<compile_context>
chip_gen: v5e
topology: v5e:2x2
jax: 0.10.0
libtpu: 0.0.40
codegen_flags: <defaults>
</compile_context>

<pallas_src>
import functools

import jax
import jax.numpy as jnp
from jax.experimental import pallas as pl
from jax.experimental.pallas import tpu as pltpu

# -------------------- model hyper-parameters (small, consistent) -----------
FILTER_LENGTH1 = 5
NUM_FILTERS = 32
VOCAB = 100
EMB_DIM = 64          # embedding width == Conv1d "length" axis (as in the reference)
SEQ_LEN = 30          # token count == Conv1d in_channels (as in the reference)
BATCH = 2


# ============================ fused Pallas kernel ===========================

def _net_fused_kernel(ids_ref, embt_ref,
                      w1_ref, b1_ref, w2_ref, b2_ref, w3_ref, b3_ref,
                      f1w_ref, f1b_ref, f2w_hbm, f2b_ref,
                      f3w_hbm, f3b_ref, f4w_ref, f4b_ref,
                      o_ref,
                      fc2_buf, fc3_buf, dma_sem,
                      *, bsz, seq, k_taps):
    """Whole forward pass in one kernel.

    ids_ref : (1, B*SEQ) int32 token ids (column j = b*SEQ + c)
    embt_ref: (EMB, VOCAB) bf16 transposed embedding table
    wN_ref  : (K, C_in, F_out) bf16 conv weights (per-tap), bN: (1, F_out) f32
    fNw     : (Din, Dout) bf16 FC weights (pre-transposed), fNb: (1, Dout) f32
    f2w/f3w : raw HBM refs (memory_space=pl.ANY), DMA'd into fc2_buf/fc3_buf
    o_ref   : (B, 1) f32
    Activations use rows = batch*length (batch b's block starts at row b*EMB),
    lanes = channels/features; tail rows past each batch's valid length are
    garbage and are never read by valid outputs.
    """
    emb_dim, vocab = embt_ref.shape

    # ---- overlap the big FC-weight DMAs with the embedding/conv compute ----
    cp_fc2 = pltpu.make_async_copy(f2w_hbm, fc2_buf, dma_sem.at[0])
    cp_fc3 = pltpu.make_async_copy(f3w_hbm, fc3_buf, dma_sem.at[1])
    cp_fc2.start()
    cp_fc3.start()

    # ---- embedding: one one-hot matmul for the whole batch -----------------
    iota_v = jax.lax.broadcasted_iota(jnp.int32, (vocab, bsz * seq), 0)
    onehot = (ids_ref[...] == iota_v).astype(jnp.bfloat16)            # (VOCAB, B*SEQ)
    emb_all = jnp.dot(embt_ref[...], onehot,
                      preferred_element_type=jnp.float32)             # (EMB, B*SEQ)
    # split per batch along lanes, stack along sublanes -> (B*EMB, SEQ) = (128, 30)
    x = jnp.concatenate(
        [emb_all[:, b * seq:(b + 1) * seq] for b in range(bsz)], axis=0)

    # ---- three conv1d + relu stages, batch folded into the sublane axis ----
    def conv_relu(xin, w_ref, b_ref):
        # xin: (R_in, C) f32 ; w_ref: (K, C, F) bf16 ; b_ref: (1, F) f32
        r_out = xin.shape[0] - (k_taps - 1)
        f_out = w_ref.shape[2]
        xb = xin.astype(jnp.bfloat16)
        acc = jnp.zeros((r_out, f_out), jnp.float32)
        for k in range(k_taps):                                       # static unroll -> MXU
            acc += jnp.dot(xb[k:k + r_out, :], w_ref[k],
                           preferred_element_type=jnp.float32)
        return jnp.maximum(acc + b_ref[...], 0.0)

    x = conv_relu(x, w1_ref, b1_ref)          # (124,  NF)
    x = conv_relu(x, w2_ref, b2_ref)          # (120, 2NF)
    x = conv_relu(x, w3_ref, b3_ref)          # (116, 3NF)

    # ---- global mean over valid length: ONE selector matmul for all batches
    r3 = x.shape[0]
    lv3 = emb_dim - 3 * (k_taps - 1)                                  # 52
    r_io = jax.lax.broadcasted_iota(jnp.int32, (bsz, r3), 1)
    b_io = jax.lax.broadcasted_iota(jnp.int32, (bsz, r3), 0)
    lo = b_io * emb_dim
    sel = ((r_io >= lo) & (r_io < lo + lv3)).astype(jnp.bfloat16)     # (B, R3) 0/1
    pooled = jnp.dot(sel, x.astype(jnp.bfloat16),
                     preferred_element_type=jnp.float32) * (1.0 / lv3)  # (B, 3NF)

    # ---- fully-connected head (dropout = identity at inference) ------------
    def fc(h, w, b):
        y = jnp.dot(h.astype(jnp.bfloat16), w,
                    preferred_element_type=jnp.float32) + b
        return jnp.maximum(y, 0.0)

    h = fc(pooled, f1w_ref[...], f1b_ref[...])     # (B, 1024)
    cp_fc2.wait()
    h = fc(h, fc2_buf[...], f2b_ref[...])          # (B, 1024)
    cp_fc3.wait()
    h = fc(h, fc3_buf[...], f3b_ref[...])          # (B, 512)
    # TODO(synk): ReLU on the regression output mirrors the (broken) reference.
    h = fc(h, f4w_ref[...], f4b_ref[...])          # (B, 1)
    o_ref[...] = h


# ============================ parameter init ================================

def init_params(key):
    ks = jax.random.split(key, 8)
    nf, k = NUM_FILTERS, FILTER_LENGTH1

    def nrm(k_, shape, scale):
        return scale * jax.random.normal(k_, shape, dtype=jnp.float32)

    def conv_prep(w):
        # torch layout (F, C, K) -> per-tap (K, C, F) bf16 for x[k:k+R] @ w[k].
        return jnp.transpose(w, (2, 1, 0)).astype(jnp.bfloat16)

    p = {}
    emb = nrm(ks[0], (VOCAB, EMB_DIM), 0.1)
    p["emb_t"] = jnp.transpose(emb).astype(jnp.bfloat16)              # (EMB, VOCAB)

    p["conv1_w"] = conv_prep(nrm(ks[1], (nf, SEQ_LEN, k), 0.05))      # (K, 30, NF)
    p["conv1_b"] = jnp.zeros((1, nf), jnp.float32)
    p["conv2_w"] = conv_prep(nrm(ks[2], (2 * nf, nf, k), 0.05))       # (K, NF, 2NF)
    p["conv2_b"] = jnp.zeros((1, 2 * nf), jnp.float32)
    p["conv3_w"] = conv_prep(nrm(ks[3], (3 * nf, 2 * nf, k), 0.05))   # (K, 2NF, 3NF)
    p["conv3_b"] = jnp.zeros((1, 3 * nf), jnp.float32)

    # FC weights stored pre-transposed as (Din, Dout) bf16; biases (1, Dout) f32.
    p["fc1_w"] = nrm(ks[4], (3 * nf, 1024), 0.05).astype(jnp.bfloat16)
    p["fc1_b"] = jnp.zeros((1, 1024), jnp.float32)
    p["fc2_w"] = nrm(ks[5], (1024, 1024), 0.02).astype(jnp.bfloat16)
    p["fc2_b"] = jnp.zeros((1, 1024), jnp.float32)
    p["fc3_w"] = nrm(ks[6], (1024, 512), 0.02).astype(jnp.bfloat16)
    p["fc3_b"] = jnp.zeros((1, 512), jnp.float32)
    p["fc4_w"] = nrm(ks[7], (512, 1), 0.02).astype(jnp.bfloat16)
    p["fc4_b"] = jnp.zeros((1, 1), jnp.float32)
    return p


# ============================ forward pass ==================================

@jax.jit
def net_forward(params, xd_input, xt_input):
    del xt_input  # unused by the reference forward as well
    bsz, seq = xd_input.shape
    ids = xd_input.reshape(1, bsz * seq).astype(jnp.int32)   # column j = b*seq + c

    kernel = functools.partial(_net_fused_kernel, bsz=bsz, seq=seq,
                               k_taps=FILTER_LENGTH1)

    vmem = pl.BlockSpec(memory_space=pltpu.MemorySpace.VMEM)
    hbm = pl.BlockSpec(memory_space=pl.ANY)

    # Advisory cost estimate (static python ints).
    nf, k = NUM_FILTERS, FILTER_LENGTH1
    r1 = bsz * EMB_DIM - (k - 1)
    r2 = r1 - (k - 1)
    r3 = r2 - (k - 1)
    flops = 2 * (EMB_DIM * VOCAB * bsz * seq
                 + k * (r1 * seq * nf + r2 * nf * 2 * nf + r3 * 2 * nf * 3 * nf)
                 + bsz * r3 * 3 * nf
                 + bsz * (3 * nf * 1024 + 1024 * 1024 + 1024 * 512 + 512))
    bytes_accessed = (sum(int(a.size) * a.dtype.itemsize
                          for a in jax.tree_util.tree_leaves(params))
                      + ids.size * 4 + bsz * 4)

    return pl.pallas_call(
        kernel,
        out_shape=jax.ShapeDtypeStruct((bsz, 1), jnp.float32),
        in_specs=[vmem, vmem,
                  vmem, vmem, vmem, vmem, vmem, vmem,
                  vmem, vmem, hbm, vmem,
                  hbm, vmem, vmem, vmem],
        out_specs=pl.BlockSpec(memory_space=pltpu.MemorySpace.VMEM),
        scratch_shapes=[pltpu.VMEM((1024, 1024), jnp.bfloat16),   # fc2 weights
                        pltpu.VMEM((1024, 512), jnp.bfloat16),    # fc3 weights
                        pltpu.SemaphoreType.DMA((2,))],
        compiler_params=pltpu.CompilerParams(
            vmem_limit_bytes=12 * 1024 * 1024),
        cost_estimate=pl.CostEstimate(flops=flops, transcendentals=0,
                                      bytes_accessed=bytes_accessed),
    )(ids, params["emb_t"],
      params["conv1_w"], params["conv1_b"],
      params["conv2_w"], params["conv2_b"],
      params["conv3_w"], params["conv3_b"],
      params["fc1_w"], params["fc1_b"],
      params["fc2_w"], params["fc2_b"],
      params["fc3_w"], params["fc3_b"],
      params["fc4_w"], params["fc4_b"])


# ============================ driver ========================================

if __name__ == "__main__":
    key = jax.random.PRNGKey(0)
    k_params, k_xd, k_xt = jax.random.split(key, 3)

    params = init_params(k_params)
    xd = jax.random.randint(k_xd, (BATCH, SEQ_LEN), 0, VOCAB, dtype=jnp.int32)
    xt = jax.random.randint(k_xt, (BATCH, SEQ_LEN), 0, VOCAB, dtype=jnp.int32)

    out = net_forward(params, xd, xt)
    out = jax.block_until_ready(out)
    assert out.shape == (BATCH, 1), out.shape
    print("KERNEL_OK")
</pallas_src>

<mosaic_0001>
module attributes {stable_mosaic.version = 11 : i64} {
  func.func @_net_fused_kernel(%arg0: memref<1x60xi32, #tpu.memory_space<vmem>>, %arg1: memref<64x100xbf16, #tpu.memory_space<vmem>>, %arg2: memref<5x30x32xbf16, #tpu.memory_space<vmem>>, %arg3: memref<1x32xf32, #tpu.memory_space<vmem>>, %arg4: memref<5x32x64xbf16, #tpu.memory_space<vmem>>, %arg5: memref<1x64xf32, #tpu.memory_space<vmem>>, %arg6: memref<5x64x96xbf16, #tpu.memory_space<vmem>>, %arg7: memref<1x96xf32, #tpu.memory_space<vmem>>, %arg8: memref<96x1024xbf16, #tpu.memory_space<vmem>>, %arg9: memref<1x1024xf32, #tpu.memory_space<vmem>>, %arg10: memref<1024x1024xbf16, #tpu.memory_space<any>>, %arg11: memref<1x1024xf32, #tpu.memory_space<vmem>>, %arg12: memref<1024x512xbf16, #tpu.memory_space<any>>, %arg13: memref<1x512xf32, #tpu.memory_space<vmem>>, %arg14: memref<512x1xbf16, #tpu.memory_space<vmem>>, %arg15: memref<1x1xf32, #tpu.memory_space<vmem>>, %arg16: memref<2x1xf32, #tpu.memory_space<vmem>>, %arg17: memref<1024x1024xbf16, #tpu.memory_space<vmem>>, %arg18: memref<1024x512xbf16, #tpu.memory_space<vmem>>, %arg19: memref<2x!tpu.dma_semaphore, #tpu.memory_space<semaphore_mem>>) attributes {dimension_semantics = [], scalar_prefetch = 0 : i64, scratch_operands = 3 : i64, tpu.core_type = #tpu.core_type<tc>} {
    %c0_i32 = arith.constant 0 : i32
    %0 = tpu.memref_slice %arg19[%c0_i32] : memref<2x!tpu.dma_semaphore, #tpu.memory_space<semaphore_mem>> -> memref<1x!tpu.dma_semaphore, #tpu.memory_space<semaphore_mem>>
    %1 = tpu.memref_squeeze %0 : memref<1x!tpu.dma_semaphore, #tpu.memory_space<semaphore_mem>> -> memref<!tpu.dma_semaphore, #tpu.memory_space<semaphore_mem>>
    tpu.enqueue_dma source(%arg10 : memref<1024x1024xbf16, #tpu.memory_space<any>>) target(%arg17 : memref<1024x1024xbf16, #tpu.memory_space<vmem>>) target_semaphore(%1 : memref<!tpu.dma_semaphore, #tpu.memory_space<semaphore_mem>>)
    %c1_i32 = arith.constant 1 : i32
    %2 = tpu.memref_slice %arg19[%c1_i32] : memref<2x!tpu.dma_semaphore, #tpu.memory_space<semaphore_mem>> -> memref<1x!tpu.dma_semaphore, #tpu.memory_space<semaphore_mem>>
    %3 = tpu.memref_squeeze %2 : memref<1x!tpu.dma_semaphore, #tpu.memory_space<semaphore_mem>> -> memref<!tpu.dma_semaphore, #tpu.memory_space<semaphore_mem>>
    tpu.enqueue_dma source(%arg12 : memref<1024x512xbf16, #tpu.memory_space<any>>) target(%arg18 : memref<1024x512xbf16, #tpu.memory_space<vmem>>) target_semaphore(%3 : memref<!tpu.dma_semaphore, #tpu.memory_space<semaphore_mem>>)
    %4 = tpu.iota {dimensions = array<i32: 0>} : vector<100x60xi32>
    %c0 = arith.constant 0 : index
    %c0_0 = arith.constant 0 : index
    %5 = vector.load %arg0[%c0, %c0_0] : memref<1x60xi32, #tpu.memory_space<vmem>>, vector<1x60xi32>
    %6 = vector.broadcast %5 : vector<1x60xi32> to vector<100x60xi32>
    %7 = arith.cmpi eq, %6, %4 : vector<100x60xi32>
    %8 = arith.extui %7 : vector<100x60xi1> to vector<100x60xi32>
    %9 = arith.sitofp %8 : vector<100x60xi32> to vector<100x60xf32>
    %10 = arith.truncf %9 : vector<100x60xf32> to vector<100x60xbf16>
    %c0_1 = arith.constant 0 : index
    %c0_2 = arith.constant 0 : index
    %11 = vector.load %arg1[%c0_1, %c0_2] : memref<64x100xbf16, #tpu.memory_space<vmem>>, vector<64x100xbf16>
    %cst = arith.constant dense<0.000000e+00> : vector<64x60xf32>
    %12 = tpu.matmul %11, %10, %cst {dimension_numbers = #tpu.dot_dimension_numbers<[1], [0], [0], [1], [0, 0, 1, 1], [], []>} : vector<64x100xbf16>, vector<100x60xbf16>, vector<64x60xf32> -> vector<64x60xf32>
    %13 = vector.extract_strided_slice %12 {offsets = [0, 0], sizes = [64, 30], strides = [1, 1]} : vector<64x60xf32> to vector<64x30xf32>
    %14 = vector.extract_strided_slice %12 {offsets = [0, 30], sizes = [64, 30], strides = [1, 1]} : vector<64x60xf32> to vector<64x30xf32>
    %15 = tpu.concatenate %13, %14 in 0 : vector<64x30xf32>, vector<64x30xf32> -> vector<128x30xf32>
    %16 = arith.truncf %15 : vector<128x30xf32> to vector<128x30xbf16>
    %cst_3 = arith.constant 0.000000e+00 : f32
    %17 = vector.broadcast %cst_3 : f32 to vector<124x32xf32>
    %18 = vector.extract_strided_slice %16 {offsets = [0, 0], sizes = [124, 30], strides = [1, 1]} : vector<128x30xbf16> to vector<124x30xbf16>
    %c0_4 = arith.constant 0 : index
    %c0_5 = arith.constant 0 : index
    %c0_6 = arith.constant 0 : index
    %19 = vector.load %arg2[%c0_4, %c0_5, %c0_6] : memref<5x30x32xbf16, #tpu.memory_space<vmem>>, vector<1x30x32xbf16>
    %20 = vector.shape_cast %19 : vector<1x30x32xbf16> to vector<30x32xbf16>
    %cst_7 = arith.constant dense<0.000000e+00> : vector<124x32xf32>
    %21 = tpu.matmul %18, %20, %cst_7 {dimension_numbers = #tpu.dot_dimension_numbers<[1], [0], [0], [1], [0, 0, 1, 1], [], []>} : vector<124x30xbf16>, vector<30x32xbf16>, vector<124x32xf32> -> vector<124x32xf32>
    %22 = arith.addf %17, %21 : vector<124x32xf32>
    %23 = vector.extract_strided_slice %16 {offsets = [1, 0], sizes = [124, 30], strides = [1, 1]} : vector<128x30xbf16> to vector<124x30xbf16>
    %c1 = arith.constant 1 : index
    %c0_8 = arith.constant 0 : index
    %c0_9 = arith.constant 0 : index
    %24 = vector.load %arg2[%c1, %c0_8, %c0_9] : memref<5x30x32xbf16, #tpu.memory_space<vmem>>, vector<1x30x32xbf16>
    %25 = vector.shape_cast %24 : vector<1x30x32xbf16> to vector<30x32xbf16>
    %cst_10 = arith.constant dense<0.000000e+00> : vector<124x32xf32>
    %26 = tpu.matmul %23, %25, %cst_10 {dimension_numbers = #tpu.dot_dimension_numbers<[1], [0], [0], [1], [0, 0, 1, 1], [], []>} : vector<124x30xbf16>, vector<30x32xbf16>, vector<124x32xf32> -> vector<124x32xf32>
    %27 = arith.addf %22, %26 : vector<124x32xf32>
    %28 = vector.extract_strided_slice %16 {offsets = [2, 0], sizes = [124, 30], strides = [1, 1]} : vector<128x30xbf16> to vector<124x30xbf16>
    %c2 = arith.constant 2 : index
    %c0_11 = arith.constant 0 : index
    %c0_12 = arith.constant 0 : index
    %29 = vector.load %arg2[%c2, %c0_11, %c0_12] : memref<5x30x32xbf16, #tpu.memory_space<vmem>>, vector<1x30x32xbf16>
    %30 = vector.shape_cast %29 : vector<1x30x32xbf16> to vector<30x32xbf16>
    %cst_13 = arith.constant dense<0.000000e+00> : vector<124x32xf32>
    %31 = tpu.matmul %28, %30, %cst_13 {dimension_numbers = #tpu.dot_dimension_numbers<[1], [0], [0], [1], [0, 0, 1, 1], [], []>} : vector<124x30xbf16>, vector<30x32xbf16>, vector<124x32xf32> -> vector<124x32xf32>
    %32 = arith.addf %27, %31 : vector<124x32xf32>
    %33 = vector.extract_strided_slice %16 {offsets = [3, 0], sizes = [124, 30], strides = [1, 1]} : vector<128x30xbf16> to vector<124x30xbf16>
    %c3 = arith.constant 3 : index
    %c0_14 = arith.constant 0 : index
    %c0_15 = arith.constant 0 : index
    %34 = vector.load %arg2[%c3, %c0_14, %c0_15] : memref<5x30x32xbf16, #tpu.memory_space<vmem>>, vector<1x30x32xbf16>
    %35 = vector.shape_cast %34 : vector<1x30x32xbf16> to vector<30x32xbf16>
    %cst_16 = arith.constant dense<0.000000e+00> : vector<124x32xf32>
    %36 = tpu.matmul %33, %35, %cst_16 {dimension_numbers = #tpu.dot_dimension_numbers<[1], [0], [0], [1], [0, 0, 1, 1], [], []>} : vector<124x30xbf16>, vector<30x32xbf16>, vector<124x32xf32> -> vector<124x32xf32>
    %37 = arith.addf %32, %36 : vector<124x32xf32>
    %38 = vector.extract_strided_slice %16 {offsets = [4, 0], sizes = [124, 30], strides = [1, 1]} : vector<128x30xbf16> to vector<124x30xbf16>
    %c4 = arith.constant 4 : index
    %c0_17 = arith.constant 0 : index
    %c0_18 = arith.constant 0 : index
    %39 = vector.load %arg2[%c4, %c0_17, %c0_18] : memref<5x30x32xbf16, #tpu.memory_space<vmem>>, vector<1x30x32xbf16>
    %40 = vector.shape_cast %39 : vector<1x30x32xbf16> to vector<30x32xbf16>
    %cst_19 = arith.constant dense<0.000000e+00> : vector<124x32xf32>
    %41 = tpu.matmul %38, %40, %cst_19 {dimension_numbers = #tpu.dot_dimension_numbers<[1], [0], [0], [1], [0, 0, 1, 1], [], []>} : vector<124x30xbf16>, vector<30x32xbf16>, vector<124x32xf32> -> vector<124x32xf32>
    %42 = arith.addf %37, %41 : vector<124x32xf32>
    %c0_20 = arith.constant 0 : index
    %c0_21 = arith.constant 0 : index
    %43 = vector.load %arg3[%c0_20, %c0_21] : memref<1x32xf32, #tpu.memory_space<vmem>>, vector<1x32xf32>
    %44 = vector.broadcast %43 : vector<1x32xf32> to vector<124x32xf32>
    %45 = arith.addf %42, %44 : vector<124x32xf32>
    %cst_22 = arith.constant 0.000000e+00 : f32
    %46 = vector.broadcast %cst_22 : f32 to vector<124x32xf32>
    %47 = arith.maximumf %45, %46 : vector<124x32xf32>
    %48 = arith.truncf %47 : vector<124x32xf32> to vector<124x32xbf16>
    %cst_23 = arith.constant 0.000000e+00 : f32
    %49 = vector.broadcast %cst_23 : f32 to vector<120x64xf32>
    %50 = vector.extract_strided_slice %48 {offsets = [0, 0], sizes = [120, 32], strides = [1, 1]} : vector<124x32xbf16> to vector<120x32xbf16>
    %c0_24 = arith.constant 0 : index
    %c0_25 = arith.constant 0 : index
    %c0_26 = arith.constant 0 : index
    %51 = vector.load %arg4[%c0_24, %c0_25, %c0_26] : memref<5x32x64xbf16, #tpu.memory_space<vmem>>, vector<1x32x64xbf16>
    %52 = vector.shape_cast %51 : vector<1x32x64xbf16> to vector<32x64xbf16>
    %cst_27 = arith.constant dense<0.000000e+00> : vector<120x64xf32>
    %53 = tpu.matmul %50, %52, %cst_27 {dimension_numbers = #tpu.dot_dimension_numbers<[1], [0], [0], [1], [0, 0, 1, 1], [], []>} : vector<120x32xbf16>, vector<32x64xbf16>, vector<120x64xf32> -> vector<120x64xf32>
    %54 = arith.addf %49, %53 : vector<120x64xf32>
    %55 = vector.extract_strided_slice %48 {offsets = [1, 0], sizes = [120, 32], strides = [1, 1]} : vector<124x32xbf16> to vector<120x32xbf16>
    %c1_28 = arith.constant 1 : index
    %c0_29 = arith.constant 0 : index
    %c0_30 = arith.constant 0 : index
    %56 = vector.load %arg4[%c1_28, %c0_29, %c0_30] : memref<5x32x64xbf16, #tpu.memory_space<vmem>>, vector<1x32x64xbf16>
    %57 = vector.shape_cast %56 : vector<1x32x64xbf16> to vector<32x64xbf16>
    %cst_31 = arith.constant dense<0.000000e+00> : vector<120x64xf32>
    %58 = tpu.matmul %55, %57, %cst_31 {dimension_numbers = #tpu.dot_dimension_numbers<[1], [0], [0], [1], [0, 0, 1, 1], [], []>} : vector<120x32xbf16>, vector<32x64xbf16>, vector<120x64xf32> -> vector<120x64xf32>
    %59 = arith.addf %54, %58 : vector<120x64xf32>
    %60 = vector.extract_strided_slice %48 {offsets = [2, 0], sizes = [120, 32], strides = [1, 1]} : vector<124x32xbf16> to vector<120x32xbf16>
    %c2_32 = arith.constant 2 : index
    %c0_33 = arith.constant 0 : index
    %c0_34 = arith.constant 0 : index
    %61 = vector.load %arg4[%c2_32, %c0_33, %c0_34] : memref<5x32x64xbf16, #tpu.memory_space<vmem>>, vector<1x32x64xbf16>
    %62 = vector.shape_cast %61 : vector<1x32x64xbf16> to vector<32x64xbf16>
    %cst_35 = arith.constant dense<0.000000e+00> : vector<120x64xf32>
    %63 = tpu.matmul %60, %62, %cst_35 {dimension_numbers = #tpu.dot_dimension_numbers<[1], [0], [0], [1], [0, 0, 1, 1], [], []>} : vector<120x32xbf16>, vector<32x64xbf16>, vector<120x64xf32> -> vector<120x64xf32>
    %64 = arith.addf %59, %63 : vector<120x64xf32>
    %65 = vector.extract_strided_slice %48 {offsets = [3, 0], sizes = [120, 32], strides = [1, 1]} : vector<124x32xbf16> to vector<120x32xbf16>
    %c3_36 = arith.constant 3 : index
    %c0_37 = arith.constant 0 : index
    %c0_38 = arith.constant 0 : index
    %66 = vector.load %arg4[%c3_36, %c0_37, %c0_38] : memref<5x32x64xbf16, #tpu.memory_space<vmem>>, vector<1x32x64xbf16>
    %67 = vector.shape_cast %66 : vector<1x32x64xbf16> to vector<32x64xbf16>
    %cst_39 = arith.constant dense<0.000000e+00> : vector<120x64xf32>
    %68 = tpu.matmul %65, %67, %cst_39 {dimension_numbers = #tpu.dot_dimension_numbers<[1], [0], [0], [1], [0, 0, 1, 1], [], []>} : vector<120x32xbf16>, vector<32x64xbf16>, vector<120x64xf32> -> vector<120x64xf32>
    %69 = arith.addf %64, %68 : vector<120x64xf32>
    %70 = vector.extract_strided_slice %48 {offsets = [4, 0], sizes = [120, 32], strides = [1, 1]} : vector<124x32xbf16> to vector<120x32xbf16>
    %c4_40 = arith.constant 4 : index
    %c0_41 = arith.constant 0 : index
    %c0_42 = arith.constant 0 : index
    %71 = vector.load %arg4[%c4_40, %c0_41, %c0_42] : memref<5x32x64xbf16, #tpu.memory_space<vmem>>, vector<1x32x64xbf16>
    %72 = vector.shape_cast %71 : vector<1x32x64xbf16> to vector<32x64xbf16>
    %cst_43 = arith.constant dense<0.000000e+00> : vector<120x64xf32>
    %73 = tpu.matmul %70, %72, %cst_43 {dimension_numbers = #tpu.dot_dimension_numbers<[1], [0], [0], [1], [0, 0, 1, 1], [], []>} : vector<120x32xbf16>, vector<32x64xbf16>, vector<120x64xf32> -> vector<120x64xf32>
    %74 = arith.addf %69, %73 : vector<120x64xf32>
    %c0_44 = arith.constant 0 : index
    %c0_45 = arith.constant 0 : index
    %75 = vector.load %arg5[%c0_44, %c0_45] : memref<1x64xf32, #tpu.memory_space<vmem>>, vector<1x64xf32>
    %76 = vector.broadcast %75 : vector<1x64xf32> to vector<120x64xf32>
    %77 = arith.addf %74, %76 : vector<120x64xf32>
    %cst_46 = arith.constant 0.000000e+00 : f32
    %78 = vector.broadcast %cst_46 : f32 to vector<120x64xf32>
    %79 = arith.maximumf %77, %78 : vector<120x64xf32>
    %80 = arith.truncf %79 : vector<120x64xf32> to vector<120x64xbf16>
    %cst_47 = arith.constant 0.000000e+00 : f32
    %81 = vector.broadcast %cst_47 : f32 to vector<116x96xf32>
    %82 = vector.extract_strided_slice %80 {offsets = [0, 0], sizes = [116, 64], strides = [1, 1]} : vector<120x64xbf16> to vector<116x64xbf16>
    %c0_48 = arith.constant 0 : index
    %c0_49 = arith.constant 0 : index
    %c0_50 = arith.constant 0 : index
    %83 = vector.load %arg6[%c0_48, %c0_49, %c0_50] : memref<5x64x96xbf16, #tpu.memory_space<vmem>>, vector<1x64x96xbf16>
    %84 = vector.shape_cast %83 : vector<1x64x96xbf16> to vector<64x96xbf16>
    %cst_51 = arith.constant dense<0.000000e+00> : vector<116x96xf32>
    %85 = tpu.matmul %82, %84, %cst_51 {dimension_numbers = #tpu.dot_dimension_numbers<[1], [0], [0], [1], [0, 0, 1, 1], [], []>} : vector<116x64xbf16>, vector<64x96xbf16>, vector<116x96xf32> -> vector<116x96xf32>
    %86 = arith.addf %81, %85 : vector<116x96xf32>
    %87 = vector.extract_strided_slice %80 {offsets = [1, 0], sizes = [116, 64], strides = [1, 1]} : vector<120x64xbf16> to vector<116x64xbf16>
    %c1_52 = arith.constant 1 : index
    %c0_53 = arith.constant 0 : index
    %c0_54 = arith.constant 0 : index
    %88 = vector.load %arg6[%c1_52, %c0_53, %c0_54] : memref<5x64x96xbf16, #tpu.memory_space<vmem>>, vector<1x64x96xbf16>
    %89 = vector.shape_cast %88 : vector<1x64x96xbf16> to vector<64x96xbf16>
    %cst_55 = arith.constant dense<0.000000e+00> : vector<116x96xf32>
    %90 = tpu.matmul %87, %89, %cst_55 {dimension_numbers = #tpu.dot_dimension_numbers<[1], [0], [0], [1], [0, 0, 1, 1], [], []>} : vector<116x64xbf16>, vector<64x96xbf16>, vector<116x96xf32> -> vector<116x96xf32>
    %91 = arith.addf %86, %90 : vector<116x96xf32>
    %92 = vector.extract_strided_slice %80 {offsets = [2, 0], sizes = [116, 64], strides = [1, 1]} : vector<120x64xbf16> to vector<116x64xbf16>
    %c2_56 = arith.constant 2 : index
    %c0_57 = arith.constant 0 : index
    %c0_58 = arith.constant 0 : index
    %93 = vector.load %arg6[%c2_56, %c0_57, %c0_58] : memref<5x64x96xbf16, #tpu.memory_space<vmem>>, vector<1x64x96xbf16>
    %94 = vector.shape_cast %93 : vector<1x64x96xbf16> to vector<64x96xbf16>
    %cst_59 = arith.constant dense<0.000000e+00> : vector<116x96xf32>
    %95 = tpu.matmul %92, %94, %cst_59 {dimension_numbers = #tpu.dot_dimension_numbers<[1], [0], [0], [1], [0, 0, 1, 1], [], []>} : vector<116x64xbf16>, vector<64x96xbf16>, vector<116x96xf32> -> vector<116x96xf32>
    %96 = arith.addf %91, %95 : vector<116x96xf32>
    %97 = vector.extract_strided_slice %80 {offsets = [3, 0], sizes = [116, 64], strides = [1, 1]} : vector<120x64xbf16> to vector<116x64xbf16>
    %c3_60 = arith.constant 3 : index
    %c0_61 = arith.constant 0 : index
    %c0_62 = arith.constant 0 : index
    %98 = vector.load %arg6[%c3_60, %c0_61, %c0_62] : memref<5x64x96xbf16, #tpu.memory_space<vmem>>, vector<1x64x96xbf16>
    %99 = vector.shape_cast %98 : vector<1x64x96xbf16> to vector<64x96xbf16>
    %cst_63 = arith.constant dense<0.000000e+00> : vector<116x96xf32>
    %100 = tpu.matmul %97, %99, %cst_63 {dimension_numbers = #tpu.dot_dimension_numbers<[1], [0], [0], [1], [0, 0, 1, 1], [], []>} : vector<116x64xbf16>, vector<64x96xbf16>, vector<116x96xf32> -> vector<116x96xf32>
    %101 = arith.addf %96, %100 : vector<116x96xf32>
    %102 = vector.extract_strided_slice %80 {offsets = [4, 0], sizes = [116, 64], strides = [1, 1]} : vector<120x64xbf16> to vector<116x64xbf16>
    %c4_64 = arith.constant 4 : index
    %c0_65 = arith.constant 0 : index
    %c0_66 = arith.constant 0 : index
    %103 = vector.load %arg6[%c4_64, %c0_65, %c0_66] : memref<5x64x96xbf16, #tpu.memory_space<vmem>>, vector<1x64x96xbf16>
    %104 = vector.shape_cast %103 : vector<1x64x96xbf16> to vector<64x96xbf16>
    %cst_67 = arith.constant dense<0.000000e+00> : vector<116x96xf32>
    %105 = tpu.matmul %102, %104, %cst_67 {dimension_numbers = #tpu.dot_dimension_numbers<[1], [0], [0], [1], [0, 0, 1, 1], [], []>} : vector<116x64xbf16>, vector<64x96xbf16>, vector<116x96xf32> -> vector<116x96xf32>
    %106 = arith.addf %101, %105 : vector<116x96xf32>
    %c0_68 = arith.constant 0 : index
    %c0_69 = arith.constant 0 : index
    %107 = vector.load %arg7[%c0_68, %c0_69] : memref<1x96xf32, #tpu.memory_space<vmem>>, vector<1x96xf32>
    %108 = vector.broadcast %107 : vector<1x96xf32> to vector<116x96xf32>
    %109 = arith.addf %106, %108 : vector<116x96xf32>
    %cst_70 = arith.constant 0.000000e+00 : f32
    %110 = vector.broadcast %cst_70 : f32 to vector<116x96xf32>
    %111 = arith.maximumf %109, %110 : vector<116x96xf32>
    %112 = tpu.iota {dimensions = array<i32: 1>} : vector<2x116xi32>
    %113 = tpu.iota {dimensions = array<i32: 0>} : vector<2x116xi32>
    %c64_i32 = arith.constant 64 : i32
    %114 = vector.broadcast %c64_i32 : i32 to vector<2x116xi32>
    %115 = arith.muli %113, %114 : vector<2x116xi32>
    %116 = arith.cmpi sge, %112, %115 : vector<2x116xi32>
    %c52_i32 = arith.constant 52 : i32
    %117 = vector.broadcast %c52_i32 : i32 to vector<2x116xi32>
    %118 = arith.addi %115, %117 : vector<2x116xi32>
    %119 = arith.cmpi slt, %112, %118 : vector<2x116xi32>
    %120 = arith.andi %116, %119 : vector<2x116xi1>
    %121 = arith.extui %120 : vector<2x116xi1> to vector<2x116xi32>
    %122 = arith.sitofp %121 : vector<2x116xi32> to vector<2x116xf32>
    %123 = arith.truncf %122 : vector<2x116xf32> to vector<2x116xbf16>
    %124 = arith.truncf %111 : vector<116x96xf32> to vector<116x96xbf16>
    %cst_71 = arith.constant dense<0.000000e+00> : vector<2x96xf32>
    %125 = tpu.matmul %123, %124, %cst_71 {dimension_numbers = #tpu.dot_dimension_numbers<[1], [0], [0], [1], [0, 0, 1, 1], [], []>} : vector<2x116xbf16>, vector<116x96xbf16>, vector<2x96xf32> -> vector<2x96xf32>
    %cst_72 = arith.constant 0.0192307699 : f32
    %126 = vector.broadcast %cst_72 : f32 to vector<2x96xf32>
    %127 = arith.mulf %125, %126 : vector<2x96xf32>
    %c0_73 = arith.constant 0 : index
    %c0_74 = arith.constant 0 : index
    %128 = vector.load %arg8[%c0_73, %c0_74] : memref<96x1024xbf16, #tpu.memory_space<vmem>>, vector<96x1024xbf16>
    %c0_75 = arith.constant 0 : index
    %c0_76 = arith.constant 0 : index
    %129 = vector.load %arg9[%c0_75, %c0_76] : memref<1x1024xf32, #tpu.memory_space<vmem>>, vector<1x1024xf32>
    %130 = arith.truncf %127 : vector<2x96xf32> to vector<2x96xbf16>
    %cst_77 = arith.constant dense<0.000000e+00> : vector<2x1024xf32>
    %131 = tpu.matmul %130, %128, %cst_77 {dimension_numbers = #tpu.dot_dimension_numbers<[1], [0], [0], [1], [0, 0, 1, 1], [], []>} : vector<2x96xbf16>, vector<96x1024xbf16>, vector<2x1024xf32> -> vector<2x1024xf32>
    %132 = vector.broadcast %129 : vector<1x1024xf32> to vector<2x1024xf32>
    %133 = arith.addf %131, %132 : vector<2x1024xf32>
    %cst_78 = arith.constant 0.000000e+00 : f32
    %134 = vector.broadcast %cst_78 : f32 to vector<2x1024xf32>
    %135 = arith.maximumf %133, %134 : vector<2x1024xf32>
    %c0_i32_79 = arith.constant 0 : i32
    %136 = tpu.memref_slice %arg19[%c0_i32_79] : memref<2x!tpu.dma_semaphore, #tpu.memory_space<semaphore_mem>> -> memref<1x!tpu.dma_semaphore, #tpu.memory_space<semaphore_mem>>
    %137 = tpu.memref_squeeze %136 : memref<1x!tpu.dma_semaphore, #tpu.memory_space<semaphore_mem>> -> memref<!tpu.dma_semaphore, #tpu.memory_space<semaphore_mem>>
    tpu.wait_dma2 semaphore(%137 : memref<!tpu.dma_semaphore, #tpu.memory_space<semaphore_mem>>) src(%arg10 : memref<1024x1024xbf16, #tpu.memory_space<any>>) dst(%arg17 : memref<1024x1024xbf16, #tpu.memory_space<vmem>>)
    %c0_80 = arith.constant 0 : index
    %c0_81 = arith.constant 0 : index
    %138 = vector.load %arg17[%c0_80, %c0_81] : memref<1024x1024xbf16, #tpu.memory_space<vmem>>, vector<1024x1024xbf16>
    %c0_82 = arith.constant 0 : index
    %c0_83 = arith.constant 0 : index
    %139 = vector.load %arg11[%c0_82, %c0_83] : memref<1x1024xf32, #tpu.memory_space<vmem>>, vector<1x1024xf32>
    %140 = arith.truncf %135 : vector<2x1024xf32> to vector<2x1024xbf16>
    %cst_84 = arith.constant dense<0.000000e+00> : vector<2x1024xf32>
    %141 = tpu.matmul %140, %138, %cst_84 {dimension_numbers = #tpu.dot_dimension_numbers<[1], [0], [0], [1], [0, 0, 1, 1], [], []>} : vector<2x1024xbf16>, vector<1024x1024xbf16>, vector<2x1024xf32> -> vector<2x1024xf32>
    %142 = vector.broadcast %139 : vector<1x1024xf32> to vector<2x1024xf32>
    %143 = arith.addf %141, %142 : vector<2x1024xf32>
    %cst_85 = arith.constant 0.000000e+00 : f32
    %144 = vector.broadcast %cst_85 : f32 to vector<2x1024xf32>
    %145 = arith.maximumf %143, %144 : vector<2x1024xf32>
    %c1_i32_86 = arith.constant 1 : i32
    %146 = tpu.memref_slice %arg19[%c1_i32_86] : memref<2x!tpu.dma_semaphore, #tpu.memory_space<semaphore_mem>> -> memref<1x!tpu.dma_semaphore, #tpu.memory_space<semaphore_mem>>
    %147 = tpu.memref_squeeze %146 : memref<1x!tpu.dma_semaphore, #tpu.memory_space<semaphore_mem>> -> memref<!tpu.dma_semaphore, #tpu.memory_space<semaphore_mem>>
    tpu.wait_dma2 semaphore(%147 : memref<!tpu.dma_semaphore, #tpu.memory_space<semaphore_mem>>) src(%arg12 : memref<1024x512xbf16, #tpu.memory_space<any>>) dst(%arg18 : memref<1024x512xbf16, #tpu.memory_space<vmem>>)
    %c0_87 = arith.constant 0 : index
    %c0_88 = arith.constant 0 : index
    %148 = vector.load %arg18[%c0_87, %c0_88] : memref<1024x512xbf16, #tpu.memory_space<vmem>>, vector<1024x512xbf16>
    %c0_89 = arith.constant 0 : index
    %c0_90 = arith.constant 0 : index
    %149 = vector.load %arg13[%c0_89, %c0_90] : memref<1x512xf32, #tpu.memory_space<vmem>>, vector<1x512xf32>
    %150 = arith.truncf %145 : vector<2x1024xf32> to vector<2x1024xbf16>
    %cst_91 = arith.constant dense<0.000000e+00> : vector<2x512xf32>
    %151 = tpu.matmul %150, %148, %cst_91 {dimension_numbers = #tpu.dot_dimension_numbers<[1], [0], [0], [1], [0, 0, 1, 1], [], []>} : vector<2x1024xbf16>, vector<1024x512xbf16>, vector<2x512xf32> -> vector<2x512xf32>
    %152 = vector.broadcast %149 : vector<1x512xf32> to vector<2x512xf32>
    %153 = arith.addf %151, %152 : vector<2x512xf32>
    %cst_92 = arith.constant 0.000000e+00 : f32
    %154 = vector.broadcast %cst_92 : f32 to vector<2x512xf32>
    %155 = arith.maximumf %153, %154 : vector<2x512xf32>
    %c0_93 = arith.constant 0 : index
    %c0_94 = arith.constant 0 : index
    %156 = vector.load %arg14[%c0_93, %c0_94] : memref<512x1xbf16, #tpu.memory_space<vmem>>, vector<512x1xbf16>
    %c0_95 = arith.constant 0 : index
    %c0_96 = arith.constant 0 : index
    %157 = vector.load %arg15[%c0_95, %c0_96] : memref<1x1xf32, #tpu.memory_space<vmem>>, vector<1x1xf32>
    %158 = arith.truncf %155 : vector<2x512xf32> to vector<2x512xbf16>
    %cst_97 = arith.constant dense<0.000000e+00> : vector<2x1xf32>
    %159 = tpu.matmul %158, %156, %cst_97 {dimension_numbers = #tpu.dot_dimension_numbers<[1], [0], [0], [1], [0, 0, 1, 1], [], []>} : vector<2x512xbf16>, vector<512x1xbf16>, vector<2x1xf32> -> vector<2x1xf32>
    %160 = vector.broadcast %157 : vector<1x1xf32> to vector<2x1xf32>
    %161 = arith.addf %159, %160 : vector<2x1xf32>
    %cst_98 = arith.constant 0.000000e+00 : f32
    %162 = vector.broadcast %cst_98 : f32 to vector<2x1xf32>
    %163 = arith.maximumf %161, %162 : vector<2x1xf32>
    %c0_99 = arith.constant 0 : index
    %c0_100 = arith.constant 0 : index
    %164 = vector.load %arg16[%c0_99, %c0_100] : memref<2x1xf32, #tpu.memory_space<vmem>>, vector<2x1xf32>
    tpu.vector_store %arg16[%c0_99, %c0_100], %163 {strides = array<i32>} : memref<2x1xf32, #tpu.memory_space<vmem>>, vector<2x1xf32>,
    return
  }
}

</mosaic_0001>

<llo_original>
// kernel: net_forward.1
$region0: #{net_forward.1}
  #allocation0 [shape = 'u32[]', space=smem, size = 0x4, offset = 0x4, fixed_abs, tag = 'smem constant byte address 0x4 - core index']
  #allocation1 [shape = 'u32[72,128]{1,0:T(1,128)}', space=vmem, size = 0x9000, scoped, tag = 'internal scratch']
  #allocation2 [shape = 'bf16[1024,1024]{1,0:T(8,128)(2,1)}', space=vmem, size = 0x200000, scoped, tag = 'scratch operand']
  #allocation3 [shape = 'bf16[1024,512]{1,0:T(8,128)(2,1)}', space=vmem, size = 0x100000, scoped, tag = 'scratch operand']
  #allocation4 [shape = 's32[2]{0}', space=sflag, size = 0x8, scoped, tag = 'scratch operand']
  #allocation5 [shape = 'f32[1,1]{1,0:T(1,128)S(1)}', space=vmem, size = 0x200, scoped, tag = 'scoped memory for net_forward.1']
  #allocation23 [shape = 's32[]', space=sflag, size = 0x4, offset = 0, fixed_abs, tag = 'sflag constant byte address 0x0 - dummy sync flag']
  #allocation24 [shape = 's32[]', space=sflag, size = 0x4, offset = 0, fixed_abs, tag = 'sflag constant byte address 0x0 - dummy sync flag']
  #allocation25 [shape = 'u32[]', space=smem, size = 0x4, offset = 0x44, fixed_abs, tag = 'smem constant byte address 0x44 - assertion arg 0']
  #allocation26 [shape = 'u32[]', space=smem, size = 0x4, offset = 0x48, fixed_abs, tag = 'smem constant byte address 0x48 - assertion arg 1']
  #allocation27 [shape = 's32[]', space=sflag, size = 0x4, offset = 0, fixed_abs, tag = 'sflag constant byte address 0x0 - dummy sync flag']
  #allocation28 [shape = 's32[]', space=sflag, size = 0x4, offset = 0, fixed_abs, tag = 'sflag constant byte address 0x0 - dummy sync flag']
  %s0 = inlined_call_operand.vmem [shape: s32[1,60], index: 0, kind: input, shape index: {}]
  %s1 = inlined_call_operand.hbm [shape: bf16[64,100], index: 1, kind: input, shape index: {}]
  %s2 = inlined_call_operand.hbm [shape: bf16[5,30,32], index: 2, kind: input, shape index: {}]
  %s3 = inlined_call_operand.hbm [shape: f32[1,32], index: 3, kind: input, shape index: {}]
  %s4 = inlined_call_operand.hbm [shape: bf16[5,32,64], index: 4, kind: input, shape index: {}]
  %s5 = inlined_call_operand.hbm [shape: f32[1,64], index: 5, kind: input, shape index: {}]
  %s6 = inlined_call_operand.hbm [shape: bf16[5,64,96], index: 6, kind: input, shape index: {}]
  %s7 = inlined_call_operand.hbm [shape: f32[1,96], index: 7, kind: input, shape index: {}]
  %s8 = inlined_call_operand.hbm [shape: bf16[96,1024], index: 8, kind: input, shape index: {}]
  %s9 = inlined_call_operand.hbm [shape: f32[1,1024], index: 9, kind: input, shape index: {}]
  %s10 = inlined_call_operand.hbm [shape: bf16[1024,1024], index: 10, kind: input, shape index: {}]
  %s11 = inlined_call_operand.hbm [shape: f32[1,1024], index: 11, kind: input, shape index: {}]
  %s12 = inlined_call_operand.hbm [shape: bf16[1024,512], index: 12, kind: input, shape index: {}]
  %s13 = inlined_call_operand.hbm [shape: f32[1,512], index: 13, kind: input, shape index: {}]
  %s14 = inlined_call_operand.vmem [shape: bf16[512,1], index: 14, kind: input, shape index: {}]
  %s15 = inlined_call_operand.<no memory space> [shape: f32[1,1], index: 15, kind: input, shape index: {}]
  %s16 = inlined_call_operand.vmem [shape: f32[2,1], index: 16, kind: output, shape index: {}]
  %s17 = sld [smem:[#allocation0]]
  $region118: #{net_forward.1} parent=0
    _
  %s19 = ssub.s32 1, %s17
  %s20 = scalar_select 0, %s19, %s17
  %v21 = vstv %s15
  %22 = vst [vmem:[#allocation5] sm:$0x1] %v21
  $region1: #{net_forward.1} parent=0
    #allocation6 [shape = 'u8[16384]{0}', space=vmem, size = 0x4000, scoped, tag = 'input window, operand 1, single buffered']
    #allocation7 [shape = 's32[1]{0}', space=sflag, size = 0x4, scoped, tag = 'scoped memory for net_forward.1']
    #allocation8 [shape = 'u8[40960]{0}', space=vmem, size = 0xa000, scoped, tag = 'input window, operand 2, single buffered']
    #allocation9 [shape = 's32[1]{0}', space=sflag, size = 0x4, scoped, tag = 'scoped memory for net_forward.1']
    #allocation10 [shape = 'u8[512]{0}', space=vmem, size = 0x400, scoped, tag = 'input window, operand 3, single buffered']
    #allocation11 [shape = 'u8[40960]{0}', space=vmem, size = 0xa000, scoped, tag = 'input window, operand 4, single buffered']
    #allocation12 [shape = 's32[1]{0}', space=sflag, size = 0x4, scoped, tag = 'scoped memory for net_forward.1']
    #allocation13 [shape = 'u8[512]{0}', space=vmem, size = 0x400, scoped, tag = 'input window, operand 5, single buffered']
    #allocation14 [shape = 'u8[81920]{0}', space=vmem, size = 0x14000, scoped, tag = 'input window, operand 6, single buffered']
    #allocation15 [shape = 's32[1]{0}', space=sflag, size = 0x4, scoped, tag = 'scoped memory for net_forward.1']
    #allocation16 [shape = 'u8[512]{0}', space=vmem, size = 0x400, scoped, tag = 'input window, operand 7, single buffered']
    #allocation17 [shape = 'u8[196608]{0}', space=vmem, size = 0x30000, scoped, tag = 'input window, operand 8, single buffered']
    #allocation18 [shape = 's32[1]{0}', space=sflag, size = 0x4, scoped, tag = 'scoped memory for net_forward.1']
    #allocation19 [shape = 'u8[4096]{0}', space=vmem, size = 0x1000, scoped, tag = 'input window, operand 9, single buffered']
    #allocation20 [shape = 'u8[4096]{0}', space=vmem, size = 0x1000, scoped, tag = 'input window, operand 11, single buffered']
    #allocation21 [shape = 's32[1]{0}', space=sflag, size = 0x4, scoped, tag = 'scoped memory for net_forward.1']
    #allocation22 [shape = 'u8[2048]{0}', space=vmem, size = 0x800, scoped, tag = 'input window, operand 13, single buffered']
    %23 = vsyncpa [#allocation7], 0
    %24 = vsyncpa [#allocation9], 0
    %25 = vsyncpa [#allocation12], 0
    %26 = vsyncpa [#allocation15], 0
    %27 = vsyncpa [#allocation18], 0
    %28 = vsyncpa [#allocation21], 0
    // Predicated region
    $region2: #{net_forward.1} parent=1 // pred_check
      _
    $region3: #{net_forward.1} parent=1 // pred_check_branch
      %30 = sbr.rel (0) target = $region5
    $region4: #{net_forward.1} parent=1 // pred_region
      _
    $region5: #{net_forward.1} parent=1 // pred_fallthru
      _
    // Predicated region
    $region6: #{net_forward.1} parent=1 // pred_check
      _
    $region7: #{net_forward.1} parent=1 // pred_check_branch
      %32 = sbr.rel (0) target = $region9
    $region8: #{net_forward.1} parent=1 // pred_region
      %34 = vsyncadd [#allocation7], 0
      %s35 = sshll.u32 %s1, 4
      %s36 = int_to_ptr.hbm [resolvable:$true] %s35
      %s37 = sshll.u32 [#allocation6], 4
      %s38 = int_to_ptr.vmem [resolvable:$true] %s37
      %43 = dma.hbm_to_vmem [thread:$0]  %s36, 512, %s38, [#allocation7], 64, 64, 4
    $region9: #{net_forward.1} parent=1 // pred_fallthru
      _
    // Predicated region
    $region10: #{net_forward.1} parent=1 // pred_check
      _
    $region11: #{net_forward.1} parent=1 // pred_check_branch
      %45 = sbr.rel (0) target = $region13
    $region12: #{net_forward.1} parent=1 // pred_region
      %47 = vsyncadd [#allocation9], 0
      %s48 = sshll.u32 %s2, 4
      %s49 = int_to_ptr.hbm [resolvable:$true] %s48
      %s50 = sshll.u32 [#allocation8], 4
      %s51 = int_to_ptr.vmem [resolvable:$true] %s50
      %56 = dma.hbm_to_vmem [thread:$0]  %s49, 1280, %s51, [#allocation9], 64, 64, 4
    $region13: #{net_forward.1} parent=1 // pred_fallthru
      _
    // Predicated region
    $region14: #{net_forward.1} parent=1 // pred_check
      _
    $region15: #{net_forward.1} parent=1 // pred_check_branch
      %58 = sbr.rel (0) target = $region17
    $region16: #{net_forward.1} parent=1 // pred_region
      %60 = vsyncadd [#allocation9], 0
      %s62 = sshll.u32 %s3, 4
      %s63 = int_to_ptr.hbm [resolvable:$true] %s62
      %s64 = sshll.u32 [#allocation10], 4
      %s65 = int_to_ptr.vmem [resolvable:$true] %s64
      %67 = dma.hbm_to_vmem [thread:$0]  %s63, 16, %s65, [#allocation9]
    $region17: #{net_forward.1} parent=1 // pred_fallthru
      _
    // Predicated region
    $region18: #{net_forward.1} parent=1 // pred_check
      _
    $region19: #{net_forward.1} parent=1 // pred_check_branch
      %69 = sbr.rel (0) target = $region21
    $region20: #{net_forward.1} parent=1 // pred_region
      %71 = vsyncadd [#allocation12], 0
      %s72 = sshll.u32 %s4, 4
      %s73 = int_to_ptr.hbm [resolvable:$true] %s72
      %s74 = sshll.u32 [#allocation11], 4
      %s75 = int_to_ptr.vmem [resolvable:$true] %s74
      %80 = dma.hbm_to_vmem [thread:$0]  %s73, 1280, %s75, [#allocation12], 64, 64, 4
    $region21: #{net_forward.1} parent=1 // pred_fallthru
      _
    // Predicated region
    $region22: #{net_forward.1} parent=1 // pred_check
      _
    $region23: #{net_forward.1} parent=1 // pred_check_branch
      %82 = sbr.rel (0) target = $region25
    $region24: #{net_forward.1} parent=1 // pred_region
      %84 = vsyncadd [#allocation12], 0
      %s86 = sshll.u32 %s5, 4
      %s87 = int_to_ptr.hbm [resolvable:$true] %s86
      %s88 = sshll.u32 [#allocation13], 4
      %s89 = int_to_ptr.vmem [resolvable:$true] %s88
      %91 = dma.hbm_to_vmem [thread:$0]  %s87, 16, %s89, [#allocation12]
    $region25: #{net_forward.1} parent=1 // pred_fallthru
      _
    // Predicated region
    $region26: #{net_forward.1} parent=1 // pred_check
      _
    $region27: #{net_forward.1} parent=1 // pred_check_branch
      %93 = sbr.rel (0) target = $region29
    $region28: #{net_forward.1} parent=1 // pred_region
      %95 = vsyncadd [#allocation15], 0
      %s96 = sshll.u32 %s6, 4
      %s97 = int_to_ptr.hbm [resolvable:$true] %s96
      %s98 = sshll.u32 [#allocation14], 4
      %s99 = int_to_ptr.vmem [resolvable:$true] %s98
      %104 = dma.hbm_to_vmem [thread:$0]  %s97, 2560, %s99, [#allocation15], 64, 64, 4
    $region29: #{net_forward.1} parent=1 // pred_fallthru
      _
    // Predicated region
    $region30: #{net_forward.1} parent=1 // pred_check
      _
    $region31: #{net_forward.1} parent=1 // pred_check_branch
      %106 = sbr.rel (0) target = $region33
    $region32: #{net_forward.1} parent=1 // pred_region
      %108 = vsyncadd [#allocation15], 0
      %s110 = sshll.u32 %s7, 4
      %s111 = int_to_ptr.hbm [resolvable:$true] %s110
      %s112 = sshll.u32 [#allocation16], 4
      %s113 = int_to_ptr.vmem [resolvable:$true] %s112
      %115 = dma.hbm_to_vmem [thread:$0]  %s111, 16, %s113, [#allocation15]
    $region33: #{net_forward.1} parent=1 // pred_fallthru
      _
    // Predicated region
    $region34: #{net_forward.1} parent=1 // pred_check
      _
    $region35: #{net_forward.1} parent=1 // pred_check_branch
      %117 = sbr.rel (0) target = $region37
    $region36: #{net_forward.1} parent=1 // pred_region
      %119 = vsyncadd [#allocation18], 0
      %s120 = sshll.u32 %s8, 4
      %s121 = int_to_ptr.hbm [resolvable:$true] %s120
      %s122 = sshll.u32 [#allocation17], 4
      %s123 = int_to_ptr.vmem [resolvable:$true] %s122
      %128 = dma.hbm_to_vmem [thread:$0]  %s121, 6144, %s123, [#allocation18], 512, 512, 32
    $region37: #{net_forward.1} parent=1 // pred_fallthru
      _
    // Predicated region
    $region38: #{net_forward.1} parent=1 // pred_check
      _
    $region39: #{net_forward.1} parent=1 // pred_check_branch
      %130 = sbr.rel (0) target = $region41
    $region40: #{net_forward.1} parent=1 // pred_region
      %132 = vsyncadd [#allocation18], 0
      %s134 = sshll.u32 %s9, 4
      %s135 = int_to_ptr.hbm [resolvable:$true] %s134
      %s136 = sshll.u32 [#allocation19], 4
      %s137 = int_to_ptr.vmem [resolvable:$true] %s136
      %139 = dma.hbm_to_vmem [thread:$0]  %s135, 128, %s137, [#allocation18]
    $region41: #{net_forward.1} parent=1 // pred_fallthru
      _
    // Predicated region
    $region42: #{net_forward.1} parent=1 // pred_check
      _
    $region43: #{net_forward.1} parent=1 // pred_check_branch
      %141 = sbr.rel (0) target = $region45
    $region44: #{net_forward.1} parent=1 // pred_region
      %143 = vsyncadd [#allocation21], 0
      %s145 = sshll.u32 %s11, 4
      %s146 = int_to_ptr.hbm [resolvable:$true] %s145
      %s147 = sshll.u32 [#allocation20], 4
      %s148 = int_to_ptr.vmem [resolvable:$true] %s147
      %150 = dma.hbm_to_vmem [thread:$0]  %s146, 128, %s148, [#allocation21]
    $region45: #{net_forward.1} parent=1 // pred_fallthru
      _
    // Predicated region
    $region46: #{net_forward.1} parent=1 // pred_check
      _
    $region47: #{net_forward.1} parent=1 // pred_check_branch
      %152 = sbr.rel (0) target = $region49
    $region48: #{net_forward.1} parent=1 // pred_region
      %154 = vsyncadd [#allocation21], 0
      %s156 = sshll.u32 %s13, 4
      %s157 = int_to_ptr.hbm [resolvable:$true] %s156
      %s158 = sshll.u32 [#allocation22], 4
      %s159 = int_to_ptr.vmem [resolvable:$true] %s158
      %161 = dma.hbm_to_vmem [thread:$0]  %s157, 64, %s159, [#allocation21]
    $region49: #{net_forward.1} parent=1 // pred_fallthru
      _
    // Predicated region
    $region50: #{net_forward.1} parent=1 // pred_check
      _
    $region51: #{net_forward.1} parent=1 // pred_check_branch
      %163 = sbr.rel (0) target = $region53
    $region52: #{net_forward.1} parent=1 // pred_region
      _
    $region53: #{net_forward.1} parent=1 // pred_fallthru
      _
    // Predicated region
    $region54: #{net_forward.1} parent=1 // pred_check
      _
    $region55: #{net_forward.1} parent=1 // pred_check_branch
      %165 = sbr.rel (0) target = $region57
    $region56: #{net_forward.1} parent=1 // pred_region
      _
    $region57: #{net_forward.1} parent=1 // pred_fallthru
      _
    // Predicated region
    $region58: #{net_forward.1} parent=1 // pred_check
      _
    $region59: #{net_forward.1} parent=1 // pred_check_branch
      %167 = sbr.rel (0) target = $region61
    $region60: #{net_forward.1} parent=1 // pred_region
      %169 = dma.done [#allocation7], 512
    $region61: #{net_forward.1} parent=1 // pred_fallthru
      _
    // Predicated region
    $region62: #{net_forward.1} parent=1 // pred_check
      _
    $region63: #{net_forward.1} parent=1 // pred_check_branch
      %171 = sbr.rel (0) target = $region65
    $region64: #{net_forward.1} parent=1 // pred_region
      %173 = dma.done [#allocation9], 1280
    $region65: #{net_forward.1} parent=1 // pred_fallthru
      _
    // Predicated region
    $region66: #{net_forward.1} parent=1 // pred_check
      _
    $region67: #{net_forward.1} parent=1 // pred_check_branch
      %175 = sbr.rel (0) target = $region69
    $region68: #{net_forward.1} parent=1 // pred_region
      %177 = dma.done [#allocation9], 16
    $region69: #{net_forward.1} parent=1 // pred_fallthru
      _
    // Predicated region
    $region70: #{net_forward.1} parent=1 // pred_check
      _
    $region71: #{net_forward.1} parent=1 // pred_check_branch
      %179 = sbr.rel (0) target = $region73
    $region72: #{net_forward.1} parent=1 // pred_region
      %181 = dma.done [#allocation12], 1280
    $region73: #{net_forward.1} parent=1 // pred_fallthru
      _
    // Predicated region
    $region74: #{net_forward.1} parent=1 // pred_check
      _
    $region75: #{net_forward.1} parent=1 // pred_check_branch
      %183 = sbr.rel (0) target = $region77
    $region76: #{net_forward.1} parent=1 // pred_region
      %185 = dma.done [#allocation12], 16
    $region77: #{net_forward.1} parent=1 // pred_fallthru
      _
    // Predicated region
    $region78: #{net_forward.1} parent=1 // pred_check
      _
    $region79: #{net_forward.1} parent=1 // pred_check_branch
      %187 = sbr.rel (0) target = $region81
    $region80: #{net_forward.1} parent=1 // pred_region
      %189 = dma.done [#allocation15], 2560
    $region81: #{net_forward.1} parent=1 // pred_fallthru
      _
    // Predicated region
    $region82: #{net_forward.1} parent=1 // pred_check
      _
    $region83: #{net_forward.1} parent=1 // pred_check_branch
      %191 = sbr.rel (0) target = $region85
    $region84: #{net_forward.1} parent=1 // pred_region
      %193 = dma.done [#allocation15], 16
    $region85: #{net_forward.1} parent=1 // pred_fallthru
      _
    // Predicated region
    $region86: #{net_forward.1} parent=1 // pred_check
      _
    $region87: #{net_forward.1} parent=1 // pred_check_branch
      %195 = sbr.rel (0) target = $region89
    $region88: #{net_forward.1} parent=1 // pred_region
      %197 = dma.done [#allocation18], 6144
    $region89: #{net_forward.1} parent=1 // pred_fallthru
      _
    // Predicated region
    $region90: #{net_forward.1} parent=1 // pred_check
      _
    $region91: #{net_forward.1} parent=1 // pred_check_branch
      %199 = sbr.rel (0) target = $region93
    $region92: #{net_forward.1} parent=1 // pred_region
      %201 = dma.done [#allocation18], 128
    $region93: #{net_forward.1} parent=1 // pred_fallthru
      _
    // Predicated region
    $region94: #{net_forward.1} parent=1 // pred_check
      _
    $region95: #{net_forward.1} parent=1 // pred_check_branch
      %203 = sbr.rel (0) target = $region97
    $region96: #{net_forward.1} parent=1 // pred_region
      %205 = dma.done [#allocation21], 128
    $region97: #{net_forward.1} parent=1 // pred_fallthru
      _
    // Predicated region
    $region98: #{net_forward.1} parent=1 // pred_check
      _
    $region99: #{net_forward.1} parent=1 // pred_check_branch
      %207 = sbr.rel (0) target = $region101
    $region100: #{net_forward.1} parent=1 // pred_region
      %209 = dma.done [#allocation21], 64
    $region101: #{net_forward.1} parent=1 // pred_fallthru
      _
    // Predicated region
    $region102: #{net_forward.1} parent=1 // pred_check
      _
    $region103: #{net_forward.1} parent=1 // pred_check_branch
      %212 = sbr.rel target = $region105
    $region104: #{net_forward.1} parent=1 // pred_region
      %213 = sst [smem:[#allocation25]] [#allocation24]
      %214 = sst [smem:[#allocation26]] [#allocation23]
    $region105: #{net_forward.1} parent=1 // pred_fallthru
      _
    %216 = shalt.err (0)
    %s218 = sshll.u32 %s10, 4
    %s219 = int_to_ptr.hbm [resolvable:$true] %s218
    %s220 = sshll.u32 [#allocation2], 4
    %s221 = int_to_ptr.vmem [resolvable:$true] %s220
    %223 = dma.hbm_to_vmem [thread:$0]  %s219, 65536, %s221, [#allocation4]
    %s224 = scalar_lea.sflag [#allocation4], 1
    // Predicated region
    $region106: #{net_forward.1} parent=1 // pred_check
      _
    $region107: #{net_forward.1} parent=1 // pred_check_branch
      %226 = sbr.rel target = $region109
    $region108: #{net_forward.1} parent=1 // pred_region
      %227 = sst [smem:[#allocation25]] [#allocation28]
      %228 = sst [smem:[#allocation26]] [#allocation27]
    $region109: #{net_forward.1} parent=1 // pred_fallthru
      _
    %230 = shalt.err (0)
    %s232 = sshll.u32 %s12, 4
    %s233 = int_to_ptr.hbm [resolvable:$true] %s232
    %s234 = sshll.u32 [#allocation3], 4
    %s235 = int_to_ptr.vmem [resolvable:$true] %s234
    %237 = dma.hbm_to_vmem [thread:$0]  %s233, 32768, %s235, %s224
    %v238 = vlaneseq
    %v239 = vshrl.u32 %v238, 7
    %v240 = vadd.s32 %v239, 8
    %v241 = vadd.s32 %v239, 16
    %v242 = vadd.s32 %v239, 24
    %v243 = vadd.s32 %v239, 32
    %v244 = vadd.s32 %v239, 40
    %v245 = vadd.s32 %v239, 48
    %v246 = vadd.s32 %v239, 56
    %v247 = vadd.s32 %v239, 64
    %v248 = vadd.s32 %v239, 72
    %v249 = vadd.s32 %v239, 80
    %v250 = vadd.s32 %v239, 88
    %v251 = vadd.s32 %v239, 96
    %v252 = vld [vmem:[%s0] sm:$0x1]
    %v253 = vperm.slane %v252, 0
    %vm254 = vcmp.eq.s32.totalorder %v253, %v239
    %vm255 = vcmp.eq.s32.totalorder %v253, %v240
    %vm256 = vcmp.eq.s32.totalorder %v253, %v241
    %vm257 = vcmp.eq.s32.totalorder %v253, %v242
    %vm258 = vcmp.eq.s32.totalorder %v253, %v243
    %vm259 = vcmp.eq.s32.totalorder %v253, %v244
    %vm260 = vcmp.eq.s32.totalorder %v253, %v245
    %vm261 = vcmp.eq.s32.totalorder %v253, %v246
    %vm262 = vcmp.eq.s32.totalorder %v253, %v247
    %vm263 = vcmp.eq.s32.totalorder %v253, %v248
    %vm264 = vcmp.eq.s32.totalorder %v253, %v249
    %vm265 = vcmp.eq.s32.totalorder %v253, %v250
    %vm266 = vcmp.eq.s32.totalorder %v253, %v251
    %v267 = vsel %vm254, 1, 0
    %v268 = vsel %vm255, 1, 0
    %v269 = vsel %vm256, 1, 0
    %v270 = vsel %vm257, 1, 0
    %v271 = vsel %vm258, 1, 0
    %v272 = vsel %vm259, 1, 0
    %v273 = vsel %vm260, 1, 0
    %v274 = vsel %vm261, 1, 0
    %v275 = vsel %vm262, 1, 0
    %v276 = vsel %vm263, 1, 0
    %v277 = vsel %vm264, 1, 0
    %v278 = vsel %vm265, 1, 0
    %v279 = vsel %vm266, 1, 0
    %v280 = vcvt.s32.f32 %v267
    %v281 = vcvt.s32.f32 %v268
    %v282 = vcvt.s32.f32 %v269
    %v283 = vcvt.s32.f32 %v270
    %v284 = vcvt.s32.f32 %v271
    %v285 = vcvt.s32.f32 %v272
    %v286 = vcvt.s32.f32 %v273
    %v287 = vcvt.s32.f32 %v274
    %v288 = vcvt.s32.f32 %v275
    %v289 = vcvt.s32.f32 %v276
    %v290 = vcvt.s32.f32 %v277
    %v291 = vcvt.s32.f32 %v278
    %v292 = vcvt.s32.f32 %v279
    %v293 = vpack.c.bf16 %v281, %v280
    %v294 = vpack.c.bf16 %v283, %v282
    %v295 = vpack.c.bf16 %v285, %v284
    %v296 = vpack.c.bf16 %v287, %v286
    %v297 = vpack.c.bf16 %v289, %v288
    %v298 = vpack.c.bf16 %v291, %v290
    %v299 = vpack.c.bf16 %v292, %v292
    %v300 = vld [vmem:[#allocation6] sm:$0xf]
    %v301 = vld [vmem:[#allocation6 + $0x4] sm:$0xf]
    %v302 = vld [vmem:[#allocation6 + $0x8] sm:$0xf]
    %v303 = vld [vmem:[#allocation6 + $0xc] sm:$0xf]
    %v304 = vld [vmem:[#allocation6 + $0x10] sm:$0xf]
    %v305 = vld [vmem:[#allocation6 + $0x14] sm:$0xf]
    %v306 = vld [vmem:[#allocation6 + $0x18] sm:$0xf]
    %v307 = vld [vmem:[#allocation6 + $0x1c] sm:$0xf]
    %v316 = vunpack.c.l.b16 %v300
    %v317 = vunpack.c.l.b16 %v301
    %v318 = vunpack.c.l.b16 %v302
    %v319 = vunpack.c.l.b16 %v303
    %v320 = vunpack.c.l.b16 %v304
    %v321 = vunpack.c.l.b16 %v305
    %v322 = vunpack.c.l.b16 %v306
    %v323 = vunpack.c.l.b16 %v307
    %v324 = vpack.c.b16 %v317, %v316
    %v325 = vpack.c.b16 %v319, %v318
    %v326 = vpack.c.b16 %v321, %v320
    %v327 = vpack.c.b16 %v323, %v322
    %vm328 = vcmask 818176
    %v330 = vsel %vm328, %v324, 0
    %v333 = vsel %vm328, %v325, 0
    %v336 = vsel %vm328, %v326, 0
    %v339 = vsel %vm328, %v327, 0
    %vm341 = vcmask 1041408
    %v343 = vsel %vm341, %v299, 0
    %345 = vmatpush.bf16.msra.mxu0 0
    %346 = vmatpush.bf16.msra.mxu0 %v343
    %347 = vmatpush.bf16.msra.mxu0 %v298
    %348 = vmatpush.bf16.msra.mxu0 %v297
    %349 = vmatpush.bf16.msra.mxu0 %v296
    %350 = vmatpush.bf16.msra.mxu0 %v295
    %351 = vmatpush.bf16.msra.mxu0 %v294
    %352 = vmatpush.bf16.msra.mxu0 %v293
    %353 = vmatmul.bf16.gmra.mxu0 %v330
    %v354 = vpop.f32.mrf.mxu0
    %v355 = vadd.f32 0.0, %v354
    %v356 = vpop.f32.mrf.mxu0
    %v357 = vadd.f32 0.0, %v356
    %358 = vmatmul.bf16.gmra.mxu0 %v333
    %v359 = vpop.f32.mrf.mxu0
    %v360 = vadd.f32 0.0, %v359
    %v361 = vpop.f32.mrf.mxu0
    %v362 = vadd.f32 0.0, %v361
    %363 = vmatmul.bf16.gmra.mxu0 %v336
    %v364 = vpop.f32.mrf.mxu0
    %v365 = vadd.f32 0.0, %v364
    %v366 = vpop.f32.mrf.mxu0
    %v367 = vadd.f32 0.0, %v366
    %368 = vmatmul.bf16.gmra.mxu0 %v339
    %v369 = vpop.f32.mrf.mxu0
    %v370 = vadd.f32 0.0, %v369
    %v371 = vpop.f32.mrf.mxu0
    %v372 = vadd.f32 0.0, %v371
    %373 = vdwg.mxu0
    %382 = vrot.lane.b32.xlu0 %v355, 98
    %v383 = vpop.permute.xlu0 %382
    %384 = vrot.lane.b32.xlu0 %v357, 98
    %v385 = vpop.permute.xlu0 %384
    %386 = vrot.lane.b32.xlu0 %v360, 98
    %v387 = vpop.permute.xlu0 %386
    %388 = vrot.lane.b32.xlu0 %v362, 98
    %v389 = vpop.permute.xlu0 %388
    %390 = vrot.lane.b32.xlu0 %v365, 98
    %v391 = vpop.permute.xlu0 %390
    %392 = vrot.lane.b32.xlu0 %v367, 98
    %v393 = vpop.permute.xlu0 %392
    %394 = vrot.lane.b32.xlu0 %v370, 98
    %v395 = vpop.permute.xlu0 %394
    %396 = vrot.lane.b32.xlu0 %v372, 98
    %v397 = vpop.permute.xlu0 %396
    %v406 = vpack.c.bf16 %v355, %v355
    %v407 = vpack.c.bf16 %v357, %v357
    %v408 = vpack.c.bf16 %v360, %v360
    %v409 = vpack.c.bf16 %v362, %v362
    %v410 = vpack.c.bf16 %v365, %v365
    %v411 = vpack.c.bf16 %v367, %v367
    %v412 = vpack.c.bf16 %v370, %v370
    %v413 = vpack.c.bf16 %v372, %v372
    %v414 = vpack.c.bf16 %v383, %v383
    %v415 = vpack.c.bf16 %v385, %v385
    %v416 = vpack.c.bf16 %v387, %v387
    %v417 = vpack.c.bf16 %v389, %v389
    %v418 = vpack.c.bf16 %v391, %v391
    %v419 = vpack.c.bf16 %v393, %v393
    %v420 = vpack.c.bf16 %v395, %v395
    %v421 = vpack.c.bf16 %v397, %v397
    %v422 = vld [vmem:[#allocation8] sm:$0xf]
    %v423 = vld [vmem:[#allocation8 + $0x4] sm:$0xf]
    %v424 = vld [vmem:[#allocation8 + $0x8] sm:$0xf]
    %v425 = vld [vmem:[#allocation8 + $0xc] sm:$0x7]
    %s426 = scalar_lea.vmem [#allocation8], 16
    %v427 = vld [vmem:[%s426] sm:$0xf]
    %v428 = vld [vmem:[%s426 + $0x4] sm:$0xf]
    %v429 = vld [vmem:[%s426 + $0x8] sm:$0xf]
    %v430 = vld [vmem:[%s426 + $0xc] sm:$0x7]
    %v447 = vunpack.c.l.b16 %v406
    %v448 = vunpack.c.l.b16 %v407
    %v449 = vunpack.c.l.b16 %v408
    %v450 = vunpack.c.l.b16 %v409
    %v451 = vunpack.c.l.b16 %v410
    %v452 = vunpack.c.l.b16 %v411
    %v453 = vunpack.c.l.b16 %v412
    %v454 = vunpack.c.l.b16 %v413
    %v455 = vunpack.c.l.b16 %v414
    %v456 = vunpack.c.l.b16 %v415
    %v457 = vunpack.c.l.b16 %v416
    %v458 = vunpack.c.l.b16 %v417
    %v459 = vunpack.c.l.b16 %v418
    %v460 = vunpack.c.l.b16 %v419
    %v461 = vunpack.c.l.b16 %v420
    %v462 = vunpack.c.l.b16 %v421
    %v463 = vpack.c.b16 %v448, %v447
    %v464 = vpack.c.b16 %v450, %v449
    %v465 = vpack.c.b16 %v452, %v451
    %v466 = vpack.c.b16 %v454, %v453
    %v467 = vpack.c.b16 %v456, %v455
    %v468 = vpack.c.b16 %v458, %v457
    %v469 = vpack.c.b16 %v460, %v459
    %v470 = vpack.c.b16 %v462, %v461
    %vm471 = vsmask.f32 7424
    %v473 = vshrl.u32 %v463, 16
    %v475 = vshll.u32 %v463, 16
    %v477 = vrot.slane %v475, 1
    %v478 = vor.u32 %v473, %v477
    %v480 = vshll.u32 %v464, 16
    %v482 = vrot.slane %v480, 1
    %v483 = vsel %vm471, %v478, %v482
    %v484 = vshrl.u32 %v464, 16
    %v486 = vor.u32 %v484, %v482
    %v488 = vshll.u32 %v465, 16
    %v490 = vrot.slane %v488, 1
    %v491 = vsel %vm471, %v486, %v490
    %v492 = vshrl.u32 %v465, 16
    %v494 = vor.u32 %v492, %v490
    %v496 = vshll.u32 %v466, 16
    %v498 = vrot.slane %v496, 1
    %v499 = vsel %vm471, %v494, %v498
    %v500 = vshrl.u32 %v466, 16
    %v502 = vor.u32 %v500, %v498
    %v504 = vshll.u32 %v467, 16
    %v506 = vrot.slane %v504, 1
    %v507 = vsel %vm471, %v502, %v506
    %v508 = vshrl.u32 %v467, 16
    %v510 = vor.u32 %v508, %v506
    %v512 = vshll.u32 %v468, 16
    %v514 = vrot.slane %v512, 1
    %v515 = vsel %vm471, %v510, %v514
    %v516 = vshrl.u32 %v468, 16
    %v518 = vor.u32 %v516, %v514
    %v520 = vshll.u32 %v469, 16
    %v522 = vrot.slane %v520, 1
    %v523 = vsel %vm471, %v518, %v522
    %v524 = vshrl.u32 %v469, 16
    %v526 = vor.u32 %v524, %v522
    %v528 = vshll.u32 %v470, 16
    %v530 = vrot.slane %v528, 1
    %v531 = vsel %vm471, %v526, %v530
    %v532 = vshrl.u32 %v470, 16
    %v534 = vor.u32 %v532, %v530
    %v539 = vunpack.c.l.b16 %v427
    %v540 = vunpack.c.l.b16 %v428
    %v541 = vunpack.c.l.b16 %v429
    %v542 = vunpack.c.l.b16 %v430
    %v543 = vpack.c.b16 %v540, %v539
    %v544 = vpack.c.b16 %v542, %v541
    %vm546 = vcmask 244736
    %v548 = vsel %vm546, %v483, 0
    %v551 = vsel %vm546, %v491, 0
    %v554 = vsel %vm546, %v499, 0
    %v557 = vsel %vm546, %v507, 0
    %v560 = vsel %vm546, %v515, 0
    %v563 = vsel %vm546, %v523, 0
    %v566 = vsel %vm546, %v531, 0
    %v569 = vsel %vm546, %v534, 0
    %vm571 = vcmask 1046528
    %v573 = vsel %vm571, %v544, 0
    %575 = vmatpush.bf16.msra.mxu0 0
    %576 = vmatpush.bf16.msra.mxu0 0
    %577 = vmatpush.bf16.msra.mxu0 0
    %578 = vmatpush.bf16.msra.mxu0 0
    %579 = vmatpush.bf16.msra.mxu0 0
    %580 = vmatpush.bf16.msra.mxu0 0
    %581 = vmatpush.bf16.msra.mxu0 %v573
    %582 = vmatpush.bf16.msra.mxu0 %v543
    %583 = vmatmul.bf16.gmra.mxu0 %v548
    %v584 = vpop.f32.mrf.mxu0
    %v585 = vadd.f32 0.0, %v584
    %v586 = vpop.f32.mrf.mxu0
    %v587 = vadd.f32 0.0, %v586
    %588 = vmatmul.bf16.gmra.mxu0 %v551
    %v589 = vpop.f32.mrf.mxu0
    %v590 = vadd.f32 0.0, %v589
    %v591 = vpop.f32.mrf.mxu0
    %v592 = vadd.f32 0.0, %v591
    %593 = vmatmul.bf16.gmra.mxu0 %v554
    %v594 = vpop.f32.mrf.mxu0
    %v595 = vadd.f32 0.0, %v594
    %v596 = vpop.f32.mrf.mxu0
    %v597 = vadd.f32 0.0, %v596
    %598 = vmatmul.bf16.gmra.mxu0 %v557
    %v599 = vpop.f32.mrf.mxu0
    %v600 = vadd.f32 0.0, %v599
    %v601 = vpop.f32.mrf.mxu0
    %v602 = vadd.f32 0.0, %v601
    %603 = vmatmul.bf16.gmra.mxu0 %v560
    %v604 = vpop.f32.mrf.mxu0
    %v605 = vadd.f32 0.0, %v604
    %v606 = vpop.f32.mrf.mxu0
    %v607 = vadd.f32 0.0, %v606
    %608 = vmatmul.bf16.gmra.mxu0 %v563
    %v609 = vpop.f32.mrf.mxu0
    %v610 = vadd.f32 0.0, %v609
    %v611 = vpop.f32.mrf.mxu0
    %v612 = vadd.f32 0.0, %v611
    %613 = vmatmul.bf16.gmra.mxu0 %v566
    %v614 = vpop.f32.mrf.mxu0
    %v615 = vadd.f32 0.0, %v614
    %v616 = vpop.f32.mrf.mxu0
    %v617 = vadd.f32 0.0, %v616
    %618 = vmatmul.bf16.gmra.mxu0 %v569
    %v619 = vpop.f32.mrf.mxu0
    %v620 = vadd.f32 0.0, %v619
    %v621 = vpop.f32.mrf.mxu0
    %v622 = vadd.f32 0.0, %v621
    %623 = vdwg.mxu0
    %v628 = vunpack.c.l.b16 %v422
    %v629 = vunpack.c.l.b16 %v423
    %v630 = vunpack.c.l.b16 %v424
    %v631 = vunpack.c.l.b16 %v425
    %v632 = vpack.c.b16 %v629, %v628
    %v633 = vpack.c.b16 %v631, %v630
    %v635 = vsel %vm546, %v463, 0
    %v637 = vsel %vm546, %v464, 0
    %v639 = vsel %vm546, %v465, 0
    %v641 = vsel %vm546, %v466, 0
    %v643 = vsel %vm546, %v467, 0
    %v645 = vsel %vm546, %v468, 0
    %v647 = vsel %vm546, %v469, 0
    %v649 = vsel %vm546, %v470, 0
    %v652 = vsel %vm571, %v633, 0
    %654 = vmatpush.bf16.msra.mxu0 0
    %655 = vmatpush.bf16.msra.mxu0 0
    %656 = vmatpush.bf16.msra.mxu0 0
    %657 = vmatpush.bf16.msra.mxu0 0
    %658 = vmatpush.bf16.msra.mxu0 0
    %659 = vmatpush.bf16.msra.mxu0 0
    %660 = vmatpush.bf16.msra.mxu0 %v652
    %661 = vmatpush.bf16.msra.mxu0 %v632
    %662 = vmatmul.bf16.gmra.mxu0 %v635
    %v663 = vpop.f32.mrf.mxu0
    %v664 = vadd.f32 %v585, %v663
    %v665 = vpop.f32.mrf.mxu0
    %v666 = vadd.f32 %v587, %v665
    %667 = vmatmul.bf16.gmra.mxu0 %v637
    %v668 = vpop.f32.mrf.mxu0
    %v669 = vadd.f32 %v590, %v668
    %v670 = vpop.f32.mrf.mxu0
    %v671 = vadd.f32 %v592, %v670
    %672 = vmatmul.bf16.gmra.mxu0 %v639
    %v673 = vpop.f32.mrf.mxu0
    %v674 = vadd.f32 %v595, %v673
    %v675 = vpop.f32.mrf.mxu0
    %v676 = vadd.f32 %v597, %v675
    %677 = vmatmul.bf16.gmra.mxu0 %v641
    %v678 = vpop.f32.mrf.mxu0
    %v679 = vadd.f32 %v600, %v678
    %v680 = vpop.f32.mrf.mxu0
    %v681 = vadd.f32 %v602, %v680
    %682 = vmatmul.bf16.gmra.mxu0 %v643
    %v683 = vpop.f32.mrf.mxu0
    %v684 = vadd.f32 %v605, %v683
    %v685 = vpop.f32.mrf.mxu0
    %v686 = vadd.f32 %v607, %v685
    %687 = vmatmul.bf16.gmra.mxu0 %v645
    %v688 = vpop.f32.mrf.mxu0
    %v689 = vadd.f32 %v610, %v688
    %v690 = vpop.f32.mrf.mxu0
    %v691 = vadd.f32 %v612, %v690
    %692 = vmatmul.bf16.gmra.mxu0 %v647
    %v693 = vpop.f32.mrf.mxu0
    %v694 = vadd.f32 %v615, %v693
    %v695 = vpop.f32.mrf.mxu0
    %v696 = vadd.f32 %v617, %v695
    %697 = vmatmul.bf16.gmra.mxu0 %v649
    %v698 = vpop.f32.mrf.mxu0
    %v699 = vadd.f32 %v620, %v698
    %v700 = vpop.f32.mrf.mxu0
    %v701 = vadd.f32 %v622, %v700
    %702 = vdwg.mxu0
    %s703 = scalar_lea.vmem [#allocation8], 32
    %v704 = vld [vmem:[%s703] sm:$0xf]
    %v705 = vld [vmem:[%s703 + $0x4] sm:$0xf]
    %v706 = vld [vmem:[%s703 + $0x8] sm:$0xf]
    %v707 = vld [vmem:[%s703 + $0xc] sm:$0x7]
    %vm708 = vcmask 1046528
    %v709 = vrot.slane %v463, 1
    %v710 = vrot.slane %v464, 1
    %v711 = vsel %vm708, %v709, %v710
    %v712 = vrot.slane %v465, 1
    %v713 = vsel %vm708, %v710, %v712
    %v714 = vrot.slane %v466, 1
    %v715 = vsel %vm708, %v712, %v714
    %v716 = vrot.slane %v467, 1
    %v717 = vsel %vm708, %v714, %v716
    %v718 = vrot.slane %v468, 1
    %v719 = vsel %vm708, %v716, %v718
    %v720 = vrot.slane %v469, 1
    %v721 = vsel %vm708, %v718, %v720
    %v722 = vrot.slane %v470, 1
    %v723 = vsel %vm708, %v720, %v722
    %v728 = vunpack.c.l.b16 %v704
    %v729 = vunpack.c.l.b16 %v705
    %v730 = vunpack.c.l.b16 %v706
    %v731 = vunpack.c.l.b16 %v707
    %v732 = vpack.c.b16 %v729, %v728
    %v733 = vpack.c.b16 %v731, %v730
    %v736 = vsel %vm546, %v711, 0
    %v739 = vsel %vm546, %v713, 0
    %v742 = vsel %vm546, %v715, 0
    %v745 = vsel %vm546, %v717, 0
    %v748 = vsel %vm546, %v719, 0
    %v751 = vsel %vm546, %v721, 0
    %v754 = vsel %vm546, %v723, 0
    %v757 = vsel %vm546, %v722, 0
    %v760 = vsel %vm571, %v733, 0
    %762 = vmatpush.bf16.msra.mxu0 0
    %763 = vmatpush.bf16.msra.mxu0 0
    %764 = vmatpush.bf16.msra.mxu0 0
    %765 = vmatpush.bf16.msra.mxu0 0
    %766 = vmatpush.bf16.msra.mxu0 0
    %767 = vmatpush.bf16.msra.mxu0 0
    %768 = vmatpush.bf16.msra.mxu0 %v760
    %769 = vmatpush.bf16.msra.mxu0 %v732
    %770 = vmatmul.bf16.gmra.mxu0 %v736
    %v771 = vpop.f32.mrf.mxu0
    %v772 = vadd.f32 0.0, %v771
    %v773 = vpop.f32.mrf.mxu0
    %v774 = vadd.f32 0.0, %v773
    %775 = vmatmul.bf16.gmra.mxu0 %v739
    %v776 = vpop.f32.mrf.mxu0
    %v777 = vadd.f32 0.0, %v776
    %v778 = vpop.f32.mrf.mxu0
    %v779 = vadd.f32 0.0, %v778
    %780 = vmatmul.bf16.gmra.mxu0 %v742
    %v781 = vpop.f32.mrf.mxu0
    %v782 = vadd.f32 0.0, %v781
    %v783 = vpop.f32.mrf.mxu0
    %v784 = vadd.f32 0.0, %v783
    %785 = vmatmul.bf16.gmra.mxu0 %v745
    %v786 = vpop.f32.mrf.mxu0
    %v787 = vadd.f32 0.0, %v786
    %v788 = vpop.f32.mrf.mxu0
    %v789 = vadd.f32 0.0, %v788
    %790 = vmatmul.bf16.gmra.mxu0 %v748
    %v791 = vpop.f32.mrf.mxu0
    %v792 = vadd.f32 0.0, %v791
    %v793 = vpop.f32.mrf.mxu0
    %v794 = vadd.f32 0.0, %v793
    %795 = vmatmul.bf16.gmra.mxu0 %v751
    %v796 = vpop.f32.mrf.mxu0
    %v797 = vadd.f32 0.0, %v796
    %v798 = vpop.f32.mrf.mxu0
    %v799 = vadd.f32 0.0, %v798
    %800 = vmatmul.bf16.gmra.mxu0 %v754
    %v801 = vpop.f32.mrf.mxu0
    %v802 = vadd.f32 0.0, %v801
    %v803 = vpop.f32.mrf.mxu0
    %v804 = vadd.f32 0.0, %v803
    %805 = vmatmul.bf16.gmra.mxu0 %v757
    %v806 = vpop.f32.mrf.mxu0
    %v807 = vadd.f32 0.0, %v806
    %v808 = vpop.f32.mrf.mxu0
    %v809 = vadd.f32 0.0, %v808
    %810 = vdwg.mxu0
    %v811 = vadd.f32 %v664, %v772
    %v812 = vadd.f32 %v666, %v774
    %v813 = vadd.f32 %v669, %v777
    %v814 = vadd.f32 %v671, %v779
    %v815 = vadd.f32 %v674, %v782
    %v816 = vadd.f32 %v676, %v784
    %v817 = vadd.f32 %v679, %v787
    %v818 = vadd.f32 %v681, %v789
    %v819 = vadd.f32 %v684, %v792
    %v820 = vadd.f32 %v686, %v794
    %v821 = vadd.f32 %v689, %v797
    %v822 = vadd.f32 %v691, %v799
    %v823 = vadd.f32 %v694, %v802
    %v824 = vadd.f32 %v696, %v804
    %v825 = vadd.f32 %v699, %v807
    %v826 = vadd.f32 %v701, %v809
    %s827 = scalar_lea.vmem [#allocation8], 48
    %v828 = vld [vmem:[%s827] sm:$0xf]
    %v829 = vld [vmem:[%s827 + $0x4] sm:$0xf]
    %v830 = vld [vmem:[%s827 + $0x8] sm:$0xf]
    %v831 = vld [vmem:[%s827 + $0xc] sm:$0x7]
    %vm832 = vsmask.f32 6400
    %v833 = vrot.slane %v473, 1
    %v834 = vrot.slane %v475, 2
    %v835 = vor.u32 %v833, %v834
    %v836 = vrot.slane %v484, 1
    %v837 = vrot.slane %v480, 2
    %v838 = vor.u32 %v836, %v837
    %v839 = vsel %vm832, %v835, %v838
    %v840 = vrot.slane %v492, 1
    %v841 = vrot.slane %v488, 2
    %v842 = vor.u32 %v840, %v841
    %v843 = vsel %vm832, %v838, %v842
    %v844 = vrot.slane %v500, 1
    %v845 = vrot.slane %v496, 2
    %v846 = vor.u32 %v844, %v845
    %v847 = vsel %vm832, %v842, %v846
    %v848 = vrot.slane %v508, 1
    %v849 = vrot.slane %v504, 2
    %v850 = vor.u32 %v848, %v849
    %v851 = vsel %vm832, %v846, %v850
    %v852 = vrot.slane %v516, 1
    %v853 = vrot.slane %v512, 2
    %v854 = vor.u32 %v852, %v853
    %v855 = vsel %vm832, %v850, %v854
    %v856 = vrot.slane %v524, 1
    %v857 = vrot.slane %v520, 2
    %v858 = vor.u32 %v856, %v857
    %v859 = vsel %vm832, %v854, %v858
    %v860 = vrot.slane %v532, 1
    %v861 = vrot.slane %v528, 2
    %v862 = vor.u32 %v860, %v861
    %v863 = vsel %vm832, %v858, %v862
    %v868 = vunpack.c.l.b16 %v828
    %v869 = vunpack.c.l.b16 %v829
    %v870 = vunpack.c.l.b16 %v830
    %v871 = vunpack.c.l.b16 %v831
    %v872 = vpack.c.b16 %v869, %v868
    %v873 = vpack.c.b16 %v871, %v870
    %v876 = vsel %vm546, %v839, 0
    %v879 = vsel %vm546, %v843, 0
    %v882 = vsel %vm546, %v847, 0
    %v885 = vsel %vm546, %v851, 0
    %v888 = vsel %vm546, %v855, 0
    %v891 = vsel %vm546, %v859, 0
    %v894 = vsel %vm546, %v863, 0
    %v897 = vsel %vm546, %v862, 0
    %v900 = vsel %vm571, %v873, 0
    %902 = vmatpush.bf16.msra.mxu0 0
    %903 = vmatpush.bf16.msra.mxu0 0
    %904 = vmatpush.bf16.msra.mxu0 0
    %905 = vmatpush.bf16.msra.mxu0 0
    %906 = vmatpush.bf16.msra.mxu0 0
    %907 = vmatpush.bf16.msra.mxu0 0
    %908 = vmatpush.bf16.msra.mxu0 %v900
    %909 = vmatpush.bf16.msra.mxu0 %v872
    %910 = vmatmul.bf16.gmra.mxu0 %v876
    %v911 = vpop.f32.mrf.mxu0
    %v912 = vadd.f32 0.0, %v911
    %v913 = vpop.f32.mrf.mxu0
    %v914 = vadd.f32 0.0, %v913
    %915 = vmatmul.bf16.gmra.mxu0 %v879
    %v916 = vpop.f32.mrf.mxu0
    %v917 = vadd.f32 0.0, %v916
    %v918 = vpop.f32.mrf.mxu0
    %v919 = vadd.f32 0.0, %v918
    %920 = vmatmul.bf16.gmra.mxu0 %v882
    %v921 = vpop.f32.mrf.mxu0
    %v922 = vadd.f32 0.0, %v921
    %v923 = vpop.f32.mrf.mxu0
    %v924 = vadd.f32 0.0, %v923
    %925 = vmatmul.bf16.gmra.mxu0 %v885
    %v926 = vpop.f32.mrf.mxu0
    %v927 = vadd.f32 0.0, %v926
    %v928 = vpop.f32.mrf.mxu0
    %v929 = vadd.f32 0.0, %v928
    %930 = vmatmul.bf16.gmra.mxu0 %v888
    %v931 = vpop.f32.mrf.mxu0
    %v932 = vadd.f32 0.0, %v931
    %v933 = vpop.f32.mrf.mxu0
    %v934 = vadd.f32 0.0, %v933
    %935 = vmatmul.bf16.gmra.mxu0 %v891
    %v936 = vpop.f32.mrf.mxu0
    %v937 = vadd.f32 0.0, %v936
    %v938 = vpop.f32.mrf.mxu0
    %v939 = vadd.f32 0.0, %v938
    %940 = vmatmul.bf16.gmra.mxu0 %v894
    %v941 = vpop.f32.mrf.mxu0
    %v942 = vadd.f32 0.0, %v941
    %v943 = vpop.f32.mrf.mxu0
    %v944 = vadd.f32 0.0, %v943
    %945 = vmatmul.bf16.gmra.mxu0 %v897
    %v946 = vpop.f32.mrf.mxu0
    %v947 = vadd.f32 0.0, %v946
    %v948 = vpop.f32.mrf.mxu0
    %v949 = vadd.f32 0.0, %v948
    %950 = vdwg.mxu0
    %v951 = vadd.f32 %v811, %v912
    %v952 = vadd.f32 %v812, %v914
    %v953 = vadd.f32 %v813, %v917
    %v954 = vadd.f32 %v814, %v919
    %v955 = vadd.f32 %v815, %v922
    %v956 = vadd.f32 %v816, %v924
    %v957 = vadd.f32 %v817, %v927
    %v958 = vadd.f32 %v818, %v929
    %v959 = vadd.f32 %v819, %v932
    %v960 = vadd.f32 %v820, %v934
    %v961 = vadd.f32 %v821, %v937
    %v962 = vadd.f32 %v822, %v939
    %v963 = vadd.f32 %v823, %v942
    %v964 = vadd.f32 %v824, %v944
    %v965 = vadd.f32 %v825, %v947
    %v966 = vadd.f32 %v826, %v949
    %s967 = scalar_lea.vmem [#allocation8], 64
    %v968 = vld [vmem:[%s967] sm:$0xf]
    %v969 = vld [vmem:[%s967 + $0x4] sm:$0xf]
    %v970 = vld [vmem:[%s967 + $0x8] sm:$0xf]
    %v971 = vld [vmem:[%s967 + $0xc] sm:$0x7]
    %vm972 = vcmask 1045504
    %v973 = vrot.slane %v463, 2
    %v974 = vrot.slane %v464, 2
    %v975 = vsel %vm972, %v973, %v974
    %v976 = vrot.slane %v465, 2
    %v977 = vsel %vm972, %v974, %v976
    %v978 = vrot.slane %v466, 2
    %v979 = vsel %vm972, %v976, %v978
    %v980 = vrot.slane %v467, 2
    %v981 = vsel %vm972, %v978, %v980
    %v982 = vrot.slane %v468, 2
    %v983 = vsel %vm972, %v980, %v982
    %v984 = vrot.slane %v469, 2
    %v985 = vsel %vm972, %v982, %v984
    %v986 = vrot.slane %v470, 2
    %v987 = vsel %vm972, %v984, %v986
    %v992 = vunpack.c.l.b16 %v968
    %v993 = vunpack.c.l.b16 %v969
    %v994 = vunpack.c.l.b16 %v970
    %v995 = vunpack.c.l.b16 %v971
    %v996 = vpack.c.b16 %v993, %v992
    %v997 = vpack.c.b16 %v995, %v994
    %v1000 = vsel %vm546, %v975, 0
    %v1003 = vsel %vm546, %v977, 0
    %v1006 = vsel %vm546, %v979, 0
    %v1009 = vsel %vm546, %v981, 0
    %v1012 = vsel %vm546, %v983, 0
    %v1015 = vsel %vm546, %v985, 0
    %v1018 = vsel %vm546, %v987, 0
    %v1021 = vsel %vm546, %v986, 0
    %v1024 = vsel %vm571, %v997, 0
    %1026 = vmatpush.bf16.msra.mxu0 0
    %1027 = vmatpush.bf16.msra.mxu0 0
    %1028 = vmatpush.bf16.msra.mxu0 0
    %1029 = vmatpush.bf16.msra.mxu0 0
    %1030 = vmatpush.bf16.msra.mxu0 0
    %1031 = vmatpush.bf16.msra.mxu0 0
    %1032 = vmatpush.bf16.msra.mxu0 %v1024
    %1033 = vmatpush.bf16.msra.mxu0 %v996
    %1034 = vmatmul.bf16.gmra.mxu0 %v1000
    %v1035 = vpop.f32.mrf.mxu0
    %v1036 = vadd.f32 0.0, %v1035
    %v1037 = vpop.f32.mrf.mxu0
    %v1038 = vadd.f32 0.0, %v1037
    %1039 = vmatmul.bf16.gmra.mxu0 %v1003
    %v1040 = vpop.f32.mrf.mxu0
    %v1041 = vadd.f32 0.0, %v1040
    %v1042 = vpop.f32.mrf.mxu0
    %v1043 = vadd.f32 0.0, %v1042
    %1044 = vmatmul.bf16.gmra.mxu0 %v1006
    %v1045 = vpop.f32.mrf.mxu0
    %v1046 = vadd.f32 0.0, %v1045
    %v1047 = vpop.f32.mrf.mxu0
    %v1048 = vadd.f32 0.0, %v1047
    %1049 = vmatmul.bf16.gmra.mxu0 %v1009
    %v1050 = vpop.f32.mrf.mxu0
    %v1051 = vadd.f32 0.0, %v1050
    %v1052 = vpop.f32.mrf.mxu0
    %v1053 = vadd.f32 0.0, %v1052
    %1054 = vmatmul.bf16.gmra.mxu0 %v1012
    %v1055 = vpop.f32.mrf.mxu0
    %v1056 = vadd.f32 0.0, %v1055
    %v1057 = vpop.f32.mrf.mxu0
    %v1058 = vadd.f32 0.0, %v1057
    %1059 = vmatmul.bf16.gmra.mxu0 %v1015
    %v1060 = vpop.f32.mrf.mxu0
    %v1061 = vadd.f32 0.0, %v1060
    %v1062 = vpop.f32.mrf.mxu0
    %v1063 = vadd.f32 0.0, %v1062
    %1064 = vmatmul.bf16.gmra.mxu0 %v1018
    %v1065 = vpop.f32.mrf.mxu0
    %v1066 = vadd.f32 0.0, %v1065
    %v1067 = vpop.f32.mrf.mxu0
    %v1068 = vadd.f32 0.0, %v1067
    %1069 = vmatmul.bf16.gmra.mxu0 %v1021
    %v1070 = vpop.f32.mrf.mxu0
    %v1071 = vadd.f32 0.0, %v1070
    %v1072 = vpop.f32.mrf.mxu0
    %v1073 = vadd.f32 0.0, %v1072
    %1074 = vdwg.mxu0
    %v1075 = vadd.f32 %v951, %v1036
    %v1076 = vadd.f32 %v952, %v1038
    %v1077 = vadd.f32 %v953, %v1041
    %v1078 = vadd.f32 %v954, %v1043
    %v1079 = vadd.f32 %v955, %v1046
    %v1080 = vadd.f32 %v956, %v1048
    %v1081 = vadd.f32 %v957, %v1051
    %v1082 = vadd.f32 %v958, %v1053
    %v1083 = vadd.f32 %v959, %v1056
    %v1084 = vadd.f32 %v960, %v1058
    %v1085 = vadd.f32 %v961, %v1061
    %v1086 = vadd.f32 %v962, %v1063
    %v1087 = vadd.f32 %v963, %v1066
    %v1088 = vadd.f32 %v964, %v1068
    %v1089 = vadd.f32 %v965, %v1071
    %v1090 = vadd.f32 %v966, %v1073
    %v1091 = vld [vmem:[#allocation10] sm:$0x1]
    %v1093 = vperm.slane %v1091, 0
    %v1095 = vadd.f32 %v1075, %v1093
    %v1096 = vadd.f32 %v1076, %v1093
    %v1097 = vadd.f32 %v1077, %v1093
    %v1098 = vadd.f32 %v1078, %v1093
    %v1099 = vadd.f32 %v1079, %v1093
    %v1100 = vadd.f32 %v1080, %v1093
    %v1101 = vadd.f32 %v1081, %v1093
    %v1102 = vadd.f32 %v1082, %v1093
    %v1103 = vadd.f32 %v1083, %v1093
    %v1104 = vadd.f32 %v1084, %v1093
    %v1105 = vadd.f32 %v1085, %v1093
    %v1106 = vadd.f32 %v1086, %v1093
    %v1107 = vadd.f32 %v1087, %v1093
    %v1108 = vadd.f32 %v1088, %v1093
    %v1109 = vadd.f32 %v1089, %v1093
    %v1110 = vadd.f32 %v1090, %v1093
    %v1111 = vmax.f32 %v1095, 0.0
    %v1112 = vmax.f32 %v1096, 0.0
    %v1113 = vmax.f32 %v1097, 0.0
    %v1114 = vmax.f32 %v1098, 0.0
    %v1115 = vmax.f32 %v1099, 0.0
    %v1116 = vmax.f32 %v1100, 0.0
    %v1117 = vmax.f32 %v1101, 0.0
    %v1118 = vmax.f32 %v1102, 0.0
    %v1119 = vmax.f32 %v1103, 0.0
    %v1120 = vmax.f32 %v1104, 0.0
    %v1121 = vmax.f32 %v1105, 0.0
    %v1122 = vmax.f32 %v1106, 0.0
    %v1123 = vmax.f32 %v1107, 0.0
    %v1124 = vmax.f32 %v1108, 0.0
    %v1125 = vmax.f32 %v1109, 0.0
    %v1126 = vmax.f32 %v1110, 0.0
    %v1127 = vpack.c.bf16 %v1111, %v1111
    %v1128 = vpack.c.bf16 %v1112, %v1112
    %v1129 = vpack.c.bf16 %v1113, %v1113
    %v1130 = vpack.c.bf16 %v1114, %v1114
    %v1131 = vpack.c.bf16 %v1115, %v1115
    %v1132 = vpack.c.bf16 %v1116, %v1116
    %v1133 = vpack.c.bf16 %v1117, %v1117
    %v1134 = vpack.c.bf16 %v1118, %v1118
    %v1135 = vpack.c.bf16 %v1119, %v1119
    %v1136 = vpack.c.bf16 %v1120, %v1120
    %v1137 = vpack.c.bf16 %v1121, %v1121
    %v1138 = vpack.c.bf16 %v1122, %v1122
    %v1139 = vpack.c.bf16 %v1123, %v1123
    %v1140 = vpack.c.bf16 %v1124, %v1124
    %v1141 = vpack.c.bf16 %v1125, %v1125
    %v1142 = vpack.c.bf16 %v1126, %v1126
    %v1143 = vld [vmem:[#allocation11] sm:$0xf]
    %v1144 = vld [vmem:[#allocation11 + $0x4] sm:$0xf]
    %v1145 = vld [vmem:[#allocation11 + $0x8] sm:$0xf]
    %v1146 = vld [vmem:[#allocation11 + $0xc] sm:$0xf]
    %s1147 = scalar_lea.vmem [#allocation11], 16
    %v1148 = vld [vmem:[%s1147] sm:$0xf]
    %v1149 = vld [vmem:[%s1147 + $0x4] sm:$0xf]
    %v1150 = vld [vmem:[%s1147 + $0x8] sm:$0xf]
    %v1151 = vld [vmem:[%s1147 + $0xc] sm:$0xf]
    %v1168 = vunpack.c.l.b16 %v1127
    %v1169 = vunpack.c.l.b16 %v1128
    %v1170 = vunpack.c.l.b16 %v1129
    %v1171 = vunpack.c.l.b16 %v1130
    %v1172 = vunpack.c.l.b16 %v1131
    %v1173 = vunpack.c.l.b16 %v1132
    %v1174 = vunpack.c.l.b16 %v1133
    %v1175 = vunpack.c.l.b16 %v1134
    %v1176 = vunpack.c.l.b16 %v1135
    %v1177 = vunpack.c.l.b16 %v1136
    %v1178 = vunpack.c.l.b16 %v1137
    %v1179 = vunpack.c.l.b16 %v1138
    %v1180 = vunpack.c.l.b16 %v1139
    %v1181 = vunpack.c.l.b16 %v1140
    %v1182 = vunpack.c.l.b16 %v1141
    %v1183 = vunpack.c.l.b16 %v1142
    %v1184 = vpack.c.b16 %v1169, %v1168
    %v1185 = vpack.c.b16 %v1171, %v1170
    %v1186 = vpack.c.b16 %v1173, %v1172
    %v1187 = vpack.c.b16 %v1175, %v1174
    %v1188 = vpack.c.b16 %v1177, %v1176
    %v1189 = vpack.c.b16 %v1179, %v1178
    %v1190 = vpack.c.b16 %v1181, %v1180
    %v1191 = vpack.c.b16 %v1183, %v1182
    %v1193 = vshrl.u32 %v1184, 16
    %v1195 = vshll.u32 %v1184, 16
    %v1197 = vrot.slane %v1195, 1
    %v1198 = vor.u32 %v1193, %v1197
    %v1200 = vshll.u32 %v1185, 16
    %v1202 = vrot.slane %v1200, 1
    %v1203 = vsel %vm471, %v1198, %v1202
    %v1204 = vshrl.u32 %v1185, 16
    %v1206 = vor.u32 %v1204, %v1202
    %v1208 = vshll.u32 %v1186, 16
    %v1210 = vrot.slane %v1208, 1
    %v1211 = vsel %vm471, %v1206, %v1210
    %v1212 = vshrl.u32 %v1186, 16
    %v1214 = vor.u32 %v1212, %v1210
    %v1216 = vshll.u32 %v1187, 16
    %v1218 = vrot.slane %v1216, 1
    %v1219 = vsel %vm471, %v1214, %v1218
    %v1220 = vshrl.u32 %v1187, 16
    %v1222 = vor.u32 %v1220, %v1218
    %v1224 = vshll.u32 %v1188, 16
    %v1226 = vrot.slane %v1224, 1
    %v1227 = vsel %vm471, %v1222, %v1226
    %v1228 = vshrl.u32 %v1188, 16
    %v1230 = vor.u32 %v1228, %v1226
    %v1232 = vshll.u32 %v1189, 16
    %v1234 = vrot.slane %v1232, 1
    %v1235 = vsel %vm471, %v1230, %v1234
    %v1236 = vshrl.u32 %v1189, 16
    %v1238 = vor.u32 %v1236, %v1234
    %v1240 = vshll.u32 %v1190, 16
    %v1242 = vrot.slane %v1240, 1
    %v1243 = vsel %vm471, %v1238, %v1242
    %v1244 = vshrl.u32 %v1190, 16
    %v1246 = vor.u32 %v1244, %v1242
    %v1248 = vshll.u32 %v1191, 16
    %v1250 = vrot.slane %v1248, 1
    %v1251 = vsel %vm471, %v1246, %v1250
    %v1252 = vshrl.u32 %v1191, 16
    %v1254 = vor.u32 %v1252, %v1250
    %v1259 = vunpack.c.l.b16 %v1148
    %v1260 = vunpack.c.l.b16 %v1149
    %v1261 = vunpack.c.l.b16 %v1150
    %v1262 = vunpack.c.l.b16 %v1151
    %v1263 = vpack.c.b16 %v1260, %v1259
    %v1264 = vpack.c.b16 %v1262, %v1261
    %vm1267 = vcmask 261120
    %v1269 = vsel %vm1267, %v1203, 0
    %v1272 = vsel %vm1267, %v1211, 0
    %v1275 = vsel %vm1267, %v1219, 0
    %v1278 = vsel %vm1267, %v1227, 0
    %v1281 = vsel %vm1267, %v1235, 0
    %v1284 = vsel %vm1267, %v1243, 0
    %v1287 = vsel %vm1267, %v1251, 0
    %v1290 = vsel %vm1267, %v1254, 0
    %1292 = vmatpush.bf16.msra.mxu0 0
    %1293 = vmatpush.bf16.msra.mxu0 0
    %1294 = vmatpush.bf16.msra.mxu0 0
    %1295 = vmatpush.bf16.msra.mxu0 0
    %1296 = vmatpush.bf16.msra.mxu0 0
    %1297 = vmatpush.bf16.msra.mxu0 0
    %1298 = vmatpush.bf16.msra.mxu0 %v1264
    %1299 = vmatpush.bf16.msra.mxu0 %v1263
    %1300 = vmatmul.bf16.gmra.mxu0 %v1269
    %v1301 = vpop.f32.mrf.mxu0
    %v1302 = vadd.f32 0.0, %v1301
    %v1303 = vpop.f32.mrf.mxu0
    %v1304 = vadd.f32 0.0, %v1303
    %1305 = vmatmul.bf16.gmra.mxu0 %v1272
    %v1306 = vpop.f32.mrf.mxu0
    %v1307 = vadd.f32 0.0, %v1306
    %v1308 = vpop.f32.mrf.mxu0
    %v1309 = vadd.f32 0.0, %v1308
    %1310 = vmatmul.bf16.gmra.mxu0 %v1275
    %v1311 = vpop.f32.mrf.mxu0
    %v1312 = vadd.f32 0.0, %v1311
    %v1313 = vpop.f32.mrf.mxu0
    %v1314 = vadd.f32 0.0, %v1313
    %1315 = vmatmul.bf16.gmra.mxu0 %v1278
    %v1316 = vpop.f32.mrf.mxu0
    %v1317 = vadd.f32 0.0, %v1316
    %v1318 = vpop.f32.mrf.mxu0
    %v1319 = vadd.f32 0.0, %v1318
    %1320 = vmatmul.bf16.gmra.mxu0 %v1281
    %v1321 = vpop.f32.mrf.mxu0
    %v1322 = vadd.f32 0.0, %v1321
    %v1323 = vpop.f32.mrf.mxu0
    %v1324 = vadd.f32 0.0, %v1323
    %1325 = vmatmul.bf16.gmra.mxu0 %v1284
    %v1326 = vpop.f32.mrf.mxu0
    %v1327 = vadd.f32 0.0, %v1326
    %v1328 = vpop.f32.mrf.mxu0
    %v1329 = vadd.f32 0.0, %v1328
    %1330 = vmatmul.bf16.gmra.mxu0 %v1287
    %v1331 = vpop.f32.mrf.mxu0
    %v1332 = vadd.f32 0.0, %v1331
    %v1333 = vpop.f32.mrf.mxu0
    %v1334 = vadd.f32 0.0, %v1333
    %1335 = vmatmul.bf16.gmra.mxu0 %v1290
    %v1336 = vpop.f32.mrf.mxu0
    %v1337 = vadd.f32 0.0, %v1336
    %v1338 = vpop.f32.mrf.mxu0
    %1339 = vdwg.mxu0
    %v1340 = vpack.c.b16 %v1182, %v1182
    %v1345 = vunpack.c.l.b16 %v1143
    %v1346 = vunpack.c.l.b16 %v1144
    %v1347 = vunpack.c.l.b16 %v1145
    %v1348 = vunpack.c.l.b16 %v1146
    %v1349 = vpack.c.b16 %v1346, %v1345
    %v1350 = vpack.c.b16 %v1348, %v1347
    %v1353 = vsel %vm1267, %v1184, 0
    %v1355 = vsel %vm1267, %v1185, 0
    %v1357 = vsel %vm1267, %v1186, 0
    %v1359 = vsel %vm1267, %v1187, 0
    %v1361 = vsel %vm1267, %v1188, 0
    %v1363 = vsel %vm1267, %v1189, 0
    %v1365 = vsel %vm1267, %v1190, 0
    %v1368 = vsel %vm1267, %v1340, 0
    %1370 = vmatpush.bf16.msra.mxu0 0
    %1371 = vmatpush.bf16.msra.mxu0 0
    %1372 = vmatpush.bf16.msra.mxu0 0
    %1373 = vmatpush.bf16.msra.mxu0 0
    %1374 = vmatpush.bf16.msra.mxu0 0
    %1375 = vmatpush.bf16.msra.mxu0 0
    %1376 = vmatpush.bf16.msra.mxu0 %v1350
    %1377 = vmatpush.bf16.msra.mxu0 %v1349
    %1378 = vmatmul.bf16.gmra.mxu0 %v1353
    %v1379 = vpop.f32.mrf.mxu0
    %v1380 = vadd.f32 %v1302, %v1379
    %v1381 = vpop.f32.mrf.mxu0
    %v1382 = vadd.f32 %v1304, %v1381
    %1383 = vmatmul.bf16.gmra.mxu0 %v1355
    %v1384 = vpop.f32.mrf.mxu0
    %v1385 = vadd.f32 %v1307, %v1384
    %v1386 = vpop.f32.mrf.mxu0
    %v1387 = vadd.f32 %v1309, %v1386
    %1388 = vmatmul.bf16.gmra.mxu0 %v1357
    %v1389 = vpop.f32.mrf.mxu0
    %v1390 = vadd.f32 %v1312, %v1389
    %v1391 = vpop.f32.mrf.mxu0
    %v1392 = vadd.f32 %v1314, %v1391
    %1393 = vmatmul.bf16.gmra.mxu0 %v1359
    %v1394 = vpop.f32.mrf.mxu0
    %v1395 = vadd.f32 %v1317, %v1394
    %v1396 = vpop.f32.mrf.mxu0
    %v1397 = vadd.f32 %v1319, %v1396
    %1398 = vmatmul.bf16.gmra.mxu0 %v1361
    %v1399 = vpop.f32.mrf.mxu0
    %v1400 = vadd.f32 %v1322, %v1399
    %v1401 = vpop.f32.mrf.mxu0
    %v1402 = vadd.f32 %v1324, %v1401
    %1403 = vmatmul.bf16.gmra.mxu0 %v1363
    %v1404 = vpop.f32.mrf.mxu0
    %v1405 = vadd.f32 %v1327, %v1404
    %v1406 = vpop.f32.mrf.mxu0
    %v1407 = vadd.f32 %v1329, %v1406
    %1408 = vmatmul.bf16.gmra.mxu0 %v1365
    %v1409 = vpop.f32.mrf.mxu0
    %v1410 = vadd.f32 %v1332, %v1409
    %v1411 = vpop.f32.mrf.mxu0
    %v1412 = vadd.f32 %v1334, %v1411
    %1413 = vmatmul.bf16.gmra.mxu0 %v1368
    %v1414 = vpop.f32.mrf.mxu0
    %v1415 = vadd.f32 %v1337, %v1414
    %v1416 = vpop.f32.mrf.mxu0
    %1417 = vdwg.mxu0
    %s1418 = scalar_lea.vmem [#allocation11], 32
    %v1419 = vld [vmem:[%s1418] sm:$0xf]
    %v1420 = vld [vmem:[%s1418 + $0x4] sm:$0xf]
    %v1421 = vld [vmem:[%s1418 + $0x8] sm:$0xf]
    %v1422 = vld [vmem:[%s1418 + $0xc] sm:$0xf]
    %v1423 = vrot.slane %v1184, 1
    %v1424 = vrot.slane %v1185, 1
    %v1425 = vsel %vm708, %v1423, %v1424
    %v1426 = vrot.slane %v1186, 1
    %v1427 = vsel %vm708, %v1424, %v1426
    %v1428 = vrot.slane %v1187, 1
    %v1429 = vsel %vm708, %v1426, %v1428
    %v1430 = vrot.slane %v1188, 1
    %v1431 = vsel %vm708, %v1428, %v1430
    %v1432 = vrot.slane %v1189, 1
    %v1433 = vsel %vm708, %v1430, %v1432
    %v1434 = vrot.slane %v1190, 1
    %v1435 = vsel %vm708, %v1432, %v1434
    %v1436 = vrot.slane %v1191, 1
    %v1437 = vsel %vm708, %v1434, %v1436
    %v1442 = vunpack.c.l.b16 %v1419
    %v1443 = vunpack.c.l.b16 %v1420
    %v1444 = vunpack.c.l.b16 %v1421
    %v1445 = vunpack.c.l.b16 %v1422
    %v1446 = vpack.c.b16 %v1443, %v1442
    %v1447 = vpack.c.b16 %v1445, %v1444
    %v1451 = vsel %vm1267, %v1425, 0
    %v1454 = vsel %vm1267, %v1427, 0
    %v1457 = vsel %vm1267, %v1429, 0
    %v1460 = vsel %vm1267, %v1431, 0
    %v1463 = vsel %vm1267, %v1433, 0
    %v1466 = vsel %vm1267, %v1435, 0
    %v1469 = vsel %vm1267, %v1437, 0
    %v1472 = vsel %vm1267, %v1436, 0
    %1474 = vmatpush.bf16.msra.mxu0 0
    %1475 = vmatpush.bf16.msra.mxu0 0
    %1476 = vmatpush.bf16.msra.mxu0 0
    %1477 = vmatpush.bf16.msra.mxu0 0
    %1478 = vmatpush.bf16.msra.mxu0 0
    %1479 = vmatpush.bf16.msra.mxu0 0
    %1480 = vmatpush.bf16.msra.mxu0 %v1447
    %1481 = vmatpush.bf16.msra.mxu0 %v1446
    %1482 = vmatmul.bf16.gmra.mxu0 %v1451
    %v1483 = vpop.f32.mrf.mxu0
    %v1484 = vadd.f32 0.0, %v1483
    %v1485 = vpop.f32.mrf.mxu0
    %v1486 = vadd.f32 0.0, %v1485
    %1487 = vmatmul.bf16.gmra.mxu0 %v1454
    %v1488 = vpop.f32.mrf.mxu0
    %v1489 = vadd.f32 0.0, %v1488
    %v1490 = vpop.f32.mrf.mxu0
    %v1491 = vadd.f32 0.0, %v1490
    %1492 = vmatmul.bf16.gmra.mxu0 %v1457
    %v1493 = vpop.f32.mrf.mxu0
    %v1494 = vadd.f32 0.0, %v1493
    %v1495 = vpop.f32.mrf.mxu0
    %v1496 = vadd.f32 0.0, %v1495
    %1497 = vmatmul.bf16.gmra.mxu0 %v1460
    %v1498 = vpop.f32.mrf.mxu0
    %v1499 = vadd.f32 0.0, %v1498
    %v1500 = vpop.f32.mrf.mxu0
    %v1501 = vadd.f32 0.0, %v1500
    %1502 = vmatmul.bf16.gmra.mxu0 %v1463
    %v1503 = vpop.f32.mrf.mxu0
    %v1504 = vadd.f32 0.0, %v1503
    %v1505 = vpop.f32.mrf.mxu0
    %v1506 = vadd.f32 0.0, %v1505
    %1507 = vmatmul.bf16.gmra.mxu0 %v1466
    %v1508 = vpop.f32.mrf.mxu0
    %v1509 = vadd.f32 0.0, %v1508
    %v1510 = vpop.f32.mrf.mxu0
    %v1511 = vadd.f32 0.0, %v1510
    %1512 = vmatmul.bf16.gmra.mxu0 %v1469
    %v1513 = vpop.f32.mrf.mxu0
    %v1514 = vadd.f32 0.0, %v1513
    %v1515 = vpop.f32.mrf.mxu0
    %v1516 = vadd.f32 0.0, %v1515
    %1517 = vmatmul.bf16.gmra.mxu0 %v1472
    %v1518 = vpop.f32.mrf.mxu0
    %v1519 = vadd.f32 0.0, %v1518
    %v1520 = vpop.f32.mrf.mxu0
    %1521 = vdwg.mxu0
    %v1522 = vadd.f32 %v1380, %v1484
    %v1523 = vadd.f32 %v1382, %v1486
    %v1524 = vadd.f32 %v1385, %v1489
    %v1525 = vadd.f32 %v1387, %v1491
    %v1526 = vadd.f32 %v1390, %v1494
    %v1527 = vadd.f32 %v1392, %v1496
    %v1528 = vadd.f32 %v1395, %v1499
    %v1529 = vadd.f32 %v1397, %v1501
    %v1530 = vadd.f32 %v1400, %v1504
    %v1531 = vadd.f32 %v1402, %v1506
    %v1532 = vadd.f32 %v1405, %v1509
    %v1533 = vadd.f32 %v1407, %v1511
    %v1534 = vadd.f32 %v1410, %v1514
    %v1535 = vadd.f32 %v1412, %v1516
    %v1536 = vadd.f32 %v1415, %v1519
    %s1537 = scalar_lea.vmem [#allocation11], 48
    %v1538 = vld [vmem:[%s1537] sm:$0xf]
    %v1539 = vld [vmem:[%s1537 + $0x4] sm:$0xf]
    %v1540 = vld [vmem:[%s1537 + $0x8] sm:$0xf]
    %v1541 = vld [vmem:[%s1537 + $0xc] sm:$0xf]
    %v1542 = vrot.slane %v1193, 1
    %v1543 = vrot.slane %v1195, 2
    %v1544 = vor.u32 %v1542, %v1543
    %v1545 = vrot.slane %v1204, 1
    %v1546 = vrot.slane %v1200, 2
    %v1547 = vor.u32 %v1545, %v1546
    %v1548 = vsel %vm832, %v1544, %v1547
    %v1549 = vrot.slane %v1212, 1
    %v1550 = vrot.slane %v1208, 2
    %v1551 = vor.u32 %v1549, %v1550
    %v1552 = vsel %vm832, %v1547, %v1551
    %v1553 = vrot.slane %v1220, 1
    %v1554 = vrot.slane %v1216, 2
    %v1555 = vor.u32 %v1553, %v1554
    %v1556 = vsel %vm832, %v1551, %v1555
    %v1557 = vrot.slane %v1228, 1
    %v1558 = vrot.slane %v1224, 2
    %v1559 = vor.u32 %v1557, %v1558
    %v1560 = vsel %vm832, %v1555, %v1559
    %v1561 = vrot.slane %v1236, 1
    %v1562 = vrot.slane %v1232, 2
    %v1563 = vor.u32 %v1561, %v1562
    %v1564 = vsel %vm832, %v1559, %v1563
    %v1565 = vrot.slane %v1244, 1
    %v1566 = vrot.slane %v1240, 2
    %v1567 = vor.u32 %v1565, %v1566
    %v1568 = vsel %vm832, %v1563, %v1567
    %v1569 = vrot.slane %v1252, 1
    %v1570 = vrot.slane %v1248, 2
    %v1571 = vor.u32 %v1569, %v1570
    %v1572 = vsel %vm832, %v1567, %v1571
    %v1577 = vunpack.c.l.b16 %v1538
    %v1578 = vunpack.c.l.b16 %v1539
    %v1579 = vunpack.c.l.b16 %v1540
    %v1580 = vunpack.c.l.b16 %v1541
    %v1581 = vpack.c.b16 %v1578, %v1577
    %v1582 = vpack.c.b16 %v1580, %v1579
    %v1586 = vsel %vm1267, %v1548, 0
    %v1589 = vsel %vm1267, %v1552, 0
    %v1592 = vsel %vm1267, %v1556, 0
    %v1595 = vsel %vm1267, %v1560, 0
    %v1598 = vsel %vm1267, %v1564, 0
    %v1601 = vsel %vm1267, %v1568, 0
    %v1604 = vsel %vm1267, %v1572, 0
    %v1607 = vsel %vm1267, %v1571, 0
    %1609 = vmatpush.bf16.msra.mxu0 0
    %1610 = vmatpush.bf16.msra.mxu0 0
    %1611 = vmatpush.bf16.msra.mxu0 0
    %1612 = vmatpush.bf16.msra.mxu0 0
    %1613 = vmatpush.bf16.msra.mxu0 0
    %1614 = vmatpush.bf16.msra.mxu0 0
    %1615 = vmatpush.bf16.msra.mxu0 %v1582
    %1616 = vmatpush.bf16.msra.mxu0 %v1581
    %1617 = vmatmul.bf16.gmra.mxu0 %v1586
    %v1618 = vpop.f32.mrf.mxu0
    %v1619 = vadd.f32 0.0, %v1618
    %v1620 = vpop.f32.mrf.mxu0
    %v1621 = vadd.f32 0.0, %v1620
    %1622 = vmatmul.bf16.gmra.mxu0 %v1589
    %v1623 = vpop.f32.mrf.mxu0
    %v1624 = vadd.f32 0.0, %v1623
    %v1625 = vpop.f32.mrf.mxu0
    %v1626 = vadd.f32 0.0, %v1625
    %1627 = vmatmul.bf16.gmra.mxu0 %v1592
    %v1628 = vpop.f32.mrf.mxu0
    %v1629 = vadd.f32 0.0, %v1628
    %v1630 = vpop.f32.mrf.mxu0
    %v1631 = vadd.f32 0.0, %v1630
    %1632 = vmatmul.bf16.gmra.mxu0 %v1595
    %v1633 = vpop.f32.mrf.mxu0
    %v1634 = vadd.f32 0.0, %v1633
    %v1635 = vpop.f32.mrf.mxu0
    %v1636 = vadd.f32 0.0, %v1635
    %1637 = vmatmul.bf16.gmra.mxu0 %v1598
    %v1638 = vpop.f32.mrf.mxu0
    %v1639 = vadd.f32 0.0, %v1638
    %v1640 = vpop.f32.mrf.mxu0
    %v1641 = vadd.f32 0.0, %v1640
    %1642 = vmatmul.bf16.gmra.mxu0 %v1601
    %v1643 = vpop.f32.mrf.mxu0
    %v1644 = vadd.f32 0.0, %v1643
    %v1645 = vpop.f32.mrf.mxu0
    %v1646 = vadd.f32 0.0, %v1645
    %1647 = vmatmul.bf16.gmra.mxu0 %v1604
    %v1648 = vpop.f32.mrf.mxu0
    %v1649 = vadd.f32 0.0, %v1648
    %v1650 = vpop.f32.mrf.mxu0
    %v1651 = vadd.f32 0.0, %v1650
    %1652 = vmatmul.bf16.gmra.mxu0 %v1607
    %v1653 = vpop.f32.mrf.mxu0
    %v1654 = vadd.f32 0.0, %v1653
    %v1655 = vpop.f32.mrf.mxu0
    %1656 = vdwg.mxu0
    %v1657 = vadd.f32 %v1522, %v1619
    %v1658 = vadd.f32 %v1523, %v1621
    %v1659 = vadd.f32 %v1524, %v1624
    %v1660 = vadd.f32 %v1525, %v1626
    %v1661 = vadd.f32 %v1526, %v1629
    %v1662 = vadd.f32 %v1527, %v1631
    %v1663 = vadd.f32 %v1528, %v1634
    %v1664 = vadd.f32 %v1529, %v1636
    %v1665 = vadd.f32 %v1530, %v1639
    %v1666 = vadd.f32 %v1531, %v1641
    %v1667 = vadd.f32 %v1532, %v1644
    %v1668 = vadd.f32 %v1533, %v1646
    %v1669 = vadd.f32 %v1534, %v1649
    %v1670 = vadd.f32 %v1535, %v1651
    %v1671 = vadd.f32 %v1536, %v1654
    %s1672 = scalar_lea.vmem [#allocation11], 64
    %v1673 = vld [vmem:[%s1672] sm:$0xf]
    %v1674 = vld [vmem:[%s1672 + $0x4] sm:$0xf]
    %v1675 = vld [vmem:[%s1672 + $0x8] sm:$0xf]
    %v1676 = vld [vmem:[%s1672 + $0xc] sm:$0xf]
    %v1677 = vrot.slane %v1184, 2
    %v1678 = vrot.slane %v1185, 2
    %v1679 = vsel %vm972, %v1677, %v1678
    %v1680 = vrot.slane %v1186, 2
    %v1681 = vsel %vm972, %v1678, %v1680
    %v1682 = vrot.slane %v1187, 2
    %v1683 = vsel %vm972, %v1680, %v1682
    %v1684 = vrot.slane %v1188, 2
    %v1685 = vsel %vm972, %v1682, %v1684
    %v1686 = vrot.slane %v1189, 2
    %v1687 = vsel %vm972, %v1684, %v1686
    %v1688 = vrot.slane %v1190, 2
    %v1689 = vsel %vm972, %v1686, %v1688
    %v1690 = vrot.slane %v1191, 2
    %v1691 = vsel %vm972, %v1688, %v1690
    %v1696 = vunpack.c.l.b16 %v1673
    %v1697 = vunpack.c.l.b16 %v1674
    %v1698 = vunpack.c.l.b16 %v1675
    %v1699 = vunpack.c.l.b16 %v1676
    %v1700 = vpack.c.b16 %v1697, %v1696
    %v1701 = vpack.c.b16 %v1699, %v1698
    %v1705 = vsel %vm1267, %v1679, 0
    %v1708 = vsel %vm1267, %v1681, 0
    %v1711 = vsel %vm1267, %v1683, 0
    %v1714 = vsel %vm1267, %v1685, 0
    %v1717 = vsel %vm1267, %v1687, 0
    %v1720 = vsel %vm1267, %v1689, 0
    %v1723 = vsel %vm1267, %v1691, 0
    %v1726 = vsel %vm1267, %v1690, 0
    %1728 = vmatpush.bf16.msra.mxu0 0
    %1729 = vmatpush.bf16.msra.mxu0 0
    %1730 = vmatpush.bf16.msra.mxu0 0
    %1731 = vmatpush.bf16.msra.mxu0 0
    %1732 = vmatpush.bf16.msra.mxu0 0
    %1733 = vmatpush.bf16.msra.mxu0 0
    %1734 = vmatpush.bf16.msra.mxu0 %v1701
    %1735 = vmatpush.bf16.msra.mxu0 %v1700
    %1736 = vmatmul.bf16.gmra.mxu0 %v1705
    %v1737 = vpop.f32.mrf.mxu0
    %v1738 = vadd.f32 0.0, %v1737
    %v1739 = vpop.f32.mrf.mxu0
    %v1740 = vadd.f32 0.0, %v1739
    %1741 = vmatmul.bf16.gmra.mxu0 %v1708
    %v1742 = vpop.f32.mrf.mxu0
    %v1743 = vadd.f32 0.0, %v1742
    %v1744 = vpop.f32.mrf.mxu0
    %v1745 = vadd.f32 0.0, %v1744
    %1746 = vmatmul.bf16.gmra.mxu0 %v1711
    %v1747 = vpop.f32.mrf.mxu0
    %v1748 = vadd.f32 0.0, %v1747
    %v1749 = vpop.f32.mrf.mxu0
    %v1750 = vadd.f32 0.0, %v1749
    %1751 = vmatmul.bf16.gmra.mxu0 %v1714
    %v1752 = vpop.f32.mrf.mxu0
    %v1753 = vadd.f32 0.0, %v1752
    %v1754 = vpop.f32.mrf.mxu0
    %v1755 = vadd.f32 0.0, %v1754
    %1756 = vmatmul.bf16.gmra.mxu0 %v1717
    %v1757 = vpop.f32.mrf.mxu0
    %v1758 = vadd.f32 0.0, %v1757
    %v1759 = vpop.f32.mrf.mxu0
    %v1760 = vadd.f32 0.0, %v1759
    %1761 = vmatmul.bf16.gmra.mxu0 %v1720
    %v1762 = vpop.f32.mrf.mxu0
    %v1763 = vadd.f32 0.0, %v1762
    %v1764 = vpop.f32.mrf.mxu0
    %v1765 = vadd.f32 0.0, %v1764
    %1766 = vmatmul.bf16.gmra.mxu0 %v1723
    %v1767 = vpop.f32.mrf.mxu0
    %v1768 = vadd.f32 0.0, %v1767
    %v1769 = vpop.f32.mrf.mxu0
    %v1770 = vadd.f32 0.0, %v1769
    %1771 = vmatmul.bf16.gmra.mxu0 %v1726
    %v1772 = vpop.f32.mrf.mxu0
    %v1773 = vadd.f32 0.0, %v1772
    %v1774 = vpop.f32.mrf.mxu0
    %1775 = vdwg.mxu0
    %v1776 = vadd.f32 %v1657, %v1738
    %v1777 = vadd.f32 %v1658, %v1740
    %v1778 = vadd.f32 %v1659, %v1743
    %v1779 = vadd.f32 %v1660, %v1745
    %v1780 = vadd.f32 %v1661, %v1748
    %v1781 = vadd.f32 %v1662, %v1750
    %v1782 = vadd.f32 %v1663, %v1753
    %v1783 = vadd.f32 %v1664, %v1755
    %v1784 = vadd.f32 %v1665, %v1758
    %v1785 = vadd.f32 %v1666, %v1760
    %v1786 = vadd.f32 %v1667, %v1763
    %v1787 = vadd.f32 %v1668, %v1765
    %v1788 = vadd.f32 %v1669, %v1768
    %v1789 = vadd.f32 %v1670, %v1770
    %v1790 = vadd.f32 %v1671, %v1773
    %v1791 = vld [vmem:[#allocation13] sm:$0x1]
    %v1793 = vperm.slane %v1791, 0
    %v1795 = vadd.f32 %v1776, %v1793
    %v1796 = vadd.f32 %v1777, %v1793
    %v1797 = vadd.f32 %v1778, %v1793
    %v1798 = vadd.f32 %v1779, %v1793
    %v1799 = vadd.f32 %v1780, %v1793
    %v1800 = vadd.f32 %v1781, %v1793
    %v1801 = vadd.f32 %v1782, %v1793
    %v1802 = vadd.f32 %v1783, %v1793
    %v1803 = vadd.f32 %v1784, %v1793
    %v1804 = vadd.f32 %v1785, %v1793
    %v1805 = vadd.f32 %v1786, %v1793
    %v1806 = vadd.f32 %v1787, %v1793
    %v1807 = vadd.f32 %v1788, %v1793
    %v1808 = vadd.f32 %v1789, %v1793
    %v1809 = vadd.f32 %v1790, %v1793
    %v1810 = vmax.f32 %v1795, 0.0
    %v1811 = vmax.f32 %v1796, 0.0
    %v1812 = vmax.f32 %v1797, 0.0
    %v1813 = vmax.f32 %v1798, 0.0
    %v1814 = vmax.f32 %v1799, 0.0
    %v1815 = vmax.f32 %v1800, 0.0
    %v1816 = vmax.f32 %v1801, 0.0
    %v1817 = vmax.f32 %v1802, 0.0
    %v1818 = vmax.f32 %v1803, 0.0
    %v1819 = vmax.f32 %v1804, 0.0
    %v1820 = vmax.f32 %v1805, 0.0
    %v1821 = vmax.f32 %v1806, 0.0
    %v1822 = vmax.f32 %v1807, 0.0
    %v1823 = vmax.f32 %v1808, 0.0
    %v1824 = vmax.f32 %v1809, 0.0
    %v1825 = vpack.c.bf16 %v1810, %v1810
    %v1826 = vpack.c.bf16 %v1811, %v1811
    %v1827 = vpack.c.bf16 %v1812, %v1812
    %v1828 = vpack.c.bf16 %v1813, %v1813
    %v1829 = vpack.c.bf16 %v1814, %v1814
    %v1830 = vpack.c.bf16 %v1815, %v1815
    %v1831 = vpack.c.bf16 %v1816, %v1816
    %v1832 = vpack.c.bf16 %v1817, %v1817
    %v1833 = vpack.c.bf16 %v1818, %v1818
    %v1834 = vpack.c.bf16 %v1819, %v1819
    %v1835 = vpack.c.bf16 %v1820, %v1820
    %v1836 = vpack.c.bf16 %v1821, %v1821
    %v1837 = vpack.c.bf16 %v1822, %v1822
    %v1838 = vpack.c.bf16 %v1823, %v1823
    %v1839 = vpack.c.bf16 %v1824, %v1824
    %v1840 = vld [vmem:[#allocation14] sm:$0xf]
    %v1841 = vld [vmem:[#allocation14 + $0x4] sm:$0xf]
    %v1842 = vld [vmem:[#allocation14 + $0x8] sm:$0xf]
    %v1843 = vld [vmem:[#allocation14 + $0xc] sm:$0xf]
    %v1844 = vld [vmem:[#allocation14 + $0x10] sm:$0xf]
    %v1845 = vld [vmem:[#allocation14 + $0x14] sm:$0xf]
    %v1846 = vld [vmem:[#allocation14 + $0x18] sm:$0xf]
    %v1847 = vld [vmem:[#allocation14 + $0x1c] sm:$0xf]
    %s1848 = scalar_lea.vmem [#allocation14], 32
    %v1849 = vld [vmem:[%s1848] sm:$0xf]
    %v1850 = vld [vmem:[%s1848 + $0x4] sm:$0xf]
    %v1851 = vld [vmem:[%s1848 + $0x8] sm:$0xf]
    %v1852 = vld [vmem:[%s1848 + $0xc] sm:$0xf]
    %v1853 = vld [vmem:[%s1848 + $0x10] sm:$0xf]
    %v1854 = vld [vmem:[%s1848 + $0x14] sm:$0xf]
    %v1855 = vld [vmem:[%s1848 + $0x18] sm:$0xf]
    %v1856 = vld [vmem:[%s1848 + $0x1c] sm:$0xf]
    %v1872 = vunpack.c.l.b16 %v1825
    %v1873 = vunpack.c.l.b16 %v1826
    %v1874 = vunpack.c.l.b16 %v1827
    %v1875 = vunpack.c.l.b16 %v1828
    %v1876 = vunpack.c.l.b16 %v1829
    %v1877 = vunpack.c.l.b16 %v1830
    %v1878 = vunpack.c.l.b16 %v1831
    %v1879 = vunpack.c.l.b16 %v1832
    %v1880 = vunpack.c.l.b16 %v1833
    %v1881 = vunpack.c.l.b16 %v1834
    %v1882 = vunpack.c.l.b16 %v1835
    %v1883 = vunpack.c.l.b16 %v1836
    %v1884 = vunpack.c.l.b16 %v1837
    %v1885 = vunpack.c.l.b16 %v1838
    %v1886 = vunpack.c.l.b16 %v1839
    %v1887 = vpack.c.b16 %v1873, %v1872
    %v1888 = vpack.c.b16 %v1875, %v1874
    %v1889 = vpack.c.b16 %v1877, %v1876
    %v1890 = vpack.c.b16 %v1879, %v1878
    %v1891 = vpack.c.b16 %v1881, %v1880
    %v1892 = vpack.c.b16 %v1883, %v1882
    %v1893 = vpack.c.b16 %v1885, %v1884
    %v1894 = vpack.c.b16 %v1886, %v1886
    %v1896 = vshrl.u32 %v1887, 16
    %v1898 = vshll.u32 %v1887, 16
    %v1900 = vrot.slane %v1898, 1
    %v1901 = vor.u32 %v1896, %v1900
    %v1903 = vshll.u32 %v1888, 16
    %v1905 = vrot.slane %v1903, 1
    %v1906 = vsel %vm471, %v1901, %v1905
    %v1907 = vshrl.u32 %v1888, 16
    %v1909 = vor.u32 %v1907, %v1905
    %v1911 = vshll.u32 %v1889, 16
    %v1913 = vrot.slane %v1911, 1
    %v1914 = vsel %vm471, %v1909, %v1913
    %v1915 = vshrl.u32 %v1889, 16
    %v1917 = vor.u32 %v1915, %v1913
    %v1919 = vshll.u32 %v1890, 16
    %v1921 = vrot.slane %v1919, 1
    %v1922 = vsel %vm471, %v1917, %v1921
    %v1923 = vshrl.u32 %v1890, 16
    %v1925 = vor.u32 %v1923, %v1921
    %v1927 = vshll.u32 %v1891, 16
    %v1929 = vrot.slane %v1927, 1
    %v1930 = vsel %vm471, %v1925, %v1929
    %v1931 = vshrl.u32 %v1891, 16
    %v1933 = vor.u32 %v1931, %v1929
    %v1935 = vshll.u32 %v1892, 16
    %v1937 = vrot.slane %v1935, 1
    %v1938 = vsel %vm471, %v1933, %v1937
    %v1939 = vshrl.u32 %v1892, 16
    %v1941 = vor.u32 %v1939, %v1937
    %v1943 = vshll.u32 %v1893, 16
    %v1945 = vrot.slane %v1943, 1
    %v1946 = vsel %vm471, %v1941, %v1945
    %v1947 = vshrl.u32 %v1893, 16
    %v1949 = vor.u32 %v1947, %v1945
    %v1951 = vshll.u32 %v1894, 16
    %v1953 = vrot.slane %v1951, 1
    %v1954 = vsel %vm471, %v1949, %v1953
    %v1955 = vshrl.u32 %v1894, 16
    %v1957 = vor.u32 %v1955, %v1953
    %v1966 = vunpack.c.l.b16 %v1849
    %v1967 = vunpack.c.l.b16 %v1850
    %v1968 = vunpack.c.l.b16 %v1851
    %v1969 = vunpack.c.l.b16 %v1852
    %v1970 = vunpack.c.l.b16 %v1853
    %v1971 = vunpack.c.l.b16 %v1854
    %v1972 = vunpack.c.l.b16 %v1855
    %v1973 = vunpack.c.l.b16 %v1856
    %v1974 = vpack.c.b16 %v1967, %v1966
    %v1975 = vpack.c.b16 %v1969, %v1968
    %v1976 = vpack.c.b16 %v1971, %v1970
    %v1977 = vpack.c.b16 %v1973, %v1972
    %vm1982 = vcmask 523264
    %v1984 = vsel %vm1982, %v1906, 0
    %v1987 = vsel %vm1982, %v1914, 0
    %v1990 = vsel %vm1982, %v1922, 0
    %v1993 = vsel %vm1982, %v1930, 0
    %v1996 = vsel %vm1982, %v1938, 0
    %v1999 = vsel %vm1982, %v1946, 0
    %v2002 = vsel %vm1982, %v1954, 0
    %v2005 = vsel %vm1982, %v1957, 0
    %2007 = vmatpush.bf16.msra.mxu0 0
    %2008 = vmatpush.bf16.msra.mxu0 0
    %2009 = vmatpush.bf16.msra.mxu0 0
    %2010 = vmatpush.bf16.msra.mxu0 0
    %2011 = vmatpush.bf16.msra.mxu0 %v1977
    %2012 = vmatpush.bf16.msra.mxu0 %v1976
    %2013 = vmatpush.bf16.msra.mxu0 %v1975
    %2014 = vmatpush.bf16.msra.mxu0 %v1974
    %2015 = vmatmul.bf16.gmra.mxu0 %v1984
    %v2016 = vpop.f32.mrf.mxu0
    %v2017 = vadd.f32 0.0, %v2016
    %v2018 = vpop.f32.mrf.mxu0
    %v2019 = vadd.f32 0.0, %v2018
    %2020 = vmatmul.bf16.gmra.mxu0 %v1987
    %v2021 = vpop.f32.mrf.mxu0
    %v2022 = vadd.f32 0.0, %v2021
    %v2023 = vpop.f32.mrf.mxu0
    %v2024 = vadd.f32 0.0, %v2023
    %2025 = vmatmul.bf16.gmra.mxu0 %v1990
    %v2026 = vpop.f32.mrf.mxu0
    %v2027 = vadd.f32 0.0, %v2026
    %v2028 = vpop.f32.mrf.mxu0
    %v2029 = vadd.f32 0.0, %v2028
    %2030 = vmatmul.bf16.gmra.mxu0 %v1993
    %v2031 = vpop.f32.mrf.mxu0
    %v2032 = vadd.f32 0.0, %v2031
    %v2033 = vpop.f32.mrf.mxu0
    %v2034 = vadd.f32 0.0, %v2033
    %2035 = vmatmul.bf16.gmra.mxu0 %v1996
    %v2036 = vpop.f32.mrf.mxu0
    %v2037 = vadd.f32 0.0, %v2036
    %v2038 = vpop.f32.mrf.mxu0
    %v2039 = vadd.f32 0.0, %v2038
    %2040 = vmatmul.bf16.gmra.mxu0 %v1999
    %v2041 = vpop.f32.mrf.mxu0
    %v2042 = vadd.f32 0.0, %v2041
    %v2043 = vpop.f32.mrf.mxu0
    %v2044 = vadd.f32 0.0, %v2043
    %2045 = vmatmul.bf16.gmra.mxu0 %v2002
    %v2046 = vpop.f32.mrf.mxu0
    %v2047 = vadd.f32 0.0, %v2046
    %v2048 = vpop.f32.mrf.mxu0
    %v2049 = vadd.f32 0.0, %v2048
    %2050 = vmatmul.bf16.gmra.mxu0 %v2005
    %v2051 = vpop.f32.mrf.mxu0
    %v2052 = vadd.f32 0.0, %v2051
    %v2053 = vpop.f32.mrf.mxu0
    %2054 = vdwg.mxu0
    %v2063 = vunpack.c.l.b16 %v1840
    %v2064 = vunpack.c.l.b16 %v1841
    %v2065 = vunpack.c.l.b16 %v1842
    %v2066 = vunpack.c.l.b16 %v1843
    %v2067 = vunpack.c.l.b16 %v1844
    %v2068 = vunpack.c.l.b16 %v1845
    %v2069 = vunpack.c.l.b16 %v1846
    %v2070 = vunpack.c.l.b16 %v1847
    %v2071 = vpack.c.b16 %v2064, %v2063
    %v2072 = vpack.c.b16 %v2066, %v2065
    %v2073 = vpack.c.b16 %v2068, %v2067
    %v2074 = vpack.c.b16 %v2070, %v2069
    %v2079 = vsel %vm1982, %v1887, 0
    %v2081 = vsel %vm1982, %v1888, 0
    %v2083 = vsel %vm1982, %v1889, 0
    %v2085 = vsel %vm1982, %v1890, 0
    %v2087 = vsel %vm1982, %v1891, 0
    %v2089 = vsel %vm1982, %v1892, 0
    %v2091 = vsel %vm1982, %v1893, 0
    %v2093 = vsel %vm1982, %v1894, 0
    %2095 = vmatpush.bf16.msra.mxu0 0
    %2096 = vmatpush.bf16.msra.mxu0 0
    %2097 = vmatpush.bf16.msra.mxu0 0
    %2098 = vmatpush.bf16.msra.mxu0 0
    %2099 = vmatpush.bf16.msra.mxu0 %v2074
    %2100 = vmatpush.bf16.msra.mxu0 %v2073
    %2101 = vmatpush.bf16.msra.mxu0 %v2072
    %2102 = vmatpush.bf16.msra.mxu0 %v2071
    %2103 = vmatmul.bf16.gmra.mxu0 %v2079
    %v2104 = vpop.f32.mrf.mxu0
    %v2105 = vadd.f32 %v2017, %v2104
    %v2106 = vpop.f32.mrf.mxu0
    %v2107 = vadd.f32 %v2019, %v2106
    %2108 = vmatmul.bf16.gmra.mxu0 %v2081
    %v2109 = vpop.f32.mrf.mxu0
    %v2110 = vadd.f32 %v2022, %v2109
    %v2111 = vpop.f32.mrf.mxu0
    %v2112 = vadd.f32 %v2024, %v2111
    %2113 = vmatmul.bf16.gmra.mxu0 %v2083
    %v2114 = vpop.f32.mrf.mxu0
    %v2115 = vadd.f32 %v2027, %v2114
    %v2116 = vpop.f32.mrf.mxu0
    %v2117 = vadd.f32 %v2029, %v2116
    %2118 = vmatmul.bf16.gmra.mxu0 %v2085
    %v2119 = vpop.f32.mrf.mxu0
    %v2120 = vadd.f32 %v2032, %v2119
    %v2121 = vpop.f32.mrf.mxu0
    %v2122 = vadd.f32 %v2034, %v2121
    %2123 = vmatmul.bf16.gmra.mxu0 %v2087
    %v2124 = vpop.f32.mrf.mxu0
    %v2125 = vadd.f32 %v2037, %v2124
    %v2126 = vpop.f32.mrf.mxu0
    %v2127 = vadd.f32 %v2039, %v2126
    %2128 = vmatmul.bf16.gmra.mxu0 %v2089
    %v2129 = vpop.f32.mrf.mxu0
    %v2130 = vadd.f32 %v2042, %v2129
    %v2131 = vpop.f32.mrf.mxu0
    %v2132 = vadd.f32 %v2044, %v2131
    %2133 = vmatmul.bf16.gmra.mxu0 %v2091
    %v2134 = vpop.f32.mrf.mxu0
    %v2135 = vadd.f32 %v2047, %v2134
    %v2136 = vpop.f32.mrf.mxu0
    %v2137 = vadd.f32 %v2049, %v2136
    %2138 = vmatmul.bf16.gmra.mxu0 %v2093
    %v2139 = vpop.f32.mrf.mxu0
    %v2140 = vadd.f32 %v2052, %v2139
    %v2141 = vpop.f32.mrf.mxu0
    %2142 = vdwg.mxu0
    %s2143 = scalar_lea.vmem [#allocation14], 64
    %v2144 = vld [vmem:[%s2143] sm:$0xf]
    %v2145 = vld [vmem:[%s2143 + $0x4] sm:$0xf]
    %v2146 = vld [vmem:[%s2143 + $0x8] sm:$0xf]
    %v2147 = vld [vmem:[%s2143 + $0xc] sm:$0xf]
    %v2148 = vld [vmem:[%s2143 + $0x10] sm:$0xf]
    %v2149 = vld [vmem:[%s2143 + $0x14] sm:$0xf]
    %v2150 = vld [vmem:[%s2143 + $0x18] sm:$0xf]
    %v2151 = vld [vmem:[%s2143 + $0x1c] sm:$0xf]
    %v2152 = vrot.slane %v1887, 1
    %v2153 = vrot.slane %v1888, 1
    %v2154 = vsel %vm708, %v2152, %v2153
    %v2155 = vrot.slane %v1889, 1
    %v2156 = vsel %vm708, %v2153, %v2155
    %v2157 = vrot.slane %v1890, 1
    %v2158 = vsel %vm708, %v2155, %v2157
    %v2159 = vrot.slane %v1891, 1
    %v2160 = vsel %vm708, %v2157, %v2159
    %v2161 = vrot.slane %v1892, 1
    %v2162 = vsel %vm708, %v2159, %v2161
    %v2163 = vrot.slane %v1893, 1
    %v2164 = vsel %vm708, %v2161, %v2163
    %v2165 = vrot.slane %v1894, 1
    %v2166 = vsel %vm708, %v2163, %v2165
    %v2175 = vunpack.c.l.b16 %v2144
    %v2176 = vunpack.c.l.b16 %v2145
    %v2177 = vunpack.c.l.b16 %v2146
    %v2178 = vunpack.c.l.b16 %v2147
    %v2179 = vunpack.c.l.b16 %v2148
    %v2180 = vunpack.c.l.b16 %v2149
    %v2181 = vunpack.c.l.b16 %v2150
    %v2182 = vunpack.c.l.b16 %v2151
    %v2183 = vpack.c.b16 %v2176, %v2175
    %v2184 = vpack.c.b16 %v2178, %v2177
    %v2185 = vpack.c.b16 %v2180, %v2179
    %v2186 = vpack.c.b16 %v2182, %v2181
    %v2192 = vsel %vm1982, %v2154, 0
    %v2195 = vsel %vm1982, %v2156, 0
    %v2198 = vsel %vm1982, %v2158, 0
    %v2201 = vsel %vm1982, %v2160, 0
    %v2204 = vsel %vm1982, %v2162, 0
    %v2207 = vsel %vm1982, %v2164, 0
    %v2210 = vsel %vm1982, %v2166, 0
    %v2213 = vsel %vm1982, %v2165, 0
    %2215 = vmatpush.bf16.msra.mxu0 0
    %2216 = vmatpush.bf16.msra.mxu0 0
    %2217 = vmatpush.bf16.msra.mxu0 0
    %2218 = vmatpush.bf16.msra.mxu0 0
    %2219 = vmatpush.bf16.msra.mxu0 %v2186
    %2220 = vmatpush.bf16.msra.mxu0 %v2185
    %2221 = vmatpush.bf16.msra.mxu0 %v2184
    %2222 = vmatpush.bf16.msra.mxu0 %v2183
    %2223 = vmatmul.bf16.gmra.mxu0 %v2192
    %v2224 = vpop.f32.mrf.mxu0
    %v2225 = vadd.f32 0.0, %v2224
    %v2226 = vpop.f32.mrf.mxu0
    %v2227 = vadd.f32 0.0, %v2226
    %2228 = vmatmul.bf16.gmra.mxu0 %v2195
    %v2229 = vpop.f32.mrf.mxu0
    %v2230 = vadd.f32 0.0, %v2229
    %v2231 = vpop.f32.mrf.mxu0
    %v2232 = vadd.f32 0.0, %v2231
    %2233 = vmatmul.bf16.gmra.mxu0 %v2198
    %v2234 = vpop.f32.mrf.mxu0
    %v2235 = vadd.f32 0.0, %v2234
    %v2236 = vpop.f32.mrf.mxu0
    %v2237 = vadd.f32 0.0, %v2236
    %2238 = vmatmul.bf16.gmra.mxu0 %v2201
    %v2239 = vpop.f32.mrf.mxu0
    %v2240 = vadd.f32 0.0, %v2239
    %v2241 = vpop.f32.mrf.mxu0
    %v2242 = vadd.f32 0.0, %v2241
    %2243 = vmatmul.bf16.gmra.mxu0 %v2204
    %v2244 = vpop.f32.mrf.mxu0
    %v2245 = vadd.f32 0.0, %v2244
    %v2246 = vpop.f32.mrf.mxu0
    %v2247 = vadd.f32 0.0, %v2246
    %2248 = vmatmul.bf16.gmra.mxu0 %v2207
    %v2249 = vpop.f32.mrf.mxu0
    %v2250 = vadd.f32 0.0, %v2249
    %v2251 = vpop.f32.mrf.mxu0
    %v2252 = vadd.f32 0.0, %v2251
    %2253 = vmatmul.bf16.gmra.mxu0 %v2210
    %v2254 = vpop.f32.mrf.mxu0
    %v2255 = vadd.f32 0.0, %v2254
    %v2256 = vpop.f32.mrf.mxu0
    %v2257 = vadd.f32 0.0, %v2256
    %2258 = vmatmul.bf16.gmra.mxu0 %v2213
    %v2259 = vpop.f32.mrf.mxu0
    %v2260 = vadd.f32 0.0, %v2259
    %v2261 = vpop.f32.mrf.mxu0
    %2262 = vdwg.mxu0
    %v2263 = vadd.f32 %v2105, %v2225
    %v2264 = vadd.f32 %v2107, %v2227
    %v2265 = vadd.f32 %v2110, %v2230
    %v2266 = vadd.f32 %v2112, %v2232
    %v2267 = vadd.f32 %v2115, %v2235
    %v2268 = vadd.f32 %v2117, %v2237
    %v2269 = vadd.f32 %v2120, %v2240
    %v2270 = vadd.f32 %v2122, %v2242
    %v2271 = vadd.f32 %v2125, %v2245
    %v2272 = vadd.f32 %v2127, %v2247
    %v2273 = vadd.f32 %v2130, %v2250
    %v2274 = vadd.f32 %v2132, %v2252
    %v2275 = vadd.f32 %v2135, %v2255
    %v2276 = vadd.f32 %v2137, %v2257
    %v2277 = vadd.f32 %v2140, %v2260
    %s2278 = scalar_lea.vmem [#allocation14], 96
    %v2279 = vld [vmem:[%s2278] sm:$0xf]
    %v2280 = vld [vmem:[%s2278 + $0x4] sm:$0xf]
    %v2281 = vld [vmem:[%s2278 + $0x8] sm:$0xf]
    %v2282 = vld [vmem:[%s2278 + $0xc] sm:$0xf]
    %v2283 = vld [vmem:[%s2278 + $0x10] sm:$0xf]
    %v2284 = vld [vmem:[%s2278 + $0x14] sm:$0xf]
    %v2285 = vld [vmem:[%s2278 + $0x18] sm:$0xf]
    %v2286 = vld [vmem:[%s2278 + $0x1c] sm:$0xf]
    %v2287 = vrot.slane %v1896, 1
    %v2288 = vrot.slane %v1898, 2
    %v2289 = vor.u32 %v2287, %v2288
    %v2290 = vrot.slane %v1907, 1
    %v2291 = vrot.slane %v1903, 2
    %v2292 = vor.u32 %v2290, %v2291
    %v2293 = vsel %vm832, %v2289, %v2292
    %v2294 = vrot.slane %v1915, 1
    %v2295 = vrot.slane %v1911, 2
    %v2296 = vor.u32 %v2294, %v2295
    %v2297 = vsel %vm832, %v2292, %v2296
    %v2298 = vrot.slane %v1923, 1
    %v2299 = vrot.slane %v1919, 2
    %v2300 = vor.u32 %v2298, %v2299
    %v2301 = vsel %vm832, %v2296, %v2300
    %v2302 = vrot.slane %v1931, 1
    %v2303 = vrot.slane %v1927, 2
    %v2304 = vor.u32 %v2302, %v2303
    %v2305 = vsel %vm832, %v2300, %v2304
    %v2306 = vrot.slane %v1939, 1
    %v2307 = vrot.slane %v1935, 2
    %v2308 = vor.u32 %v2306, %v2307
    %v2309 = vsel %vm832, %v2304, %v2308
    %v2310 = vrot.slane %v1947, 1
    %v2311 = vrot.slane %v1943, 2
    %v2312 = vor.u32 %v2310, %v2311
    %v2313 = vsel %vm832, %v2308, %v2312
    %v2314 = vrot.slane %v1955, 1
    %v2315 = vrot.slane %v1951, 2
    %v2316 = vor.u32 %v2314, %v2315
    %v2317 = vsel %vm832, %v2312, %v2316
    %v2326 = vunpack.c.l.b16 %v2279
    %v2327 = vunpack.c.l.b16 %v2280
    %v2328 = vunpack.c.l.b16 %v2281
    %v2329 = vunpack.c.l.b16 %v2282
    %v2330 = vunpack.c.l.b16 %v2283
    %v2331 = vunpack.c.l.b16 %v2284
    %v2332 = vunpack.c.l.b16 %v2285
    %v2333 = vunpack.c.l.b16 %v2286
    %v2334 = vpack.c.b16 %v2327, %v2326
    %v2335 = vpack.c.b16 %v2329, %v2328
    %v2336 = vpack.c.b16 %v2331, %v2330
    %v2337 = vpack.c.b16 %v2333, %v2332
    %v2343 = vsel %vm1982, %v2293, 0
    %v2346 = vsel %vm1982, %v2297, 0
    %v2349 = vsel %vm1982, %v2301, 0
    %v2352 = vsel %vm1982, %v2305, 0
    %v2355 = vsel %vm1982, %v2309, 0
    %v2358 = vsel %vm1982, %v2313, 0
    %v2361 = vsel %vm1982, %v2317, 0
    %v2364 = vsel %vm1982, %v2316, 0
    %2366 = vmatpush.bf16.msra.mxu0 0
    %2367 = vmatpush.bf16.msra.mxu0 0
    %2368 = vmatpush.bf16.msra.mxu0 0
    %2369 = vmatpush.bf16.msra.mxu0 0
    %2370 = vmatpush.bf16.msra.mxu0 %v2337
    %2371 = vmatpush.bf16.msra.mxu0 %v2336
    %2372 = vmatpush.bf16.msra.mxu0 %v2335
    %2373 = vmatpush.bf16.msra.mxu0 %v2334
    %2374 = vmatmul.bf16.gmra.mxu0 %v2343
    %v2375 = vpop.f32.mrf.mxu0
    %v2376 = vadd.f32 0.0, %v2375
    %v2377 = vpop.f32.mrf.mxu0
    %v2378 = vadd.f32 0.0, %v2377
    %2379 = vmatmul.bf16.gmra.mxu0 %v2346
    %v2380 = vpop.f32.mrf.mxu0
    %v2381 = vadd.f32 0.0, %v2380
    %v2382 = vpop.f32.mrf.mxu0
    %v2383 = vadd.f32 0.0, %v2382
    %2384 = vmatmul.bf16.gmra.mxu0 %v2349
    %v2385 = vpop.f32.mrf.mxu0
    %v2386 = vadd.f32 0.0, %v2385
    %v2387 = vpop.f32.mrf.mxu0
    %v2388 = vadd.f32 0.0, %v2387
    %2389 = vmatmul.bf16.gmra.mxu0 %v2352
    %v2390 = vpop.f32.mrf.mxu0
    %v2391 = vadd.f32 0.0, %v2390
    %v2392 = vpop.f32.mrf.mxu0
    %v2393 = vadd.f32 0.0, %v2392
    %2394 = vmatmul.bf16.gmra.mxu0 %v2355
    %v2395 = vpop.f32.mrf.mxu0
    %v2396 = vadd.f32 0.0, %v2395
    %v2397 = vpop.f32.mrf.mxu0
    %v2398 = vadd.f32 0.0, %v2397
    %2399 = vmatmul.bf16.gmra.mxu0 %v2358
    %v2400 = vpop.f32.mrf.mxu0
    %v2401 = vadd.f32 0.0, %v2400
    %v2402 = vpop.f32.mrf.mxu0
    %v2403 = vadd.f32 0.0, %v2402
    %2404 = vmatmul.bf16.gmra.mxu0 %v2361
    %v2405 = vpop.f32.mrf.mxu0
    %v2406 = vadd.f32 0.0, %v2405
    %v2407 = vpop.f32.mrf.mxu0
    %v2408 = vadd.f32 0.0, %v2407
    %2409 = vmatmul.bf16.gmra.mxu0 %v2364
    %v2410 = vpop.f32.mrf.mxu0
    %v2411 = vadd.f32 0.0, %v2410
    %v2412 = vpop.f32.mrf.mxu0
    %2413 = vdwg.mxu0
    %v2414 = vadd.f32 %v2263, %v2376
    %v2415 = vadd.f32 %v2264, %v2378
    %v2416 = vadd.f32 %v2265, %v2381
    %v2417 = vadd.f32 %v2266, %v2383
    %v2418 = vadd.f32 %v2267, %v2386
    %v2419 = vadd.f32 %v2268, %v2388
    %v2420 = vadd.f32 %v2269, %v2391
    %v2421 = vadd.f32 %v2270, %v2393
    %v2422 = vadd.f32 %v2271, %v2396
    %v2423 = vadd.f32 %v2272, %v2398
    %v2424 = vadd.f32 %v2273, %v2401
    %v2425 = vadd.f32 %v2274, %v2403
    %v2426 = vadd.f32 %v2275, %v2406
    %v2427 = vadd.f32 %v2276, %v2408
    %v2428 = vadd.f32 %v2277, %v2411
    %s2429 = scalar_lea.vmem [#allocation14], 128
    %v2430 = vld [vmem:[%s2429] sm:$0xf]
    %v2431 = vld [vmem:[%s2429 + $0x4] sm:$0xf]
    %v2432 = vld [vmem:[%s2429 + $0x8] sm:$0xf]
    %v2433 = vld [vmem:[%s2429 + $0xc] sm:$0xf]
    %v2434 = vld [vmem:[%s2429 + $0x10] sm:$0xf]
    %v2435 = vld [vmem:[%s2429 + $0x14] sm:$0xf]
    %v2436 = vld [vmem:[%s2429 + $0x18] sm:$0xf]
    %v2437 = vld [vmem:[%s2429 + $0x1c] sm:$0xf]
    %v2438 = vrot.slane %v1887, 2
    %v2439 = vrot.slane %v1888, 2
    %v2440 = vsel %vm972, %v2438, %v2439
    %v2441 = vrot.slane %v1889, 2
    %v2442 = vsel %vm972, %v2439, %v2441
    %v2443 = vrot.slane %v1890, 2
    %v2444 = vsel %vm972, %v2441, %v2443
    %v2445 = vrot.slane %v1891, 2
    %v2446 = vsel %vm972, %v2443, %v2445
    %v2447 = vrot.slane %v1892, 2
    %v2448 = vsel %vm972, %v2445, %v2447
    %v2449 = vrot.slane %v1893, 2
    %v2450 = vsel %vm972, %v2447, %v2449
    %v2451 = vrot.slane %v1894, 2
    %v2452 = vsel %vm972, %v2449, %v2451
    %v2461 = vunpack.c.l.b16 %v2430
    %v2462 = vunpack.c.l.b16 %v2431
    %v2463 = vunpack.c.l.b16 %v2432
    %v2464 = vunpack.c.l.b16 %v2433
    %v2465 = vunpack.c.l.b16 %v2434
    %v2466 = vunpack.c.l.b16 %v2435
    %v2467 = vunpack.c.l.b16 %v2436
    %v2468 = vunpack.c.l.b16 %v2437
    %v2469 = vpack.c.b16 %v2462, %v2461
    %v2470 = vpack.c.b16 %v2464, %v2463
    %v2471 = vpack.c.b16 %v2466, %v2465
    %v2472 = vpack.c.b16 %v2468, %v2467
    %v2478 = vsel %vm1982, %v2440, 0
    %v2481 = vsel %vm1982, %v2442, 0
    %v2484 = vsel %vm1982, %v2444, 0
    %v2487 = vsel %vm1982, %v2446, 0
    %v2490 = vsel %vm1982, %v2448, 0
    %v2493 = vsel %vm1982, %v2450, 0
    %v2496 = vsel %vm1982, %v2452, 0
    %v2499 = vsel %vm1982, %v2451, 0
    %2501 = vmatpush.bf16.msra.mxu0 0
    %2502 = vmatpush.bf16.msra.mxu0 0
    %2503 = vmatpush.bf16.msra.mxu0 0
    %2504 = vmatpush.bf16.msra.mxu0 0
    %2505 = vmatpush.bf16.msra.mxu0 %v2472
    %2506 = vmatpush.bf16.msra.mxu0 %v2471
    %2507 = vmatpush.bf16.msra.mxu0 %v2470
    %2508 = vmatpush.bf16.msra.mxu0 %v2469
    %2509 = vmatmul.bf16.gmra.mxu0 %v2478
    %v2510 = vpop.f32.mrf.mxu0
    %v2511 = vadd.f32 0.0, %v2510
    %v2512 = vpop.f32.mrf.mxu0
    %v2513 = vadd.f32 0.0, %v2512
    %2514 = vmatmul.bf16.gmra.mxu0 %v2481
    %v2515 = vpop.f32.mrf.mxu0
    %v2516 = vadd.f32 0.0, %v2515
    %v2517 = vpop.f32.mrf.mxu0
    %v2518 = vadd.f32 0.0, %v2517
    %2519 = vmatmul.bf16.gmra.mxu0 %v2484
    %v2520 = vpop.f32.mrf.mxu0
    %v2521 = vadd.f32 0.0, %v2520
    %v2522 = vpop.f32.mrf.mxu0
    %v2523 = vadd.f32 0.0, %v2522
    %2524 = vmatmul.bf16.gmra.mxu0 %v2487
    %v2525 = vpop.f32.mrf.mxu0
    %v2526 = vadd.f32 0.0, %v2525
    %v2527 = vpop.f32.mrf.mxu0
    %v2528 = vadd.f32 0.0, %v2527
    %2529 = vmatmul.bf16.gmra.mxu0 %v2490
    %v2530 = vpop.f32.mrf.mxu0
    %v2531 = vadd.f32 0.0, %v2530
    %v2532 = vpop.f32.mrf.mxu0
    %v2533 = vadd.f32 0.0, %v2532
    %2534 = vmatmul.bf16.gmra.mxu0 %v2493
    %v2535 = vpop.f32.mrf.mxu0
    %v2536 = vadd.f32 0.0, %v2535
    %v2537 = vpop.f32.mrf.mxu0
    %v2538 = vadd.f32 0.0, %v2537
    %2539 = vmatmul.bf16.gmra.mxu0 %v2496
    %v2540 = vpop.f32.mrf.mxu0
    %v2541 = vadd.f32 0.0, %v2540
    %v2542 = vpop.f32.mrf.mxu0
    %v2543 = vadd.f32 0.0, %v2542
    %2544 = vmatmul.bf16.gmra.mxu0 %v2499
    %v2545 = vpop.f32.mrf.mxu0
    %v2546 = vadd.f32 0.0, %v2545
    %v2547 = vpop.f32.mrf.mxu0
    %2548 = vdwg.mxu0
    %v2549 = vadd.f32 %v2414, %v2511
    %v2550 = vadd.f32 %v2415, %v2513
    %v2551 = vadd.f32 %v2416, %v2516
    %v2552 = vadd.f32 %v2417, %v2518
    %v2553 = vadd.f32 %v2418, %v2521
    %v2554 = vadd.f32 %v2419, %v2523
    %v2555 = vadd.f32 %v2420, %v2526
    %v2556 = vadd.f32 %v2421, %v2528
    %v2557 = vadd.f32 %v2422, %v2531
    %v2558 = vadd.f32 %v2423, %v2533
    %v2559 = vadd.f32 %v2424, %v2536
    %v2560 = vadd.f32 %v2425, %v2538
    %v2561 = vadd.f32 %v2426, %v2541
    %v2562 = vadd.f32 %v2427, %v2543
    %v2563 = vadd.f32 %v2428, %v2546
    %v2564 = vld [vmem:[#allocation16] sm:$0x1]
    %v2566 = vperm.slane %v2564, 0
    %v2568 = vadd.f32 %v2549, %v2566
    %v2569 = vadd.f32 %v2550, %v2566
    %v2570 = vadd.f32 %v2551, %v2566
    %v2571 = vadd.f32 %v2552, %v2566
    %v2572 = vadd.f32 %v2553, %v2566
    %v2573 = vadd.f32 %v2554, %v2566
    %v2574 = vadd.f32 %v2555, %v2566
    %v2575 = vadd.f32 %v2556, %v2566
    %v2576 = vadd.f32 %v2557, %v2566
    %v2577 = vadd.f32 %v2558, %v2566
    %v2578 = vadd.f32 %v2559, %v2566
    %v2579 = vadd.f32 %v2560, %v2566
    %v2580 = vadd.f32 %v2561, %v2566
    %v2581 = vadd.f32 %v2562, %v2566
    %v2582 = vadd.f32 %v2563, %v2566
    %v2583 = vmax.f32 %v2568, 0.0
    %v2584 = vmax.f32 %v2569, 0.0
    %v2585 = vmax.f32 %v2570, 0.0
    %v2586 = vmax.f32 %v2571, 0.0
    %v2587 = vmax.f32 %v2572, 0.0
    %v2588 = vmax.f32 %v2573, 0.0
    %v2589 = vmax.f32 %v2574, 0.0
    %v2590 = vmax.f32 %v2575, 0.0
    %v2591 = vmax.f32 %v2576, 0.0
    %v2592 = vmax.f32 %v2577, 0.0
    %v2593 = vmax.f32 %v2578, 0.0
    %v2594 = vmax.f32 %v2579, 0.0
    %v2595 = vmax.f32 %v2580, 0.0
    %v2596 = vmax.f32 %v2581, 0.0
    %v2597 = vmax.f32 %v2582, 0.0
    %v2598 = vlaneseq
    %v2599 = vand.u32 %v2598, 127
    %v2600 = vmul.u32 %v239, 64
    %vm2601 = vcmp.ge.s32.totalorder %v2599, %v2600
    %v2602 = vadd.s32 %v2600, 52
    %vm2603 = vcmp.lt.s32.totalorder %v2599, %v2602
    %vm2604 = vmand %vm2601, %vm2603
    %v2605 = vsel %vm2604, 1, 0
    %v2606 = vcvt.s32.f32 %v2605
    %v2607 = vpack.c.bf16 %v2606, %v2606
    %v2608 = vpack.c.bf16 %v2584, %v2583
    %v2609 = vpack.c.bf16 %v2586, %v2585
    %v2610 = vpack.c.bf16 %v2588, %v2587
    %v2611 = vpack.c.bf16 %v2590, %v2589
    %v2612 = vpack.c.bf16 %v2592, %v2591
    %v2613 = vpack.c.bf16 %v2594, %v2593
    %v2614 = vpack.c.bf16 %v2596, %v2595
    %v2615 = vpack.c.bf16 %v2597, %v2597
    %vm2616 = vcmask 949248
    %v2618 = vsel %vm2616, %v2607, 0
    %v2621 = vsel %vm341, %v2615, 0
    %2623 = vmatpush.bf16.msra.mxu0 %v2621
    %2624 = vmatpush.bf16.msra.mxu0 %v2614
    %2625 = vmatpush.bf16.msra.mxu0 %v2613
    %2626 = vmatpush.bf16.msra.mxu0 %v2612
    %2627 = vmatpush.bf16.msra.mxu0 %v2611
    %2628 = vmatpush.bf16.msra.mxu0 %v2610
    %2629 = vmatpush.bf16.msra.mxu0 %v2609
    %2630 = vmatpush.bf16.msra.mxu0 %v2608
    %2631 = vmatmul.bf16.gmra.mxu0 %v2618
    %v2632 = vpop.f32.mrf.mxu0
    %v2633 = vadd.f32 0.0, %v2632
    %v2634 = vpop.f32.mrf.mxu0
    %2635 = vdwg.mxu0
    %v2636 = vmul.f32 %v2633, 0.01923077
    %v2637 = vld [vmem:[#allocation17] sm:$0xff]
    %v2638 = vld [vmem:[#allocation17 + $0x8] sm:$0xff]
    %v2639 = vld [vmem:[#allocation17 + $0x10] sm:$0xff]
    %v2640 = vld [vmem:[#allocation17 + $0x18] sm:$0xff]
    %v2641 = vld [vmem:[#allocation17 + $0x20] sm:$0xff]
    %v2642 = vld [vmem:[#allocation17 + $0x28] sm:$0xff]
    %v2643 = vld [vmem:[#allocation17 + $0x30] sm:$0xff]
    %v2644 = vld [vmem:[#allocation17 + $0x38] sm:$0xff]
    %v2645 = vld [vmem:[#allocation17 + $0x40] sm:$0xff]
    %v2646 = vld [vmem:[#allocation17 + $0x48] sm:$0xff]
    %v2647 = vld [vmem:[#allocation17 + $0x50] sm:$0xff]
    %v2648 = vld [vmem:[#allocation17 + $0x58] sm:$0xff]
    %v2649 = vld [vmem:[#allocation17 + $0x60] sm:$0xff]
    %v2650 = vld [vmem:[#allocation17 + $0x68] sm:$0xff]
    %v2651 = vld [vmem:[#allocation17 + $0x70] sm:$0xff]
    %v2652 = vld [vmem:[#allocation17 + $0x78] sm:$0xff]
    %v2653 = vld [vmem:[#allocation17 + $0x80] sm:$0xff]
    %v2654 = vld [vmem:[#allocation17 + $0x88] sm:$0xff]
    %v2655 = vld [vmem:[#allocation17 + $0x90] sm:$0xff]
    %v2656 = vld [vmem:[#allocation17 + $0x98] sm:$0xff]
    %v2657 = vld [vmem:[#allocation17 + $0xa0] sm:$0xff]
    %v2658 = vld [vmem:[#allocation17 + $0xa8] sm:$0xff]
    %v2659 = vld [vmem:[#allocation17 + $0xb0] sm:$0xff]
    %v2660 = vld [vmem:[#allocation17 + $0xb8] sm:$0xff]
    %v2661 = vld [vmem:[#allocation17 + $0xc0] sm:$0xff]
    %v2662 = vld [vmem:[#allocation17 + $0xc8] sm:$0xff]
    %v2663 = vld [vmem:[#allocation17 + $0xd0] sm:$0xff]
    %v2664 = vld [vmem:[#allocation17 + $0xd8] sm:$0xff]
    %v2665 = vld [vmem:[#allocation17 + $0xe0] sm:$0xff]
    %v2666 = vld [vmem:[#allocation17 + $0xe8] sm:$0xff]
    %v2667 = vld [vmem:[#allocation17 + $0xf0] sm:$0xff]
    %v2668 = vld [vmem:[#allocation17 + $0xf8] sm:$0xff]
    %v2669 = vld [vmem:[#allocation17 + $0x100] sm:$0xff]
    %v2670 = vld [vmem:[#allocation17 + $0x108] sm:$0xff]
    %v2671 = vld [vmem:[#allocation17 + $0x110] sm:$0xff]
    %v2672 = vld [vmem:[#allocation17 + $0x118] sm:$0xff]
    %v2673 = vld [vmem:[#allocation17 + $0x120] sm:$0xff]
    %v2674 = vld [vmem:[#allocation17 + $0x128] sm:$0xff]
    %v2675 = vld [vmem:[#allocation17 + $0x130] sm:$0xff]
    %v2676 = vld [vmem:[#allocation17 + $0x138] sm:$0xff]
    %v2677 = vld [vmem:[#allocation17 + $0x140] sm:$0xff]
    %v2678 = vld [vmem:[#allocation17 + $0x148] sm:$0xff]
    %v2679 = vld [vmem:[#allocation17 + $0x150] sm:$0xff]
    %v2680 = vld [vmem:[#allocation17 + $0x158] sm:$0xff]
    %v2681 = vld [vmem:[#allocation17 + $0x160] sm:$0xff]
    %v2682 = vld [vmem:[#allocation17 + $0x168] sm:$0xff]
    %v2683 = vld [vmem:[#allocation17 + $0x170] sm:$0xff]
    %v2684 = vld [vmem:[#allocation17 + $0x178] sm:$0xff]
    %v2685 = vld [vmem:[#allocation19] sm:$0xff]
    %v2686 = vpack.c.bf16 %v2636, %v2636
    %v2688 = vperm.slane %v2685, 0
    %v2689 = vperm.slane %v2685, 1
    %v2690 = vperm.slane %v2685, 2
    %v2691 = vperm.slane %v2685, 3
    %v2692 = vperm.slane %v2685, 4
    %v2693 = vperm.slane %v2685, 5
    %v2694 = vperm.slane %v2685, 6
    %v2695 = vperm.slane %v2685, 7
    %v2752 = vunpack.c.l.b16 %v2637
    %v2753 = vunpack.c.h.b16 %v2637
    %v2754 = vunpack.c.l.b16 %v2638
    %v2755 = vunpack.c.h.b16 %v2638
    %v2756 = vunpack.c.l.b16 %v2639
    %v2757 = vunpack.c.h.b16 %v2639
    %v2758 = vunpack.c.l.b16 %v2640
    %v2759 = vunpack.c.h.b16 %v2640
    %v2760 = vunpack.c.l.b16 %v2641
    %v2761 = vunpack.c.h.b16 %v2641
    %v2762 = vunpack.c.l.b16 %v2642
    %v2763 = vunpack.c.h.b16 %v2642
    %v2764 = vunpack.c.l.b16 %v2643
    %v2765 = vunpack.c.h.b16 %v2643
    %v2766 = vunpack.c.l.b16 %v2644
    %v2767 = vunpack.c.h.b16 %v2644
    %v2768 = vunpack.c.l.b16 %v2645
    %v2769 = vunpack.c.h.b16 %v2645
    %v2770 = vunpack.c.l.b16 %v2646
    %v2771 = vunpack.c.h.b16 %v2646
    %v2772 = vunpack.c.l.b16 %v2647
    %v2773 = vunpack.c.h.b16 %v2647
    %v2774 = vunpack.c.l.b16 %v2648
    %v2775 = vunpack.c.h.b16 %v2648
    %v2776 = vunpack.c.l.b16 %v2649
    %v2777 = vunpack.c.h.b16 %v2649
    %v2778 = vunpack.c.l.b16 %v2650
    %v2779 = vunpack.c.h.b16 %v2650
    %v2780 = vunpack.c.l.b16 %v2651
    %v2781 = vunpack.c.h.b16 %v2651
    %v2782 = vunpack.c.l.b16 %v2652
    %v2783 = vunpack.c.h.b16 %v2652
    %v2784 = vunpack.c.l.b16 %v2653
    %v2785 = vunpack.c.h.b16 %v2653
    %v2786 = vunpack.c.l.b16 %v2654
    %v2787 = vunpack.c.h.b16 %v2654
    %v2788 = vunpack.c.l.b16 %v2655
    %v2789 = vunpack.c.h.b16 %v2655
    %v2790 = vunpack.c.l.b16 %v2656
    %v2791 = vunpack.c.h.b16 %v2656
    %v2792 = vunpack.c.l.b16 %v2657
    %v2793 = vunpack.c.h.b16 %v2657
    %v2794 = vunpack.c.l.b16 %v2658
    %v2795 = vunpack.c.h.b16 %v2658
    %v2796 = vunpack.c.l.b16 %v2659
    %v2797 = vunpack.c.h.b16 %v2659
    %v2798 = vunpack.c.l.b16 %v2660
    %v2799 = vunpack.c.h.b16 %v2660
    %v2800 = vunpack.c.l.b16 %v2661
    %v2801 = vunpack.c.h.b16 %v2661
    %v2802 = vunpack.c.l.b16 %v2662
    %v2803 = vunpack.c.h.b16 %v2662
    %v2804 = vunpack.c.l.b16 %v2663
    %v2805 = vunpack.c.h.b16 %v2663
    %v2806 = vunpack.c.l.b16 %v2664
    %v2807 = vunpack.c.h.b16 %v2664
    %v2808 = vunpack.c.l.b16 %v2665
    %v2809 = vunpack.c.h.b16 %v2665
    %v2810 = vunpack.c.l.b16 %v2666
    %v2811 = vunpack.c.h.b16 %v2666
    %v2812 = vunpack.c.l.b16 %v2667
    %v2813 = vunpack.c.h.b16 %v2667
    %v2814 = vunpack.c.l.b16 %v2668
    %v2815 = vunpack.c.h.b16 %v2668
    %v2816 = vunpack.c.l.b16 %v2669
    %v2817 = vunpack.c.h.b16 %v2669
    %v2818 = vunpack.c.l.b16 %v2670
    %v2819 = vunpack.c.h.b16 %v2670
    %v2820 = vunpack.c.l.b16 %v2671
    %v2821 = vunpack.c.h.b16 %v2671
    %v2822 = vunpack.c.l.b16 %v2672
    %v2823 = vunpack.c.h.b16 %v2672
    %v2824 = vunpack.c.l.b16 %v2673
    %v2825 = vunpack.c.h.b16 %v2673
    %v2826 = vunpack.c.l.b16 %v2674
    %v2827 = vunpack.c.h.b16 %v2674
    %v2828 = vunpack.c.l.b16 %v2675
    %v2829 = vunpack.c.h.b16 %v2675
    %v2830 = vunpack.c.l.b16 %v2676
    %v2831 = vunpack.c.h.b16 %v2676
    %v2832 = vunpack.c.l.b16 %v2677
    %v2833 = vunpack.c.h.b16 %v2677
    %v2834 = vunpack.c.l.b16 %v2678
    %v2835 = vunpack.c.h.b16 %v2678
    %v2836 = vunpack.c.l.b16 %v2679
    %v2837 = vunpack.c.h.b16 %v2679
    %v2838 = vunpack.c.l.b16 %v2680
    %v2839 = vunpack.c.h.b16 %v2680
    %v2840 = vunpack.c.l.b16 %v2681
    %v2841 = vunpack.c.h.b16 %v2681
    %v2842 = vunpack.c.l.b16 %v2682
    %v2843 = vunpack.c.h.b16 %v2682
    %v2844 = vunpack.c.l.b16 %v2683
    %v2845 = vunpack.c.h.b16 %v2683
    %v2846 = vunpack.c.l.b16 %v2684
    %v2847 = vunpack.c.h.b16 %v2684
    %v2848 = vpack.c.b16 %v2760, %v2752
    %v2849 = vpack.c.b16 %v2761, %v2753
    %v2850 = vpack.c.b16 %v2762, %v2754
    %v2851 = vpack.c.b16 %v2763, %v2755
    %v2852 = vpack.c.b16 %v2764, %v2756
    %v2853 = vpack.c.b16 %v2765, %v2757
    %v2854 = vpack.c.b16 %v2766, %v2758
    %v2855 = vpack.c.b16 %v2767, %v2759
    %v2856 = vpack.c.b16 %v2776, %v2768
    %v2857 = vpack.c.b16 %v2777, %v2769
    %v2858 = vpack.c.b16 %v2778, %v2770
    %v2859 = vpack.c.b16 %v2779, %v2771
    %v2860 = vpack.c.b16 %v2780, %v2772
    %v2861 = vpack.c.b16 %v2781, %v2773
    %v2862 = vpack.c.b16 %v2782, %v2774
    %v2863 = vpack.c.b16 %v2783, %v2775
    %v2864 = vpack.c.b16 %v2792, %v2784
    %v2865 = vpack.c.b16 %v2793, %v2785
    %v2866 = vpack.c.b16 %v2794, %v2786
    %v2867 = vpack.c.b16 %v2795, %v2787
    %v2868 = vpack.c.b16 %v2796, %v2788
    %v2869 = vpack.c.b16 %v2797, %v2789
    %v2870 = vpack.c.b16 %v2798, %v2790
    %v2871 = vpack.c.b16 %v2799, %v2791
    %v2872 = vpack.c.b16 %v2808, %v2800
    %v2873 = vpack.c.b16 %v2809, %v2801
    %v2874 = vpack.c.b16 %v2810, %v2802
    %v2875 = vpack.c.b16 %v2811, %v2803
    %v2876 = vpack.c.b16 %v2812, %v2804
    %v2877 = vpack.c.b16 %v2813, %v2805
    %v2878 = vpack.c.b16 %v2814, %v2806
    %v2879 = vpack.c.b16 %v2815, %v2807
    %v2880 = vpack.c.b16 %v2824, %v2816
    %v2881 = vpack.c.b16 %v2825, %v2817
    %v2882 = vpack.c.b16 %v2826, %v2818
    %v2883 = vpack.c.b16 %v2827, %v2819
    %v2884 = vpack.c.b16 %v2828, %v2820
    %v2885 = vpack.c.b16 %v2829, %v2821
    %v2886 = vpack.c.b16 %v2830, %v2822
    %v2887 = vpack.c.b16 %v2831, %v2823
    %v2888 = vpack.c.b16 %v2840, %v2832
    %v2889 = vpack.c.b16 %v2841, %v2833
    %v2890 = vpack.c.b16 %v2842, %v2834
    %v2891 = vpack.c.b16 %v2843, %v2835
    %v2892 = vpack.c.b16 %v2844, %v2836
    %v2893 = vpack.c.b16 %v2845, %v2837
    %v2894 = vpack.c.b16 %v2846, %v2838
    %v2895 = vpack.c.b16 %v2847, %v2839
    %vm2944 = vcmask 785408
    %v2946 = vsel %vm2944, %v2686, 0
    %2948 = vmatpush.bf16.msra.mxu0 0
    %2949 = vmatpush.bf16.msra.mxu0 0
    %2950 = vmatpush.bf16.msra.mxu0 %v2888
    %2951 = vmatpush.bf16.msra.mxu0 %v2880
    %2952 = vmatpush.bf16.msra.mxu0 %v2872
    %2953 = vmatpush.bf16.msra.mxu0 %v2864
    %2954 = vmatpush.bf16.msra.mxu0 %v2856
    %2955 = vmatpush.bf16.msra.mxu0 %v2848
    %2956 = vmatmul.bf16.gmra.mxu0 %v2946
    %v2957 = vpop.f32.mrf.mxu0
    %v2958 = vadd.f32 %v2688, %v2957
    %v2959 = vpop.f32.mrf.mxu0
    %2960 = vdwg.mxu0
    %2961 = vmatpush.bf16.msra.mxu0 0
    %2962 = vmatpush.bf16.msra.mxu0 0
    %2963 = vmatpush.bf16.msra.mxu0 %v2889
    %2964 = vmatpush.bf16.msra.mxu0 %v2881
    %2965 = vmatpush.bf16.msra.mxu0 %v2873
    %2966 = vmatpush.bf16.msra.mxu0 %v2865
    %2967 = vmatpush.bf16.msra.mxu0 %v2857
    %2968 = vmatpush.bf16.msra.mxu0 %v2849
    %2969 = vmatmul.bf16.gmra.mxu0 %v2946
    %v2970 = vpop.f32.mrf.mxu0
    %v2971 = vadd.f32 %v2689, %v2970
    %v2972 = vpop.f32.mrf.mxu0
    %2973 = vdwg.mxu0
    %2974 = vmatpush.bf16.msra.mxu0 0
    %2975 = vmatpush.bf16.msra.mxu0 0
    %2976 = vmatpush.bf16.msra.mxu0 %v2890
    %2977 = vmatpush.bf16.msra.mxu0 %v2882
    %2978 = vmatpush.bf16.msra.mxu0 %v2874
    %2979 = vmatpush.bf16.msra.mxu0 %v2866
    %2980 = vmatpush.bf16.msra.mxu0 %v2858
    %2981 = vmatpush.bf16.msra.mxu0 %v2850
    %2982 = vmatmul.bf16.gmra.mxu0 %v2946
    %v2983 = vpop.f32.mrf.mxu0
    %v2984 = vadd.f32 %v2690, %v2983
    %v2985 = vpop.f32.mrf.mxu0
    %2986 = vdwg.mxu0
    %2987 = vmatpush.bf16.msra.mxu0 0
    %2988 = vmatpush.bf16.msra.mxu0 0
    %2989 = vmatpush.bf16.msra.mxu0 %v2891
    %2990 = vmatpush.bf16.msra.mxu0 %v2883
    %2991 = vmatpush.bf16.msra.mxu0 %v2875
    %2992 = vmatpush.bf16.msra.mxu0 %v2867
    %2993 = vmatpush.bf16.msra.mxu0 %v2859
    %2994 = vmatpush.bf16.msra.mxu0 %v2851
    %2995 = vmatmul.bf16.gmra.mxu0 %v2946
    %v2996 = vpop.f32.mrf.mxu0
    %v2997 = vadd.f32 %v2691, %v2996
    %v2998 = vpop.f32.mrf.mxu0
    %2999 = vdwg.mxu0
    %3000 = vmatpush.bf16.msra.mxu0 0
    %3001 = vmatpush.bf16.msra.mxu0 0
    %3002 = vmatpush.bf16.msra.mxu0 %v2892
    %3003 = vmatpush.bf16.msra.mxu0 %v2884
    %3004 = vmatpush.bf16.msra.mxu0 %v2876
    %3005 = vmatpush.bf16.msra.mxu0 %v2868
    %3006 = vmatpush.bf16.msra.mxu0 %v2860
    %3007 = vmatpush.bf16.msra.mxu0 %v2852
    %3008 = vmatmul.bf16.gmra.mxu0 %v2946
    %v3009 = vpop.f32.mrf.mxu0
    %v3010 = vadd.f32 %v2692, %v3009
    %v3011 = vpop.f32.mrf.mxu0
    %3012 = vdwg.mxu0
    %3013 = vmatpush.bf16.msra.mxu0 0
    %3014 = vmatpush.bf16.msra.mxu0 0
    %3015 = vmatpush.bf16.msra.mxu0 %v2893
    %3016 = vmatpush.bf16.msra.mxu0 %v2885
    %3017 = vmatpush.bf16.msra.mxu0 %v2877
    %3018 = vmatpush.bf16.msra.mxu0 %v2869
    %3019 = vmatpush.bf16.msra.mxu0 %v2861
    %3020 = vmatpush.bf16.msra.mxu0 %v2853
    %3021 = vmatmul.bf16.gmra.mxu0 %v2946
    %v3022 = vpop.f32.mrf.mxu0
    %v3023 = vadd.f32 %v2693, %v3022
    %v3024 = vpop.f32.mrf.mxu0
    %3025 = vdwg.mxu0
    %3026 = vmatpush.bf16.msra.mxu0 0
    %3027 = vmatpush.bf16.msra.mxu0 0
    %3028 = vmatpush.bf16.msra.mxu0 %v2894
    %3029 = vmatpush.bf16.msra.mxu0 %v2886
    %3030 = vmatpush.bf16.msra.mxu0 %v2878
    %3031 = vmatpush.bf16.msra.mxu0 %v2870
    %3032 = vmatpush.bf16.msra.mxu0 %v2862
    %3033 = vmatpush.bf16.msra.mxu0 %v2854
    %3034 = vmatmul.bf16.gmra.mxu0 %v2946
    %v3035 = vpop.f32.mrf.mxu0
    %v3036 = vadd.f32 %v2694, %v3035
    %v3037 = vpop.f32.mrf.mxu0
    %3038 = vdwg.mxu0
    %3039 = vmatpush.bf16.msra.mxu0 0
    %3040 = vmatpush.bf16.msra.mxu0 0
    %3041 = vmatpush.bf16.msra.mxu0 %v2895
    %3042 = vmatpush.bf16.msra.mxu0 %v2887
    %3043 = vmatpush.bf16.msra.mxu0 %v2879
    %3044 = vmatpush.bf16.msra.mxu0 %v2871
    %3045 = vmatpush.bf16.msra.mxu0 %v2863
    %3046 = vmatpush.bf16.msra.mxu0 %v2855
    %3047 = vmatmul.bf16.gmra.mxu0 %v2946
    %v3048 = vpop.f32.mrf.mxu0
    %v3049 = vadd.f32 %v2695, %v3048
    %v3050 = vpop.f32.mrf.mxu0
    %3051 = vdwg.mxu0
    %v3052 = vmax.f32 %v2958, 0.0
    %v3053 = vmax.f32 %v2971, 0.0
    %v3054 = vmax.f32 %v2984, 0.0
    %v3055 = vmax.f32 %v2997, 0.0
    %v3056 = vmax.f32 %v3010, 0.0
    %v3057 = vmax.f32 %v3023, 0.0
    %v3058 = vmax.f32 %v3036, 0.0
    %v3059 = vmax.f32 %v3049, 0.0
    %s3060 = smul.u32 4, 128
    %s3061 = smul.u32 %s3060, 8
    %s3062 = sshll.u32 %s3061, 4
    %3063 = dma.done [#allocation4], %s3062
    %v3064 = vld [vmem:[#allocation2] sm:$0xff]
    %v3065 = vld [vmem:[#allocation2 + $0x8] sm:$0xff]
    %v3066 = vld [vmem:[#allocation2 + $0x10] sm:$0xff]
    %v3067 = vld [vmem:[#allocation2 + $0x18] sm:$0xff]
    %v3068 = vld [vmem:[#allocation2 + $0x20] sm:$0xff]
    %v3069 = vld [vmem:[#allocation2 + $0x28] sm:$0xff]
    %v3070 = vld [vmem:[#allocation2 + $0x30] sm:$0xff]
    %v3071 = vld [vmem:[#allocation2 + $0x38] sm:$0xff]
    %v3072 = vld [vmem:[#allocation2 + $0x40] sm:$0xff]
    %v3073 = vld [vmem:[#allocation2 + $0x48] sm:$0xff]
    %v3074 = vld [vmem:[#allocation2 + $0x50] sm:$0xff]
    %v3075 = vld [vmem:[#allocation2 + $0x58] sm:$0xff]
    %v3076 = vld [vmem:[#allocation2 + $0x60] sm:$0xff]
    %v3077 = vld [vmem:[#allocation2 + $0x68] sm:$0xff]
    %v3078 = vld [vmem:[#allocation2 + $0x70] sm:$0xff]
    %v3079 = vld [vmem:[#allocation2 + $0x78] sm:$0xff]
    %v3080 = vld [vmem:[#allocation2 + $0x80] sm:$0xff]
    %v3081 = vld [vmem:[#allocation2 + $0x88] sm:$0xff]
    %v3082 = vld [vmem:[#allocation2 + $0x90] sm:$0xff]
    %v3083 = vld [vmem:[#allocation2 + $0x98] sm:$0xff]
    %v3084 = vld [vmem:[#allocation2 + $0xa0] sm:$0xff]
    %v3085 = vld [vmem:[#allocation2 + $0xa8] sm:$0xff]
    %v3086 = vld [vmem:[#allocation2 + $0xb0] sm:$0xff]
    %v3087 = vld [vmem:[#allocation2 + $0xb8] sm:$0xff]
    %v3088 = vld [vmem:[#allocation2 + $0xc0] sm:$0xff]
    %v3089 = vld [vmem:[#allocation2 + $0xc8] sm:$0xff]
    %v3090 = vld [vmem:[#allocation2 + $0xd0] sm:$0xff]
    %v3091 = vld [vmem:[#allocation2 + $0xd8] sm:$0xff]
    %v3092 = vld [vmem:[#allocation2 + $0xe0] sm:$0xff]
    %v3093 = vld [vmem:[#allocation2 + $0xe8] sm:$0xff]
    %v3094 = vld [vmem:[#allocation2 + $0xf0] sm:$0xff]
    %v3095 = vld [vmem:[#allocation2 + $0xf8] sm:$0xff]
    %v3096 = vld [vmem:[#allocation2 + $0x100] sm:$0xff]
    %v3097 = vld [vmem:[#allocation2 + $0x108] sm:$0xff]
    %v3098 = vld [vmem:[#allocation2 + $0x110] sm:$0xff]
    %v3099 = vld [vmem:[#allocation2 + $0x118] sm:$0xff]
    %v3100 = vld [vmem:[#allocation2 + $0x120] sm:$0xff]
    %v3101 = vld [vmem:[#allocation2 + $0x128] sm:$0xff]
    %v3102 = vld [vmem:[#allocation2 + $0x130] sm:$0xff]
    %v3103 = vld [vmem:[#allocation2 + $0x138] sm:$0xff]
    %v3104 = vld [vmem:[#allocation2 + $0x140] sm:$0xff]
    %v3105 = vld [vmem:[#allocation2 + $0x148] sm:$0xff]
    %v3106 = vld [vmem:[#allocation2 + $0x150] sm:$0xff]
    %v3107 = vld [vmem:[#allocation2 + $0x158] sm:$0xff]
    %v3108 = vld [vmem:[#allocation2 + $0x160] sm:$0xff]
    %v3109 = vld [vmem:[#allocation2 + $0x168] sm:$0xff]
    %v3110 = vld [vmem:[#allocation2 + $0x170] sm:$0xff]
    %v3111 = vld [vmem:[#allocation2 + $0x178] sm:$0xff]
    %v3112 = vld [vmem:[#allocation2 + $0x180] sm:$0xff]
    %v3113 = vld [vmem:[#allocation2 + $0x188] sm:$0xff]
    %v3114 = vld [vmem:[#allocation2 + $0x190] sm:$0xff]
    %v3115 = vld [vmem:[#allocation2 + $0x198] sm:$0xff]
    %v3116 = vld [vmem:[#allocation2 + $0x1a0] sm:$0xff]
    %v3117 = vld [vmem:[#allocation2 + $0x1a8] sm:$0xff]
    %v3118 = vld [vmem:[#allocation2 + $0x1b0] sm:$0xff]
    %v3119 = vld [vmem:[#allocation2 + $0x1b8] sm:$0xff]
    %v3120 = vld [vmem:[#allocation2 + $0x1c0] sm:$0xff]
    %v3121 = vld [vmem:[#allocation2 + $0x1c8] sm:$0xff]
    %v3122 = vld [vmem:[#allocation2 + $0x1d0] sm:$0xff]
    %v3123 = vld [vmem:[#allocation2 + $0x1d8] sm:$0xff]
    %v3124 = vld [vmem:[#allocation2 + $0x1e0] sm:$0xff]
    %v3125 = vld [vmem:[#allocation2 + $0x1e8] sm:$0xff]
    %v3126 = vld [vmem:[#allocation2 + $0x1f0] sm:$0xff]
    %v3127 = vld [vmem:[#allocation2 + $0x1f8] sm:$0xff]
    %v3128 = vld [vmem:[#allocation2 + $0x200] sm:$0xff]
    %v3129 = vld [vmem:[#allocation2 + $0x208] sm:$0xff]
    %v3130 = vld [vmem:[#allocation2 + $0x210] sm:$0xff]
    %v3131 = vld [vmem:[#allocation2 + $0x218] sm:$0xff]
    %v3132 = vld [vmem:[#allocation2 + $0x220] sm:$0xff]
    %v3133 = vld [vmem:[#allocation2 + $0x228] sm:$0xff]
    %v3134 = vld [vmem:[#allocation2 + $0x230] sm:$0xff]
    %v3135 = vld [vmem:[#allocation2 + $0x238] sm:$0xff]
    %v3136 = vld [vmem:[#allocation2 + $0x240] sm:$0xff]
    %v3137 = vld [vmem:[#allocation2 + $0x248] sm:$0xff]
    %v3138 = vld [vmem:[#allocation2 + $0x250] sm:$0xff]
    %v3139 = vld [vmem:[#allocation2 + $0x258] sm:$0xff]
    %v3140 = vld [vmem:[#allocation2 + $0x260] sm:$0xff]
    %v3141 = vld [vmem:[#allocation2 + $0x268] sm:$0xff]
    %v3142 = vld [vmem:[#allocation2 + $0x270] sm:$0xff]
    %v3143 = vld [vmem:[#allocation2 + $0x278] sm:$0xff]
    %v3144 = vld [vmem:[#allocation2 + $0x280] sm:$0xff]
    %v3145 = vld [vmem:[#allocation2 + $0x288] sm:$0xff]
    %v3146 = vld [vmem:[#allocation2 + $0x290] sm:$0xff]
    %v3147 = vld [vmem:[#allocation2 + $0x298] sm:$0xff]
    %v3148 = vld [vmem:[#allocation2 + $0x2a0] sm:$0xff]
    %v3149 = vld [vmem:[#allocation2 + $0x2a8] sm:$0xff]
    %v3150 = vld [vmem:[#allocation2 + $0x2b0] sm:$0xff]
    %v3151 = vld [vmem:[#allocation2 + $0x2b8] sm:$0xff]
    %v3152 = vld [vmem:[#allocation2 + $0x2c0] sm:$0xff]
    %v3153 = vld [vmem:[#allocation2 + $0x2c8] sm:$0xff]
    %v3154 = vld [vmem:[#allocation2 + $0x2d0] sm:$0xff]
    %v3155 = vld [vmem:[#allocation2 + $0x2d8] sm:$0xff]
    %v3156 = vld [vmem:[#allocation2 + $0x2e0] sm:$0xff]
    %v3157 = vld [vmem:[#allocation2 + $0x2e8] sm:$0xff]
    %v3158 = vld [vmem:[#allocation2 + $0x2f0] sm:$0xff]
    %v3159 = vld [vmem:[#allocation2 + $0x2f8] sm:$0xff]
    %v3160 = vld [vmem:[#allocation2 + $0x300] sm:$0xff]
    %v3161 = vld [vmem:[#allocation2 + $0x308] sm:$0xff]
    %v3162 = vld [vmem:[#allocation2 + $0x310] sm:$0xff]
    %v3163 = vld [vmem:[#allocation2 + $0x318] sm:$0xff]
    %v3164 = vld [vmem:[#allocation2 + $0x320] sm:$0xff]
    %v3165 = vld [vmem:[#allocation2 + $0x328] sm:$0xff]
    %v3166 = vld [vmem:[#allocation2 + $0x330] sm:$0xff]
    %v3167 = vld [vmem:[#allocation2 + $0x338] sm:$0xff]
    %v3168 = vld [vmem:[#allocation2 + $0x340] sm:$0xff]
    %v3169 = vld [vmem:[#allocation2 + $0x348] sm:$0xff]
    %v3170 = vld [vmem:[#allocation2 + $0x350] sm:$0xff]
    %v3171 = vld [vmem:[#allocation2 + $0x358] sm:$0xff]
    %v3172 = vld [vmem:[#allocation2 + $0x360] sm:$0xff]
    %v3173 = vld [vmem:[#allocation2 + $0x368] sm:$0xff]
    %v3174 = vld [vmem:[#allocation2 + $0x370] sm:$0xff]
    %v3175 = vld [vmem:[#allocation2 + $0x378] sm:$0xff]
    %v3176 = vld [vmem:[#allocation2 + $0x380] sm:$0xff]
    %v3177 = vld [vmem:[#allocation2 + $0x388] sm:$0xff]
    %v3178 = vld [vmem:[#allocation2 + $0x390] sm:$0xff]
    %v3179 = vld [vmem:[#allocation2 + $0x398] sm:$0xff]
    %v3180 = vld [vmem:[#allocation2 + $0x3a0] sm:$0xff]
    %v3181 = vld [vmem:[#allocation2 + $0x3a8] sm:$0xff]
    %v3182 = vld [vmem:[#allocation2 + $0x3b0] sm:$0xff]
    %v3183 = vld [vmem:[#allocation2 + $0x3b8] sm:$0xff]
    %v3184 = vld [vmem:[#allocation2 + $0x3c0] sm:$0xff]
    %v3185 = vld [vmem:[#allocation2 + $0x3c8] sm:$0xff]
    %v3186 = vld [vmem:[#allocation2 + $0x3d0] sm:$0xff]
    %v3187 = vld [vmem:[#allocation2 + $0x3d8] sm:$0xff]
    %v3188 = vld [vmem:[#allocation2 + $0x3e0] sm:$0xff]
    %v3189 = vld [vmem:[#allocation2 + $0x3e8] sm:$0xff]
    %v3190 = vld [vmem:[#allocation2 + $0x3f0] sm:$0xff]
    %v3191 = vld [vmem:[#allocation2 + $0x3f8] sm:$0xff]
    %v3192 = vld [vmem:[#allocation2 + $0x400] sm:$0xff]
    %v3193 = vld [vmem:[#allocation2 + $0x408] sm:$0xff]
    %v3194 = vld [vmem:[#allocation2 + $0x410] sm:$0xff]
    %v3195 = vld [vmem:[#allocation2 + $0x418] sm:$0xff]
    %v3196 = vld [vmem:[#allocation2 + $0x420] sm:$0xff]
    %v3197 = vld [vmem:[#allocation2 + $0x428] sm:$0xff]
    %v3198 = vld [vmem:[#allocation2 + $0x430] sm:$0xff]
    %v3199 = vld [vmem:[#allocation2 + $0x438] sm:$0xff]
    %v3200 = vld [vmem:[#allocation2 + $0x440] sm:$0xff]
    %v3201 = vld [vmem:[#allocation2 + $0x448] sm:$0xff]
    %v3202 = vld [vmem:[#allocation2 + $0x450] sm:$0xff]
    %v3203 = vld [vmem:[#allocation2 + $0x458] sm:$0xff]
    %v3204 = vld [vmem:[#allocation2 + $0x460] sm:$0xff]
    %v3205 = vld [vmem:[#allocation2 + $0x468] sm:$0xff]
    %v3206 = vld [vmem:[#allocation2 + $0x470] sm:$0xff]
    %v3207 = vld [vmem:[#allocation2 + $0x478] sm:$0xff]
    %v3208 = vld [vmem:[#allocation2 + $0x480] sm:$0xff]
    %v3209 = vld [vmem:[#allocation2 + $0x488] sm:$0xff]
    %v3210 = vld [vmem:[#allocation2 + $0x490] sm:$0xff]
    %v3211 = vld [vmem:[#allocation2 + $0x498] sm:$0xff]
    %v3212 = vld [vmem:[#allocation2 + $0x4a0] sm:$0xff]
    %v3213 = vld [vmem:[#allocation2 + $0x4a8] sm:$0xff]
    %v3214 = vld [vmem:[#allocation2 + $0x4b0] sm:$0xff]
    %v3215 = vld [vmem:[#allocation2 + $0x4b8] sm:$0xff]
    %v3216 = vld [vmem:[#allocation2 + $0x4c0] sm:$0xff]
    %v3217 = vld [vmem:[#allocation2 + $0x4c8] sm:$0xff]
    %v3218 = vld [vmem:[#allocation2 + $0x4d0] sm:$0xff]
    %v3219 = vld [vmem:[#allocation2 + $0x4d8] sm:$0xff]
    %v3220 = vld [vmem:[#allocation2 + $0x4e0] sm:$0xff]
    %v3221 = vld [vmem:[#allocation2 + $0x4e8] sm:$0xff]
    %v3222 = vld [vmem:[#allocation2 + $0x4f0] sm:$0xff]
    %v3223 = vld [vmem:[#allocation2 + $0x4f8] sm:$0xff]
    %v3224 = vld [vmem:[#allocation2 + $0x500] sm:$0xff]
    %v3225 = vld [vmem:[#allocation2 + $0x508] sm:$0xff]
    %v3226 = vld [vmem:[#allocation2 + $0x510] sm:$0xff]
    %v3227 = vld [vmem:[#allocation2 + $0x518] sm:$0xff]
    %v3228 = vld [vmem:[#allocation2 + $0x520] sm:$0xff]
    %v3229 = vld [vmem:[#allocation2 + $0x528] sm:$0xff]
    %v3230 = vld [vmem:[#allocation2 + $0x530] sm:$0xff]
    %v3231 = vld [vmem:[#allocation2 + $0x538] sm:$0xff]
    %v3232 = vld [vmem:[#allocation2 + $0x540] sm:$0xff]
    %v3233 = vld [vmem:[#allocation2 + $0x548] sm:$0xff]
    %v3234 = vld [vmem:[#allocation2 + $0x550] sm:$0xff]
    %v3235 = vld [vmem:[#allocation2 + $0x558] sm:$0xff]
    %v3236 = vld [vmem:[#allocation2 + $0x560] sm:$0xff]
    %v3237 = vld [vmem:[#allocation2 + $0x568] sm:$0xff]
    %v3238 = vld [vmem:[#allocation2 + $0x570] sm:$0xff]
    %v3239 = vld [vmem:[#allocation2 + $0x578] sm:$0xff]
    %v3240 = vld [vmem:[#allocation2 + $0x580] sm:$0xff]
    %v3241 = vld [vmem:[#allocation2 + $0x588] sm:$0xff]
    %v3242 = vld [vmem:[#allocation2 + $0x590] sm:$0xff]
    %v3243 = vld [vmem:[#allocation2 + $0x598] sm:$0xff]
    %v3244 = vld [vmem:[#allocation2 + $0x5a0] sm:$0xff]
    %v3245 = vld [vmem:[#allocation2 + $0x5a8] sm:$0xff]
    %v3246 = vld [vmem:[#allocation2 + $0x5b0] sm:$0xff]
    %v3247 = vld [vmem:[#allocation2 + $0x5b8] sm:$0xff]
    %v3248 = vld [vmem:[#allocation2 + $0x5c0] sm:$0xff]
    %v3249 = vld [vmem:[#allocation2 + $0x5c8] sm:$0xff]
    %v3250 = vld [vmem:[#allocation2 + $0x5d0] sm:$0xff]
    %v3251 = vld [vmem:[#allocation2 + $0x5d8] sm:$0xff]
    %v3252 = vld [vmem:[#allocation2 + $0x5e0] sm:$0xff]
    %v3253 = vld [vmem:[#allocation2 + $0x5e8] sm:$0xff]
    %v3254 = vld [vmem:[#allocation2 + $0x5f0] sm:$0xff]
    %v3255 = vld [vmem:[#allocation2 + $0x5f8] sm:$0xff]
    %v3256 = vld [vmem:[#allocation2 + $0x600] sm:$0xff]
    %v3257 = vld [vmem:[#allocation2 + $0x608] sm:$0xff]
    %v3258 = vld [vmem:[#allocation2 + $0x610] sm:$0xff]
    %v3259 = vld [vmem:[#allocation2 + $0x618] sm:$0xff]
    %v3260 = vld [vmem:[#allocation2 + $0x620] sm:$0xff]
    %v3261 = vld [vmem:[#allocation2 + $0x628] sm:$0xff]
    %v3262 = vld [vmem:[#allocation2 + $0x630] sm:$0xff]
    %v3263 = vld [vmem:[#allocation2 + $0x638] sm:$0xff]
    %v3264 = vld [vmem:[#allocation2 + $0x640] sm:$0xff]
    %v3265 = vld [vmem:[#allocation2 + $0x648] sm:$0xff]
    %v3266 = vld [vmem:[#allocation2 + $0x650] sm:$0xff]
    %v3267 = vld [vmem:[#allocation2 + $0x658] sm:$0xff]
    %v3268 = vld [vmem:[#allocation2 + $0x660] sm:$0xff]
    %v3269 = vld [vmem:[#allocation2 + $0x668] sm:$0xff]
    %v3270 = vld [vmem:[#allocation2 + $0x670] sm:$0xff]
    %v3271 = vld [vmem:[#allocation2 + $0x678] sm:$0xff]
    %v3272 = vld [vmem:[#allocation2 + $0x680] sm:$0xff]
    %v3273 = vld [vmem:[#allocation2 + $0x688] sm:$0xff]
    %v3274 = vld [vmem:[#allocation2 + $0x690] sm:$0xff]
    %v3275 = vld [vmem:[#allocation2 + $0x698] sm:$0xff]
    %v3276 = vld [vmem:[#allocation2 + $0x6a0] sm:$0xff]
    %v3277 = vld [vmem:[#allocation2 + $0x6a8] sm:$0xff]
    %v3278 = vld [vmem:[#allocation2 + $0x6b0] sm:$0xff]
    %v3279 = vld [vmem:[#allocation2 + $0x6b8] sm:$0xff]
    %v3280 = vld [vmem:[#allocation2 + $0x6c0] sm:$0xff]
    %v3281 = vld [vmem:[#allocation2 + $0x6c8] sm:$0xff]
    %v3282 = vld [vmem:[#allocation2 + $0x6d0] sm:$0xff]
    %v3283 = vld [vmem:[#allocation2 + $0x6d8] sm:$0xff]
    %v3284 = vld [vmem:[#allocation2 + $0x6e0] sm:$0xff]
    %v3285 = vld [vmem:[#allocation2 + $0x6e8] sm:$0xff]
    %v3286 = vld [vmem:[#allocation2 + $0x6f0] sm:$0xff]
    %v3287 = vld [vmem:[#allocation2 + $0x6f8] sm:$0xff]
    %v3288 = vld [vmem:[#allocation2 + $0x700] sm:$0xff]
    %v3289 = vld [vmem:[#allocation2 + $0x708] sm:$0xff]
    %v3290 = vld [vmem:[#allocation2 + $0x710] sm:$0xff]
    %v3291 = vld [vmem:[#allocation2 + $0x718] sm:$0xff]
    %v3292 = vld [vmem:[#allocation2 + $0x720] sm:$0xff]
    %v3293 = vld [vmem:[#allocation2 + $0x728] sm:$0xff]
    %v3294 = vld [vmem:[#allocation2 + $0x730] sm:$0xff]
    %v3295 = vld [vmem:[#allocation2 + $0x738] sm:$0xff]
    %v3296 = vld [vmem:[#allocation2 + $0x740] sm:$0xff]
    %v3297 = vld [vmem:[#allocation2 + $0x748] sm:$0xff]
    %v3298 = vld [vmem:[#allocation2 + $0x750] sm:$0xff]
    %v3299 = vld [vmem:[#allocation2 + $0x758] sm:$0xff]
    %v3300 = vld [vmem:[#allocation2 + $0x760] sm:$0xff]
    %v3301 = vld [vmem:[#allocation2 + $0x768] sm:$0xff]
    %v3302 = vld [vmem:[#allocation2 + $0x770] sm:$0xff]
    %v3303 = vld [vmem:[#allocation2 + $0x778] sm:$0xff]
    %v3304 = vld [vmem:[#allocation2 + $0x780] sm:$0xff]
    %v3305 = vld [vmem:[#allocation2 + $0x788] sm:$0xff]
    %v3306 = vld [vmem:[#allocation2 + $0x790] sm:$0xff]
    %v3307 = vld [vmem:[#allocation2 + $0x798] sm:$0xff]
    %v3308 = vld [vmem:[#allocation2 + $0x7a0] sm:$0xff]
    %v3309 = vld [vmem:[#allocation2 + $0x7a8] sm:$0xff]
    %v3310 = vld [vmem:[#allocation2 + $0x7b0] sm:$0xff]
    %v3311 = vld [vmem:[#allocation2 + $0x7b8] sm:$0xff]
    %v3312 = vld [vmem:[#allocation2 + $0x7c0] sm:$0xff]
    %v3313 = vld [vmem:[#allocation2 + $0x7c8] sm:$0xff]
    %v3314 = vld [vmem:[#allocation2 + $0x7d0] sm:$0xff]
    %v3315 = vld [vmem:[#allocation2 + $0x7d8] sm:$0xff]
    %v3316 = vld [vmem:[#allocation2 + $0x7e0] sm:$0xff]
    %v3317 = vld [vmem:[#allocation2 + $0x7e8] sm:$0xff]
    %v3318 = vld [vmem:[#allocation2 + $0x7f0] sm:$0xff]
    %v3319 = vld [vmem:[#allocation2 + $0x7f8] sm:$0xff]
    %v3320 = vld [vmem:[#allocation2 + $0x800] sm:$0xff]
    %v3321 = vld [vmem:[#allocation2 + $0x808] sm:$0xff]
    %v3322 = vld [vmem:[#allocation2 + $0x810] sm:$0xff]
    %v3323 = vld [vmem:[#allocation2 + $0x818] sm:$0xff]
    %v3324 = vld [vmem:[#allocation2 + $0x820] sm:$0xff]
    %v3325 = vld [vmem:[#allocation2 + $0x828] sm:$0xff]
    %v3326 = vld [vmem:[#allocation2 + $0x830] sm:$0xff]
    %v3327 = vld [vmem:[#allocation2 + $0x838] sm:$0xff]
    %v3328 = vld [vmem:[#allocation2 + $0x840] sm:$0xff]
    %v3329 = vld [vmem:[#allocation2 + $0x848] sm:$0xff]
    %v3330 = vld [vmem:[#allocation2 + $0x850] sm:$0xff]
    %v3331 = vld [vmem:[#allocation2 + $0x858] sm:$0xff]
    %v3332 = vld [vmem:[#allocation2 + $0x860] sm:$0xff]
    %v3333 = vld [vmem:[#allocation2 + $0x868] sm:$0xff]
    %v3334 = vld [vmem:[#allocation2 + $0x870] sm:$0xff]
    %v3335 = vld [vmem:[#allocation2 + $0x878] sm:$0xff]
    %v3336 = vld [vmem:[#allocation2 + $0x880] sm:$0xff]
    %v3337 = vld [vmem:[#allocation2 + $0x888] sm:$0xff]
    %v3338 = vld [vmem:[#allocation2 + $0x890] sm:$0xff]
    %v3339 = vld [vmem:[#allocation2 + $0x898] sm:$0xff]
    %v3340 = vld [vmem:[#allocation2 + $0x8a0] sm:$0xff]
    %v3341 = vld [vmem:[#allocation2 + $0x8a8] sm:$0xff]
    %v3342 = vld [vmem:[#allocation2 + $0x8b0] sm:$0xff]
    %v3343 = vld [vmem:[#allocation2 + $0x8b8] sm:$0xff]
    %v3344 = vld [vmem:[#allocation2 + $0x8c0] sm:$0xff]
    %v3345 = vld [vmem:[#allocation2 + $0x8c8] sm:$0xff]
    %v3346 = vld [vmem:[#allocation2 + $0x8d0] sm:$0xff]
    %v3347 = vld [vmem:[#allocation2 + $0x8d8] sm:$0xff]
    %v3348 = vld [vmem:[#allocation2 + $0x8e0] sm:$0xff]
    %v3349 = vld [vmem:[#allocation2 + $0x8e8] sm:$0xff]
    %v3350 = vld [vmem:[#allocation2 + $0x8f0] sm:$0xff]
    %v3351 = vld [vmem:[#allocation2 + $0x8f8] sm:$0xff]
    %v3352 = vld [vmem:[#allocation2 + $0x900] sm:$0xff]
    %v3353 = vld [vmem:[#allocation2 + $0x908] sm:$0xff]
    %v3354 = vld [vmem:[#allocation2 + $0x910] sm:$0xff]
    %v3355 = vld [vmem:[#allocation2 + $0x918] sm:$0xff]
    %v3356 = vld [vmem:[#allocation2 + $0x920] sm:$0xff]
    %v3357 = vld [vmem:[#allocation2 + $0x928] sm:$0xff]
    %v3358 = vld [vmem:[#allocation2 + $0x930] sm:$0xff]
    %v3359 = vld [vmem:[#allocation2 + $0x938] sm:$0xff]
    %v3360 = vld [vmem:[#allocation2 + $0x940] sm:$0xff]
    %v3361 = vld [vmem:[#allocation2 + $0x948] sm:$0xff]
    %v3362 = vld [vmem:[#allocation2 + $0x950] sm:$0xff]
    %v3363 = vld [vmem:[#allocation2 + $0x958] sm:$0xff]
    %v3364 = vld [vmem:[#allocation2 + $0x960] sm:$0xff]
    %v3365 = vld [vmem:[#allocation2 + $0x968] sm:$0xff]
    %v3366 = vld [vmem:[#allocation2 + $0x970] sm:$0xff]
    %v3367 = vld [vmem:[#allocation2 + $0x978] sm:$0xff]
    %v3368 = vld [vmem:[#allocation2 + $0x980] sm:$0xff]
    %v3369 = vld [vmem:[#allocation2 + $0x988] sm:$0xff]
    %v3370 = vld [vmem:[#allocation2 + $0x990] sm:$0xff]
    %v3371 = vld [vmem:[#allocation2 + $0x998] sm:$0xff]
    %v3372 = vld [vmem:[#allocation2 + $0x9a0] sm:$0xff]
    %v3373 = vld [vmem:[#allocation2 + $0x9a8] sm:$0xff]
    %v3374 = vld [vmem:[#allocation2 + $0x9b0] sm:$0xff]
    %v3375 = vld [vmem:[#allocation2 + $0x9b8] sm:$0xff]
    %v3376 = vld [vmem:[#allocation2 + $0x9c0] sm:$0xff]
    %v3377 = vld [vmem:[#allocation2 + $0x9c8] sm:$0xff]
    %v3378 = vld [vmem:[#allocation2 + $0x9d0] sm:$0xff]
    %v3379 = vld [vmem:[#allocation2 + $0x9d8] sm:$0xff]
    %v3380 = vld [vmem:[#allocation2 + $0x9e0] sm:$0xff]
    %v3381 = vld [vmem:[#allocation2 + $0x9e8] sm:$0xff]
    %v3382 = vld [vmem:[#allocation2 + $0x9f0] sm:$0xff]
    %v3383 = vld [vmem:[#allocation2 + $0x9f8] sm:$0xff]
    %v3384 = vld [vmem:[#allocation2 + $0xa00] sm:$0xff]
    %v3385 = vld [vmem:[#allocation2 + $0xa08] sm:$0xff]
    %v3386 = vld [vmem:[#allocation2 + $0xa10] sm:$0xff]
    %v3387 = vld [vmem:[#allocation2 + $0xa18] sm:$0xff]
    %v3388 = vld [vmem:[#allocation2 + $0xa20] sm:$0xff]
    %v3389 = vld [vmem:[#allocation2 + $0xa28] sm:$0xff]
    %v3390 = vld [vmem:[#allocation2 + $0xa30] sm:$0xff]
    %v3391 = vld [vmem:[#allocation2 + $0xa38] sm:$0xff]
    %v3392 = vld [vmem:[#allocation2 + $0xa40] sm:$0xff]
    %v3393 = vld [vmem:[#allocation2 + $0xa48] sm:$0xff]
    %v3394 = vld [vmem:[#allocation2 + $0xa50] sm:$0xff]
    %v3395 = vld [vmem:[#allocation2 + $0xa58] sm:$0xff]
    %v3396 = vld [vmem:[#allocation2 + $0xa60] sm:$0xff]
    %v3397 = vld [vmem:[#allocation2 + $0xa68] sm:$0xff]
    %v3398 = vld [vmem:[#allocation2 + $0xa70] sm:$0xff]
    %v3399 = vld [vmem:[#allocation2 + $0xa78] sm:$0xff]
    %v3400 = vld [vmem:[#allocation2 + $0xa80] sm:$0xff]
    %v3401 = vld [vmem:[#allocation2 + $0xa88] sm:$0xff]
    %v3402 = vld [vmem:[#allocation2 + $0xa90] sm:$0xff]
    %v3403 = vld [vmem:[#allocation2 + $0xa98] sm:$0xff]
    %v3404 = vld [vmem:[#allocation2 + $0xaa0] sm:$0xff]
    %v3405 = vld [vmem:[#allocation2 + $0xaa8] sm:$0xff]
    %v3406 = vld [vmem:[#allocation2 + $0xab0] sm:$0xff]
    %v3407 = vld [vmem:[#allocation2 + $0xab8] sm:$0xff]
    %v3408 = vld [vmem:[#allocation2 + $0xac0] sm:$0xff]
    %v3409 = vld [vmem:[#allocation2 + $0xac8] sm:$0xff]
    %v3410 = vld [vmem:[#allocation2 + $0xad0] sm:$0xff]
    %v3411 = vld [vmem:[#allocation2 + $0xad8] sm:$0xff]
    %v3412 = vld [vmem:[#allocation2 + $0xae0] sm:$0xff]
    %v3413 = vld [vmem:[#allocation2 + $0xae8] sm:$0xff]
    %v3414 = vld [vmem:[#allocation2 + $0xaf0] sm:$0xff]
    %v3415 = vld [vmem:[#allocation2 + $0xaf8] sm:$0xff]
    %v3416 = vld [vmem:[#allocation2 + $0xb00] sm:$0xff]
    %v3417 = vld [vmem:[#allocation2 + $0xb08] sm:$0xff]
    %v3418 = vld [vmem:[#allocation2 + $0xb10] sm:$0xff]
    %v3419 = vld [vmem:[#allocation2 + $0xb18] sm:$0xff]
    %v3420 = vld [vmem:[#allocation2 + $0xb20] sm:$0xff]
    %v3421 = vld [vmem:[#allocation2 + $0xb28] sm:$0xff]
    %v3422 = vld [vmem:[#allocation2 + $0xb30] sm:$0xff]
    %v3423 = vld [vmem:[#allocation2 + $0xb38] sm:$0xff]
    %v3424 = vld [vmem:[#allocation2 + $0xb40] sm:$0xff]
    %v3425 = vld [vmem:[#allocation2 + $0xb48] sm:$0xff]
    %v3426 = vld [vmem:[#allocation2 + $0xb50] sm:$0xff]
    %v3427 = vld [vmem:[#allocation2 + $0xb58] sm:$0xff]
    %v3428 = vld [vmem:[#allocation2 + $0xb60] sm:$0xff]
    %v3429 = vld [vmem:[#allocation2 + $0xb68] sm:$0xff]
    %v3430 = vld [vmem:[#allocation2 + $0xb70] sm:$0xff]
    %v3431 = vld [vmem:[#allocation2 + $0xb78] sm:$0xff]
    %v3432 = vld [vmem:[#allocation2 + $0xb80] sm:$0xff]
    %v3433 = vld [vmem:[#allocation2 + $0xb88] sm:$0xff]
    %v3434 = vld [vmem:[#allocation2 + $0xb90] sm:$0xff]
    %v3435 = vld [vmem:[#allocation2 + $0xb98] sm:$0xff]
    %v3436 = vld [vmem:[#allocation2 + $0xba0] sm:$0xff]
    %v3437 = vld [vmem:[#allocation2 + $0xba8] sm:$0xff]
    %v3438 = vld [vmem:[#allocation2 + $0xbb0] sm:$0xff]
    %v3439 = vld [vmem:[#allocation2 + $0xbb8] sm:$0xff]
    %v3440 = vld [vmem:[#allocation2 + $0xbc0] sm:$0xff]
    %v3441 = vld [vmem:[#allocation2 + $0xbc8] sm:$0xff]
    %v3442 = vld [vmem:[#allocation2 + $0xbd0] sm:$0xff]
    %v3443 = vld [vmem:[#allocation2 + $0xbd8] sm:$0xff]
    %v3444 = vld [vmem:[#allocation2 + $0xbe0] sm:$0xff]
    %v3445 = vld [vmem:[#allocation2 + $0xbe8] sm:$0xff]
    %v3446 = vld [vmem:[#allocation2 + $0xbf0] sm:$0xff]
    %v3447 = vld [vmem:[#allocation2 + $0xbf8] sm:$0xff]
    %v3448 = vld [vmem:[#allocation2 + $0xc00] sm:$0xff]
    %v3449 = vld [vmem:[#allocation2 + $0xc08] sm:$0xff]
    %v3450 = vld [vmem:[#allocation2 + $0xc10] sm:$0xff]
    %v3451 = vld [vmem:[#allocation2 + $0xc18] sm:$0xff]
    %v3452 = vld [vmem:[#allocation2 + $0xc20] sm:$0xff]
    %v3453 = vld [vmem:[#allocation2 + $0xc28] sm:$0xff]
    %v3454 = vld [vmem:[#allocation2 + $0xc30] sm:$0xff]
    %v3455 = vld [vmem:[#allocation2 + $0xc38] sm:$0xff]
    %v3456 = vld [vmem:[#allocation2 + $0xc40] sm:$0xff]
    %v3457 = vld [vmem:[#allocation2 + $0xc48] sm:$0xff]
    %v3458 = vld [vmem:[#allocation2 + $0xc50] sm:$0xff]
    %v3459 = vld [vmem:[#allocation2 + $0xc58] sm:$0xff]
    %v3460 = vld [vmem:[#allocation2 + $0xc60] sm:$0xff]
    %v3461 = vld [vmem:[#allocation2 + $0xc68] sm:$0xff]
    %v3462 = vld [vmem:[#allocation2 + $0xc70] sm:$0xff]
    %v3463 = vld [vmem:[#allocation2 + $0xc78] sm:$0xff]
    %v3464 = vld [vmem:[#allocation2 + $0xc80] sm:$0xff]
    %v3465 = vld [vmem:[#allocation2 + $0xc88] sm:$0xff]
    %v3466 = vld [vmem:[#allocation2 + $0xc90] sm:$0xff]
    %v3467 = vld [vmem:[#allocation2 + $0xc98] sm:$0xff]
    %v3468 = vld [vmem:[#allocation2 + $0xca0] sm:$0xff]
    %v3469 = vld [vmem:[#allocation2 + $0xca8] sm:$0xff]
    %v3470 = vld [vmem:[#allocation2 + $0xcb0] sm:$0xff]
    %v3471 = vld [vmem:[#allocation2 + $0xcb8] sm:$0xff]
    %v3472 = vld [vmem:[#allocation2 + $0xcc0] sm:$0xff]
    %v3473 = vld [vmem:[#allocation2 + $0xcc8] sm:$0xff]
    %v3474 = vld [vmem:[#allocation2 + $0xcd0] sm:$0xff]
    %v3475 = vld [vmem:[#allocation2 + $0xcd8] sm:$0xff]
    %v3476 = vld [vmem:[#allocation2 + $0xce0] sm:$0xff]
    %v3477 = vld [vmem:[#allocation2 + $0xce8] sm:$0xff]
    %v3478 = vld [vmem:[#allocation2 + $0xcf0] sm:$0xff]
    %v3479 = vld [vmem:[#allocation2 + $0xcf8] sm:$0xff]
    %v3480 = vld [vmem:[#allocation2 + $0xd00] sm:$0xff]
    %v3481 = vld [vmem:[#allocation2 + $0xd08] sm:$0xff]
    %v3482 = vld [vmem:[#allocation2 + $0xd10] sm:$0xff]
    %v3483 = vld [vmem:[#allocation2 + $0xd18] sm:$0xff]
    %v3484 = vld [vmem:[#allocation2 + $0xd20] sm:$0xff]
    %v3485 = vld [vmem:[#allocation2 + $0xd28] sm:$0xff]
    %v3486 = vld [vmem:[#allocation2 + $0xd30] sm:$0xff]
    %v3487 = vld [vmem:[#allocation2 + $0xd38] sm:$0xff]
    %v3488 = vld [vmem:[#allocation2 + $0xd40] sm:$0xff]
    %v3489 = vld [vmem:[#allocation2 + $0xd48] sm:$0xff]
    %v3490 = vld [vmem:[#allocation2 + $0xd50] sm:$0xff]
    %v3491 = vld [vmem:[#allocation2 + $0xd58] sm:$0xff]
    %v3492 = vld [vmem:[#allocation2 + $0xd60] sm:$0xff]
    %v3493 = vld [vmem:[#allocation2 + $0xd68] sm:$0xff]
    %v3494 = vld [vmem:[#allocation2 + $0xd70] sm:$0xff]
    %v3495 = vld [vmem:[#allocation2 + $0xd78] sm:$0xff]
    %v3496 = vld [vmem:[#allocation2 + $0xd80] sm:$0xff]
    %v3497 = vld [vmem:[#allocation2 + $0xd88] sm:$0xff]
    %v3498 = vld [vmem:[#allocation2 + $0xd90] sm:$0xff]
    %v3499 = vld [vmem:[#allocation2 + $0xd98] sm:$0xff]
    %v3500 = vld [vmem:[#allocation2 + $0xda0] sm:$0xff]
    %v3501 = vld [vmem:[#allocation2 + $0xda8] sm:$0xff]
    %v3502 = vld [vmem:[#allocation2 + $0xdb0] sm:$0xff]
    %v3503 = vld [vmem:[#allocation2 + $0xdb8] sm:$0xff]
    %v3504 = vld [vmem:[#allocation2 + $0xdc0] sm:$0xff]
    %v3505 = vld [vmem:[#allocation2 + $0xdc8] sm:$0xff]
    %v3506 = vld [vmem:[#allocation2 + $0xdd0] sm:$0xff]
    %v3507 = vld [vmem:[#allocation2 + $0xdd8] sm:$0xff]
    %v3508 = vld [vmem:[#allocation2 + $0xde0] sm:$0xff]
    %v3509 = vld [vmem:[#allocation2 + $0xde8] sm:$0xff]
    %v3510 = vld [vmem:[#allocation2 + $0xdf0] sm:$0xff]
    %v3511 = vld [vmem:[#allocation2 + $0xdf8] sm:$0xff]
    %v3512 = vld [vmem:[#allocation2 + $0xe00] sm:$0xff]
    %v3513 = vld [vmem:[#allocation2 + $0xe08] sm:$0xff]
    %v3514 = vld [vmem:[#allocation2 + $0xe10] sm:$0xff]
    %v3515 = vld [vmem:[#allocation2 + $0xe18] sm:$0xff]
    %v3516 = vld [vmem:[#allocation2 + $0xe20] sm:$0xff]
    %v3517 = vld [vmem:[#allocation2 + $0xe28] sm:$0xff]
    %v3518 = vld [vmem:[#allocation2 + $0xe30] sm:$0xff]
    %v3519 = vld [vmem:[#allocation2 + $0xe38] sm:$0xff]
    %v3520 = vld [vmem:[#allocation2 + $0xe40] sm:$0xff]
    %v3521 = vld [vmem:[#allocation2 + $0xe48] sm:$0xff]
    %v3522 = vld [vmem:[#allocation2 + $0xe50] sm:$0xff]
    %v3523 = vld [vmem:[#allocation2 + $0xe58] sm:$0xff]
    %v3524 = vld [vmem:[#allocation2 + $0xe60] sm:$0xff]
    %v3525 = vld [vmem:[#allocation2 + $0xe68] sm:$0xff]
    %v3526 = vld [vmem:[#allocation2 + $0xe70] sm:$0xff]
    %v3527 = vld [vmem:[#allocation2 + $0xe78] sm:$0xff]
    %v3528 = vld [vmem:[#allocation2 + $0xe80] sm:$0xff]
    %v3529 = vld [vmem:[#allocation2 + $0xe88] sm:$0xff]
    %v3530 = vld [vmem:[#allocation2 + $0xe90] sm:$0xff]
    %v3531 = vld [vmem:[#allocation2 + $0xe98] sm:$0xff]
    %v3532 = vld [vmem:[#allocation2 + $0xea0] sm:$0xff]
    %v3533 = vld [vmem:[#allocation2 + $0xea8] sm:$0xff]
    %v3534 = vld [vmem:[#allocation2 + $0xeb0] sm:$0xff]
    %v3535 = vld [vmem:[#allocation2 + $0xeb8] sm:$0xff]
    %v3536 = vld [vmem:[#allocation2 + $0xec0] sm:$0xff]
    %v3537 = vld [vmem:[#allocation2 + $0xec8] sm:$0xff]
    %v3538 = vld [vmem:[#allocation2 + $0xed0] sm:$0xff]
    %v3539 = vld [vmem:[#allocation2 + $0xed8] sm:$0xff]
    %v3540 = vld [vmem:[#allocation2 + $0xee0] sm:$0xff]
    %v3541 = vld [vmem:[#allocation2 + $0xee8] sm:$0xff]
    %v3542 = vld [vmem:[#allocation2 + $0xef0] sm:$0xff]
    %v3543 = vld [vmem:[#allocation2 + $0xef8] sm:$0xff]
    %v3544 = vld [vmem:[#allocation2 + $0xf00] sm:$0xff]
    %v3545 = vld [vmem:[#allocation2 + $0xf08] sm:$0xff]
    %v3546 = vld [vmem:[#allocation2 + $0xf10] sm:$0xff]
    %v3547 = vld [vmem:[#allocation2 + $0xf18] sm:$0xff]
    %v3548 = vld [vmem:[#allocation2 + $0xf20] sm:$0xff]
    %v3549 = vld [vmem:[#allocation2 + $0xf28] sm:$0xff]
    %v3550 = vld [vmem:[#allocation2 + $0xf30] sm:$0xff]
    %v3551 = vld [vmem:[#allocation2 + $0xf38] sm:$0xff]
    %v3552 = vld [vmem:[#allocation2 + $0xf40] sm:$0xff]
    %v3553 = vld [vmem:[#allocation2 + $0xf48] sm:$0xff]
    %v3554 = vld [vmem:[#allocation2 + $0xf50] sm:$0xff]
    %v3555 = vld [vmem:[#allocation2 + $0xf58] sm:$0xff]
    %v3556 = vld [vmem:[#allocation2 + $0xf60] sm:$0xff]
    %v3557 = vld [vmem:[#allocation2 + $0xf68] sm:$0xff]
    %v3558 = vld [vmem:[#allocation2 + $0xf70] sm:$0xff]
    %v3559 = vld [vmem:[#allocation2 + $0xf78] sm:$0xff]
    %v3560 = vld [vmem:[#allocation2 + $0xf80] sm:$0xff]
    %v3561 = vld [vmem:[#allocation2 + $0xf88] sm:$0xff]
    %v3562 = vld [vmem:[#allocation2 + $0xf90] sm:$0xff]
    %v3563 = vld [vmem:[#allocation2 + $0xf98] sm:$0xff]
    %v3564 = vld [vmem:[#allocation2 + $0xfa0] sm:$0xff]
    %v3565 = vld [vmem:[#allocation2 + $0xfa8] sm:$0xff]
    %v3566 = vld [vmem:[#allocation2 + $0xfb0] sm:$0xff]
    %v3567 = vld [vmem:[#allocation2 + $0xfb8] sm:$0xff]
    %v3568 = vld [vmem:[#allocation2 + $0xfc0] sm:$0xff]
    %v3569 = vld [vmem:[#allocation2 + $0xfc8] sm:$0xff]
    %v3570 = vld [vmem:[#allocation2 + $0xfd0] sm:$0xff]
    %v3571 = vld [vmem:[#allocation2 + $0xfd8] sm:$0xff]
    %v3572 = vld [vmem:[#allocation2 + $0xfe0] sm:$0xff]
    %v3573 = vld [vmem:[#allocation2 + $0xfe8] sm:$0xff]
    %v3574 = vld [vmem:[#allocation2 + $0xff0] sm:$0xff]
    %v3575 = vld [vmem:[#allocation2 + $0xff8] sm:$0xff]
    %v3576 = vld [vmem:[#allocation20] sm:$0xff]
    %v3577 = vpack.c.bf16 %v3052, %v3052
    %v3578 = vpack.c.bf16 %v3053, %v3053
    %v3579 = vpack.c.bf16 %v3054, %v3054
    %v3580 = vpack.c.bf16 %v3055, %v3055
    %v3581 = vpack.c.bf16 %v3056, %v3056
    %v3582 = vpack.c.bf16 %v3057, %v3057
    %v3583 = vpack.c.bf16 %v3058, %v3058
    %v3584 = vpack.c.bf16 %v3059, %v3059
    %v3586 = vperm.slane %v3576, 0
    %v3587 = vperm.slane %v3576, 1
    %v3588 = vperm.slane %v3576, 2
    %v3589 = vperm.slane %v3576, 3
    %v3590 = vperm.slane %v3576, 4
    %v3591 = vperm.slane %v3576, 5
    %v3592 = vperm.slane %v3576, 6
    %v3593 = vperm.slane %v3576, 7
    %v4114 = vunpack.c.l.b16 %v3064
    %v4115 = vunpack.c.h.b16 %v3064
    %v4116 = vunpack.c.l.b16 %v3065
    %v4117 = vunpack.c.h.b16 %v3065
    %v4118 = vunpack.c.l.b16 %v3066
    %v4119 = vunpack.c.h.b16 %v3066
    %v4120 = vunpack.c.l.b16 %v3067
    %v4121 = vunpack.c.h.b16 %v3067
    %v4122 = vunpack.c.l.b16 %v3068
    %v4123 = vunpack.c.h.b16 %v3068
    %v4124 = vunpack.c.l.b16 %v3069
    %v4125 = vunpack.c.h.b16 %v3069
    %v4126 = vunpack.c.l.b16 %v3070
    %v4127 = vunpack.c.h.b16 %v3070
    %v4128 = vunpack.c.l.b16 %v3071
    %v4129 = vunpack.c.h.b16 %v3071
    %v4130 = vunpack.c.l.b16 %v3072
    %v4131 = vunpack.c.h.b16 %v3072
    %v4132 = vunpack.c.l.b16 %v3073
    %v4133 = vunpack.c.h.b16 %v3073
    %v4134 = vunpack.c.l.b16 %v3074
    %v4135 = vunpack.c.h.b16 %v3074
    %v4136 = vunpack.c.l.b16 %v3075
    %v4137 = vunpack.c.h.b16 %v3075
    %v4138 = vunpack.c.l.b16 %v3076
    %v4139 = vunpack.c.h.b16 %v3076
    %v4140 = vunpack.c.l.b16 %v3077
    %v4141 = vunpack.c.h.b16 %v3077
    %v4142 = vunpack.c.l.b16 %v3078
    %v4143 = vunpack.c.h.b16 %v3078
    %v4144 = vunpack.c.l.b16 %v3079
    %v4145 = vunpack.c.h.b16 %v3079
    %v4146 = vunpack.c.l.b16 %v3080
    %v4147 = vunpack.c.h.b16 %v3080
    %v4148 = vunpack.c.l.b16 %v3081
    %v4149 = vunpack.c.h.b16 %v3081
    %v4150 = vunpack.c.l.b16 %v3082
    %v4151 = vunpack.c.h.b16 %v3082
    %v4152 = vunpack.c.l.b16 %v3083
    %v4153 = vunpack.c.h.b16 %v3083
    %v4154 = vunpack.c.l.b16 %v3084
    %v4155 = vunpack.c.h.b16 %v3084
    %v4156 = vunpack.c.l.b16 %v3085
    %v4157 = vunpack.c.h.b16 %v3085
    %v4158 = vunpack.c.l.b16 %v3086
    %v4159 = vunpack.c.h.b16 %v3086
    %v4160 = vunpack.c.l.b16 %v3087
    %v4161 = vunpack.c.h.b16 %v3087
    %v4162 = vunpack.c.l.b16 %v3088
    %v4163 = vunpack.c.h.b16 %v3088
    %v4164 = vunpack.c.l.b16 %v3089
    %v4165 = vunpack.c.h.b16 %v3089
    %v4166 = vunpack.c.l.b16 %v3090
    %v4167 = vunpack.c.h.b16 %v3090
    %v4168 = vunpack.c.l.b16 %v3091
    %v4169 = vunpack.c.h.b16 %v3091
    %v4170 = vunpack.c.l.b16 %v3092
    %v4171 = vunpack.c.h.b16 %v3092
    %v4172 = vunpack.c.l.b16 %v3093
    %v4173 = vunpack.c.h.b16 %v3093
    %v4174 = vunpack.c.l.b16 %v3094
    %v4175 = vunpack.c.h.b16 %v3094
    %v4176 = vunpack.c.l.b16 %v3095
    %v4177 = vunpack.c.h.b16 %v3095
    %v4178 = vunpack.c.l.b16 %v3096
    %v4179 = vunpack.c.h.b16 %v3096
    %v4180 = vunpack.c.l.b16 %v3097
    %v4181 = vunpack.c.h.b16 %v3097
    %v4182 = vunpack.c.l.b16 %v3098
    %v4183 = vunpack.c.h.b16 %v3098
    %v4184 = vunpack.c.l.b16 %v3099
    %v4185 = vunpack.c.h.b16 %v3099
    %v4186 = vunpack.c.l.b16 %v3100
    %v4187 = vunpack.c.h.b16 %v3100
    %v4188 = vunpack.c.l.b16 %v3101
    %v4189 = vunpack.c.h.b16 %v3101
    %v4190 = vunpack.c.l.b16 %v3102
    %v4191 = vunpack.c.h.b16 %v3102
    %v4192 = vunpack.c.l.b16 %v3103
    %v4193 = vunpack.c.h.b16 %v3103
    %v4194 = vunpack.c.l.b16 %v3104
    %v4195 = vunpack.c.h.b16 %v3104
    %v4196 = vunpack.c.l.b16 %v3105
    %v4197 = vunpack.c.h.b16 %v3105
    %v4198 = vunpack.c.l.b16 %v3106
    %v4199 = vunpack.c.h.b16 %v3106
    %v4200 = vunpack.c.l.b16 %v3107
    %v4201 = vunpack.c.h.b16 %v3107
    %v4202 = vunpack.c.l.b16 %v3108
    %v4203 = vunpack.c.h.b16 %v3108
    %v4204 = vunpack.c.l.b16 %v3109
    %v4205 = vunpack.c.h.b16 %v3109
    %v4206 = vunpack.c.l.b16 %v3110
    %v4207 = vunpack.c.h.b16 %v3110
    %v4208 = vunpack.c.l.b16 %v3111
    %v4209 = vunpack.c.h.b16 %v3111
    %v4210 = vunpack.c.l.b16 %v3112
    %v4211 = vunpack.c.h.b16 %v3112
    %v4212 = vunpack.c.l.b16 %v3113
    %v4213 = vunpack.c.h.b16 %v3113
    %v4214 = vunpack.c.l.b16 %v3114
    %v4215 = vunpack.c.h.b16 %v3114
    %v4216 = vunpack.c.l.b16 %v3115
    %v4217 = vunpack.c.h.b16 %v3115
    %v4218 = vunpack.c.l.b16 %v3116
    %v4219 = vunpack.c.h.b16 %v3116
    %v4220 = vunpack.c.l.b16 %v3117
    %v4221 = vunpack.c.h.b16 %v3117
    %v4222 = vunpack.c.l.b16 %v3118
    %v4223 = vunpack.c.h.b16 %v3118
    %v4224 = vunpack.c.l.b16 %v3119
    %v4225 = vunpack.c.h.b16 %v3119
    %v4226 = vunpack.c.l.b16 %v3120
    %v4227 = vunpack.c.h.b16 %v3120
    %v4228 = vunpack.c.l.b16 %v3121
    %v4229 = vunpack.c.h.b16 %v3121
    %v4230 = vunpack.c.l.b16 %v3122
    %v4231 = vunpack.c.h.b16 %v3122
    %v4232 = vunpack.c.l.b16 %v3123
    %v4233 = vunpack.c.h.b16 %v3123
    %v4234 = vunpack.c.l.b16 %v3124
    %v4235 = vunpack.c.h.b16 %v3124
    %v4236 = vunpack.c.l.b16 %v3125
    %v4237 = vunpack.c.h.b16 %v3125
    %v4238 = vunpack.c.l.b16 %v3126
    %v4239 = vunpack.c.h.b16 %v3126
    %v4240 = vunpack.c.l.b16 %v3127
    %v4241 = vunpack.c.h.b16 %v3127
    %v4242 = vunpack.c.l.b16 %v3128
    %v4243 = vunpack.c.h.b16 %v3128
    %v4244 = vunpack.c.l.b16 %v3129
    %v4245 = vunpack.c.h.b16 %v3129
    %v4246 = vunpack.c.l.b16 %v3130
    %v4247 = vunpack.c.h.b16 %v3130
    %v4248 = vunpack.c.l.b16 %v3131
    %v4249 = vunpack.c.h.b16 %v3131
    %v4250 = vunpack.c.l.b16 %v3132
    %v4251 = vunpack.c.h.b16 %v3132
    %v4252 = vunpack.c.l.b16 %v3133
    %v4253 = vunpack.c.h.b16 %v3133
    %v4254 = vunpack.c.l.b16 %v3134
    %v4255 = vunpack.c.h.b16 %v3134
    %v4256 = vunpack.c.l.b16 %v3135
    %v4257 = vunpack.c.h.b16 %v3135
    %v4258 = vunpack.c.l.b16 %v3136
    %v4259 = vunpack.c.h.b16 %v3136
    %v4260 = vunpack.c.l.b16 %v3137
    %v4261 = vunpack.c.h.b16 %v3137
    %v4262 = vunpack.c.l.b16 %v3138
    %v4263 = vunpack.c.h.b16 %v3138
    %v4264 = vunpack.c.l.b16 %v3139
    %v4265 = vunpack.c.h.b16 %v3139
    %v4266 = vunpack.c.l.b16 %v3140
    %v4267 = vunpack.c.h.b16 %v3140
    %v4268 = vunpack.c.l.b16 %v3141
    %v4269 = vunpack.c.h.b16 %v3141
    %v4270 = vunpack.c.l.b16 %v3142
    %v4271 = vunpack.c.h.b16 %v3142
    %v4272 = vunpack.c.l.b16 %v3143
    %v4273 = vunpack.c.h.b16 %v3143
    %v4274 = vunpack.c.l.b16 %v3144
    %v4275 = vunpack.c.h.b16 %v3144
    %v4276 = vunpack.c.l.b16 %v3145
    %v4277 = vunpack.c.h.b16 %v3145
    %v4278 = vunpack.c.l.b16 %v3146
    %v4279 = vunpack.c.h.b16 %v3146
    %v4280 = vunpack.c.l.b16 %v3147
    %v4281 = vunpack.c.h.b16 %v3147
    %v4282 = vunpack.c.l.b16 %v3148
    %v4283 = vunpack.c.h.b16 %v3148
    %v4284 = vunpack.c.l.b16 %v3149
    %v4285 = vunpack.c.h.b16 %v3149
    %v4286 = vunpack.c.l.b16 %v3150
    %v4287 = vunpack.c.h.b16 %v3150
    %v4288 = vunpack.c.l.b16 %v3151
    %v4289 = vunpack.c.h.b16 %v3151
    %v4290 = vunpack.c.l.b16 %v3152
    %v4291 = vunpack.c.h.b16 %v3152
    %v4292 = vunpack.c.l.b16 %v3153
    %v4293 = vunpack.c.h.b16 %v3153
    %v4294 = vunpack.c.l.b16 %v3154
    %v4295 = vunpack.c.h.b16 %v3154
    %v4296 = vunpack.c.l.b16 %v3155
    %v4297 = vunpack.c.h.b16 %v3155
    %v4298 = vunpack.c.l.b16 %v3156
    %v4299 = vunpack.c.h.b16 %v3156
    %v4300 = vunpack.c.l.b16 %v3157
    %v4301 = vunpack.c.h.b16 %v3157
    %v4302 = vunpack.c.l.b16 %v3158
    %v4303 = vunpack.c.h.b16 %v3158
    %v4304 = vunpack.c.l.b16 %v3159
    %v4305 = vunpack.c.h.b16 %v3159
    %v4306 = vunpack.c.l.b16 %v3160
    %v4307 = vunpack.c.h.b16 %v3160
    %v4308 = vunpack.c.l.b16 %v3161
    %v4309 = vunpack.c.h.b16 %v3161
    %v4310 = vunpack.c.l.b16 %v3162
    %v4311 = vunpack.c.h.b16 %v3162
    %v4312 = vunpack.c.l.b16 %v3163
    %v4313 = vunpack.c.h.b16 %v3163
    %v4314 = vunpack.c.l.b16 %v3164
    %v4315 = vunpack.c.h.b16 %v3164
    %v4316 = vunpack.c.l.b16 %v3165
    %v4317 = vunpack.c.h.b16 %v3165
    %v4318 = vunpack.c.l.b16 %v3166
    %v4319 = vunpack.c.h.b16 %v3166
    %v4320 = vunpack.c.l.b16 %v3167
    %v4321 = vunpack.c.h.b16 %v3167
    %v4322 = vunpack.c.l.b16 %v3168
    %v4323 = vunpack.c.h.b16 %v3168
    %v4324 = vunpack.c.l.b16 %v3169
    %v4325 = vunpack.c.h.b16 %v3169
    %v4326 = vunpack.c.l.b16 %v3170
    %v4327 = vunpack.c.h.b16 %v3170
    %v4328 = vunpack.c.l.b16 %v3171
    %v4329 = vunpack.c.h.b16 %v3171
    %v4330 = vunpack.c.l.b16 %v3172
    %v4331 = vunpack.c.h.b16 %v3172
    %v4332 = vunpack.c.l.b16 %v3173
    %v4333 = vunpack.c.h.b16 %v3173
    %v4334 = vunpack.c.l.b16 %v3174
    %v4335 = vunpack.c.h.b16 %v3174
    %v4336 = vunpack.c.l.b16 %v3175
    %v4337 = vunpack.c.h.b16 %v3175
    %v4338 = vunpack.c.l.b16 %v3176
    %v4339 = vunpack.c.h.b16 %v3176
    %v4340 = vunpack.c.l.b16 %v3177
    %v4341 = vunpack.c.h.b16 %v3177
    %v4342 = vunpack.c.l.b16 %v3178
    %v4343 = vunpack.c.h.b16 %v3178
    %v4344 = vunpack.c.l.b16 %v3179
    %v4345 = vunpack.c.h.b16 %v3179
    %v4346 = vunpack.c.l.b16 %v3180
    %v4347 = vunpack.c.h.b16 %v3180
    %v4348 = vunpack.c.l.b16 %v3181
    %v4349 = vunpack.c.h.b16 %v3181
    %v4350 = vunpack.c.l.b16 %v3182
    %v4351 = vunpack.c.h.b16 %v3182
    %v4352 = vunpack.c.l.b16 %v3183
    %v4353 = vunpack.c.h.b16 %v3183
    %v4354 = vunpack.c.l.b16 %v3184
    %v4355 = vunpack.c.h.b16 %v3184
    %v4356 = vunpack.c.l.b16 %v3185
    %v4357 = vunpack.c.h.b16 %v3185
    %v4358 = vunpack.c.l.b16 %v3186
    %v4359 = vunpack.c.h.b16 %v3186
    %v4360 = vunpack.c.l.b16 %v3187
    %v4361 = vunpack.c.h.b16 %v3187
    %v4362 = vunpack.c.l.b16 %v3188
    %v4363 = vunpack.c.h.b16 %v3188
    %v4364 = vunpack.c.l.b16 %v3189
    %v4365 = vunpack.c.h.b16 %v3189
    %v4366 = vunpack.c.l.b16 %v3190
    %v4367 = vunpack.c.h.b16 %v3190
    %v4368 = vunpack.c.l.b16 %v3191
    %v4369 = vunpack.c.h.b16 %v3191
    %v4370 = vunpack.c.l.b16 %v3192
    %v4371 = vunpack.c.h.b16 %v3192
    %v4372 = vunpack.c.l.b16 %v3193
    %v4373 = vunpack.c.h.b16 %v3193
    %v4374 = vunpack.c.l.b16 %v3194
    %v4375 = vunpack.c.h.b16 %v3194
    %v4376 = vunpack.c.l.b16 %v3195
    %v4377 = vunpack.c.h.b16 %v3195
    %v4378 = vunpack.c.l.b16 %v3196
    %v4379 = vunpack.c.h.b16 %v3196
    %v4380 = vunpack.c.l.b16 %v3197
    %v4381 = vunpack.c.h.b16 %v3197
    %v4382 = vunpack.c.l.b16 %v3198
    %v4383 = vunpack.c.h.b16 %v3198
    %v4384 = vunpack.c.l.b16 %v3199
    %v4385 = vunpack.c.h.b16 %v3199
    %v4386 = vunpack.c.l.b16 %v3200
    %v4387 = vunpack.c.h.b16 %v3200
    %v4388 = vunpack.c.l.b16 %v3201
    %v4389 = vunpack.c.h.b16 %v3201
    %v4390 = vunpack.c.l.b16 %v3202
    %v4391 = vunpack.c.h.b16 %v3202
    %v4392 = vunpack.c.l.b16 %v3203
    %v4393 = vunpack.c.h.b16 %v3203
    %v4394 = vunpack.c.l.b16 %v3204
    %v4395 = vunpack.c.h.b16 %v3204
    %v4396 = vunpack.c.l.b16 %v3205
    %v4397 = vunpack.c.h.b16 %v3205
    %v4398 = vunpack.c.l.b16 %v3206
    %v4399 = vunpack.c.h.b16 %v3206
    %v4400 = vunpack.c.l.b16 %v3207
    %v4401 = vunpack.c.h.b16 %v3207
    %v4402 = vunpack.c.l.b16 %v3208
    %v4403 = vunpack.c.h.b16 %v3208
    %v4404 = vunpack.c.l.b16 %v3209
    %v4405 = vunpack.c.h.b16 %v3209
    %v4406 = vunpack.c.l.b16 %v3210
    %v4407 = vunpack.c.h.b16 %v3210
    %v4408 = vunpack.c.l.b16 %v3211
    %v4409 = vunpack.c.h.b16 %v3211
    %v4410 = vunpack.c.l.b16 %v3212
    %v4411 = vunpack.c.h.b16 %v3212
    %v4412 = vunpack.c.l.b16 %v3213
    %v4413 = vunpack.c.h.b16 %v3213
    %v4414 = vunpack.c.l.b16 %v3214
    %v4415 = vunpack.c.h.b16 %v3214
    %v4416 = vunpack.c.l.b16 %v3215
    %v4417 = vunpack.c.h.b16 %v3215
    %v4418 = vunpack.c.l.b16 %v3216
    %v4419 = vunpack.c.h.b16 %v3216
    %v4420 = vunpack.c.l.b16 %v3217
    %v4421 = vunpack.c.h.b16 %v3217
    %v4422 = vunpack.c.l.b16 %v3218
    %v4423 = vunpack.c.h.b16 %v3218
    %v4424 = vunpack.c.l.b16 %v3219
    %v4425 = vunpack.c.h.b16 %v3219
    %v4426 = vunpack.c.l.b16 %v3220
    %v4427 = vunpack.c.h.b16 %v3220
    %v4428 = vunpack.c.l.b16 %v3221
    %v4429 = vunpack.c.h.b16 %v3221
    %v4430 = vunpack.c.l.b16 %v3222
    %v4431 = vunpack.c.h.b16 %v3222
    %v4432 = vunpack.c.l.b16 %v3223
    %v4433 = vunpack.c.h.b16 %v3223
    %v4434 = vunpack.c.l.b16 %v3224
    %v4435 = vunpack.c.h.b16 %v3224
    %v4436 = vunpack.c.l.b16 %v3225
    %v4437 = vunpack.c.h.b16 %v3225
    %v4438 = vunpack.c.l.b16 %v3226
    %v4439 = vunpack.c.h.b16 %v3226
    %v4440 = vunpack.c.l.b16 %v3227
    %v4441 = vunpack.c.h.b16 %v3227
    %v4442 = vunpack.c.l.b16 %v3228
    %v4443 = vunpack.c.h.b16 %v3228
    %v4444 = vunpack.c.l.b16 %v3229
    %v4445 = vunpack.c.h.b16 %v3229
    %v4446 = vunpack.c.l.b16 %v3230
    %v4447 = vunpack.c.h.b16 %v3230
    %v4448 = vunpack.c.l.b16 %v3231
    %v4449 = vunpack.c.h.b16 %v3231
    %v4450 = vunpack.c.l.b16 %v3232
    %v4451 = vunpack.c.h.b16 %v3232
    %v4452 = vunpack.c.l.b16 %v3233
    %v4453 = vunpack.c.h.b16 %v3233
    %v4454 = vunpack.c.l.b16 %v3234
    %v4455 = vunpack.c.h.b16 %v3234
    %v4456 = vunpack.c.l.b16 %v3235
    %v4457 = vunpack.c.h.b16 %v3235
    %v4458 = vunpack.c.l.b16 %v3236
    %v4459 = vunpack.c.h.b16 %v3236
    %v4460 = vunpack.c.l.b16 %v3237
    %v4461 = vunpack.c.h.b16 %v3237
    %v4462 = vunpack.c.l.b16 %v3238
    %v4463 = vunpack.c.h.b16 %v3238
    %v4464 = vunpack.c.l.b16 %v3239
    %v4465 = vunpack.c.h.b16 %v3239
    %v4466 = vunpack.c.l.b16 %v3240
    %v4467 = vunpack.c.h.b16 %v3240
    %v4468 = vunpack.c.l.b16 %v3241
    %v4469 = vunpack.c.h.b16 %v3241
    %v4470 = vunpack.c.l.b16 %v3242
    %v4471 = vunpack.c.h.b16 %v3242
    %v4472 = vunpack.c.l.b16 %v3243
    %v4473 = vunpack.c.h.b16 %v3243
    %v4474 = vunpack.c.l.b16 %v3244
    %v4475 = vunpack.c.h.b16 %v3244
    %v4476 = vunpack.c.l.b16 %v3245
    %v4477 = vunpack.c.h.b16 %v3245
    %v4478 = vunpack.c.l.b16 %v3246
    %v4479 = vunpack.c.h.b16 %v3246
    %v4480 = vunpack.c.l.b16 %v3247
    %v4481 = vunpack.c.h.b16 %v3247
    %v4482 = vunpack.c.l.b16 %v3248
    %v4483 = vunpack.c.h.b16 %v3248
    %v4484 = vunpack.c.l.b16 %v3249
    %v4485 = vunpack.c.h.b16 %v3249
    %v4486 = vunpack.c.l.b16 %v3250
    %v4487 = vunpack.c.h.b16 %v3250
    %v4488 = vunpack.c.l.b16 %v3251
    %v4489 = vunpack.c.h.b16 %v3251
    %v4490 = vunpack.c.l.b16 %v3252
    %v4491 = vunpack.c.h.b16 %v3252
    %v4492 = vunpack.c.l.b16 %v3253
    %v4493 = vunpack.c.h.b16 %v3253
    %v4494 = vunpack.c.l.b16 %v3254
    %v4495 = vunpack.c.h.b16 %v3254
    %v4496 = vunpack.c.l.b16 %v3255
    %v4497 = vunpack.c.h.b16 %v3255
    %v4498 = vunpack.c.l.b16 %v3256
    %v4499 = vunpack.c.h.b16 %v3256
    %v4500 = vunpack.c.l.b16 %v3257
    %v4501 = vunpack.c.h.b16 %v3257
    %v4502 = vunpack.c.l.b16 %v3258
    %v4503 = vunpack.c.h.b16 %v3258
    %v4504 = vunpack.c.l.b16 %v3259
    %v4505 = vunpack.c.h.b16 %v3259
    %v4506 = vunpack.c.l.b16 %v3260
    %v4507 = vunpack.c.h.b16 %v3260
    %v4508 = vunpack.c.l.b16 %v3261
    %v4509 = vunpack.c.h.b16 %v3261
    %v4510 = vunpack.c.l.b16 %v3262
    %v4511 = vunpack.c.h.b16 %v3262
    %v4512 = vunpack.c.l.b16 %v3263
    %v4513 = vunpack.c.h.b16 %v3263
    %v4514 = vunpack.c.l.b16 %v3264
    %v4515 = vunpack.c.h.b16 %v3264
    %v4516 = vunpack.c.l.b16 %v3265
    %v4517 = vunpack.c.h.b16 %v3265
    %v4518 = vunpack.c.l.b16 %v3266
    %v4519 = vunpack.c.h.b16 %v3266
    %v4520 = vunpack.c.l.b16 %v3267
    %v4521 = vunpack.c.h.b16 %v3267
    %v4522 = vunpack.c.l.b16 %v3268
    %v4523 = vunpack.c.h.b16 %v3268
    %v4524 = vunpack.c.l.b16 %v3269
    %v4525 = vunpack.c.h.b16 %v3269
    %v4526 = vunpack.c.l.b16 %v3270
    %v4527 = vunpack.c.h.b16 %v3270
    %v4528 = vunpack.c.l.b16 %v3271
    %v4529 = vunpack.c.h.b16 %v3271
    %v4530 = vunpack.c.l.b16 %v3272
    %v4531 = vunpack.c.h.b16 %v3272
    %v4532 = vunpack.c.l.b16 %v3273
    %v4533 = vunpack.c.h.b16 %v3273
    %v4534 = vunpack.c.l.b16 %v3274
    %v4535 = vunpack.c.h.b16 %v3274
    %v4536 = vunpack.c.l.b16 %v3275
    %v4537 = vunpack.c.h.b16 %v3275
    %v4538 = vunpack.c.l.b16 %v3276
    %v4539 = vunpack.c.h.b16 %v3276
    %v4540 = vunpack.c.l.b16 %v3277
    %v4541 = vunpack.c.h.b16 %v3277
    %v4542 = vunpack.c.l.b16 %v3278
    %v4543 = vunpack.c.h.b16 %v3278
    %v4544 = vunpack.c.l.b16 %v3279
    %v4545 = vunpack.c.h.b16 %v3279
    %v4546 = vunpack.c.l.b16 %v3280
    %v4547 = vunpack.c.h.b16 %v3280
    %v4548 = vunpack.c.l.b16 %v3281
    %v4549 = vunpack.c.h.b16 %v3281
    %v4550 = vunpack.c.l.b16 %v3282
    %v4551 = vunpack.c.h.b16 %v3282
    %v4552 = vunpack.c.l.b16 %v3283
    %v4553 = vunpack.c.h.b16 %v3283
    %v4554 = vunpack.c.l.b16 %v3284
    %v4555 = vunpack.c.h.b16 %v3284
    %v4556 = vunpack.c.l.b16 %v3285
    %v4557 = vunpack.c.h.b16 %v3285
    %v4558 = vunpack.c.l.b16 %v3286
    %v4559 = vunpack.c.h.b16 %v3286
    %v4560 = vunpack.c.l.b16 %v3287
    %v4561 = vunpack.c.h.b16 %v3287
    %v4562 = vunpack.c.l.b16 %v3288
    %v4563 = vunpack.c.h.b16 %v3288
    %v4564 = vunpack.c.l.b16 %v3289
    %v4565 = vunpack.c.h.b16 %v3289
    %v4566 = vunpack.c.l.b16 %v3290
    %v4567 = vunpack.c.h.b16 %v3290
    %v4568 = vunpack.c.l.b16 %v3291
    %v4569 = vunpack.c.h.b16 %v3291
    %v4570 = vunpack.c.l.b16 %v3292
    %v4571 = vunpack.c.h.b16 %v3292
    %v4572 = vunpack.c.l.b16 %v3293
    %v4573 = vunpack.c.h.b16 %v3293
    %v4574 = vunpack.c.l.b16 %v3294
    %v4575 = vunpack.c.h.b16 %v3294
    %v4576 = vunpack.c.l.b16 %v3295
    %v4577 = vunpack.c.h.b16 %v3295
    %v4578 = vunpack.c.l.b16 %v3296
    %v4579 = vunpack.c.h.b16 %v3296
    %v4580 = vunpack.c.l.b16 %v3297
    %v4581 = vunpack.c.h.b16 %v3297
    %v4582 = vunpack.c.l.b16 %v3298
    %v4583 = vunpack.c.h.b16 %v3298
    %v4584 = vunpack.c.l.b16 %v3299
    %v4585 = vunpack.c.h.b16 %v3299
    %v4586 = vunpack.c.l.b16 %v3300
    %v4587 = vunpack.c.h.b16 %v3300
    %v4588 = vunpack.c.l.b16 %v3301
    %v4589 = vunpack.c.h.b16 %v3301
    %v4590 = vunpack.c.l.b16 %v3302
    %v4591 = vunpack.c.h.b16 %v3302
    %v4592 = vunpack.c.l.b16 %v3303
    %v4593 = vunpack.c.h.b16 %v3303
    %v4594 = vunpack.c.l.b16 %v3304
    %v4595 = vunpack.c.h.b16 %v3304
    %v4596 = vunpack.c.l.b16 %v3305
    %v4597 = vunpack.c.h.b16 %v3305
    %v4598 = vunpack.c.l.b16 %v3306
    %v4599 = vunpack.c.h.b16 %v3306
    %v4600 = vunpack.c.l.b16 %v3307
    %v4601 = vunpack.c.h.b16 %v3307
    %v4602 = vunpack.c.l.b16 %v3308
    %v4603 = vunpack.c.h.b16 %v3308
    %v4604 = vunpack.c.l.b16 %v3309
    %v4605 = vunpack.c.h.b16 %v3309
    %v4606 = vunpack.c.l.b16 %v3310
    %v4607 = vunpack.c.h.b16 %v3310
    %v4608 = vunpack.c.l.b16 %v3311
    %v4609 = vunpack.c.h.b16 %v3311
    %v4610 = vunpack.c.l.b16 %v3312
    %v4611 = vunpack.c.h.b16 %v3312
    %v4612 = vunpack.c.l.b16 %v3313
    %v4613 = vunpack.c.h.b16 %v3313
    %v4614 = vunpack.c.l.b16 %v3314
    %v4615 = vunpack.c.h.b16 %v3314
    %v4616 = vunpack.c.l.b16 %v3315
    %v4617 = vunpack.c.h.b16 %v3315
    %v4618 = vunpack.c.l.b16 %v3316
    %v4619 = vunpack.c.h.b16 %v3316
    %v4620 = vunpack.c.l.b16 %v3317
    %v4621 = vunpack.c.h.b16 %v3317
    %v4622 = vunpack.c.l.b16 %v3318
    %v4623 = vunpack.c.h.b16 %v3318
    %v4624 = vunpack.c.l.b16 %v3319
    %v4625 = vunpack.c.h.b16 %v3319
    %v4626 = vunpack.c.l.b16 %v3320
    %v4627 = vunpack.c.h.b16 %v3320
    %v4628 = vunpack.c.l.b16 %v3321
    %v4629 = vunpack.c.h.b16 %v3321
    %v4630 = vunpack.c.l.b16 %v3322
    %v4631 = vunpack.c.h.b16 %v3322
    %v4632 = vunpack.c.l.b16 %v3323
    %v4633 = vunpack.c.h.b16 %v3323
    %v4634 = vunpack.c.l.b16 %v3324
    %v4635 = vunpack.c.h.b16 %v3324
    %v4636 = vunpack.c.l.b16 %v3325
    %v4637 = vunpack.c.h.b16 %v3325
    %v4638 = vunpack.c.l.b16 %v3326
    %v4639 = vunpack.c.h.b16 %v3326
    %v4640 = vunpack.c.l.b16 %v3327
    %v4641 = vunpack.c.h.b16 %v3327
    %v4642 = vunpack.c.l.b16 %v3328
    %v4643 = vunpack.c.h.b16 %v3328
    %v4644 = vunpack.c.l.b16 %v3329
    %v4645 = vunpack.c.h.b16 %v3329
    %v4646 = vunpack.c.l.b16 %v3330
    %v4647 = vunpack.c.h.b16 %v3330
    %v4648 = vunpack.c.l.b16 %v3331
    %v4649 = vunpack.c.h.b16 %v3331
    %v4650 = vunpack.c.l.b16 %v3332
    %v4651 = vunpack.c.h.b16 %v3332
    %v4652 = vunpack.c.l.b16 %v3333
    %v4653 = vunpack.c.h.b16 %v3333
    %v4654 = vunpack.c.l.b16 %v3334
    %v4655 = vunpack.c.h.b16 %v3334
    %v4656 = vunpack.c.l.b16 %v3335
    %v4657 = vunpack.c.h.b16 %v3335
    %v4658 = vunpack.c.l.b16 %v3336
    %v4659 = vunpack.c.h.b16 %v3336
    %v4660 = vunpack.c.l.b16 %v3337
    %v4661 = vunpack.c.h.b16 %v3337
    %v4662 = vunpack.c.l.b16 %v3338
    %v4663 = vunpack.c.h.b16 %v3338
    %v4664 = vunpack.c.l.b16 %v3339
    %v4665 = vunpack.c.h.b16 %v3339
    %v4666 = vunpack.c.l.b16 %v3340
    %v4667 = vunpack.c.h.b16 %v3340
    %v4668 = vunpack.c.l.b16 %v3341
    %v4669 = vunpack.c.h.b16 %v3341
    %v4670 = vunpack.c.l.b16 %v3342
    %v4671 = vunpack.c.h.b16 %v3342
    %v4672 = vunpack.c.l.b16 %v3343
    %v4673 = vunpack.c.h.b16 %v3343
    %v4674 = vunpack.c.l.b16 %v3344
    %v4675 = vunpack.c.h.b16 %v3344
    %v4676 = vunpack.c.l.b16 %v3345
    %v4677 = vunpack.c.h.b16 %v3345
    %v4678 = vunpack.c.l.b16 %v3346
    %v4679 = vunpack.c.h.b16 %v3346
    %v4680 = vunpack.c.l.b16 %v3347
    %v4681 = vunpack.c.h.b16 %v3347
    %v4682 = vunpack.c.l.b16 %v3348
    %v4683 = vunpack.c.h.b16 %v3348
    %v4684 = vunpack.c.l.b16 %v3349
    %v4685 = vunpack.c.h.b16 %v3349
    %v4686 = vunpack.c.l.b16 %v3350
    %v4687 = vunpack.c.h.b16 %v3350
    %v4688 = vunpack.c.l.b16 %v3351
    %v4689 = vunpack.c.h.b16 %v3351
    %v4690 = vunpack.c.l.b16 %v3352
    %v4691 = vunpack.c.h.b16 %v3352
    %v4692 = vunpack.c.l.b16 %v3353
    %v4693 = vunpack.c.h.b16 %v3353
    %v4694 = vunpack.c.l.b16 %v3354
    %v4695 = vunpack.c.h.b16 %v3354
    %v4696 = vunpack.c.l.b16 %v3355
    %v4697 = vunpack.c.h.b16 %v3355
    %v4698 = vunpack.c.l.b16 %v3356
    %v4699 = vunpack.c.h.b16 %v3356
    %v4700 = vunpack.c.l.b16 %v3357
    %v4701 = vunpack.c.h.b16 %v3357
    %v4702 = vunpack.c.l.b16 %v3358
    %v4703 = vunpack.c.h.b16 %v3358
    %v4704 = vunpack.c.l.b16 %v3359
    %v4705 = vunpack.c.h.b16 %v3359
    %v4706 = vunpack.c.l.b16 %v3360
    %v4707 = vunpack.c.h.b16 %v3360
    %v4708 = vunpack.c.l.b16 %v3361
    %v4709 = vunpack.c.h.b16 %v3361
    %v4710 = vunpack.c.l.b16 %v3362
    %v4711 = vunpack.c.h.b16 %v3362
    %v4712 = vunpack.c.l.b16 %v3363
    %v4713 = vunpack.c.h.b16 %v3363
    %v4714 = vunpack.c.l.b16 %v3364
    %v4715 = vunpack.c.h.b16 %v3364
    %v4716 = vunpack.c.l.b16 %v3365
    %v4717 = vunpack.c.h.b16 %v3365
    %v4718 = vunpack.c.l.b16 %v3366
    %v4719 = vunpack.c.h.b16 %v3366
    %v4720 = vunpack.c.l.b16 %v3367
    %v4721 = vunpack.c.h.b16 %v3367
    %v4722 = vunpack.c.l.b16 %v3368
    %v4723 = vunpack.c.h.b16 %v3368
    %v4724 = vunpack.c.l.b16 %v3369
    %v4725 = vunpack.c.h.b16 %v3369
    %v4726 = vunpack.c.l.b16 %v3370
    %v4727 = vunpack.c.h.b16 %v3370
    %v4728 = vunpack.c.l.b16 %v3371
    %v4729 = vunpack.c.h.b16 %v3371
    %v4730 = vunpack.c.l.b16 %v3372
    %v4731 = vunpack.c.h.b16 %v3372
    %v4732 = vunpack.c.l.b16 %v3373
    %v4733 = vunpack.c.h.b16 %v3373
    %v4734 = vunpack.c.l.b16 %v3374
    %v4735 = vunpack.c.h.b16 %v3374
    %v4736 = vunpack.c.l.b16 %v3375
    %v4737 = vunpack.c.h.b16 %v3375
    %v4738 = vunpack.c.l.b16 %v3376
    %v4739 = vunpack.c.h.b16 %v3376
    %v4740 = vunpack.c.l.b16 %v3377
    %v4741 = vunpack.c.h.b16 %v3377
    %v4742 = vunpack.c.l.b16 %v3378
    %v4743 = vunpack.c.h.b16 %v3378
    %v4744 = vunpack.c.l.b16 %v3379
    %v4745 = vunpack.c.h.b16 %v3379
    %v4746 = vunpack.c.l.b16 %v3380
    %v4747 = vunpack.c.h.b16 %v3380
    %v4748 = vunpack.c.l.b16 %v3381
    %v4749 = vunpack.c.h.b16 %v3381
    %v4750 = vunpack.c.l.b16 %v3382
    %v4751 = vunpack.c.h.b16 %v3382
    %v4752 = vunpack.c.l.b16 %v3383
    %v4753 = vunpack.c.h.b16 %v3383
    %v4754 = vunpack.c.l.b16 %v3384
    %v4755 = vunpack.c.h.b16 %v3384
    %v4756 = vunpack.c.l.b16 %v3385
    %v4757 = vunpack.c.h.b16 %v3385
    %v4758 = vunpack.c.l.b16 %v3386
    %v4759 = vunpack.c.h.b16 %v3386
    %v4760 = vunpack.c.l.b16 %v3387
    %v4761 = vunpack.c.h.b16 %v3387
    %v4762 = vunpack.c.l.b16 %v3388
    %v4763 = vunpack.c.h.b16 %v3388
    %v4764 = vunpack.c.l.b16 %v3389
    %v4765 = vunpack.c.h.b16 %v3389
    %v4766 = vunpack.c.l.b16 %v3390
    %v4767 = vunpack.c.h.b16 %v3390
    %v4768 = vunpack.c.l.b16 %v3391
    %v4769 = vunpack.c.h.b16 %v3391
    %v4770 = vunpack.c.l.b16 %v3392
    %v4771 = vunpack.c.h.b16 %v3392
    %v4772 = vunpack.c.l.b16 %v3393
    %v4773 = vunpack.c.h.b16 %v3393
    %v4774 = vunpack.c.l.b16 %v3394
    %v4775 = vunpack.c.h.b16 %v3394
    %v4776 = vunpack.c.l.b16 %v3395
    %v4777 = vunpack.c.h.b16 %v3395
    %v4778 = vunpack.c.l.b16 %v3396
    %v4779 = vunpack.c.h.b16 %v3396
    %v4780 = vunpack.c.l.b16 %v3397
    %v4781 = vunpack.c.h.b16 %v3397
    %v4782 = vunpack.c.l.b16 %v3398
    %v4783 = vunpack.c.h.b16 %v3398
    %v4784 = vunpack.c.l.b16 %v3399
    %v4785 = vunpack.c.h.b16 %v3399
    %v4786 = vunpack.c.l.b16 %v3400
    %v4787 = vunpack.c.h.b16 %v3400
    %v4788 = vunpack.c.l.b16 %v3401
    %v4789 = vunpack.c.h.b16 %v3401
    %v4790 = vunpack.c.l.b16 %v3402
    %v4791 = vunpack.c.h.b16 %v3402
    %v4792 = vunpack.c.l.b16 %v3403
    %v4793 = vunpack.c.h.b16 %v3403
    %v4794 = vunpack.c.l.b16 %v3404
    %v4795 = vunpack.c.h.b16 %v3404
    %v4796 = vunpack.c.l.b16 %v3405
    %v4797 = vunpack.c.h.b16 %v3405
    %v4798 = vunpack.c.l.b16 %v3406
    %v4799 = vunpack.c.h.b16 %v3406
    %v4800 = vunpack.c.l.b16 %v3407
    %v4801 = vunpack.c.h.b16 %v3407
    %v4802 = vunpack.c.l.b16 %v3408
    %v4803 = vunpack.c.h.b16 %v3408
    %v4804 = vunpack.c.l.b16 %v3409
    %v4805 = vunpack.c.h.b16 %v3409
    %v4806 = vunpack.c.l.b16 %v3410
    %v4807 = vunpack.c.h.b16 %v3410
    %v4808 = vunpack.c.l.b16 %v3411
    %v4809 = vunpack.c.h.b16 %v3411
    %v4810 = vunpack.c.l.b16 %v3412
    %v4811 = vunpack.c.h.b16 %v3412
    %v4812 = vunpack.c.l.b16 %v3413
    %v4813 = vunpack.c.h.b16 %v3413
    %v4814 = vunpack.c.l.b16 %v3414
    %v4815 = vunpack.c.h.b16 %v3414
    %v4816 = vunpack.c.l.b16 %v3415
    %v4817 = vunpack.c.h.b16 %v3415
    %v4818 = vunpack.c.l.b16 %v3416
    %v4819 = vunpack.c.h.b16 %v3416
    %v4820 = vunpack.c.l.b16 %v3417
    %v4821 = vunpack.c.h.b16 %v3417
    %v4822 = vunpack.c.l.b16 %v3418
    %v4823 = vunpack.c.h.b16 %v3418
    %v4824 = vunpack.c.l.b16 %v3419
    %v4825 = vunpack.c.h.b16 %v3419
    %v4826 = vunpack.c.l.b16 %v3420
    %v4827 = vunpack.c.h.b16 %v3420
    %v4828 = vunpack.c.l.b16 %v3421
    %v4829 = vunpack.c.h.b16 %v3421
    %v4830 = vunpack.c.l.b16 %v3422
    %v4831 = vunpack.c.h.b16 %v3422
    %v4832 = vunpack.c.l.b16 %v3423
    %v4833 = vunpack.c.h.b16 %v3423
    %v4834 = vunpack.c.l.b16 %v3424
    %v4835 = vunpack.c.h.b16 %v3424
    %v4836 = vunpack.c.l.b16 %v3425
    %v4837 = vunpack.c.h.b16 %v3425
    %v4838 = vunpack.c.l.b16 %v3426
    %v4839 = vunpack.c.h.b16 %v3426
    %v4840 = vunpack.c.l.b16 %v3427
    %v4841 = vunpack.c.h.b16 %v3427
    %v4842 = vunpack.c.l.b16 %v3428
    %v4843 = vunpack.c.h.b16 %v3428
    %v4844 = vunpack.c.l.b16 %v3429
    %v4845 = vunpack.c.h.b16 %v3429
    %v4846 = vunpack.c.l.b16 %v3430
    %v4847 = vunpack.c.h.b16 %v3430
    %v4848 = vunpack.c.l.b16 %v3431
    %v4849 = vunpack.c.h.b16 %v3431
    %v4850 = vunpack.c.l.b16 %v3432
    %v4851 = vunpack.c.h.b16 %v3432
    %v4852 = vunpack.c.l.b16 %v3433
    %v4853 = vunpack.c.h.b16 %v3433
    %v4854 = vunpack.c.l.b16 %v3434
    %v4855 = vunpack.c.h.b16 %v3434
    %v4856 = vunpack.c.l.b16 %v3435
    %v4857 = vunpack.c.h.b16 %v3435
    %v4858 = vunpack.c.l.b16 %v3436
    %v4859 = vunpack.c.h.b16 %v3436
    %v4860 = vunpack.c.l.b16 %v3437
    %v4861 = vunpack.c.h.b16 %v3437
    %v4862 = vunpack.c.l.b16 %v3438
    %v4863 = vunpack.c.h.b16 %v3438
    %v4864 = vunpack.c.l.b16 %v3439
    %v4865 = vunpack.c.h.b16 %v3439
    %v4866 = vunpack.c.l.b16 %v3440
    %v4867 = vunpack.c.h.b16 %v3440
    %v4868 = vunpack.c.l.b16 %v3441
    %v4869 = vunpack.c.h.b16 %v3441
    %v4870 = vunpack.c.l.b16 %v3442
    %v4871 = vunpack.c.h.b16 %v3442
    %v4872 = vunpack.c.l.b16 %v3443
    %v4873 = vunpack.c.h.b16 %v3443
    %v4874 = vunpack.c.l.b16 %v3444
    %v4875 = vunpack.c.h.b16 %v3444
    %v4876 = vunpack.c.l.b16 %v3445
    %v4877 = vunpack.c.h.b16 %v3445
    %v4878 = vunpack.c.l.b16 %v3446
    %v4879 = vunpack.c.h.b16 %v3446
    %v4880 = vunpack.c.l.b16 %v3447
    %v4881 = vunpack.c.h.b16 %v3447
    %v4882 = vunpack.c.l.b16 %v3448
    %v4883 = vunpack.c.h.b16 %v3448
    %v4884 = vunpack.c.l.b16 %v3449
    %v4885 = vunpack.c.h.b16 %v3449
    %v4886 = vunpack.c.l.b16 %v3450
    %v4887 = vunpack.c.h.b16 %v3450
    %v4888 = vunpack.c.l.b16 %v3451
    %v4889 = vunpack.c.h.b16 %v3451
    %v4890 = vunpack.c.l.b16 %v3452
    %v4891 = vunpack.c.h.b16 %v3452
    %v4892 = vunpack.c.l.b16 %v3453
    %v4893 = vunpack.c.h.b16 %v3453
    %v4894 = vunpack.c.l.b16 %v3454
    %v4895 = vunpack.c.h.b16 %v3454
    %v4896 = vunpack.c.l.b16 %v3455
    %v4897 = vunpack.c.h.b16 %v3455
    %v4898 = vunpack.c.l.b16 %v3456
    %v4899 = vunpack.c.h.b16 %v3456
    %v4900 = vunpack.c.l.b16 %v3457
    %v4901 = vunpack.c.h.b16 %v3457
    %v4902 = vunpack.c.l.b16 %v3458
    %v4903 = vunpack.c.h.b16 %v3458
    %v4904 = vunpack.c.l.b16 %v3459
    %v4905 = vunpack.c.h.b16 %v3459
    %v4906 = vunpack.c.l.b16 %v3460
    %v4907 = vunpack.c.h.b16 %v3460
    %v4908 = vunpack.c.l.b16 %v3461
    %v4909 = vunpack.c.h.b16 %v3461
    %v4910 = vunpack.c.l.b16 %v3462
    %v4911 = vunpack.c.h.b16 %v3462
    %v4912 = vunpack.c.l.b16 %v3463
    %v4913 = vunpack.c.h.b16 %v3463
    %v4914 = vunpack.c.l.b16 %v3464
    %v4915 = vunpack.c.h.b16 %v3464
    %v4916 = vunpack.c.l.b16 %v3465
    %v4917 = vunpack.c.h.b16 %v3465
    %v4918 = vunpack.c.l.b16 %v3466
    %v4919 = vunpack.c.h.b16 %v3466
    %v4920 = vunpack.c.l.b16 %v3467
    %v4921 = vunpack.c.h.b16 %v3467
    %v4922 = vunpack.c.l.b16 %v3468
    %v4923 = vunpack.c.h.b16 %v3468
    %v4924 = vunpack.c.l.b16 %v3469
    %v4925 = vunpack.c.h.b16 %v3469
    %v4926 = vunpack.c.l.b16 %v3470
    %v4927 = vunpack.c.h.b16 %v3470
    %v4928 = vunpack.c.l.b16 %v3471
    %v4929 = vunpack.c.h.b16 %v3471
    %v4930 = vunpack.c.l.b16 %v3472
    %v4931 = vunpack.c.h.b16 %v3472
    %v4932 = vunpack.c.l.b16 %v3473
    %v4933 = vunpack.c.h.b16 %v3473
    %v4934 = vunpack.c.l.b16 %v3474
    %v4935 = vunpack.c.h.b16 %v3474
    %v4936 = vunpack.c.l.b16 %v3475
    %v4937 = vunpack.c.h.b16 %v3475
    %v4938 = vunpack.c.l.b16 %v3476
    %v4939 = vunpack.c.h.b16 %v3476
    %v4940 = vunpack.c.l.b16 %v3477
    %v4941 = vunpack.c.h.b16 %v3477
    %v4942 = vunpack.c.l.b16 %v3478
    %v4943 = vunpack.c.h.b16 %v3478
    %v4944 = vunpack.c.l.b16 %v3479
    %v4945 = vunpack.c.h.b16 %v3479
    %v4946 = vunpack.c.l.b16 %v3480
    %v4947 = vunpack.c.h.b16 %v3480
    %v4948 = vunpack.c.l.b16 %v3481
    %v4949 = vunpack.c.h.b16 %v3481
    %v4950 = vunpack.c.l.b16 %v3482
    %v4951 = vunpack.c.h.b16 %v3482
    %v4952 = vunpack.c.l.b16 %v3483
    %v4953 = vunpack.c.h.b16 %v3483
    %v4954 = vunpack.c.l.b16 %v3484
    %v4955 = vunpack.c.h.b16 %v3484
    %v4956 = vunpack.c.l.b16 %v3485
    %v4957 = vunpack.c.h.b16 %v3485
    %v4958 = vunpack.c.l.b16 %v3486
    %v4959 = vunpack.c.h.b16 %v3486
    %v4960 = vunpack.c.l.b16 %v3487
    %v4961 = vunpack.c.h.b16 %v3487
    %v4962 = vunpack.c.l.b16 %v3488
    %v4963 = vunpack.c.h.b16 %v3488
    %v4964 = vunpack.c.l.b16 %v3489
    %v4965 = vunpack.c.h.b16 %v3489
    %v4966 = vunpack.c.l.b16 %v3490
    %v4967 = vunpack.c.h.b16 %v3490
    %v4968 = vunpack.c.l.b16 %v3491
    %v4969 = vunpack.c.h.b16 %v3491
    %v4970 = vunpack.c.l.b16 %v3492
    %v4971 = vunpack.c.h.b16 %v3492
    %v4972 = vunpack.c.l.b16 %v3493
    %v4973 = vunpack.c.h.b16 %v3493
    %v4974 = vunpack.c.l.b16 %v3494
    %v4975 = vunpack.c.h.b16 %v3494
    %v4976 = vunpack.c.l.b16 %v3495
    %v4977 = vunpack.c.h.b16 %v3495
    %v4978 = vunpack.c.l.b16 %v3496
    %v4979 = vunpack.c.h.b16 %v3496
    %v4980 = vunpack.c.l.b16 %v3497
    %v4981 = vunpack.c.h.b16 %v3497
    %v4982 = vunpack.c.l.b16 %v3498
    %v4983 = vunpack.c.h.b16 %v3498
    %v4984 = vunpack.c.l.b16 %v3499
    %v4985 = vunpack.c.h.b16 %v3499
    %v4986 = vunpack.c.l.b16 %v3500
    %v4987 = vunpack.c.h.b16 %v3500
    %v4988 = vunpack.c.l.b16 %v3501
    %v4989 = vunpack.c.h.b16 %v3501
    %v4990 = vunpack.c.l.b16 %v3502
    %v4991 = vunpack.c.h.b16 %v3502
    %v4992 = vunpack.c.l.b16 %v3503
    %v4993 = vunpack.c.h.b16 %v3503
    %v4994 = vunpack.c.l.b16 %v3504
    %v4995 = vunpack.c.h.b16 %v3504
    %v4996 = vunpack.c.l.b16 %v3505
    %v4997 = vunpack.c.h.b16 %v3505
    %v4998 = vunpack.c.l.b16 %v3506
    %v4999 = vunpack.c.h.b16 %v3506
    %v5000 = vunpack.c.l.b16 %v3507
    %v5001 = vunpack.c.h.b16 %v3507
    %v5002 = vunpack.c.l.b16 %v3508
    %v5003 = vunpack.c.h.b16 %v3508
    %v5004 = vunpack.c.l.b16 %v3509
    %v5005 = vunpack.c.h.b16 %v3509
    %v5006 = vunpack.c.l.b16 %v3510
    %v5007 = vunpack.c.h.b16 %v3510
    %v5008 = vunpack.c.l.b16 %v3511
    %v5009 = vunpack.c.h.b16 %v3511
    %v5010 = vunpack.c.l.b16 %v3512
    %v5011 = vunpack.c.h.b16 %v3512
    %v5012 = vunpack.c.l.b16 %v3513
    %v5013 = vunpack.c.h.b16 %v3513
    %v5014 = vunpack.c.l.b16 %v3514
    %v5015 = vunpack.c.h.b16 %v3514
    %v5016 = vunpack.c.l.b16 %v3515
    %v5017 = vunpack.c.h.b16 %v3515
    %v5018 = vunpack.c.l.b16 %v3516
    %v5019 = vunpack.c.h.b16 %v3516
    %v5020 = vunpack.c.l.b16 %v3517
    %v5021 = vunpack.c.h.b16 %v3517
    %v5022 = vunpack.c.l.b16 %v3518
    %v5023 = vunpack.c.h.b16 %v3518
    %v5024 = vunpack.c.l.b16 %v3519
    %v5025 = vunpack.c.h.b16 %v3519
    %v5026 = vunpack.c.l.b16 %v3520
    %v5027 = vunpack.c.h.b16 %v3520
    %v5028 = vunpack.c.l.b16 %v3521
    %v5029 = vunpack.c.h.b16 %v3521
    %v5030 = vunpack.c.l.b16 %v3522
    %v5031 = vunpack.c.h.b16 %v3522
    %v5032 = vunpack.c.l.b16 %v3523
    %v5033 = vunpack.c.h.b16 %v3523
    %v5034 = vunpack.c.l.b16 %v3524
    %v5035 = vunpack.c.h.b16 %v3524
    %v5036 = vunpack.c.l.b16 %v3525
    %v5037 = vunpack.c.h.b16 %v3525
    %v5038 = vunpack.c.l.b16 %v3526
    %v5039 = vunpack.c.h.b16 %v3526
    %v5040 = vunpack.c.l.b16 %v3527
    %v5041 = vunpack.c.h.b16 %v3527
    %v5042 = vunpack.c.l.b16 %v3528
    %v5043 = vunpack.c.h.b16 %v3528
    %v5044 = vunpack.c.l.b16 %v3529
    %v5045 = vunpack.c.h.b16 %v3529
    %v5046 = vunpack.c.l.b16 %v3530
    %v5047 = vunpack.c.h.b16 %v3530
    %v5048 = vunpack.c.l.b16 %v3531
    %v5049 = vunpack.c.h.b16 %v3531
    %v5050 = vunpack.c.l.b16 %v3532
    %v5051 = vunpack.c.h.b16 %v3532
    %v5052 = vunpack.c.l.b16 %v3533
    %v5053 = vunpack.c.h.b16 %v3533
    %v5054 = vunpack.c.l.b16 %v3534
    %v5055 = vunpack.c.h.b16 %v3534
    %v5056 = vunpack.c.l.b16 %v3535
    %v5057 = vunpack.c.h.b16 %v3535
    %v5058 = vunpack.c.l.b16 %v3536
    %v5059 = vunpack.c.h.b16 %v3536
    %v5060 = vunpack.c.l.b16 %v3537
    %v5061 = vunpack.c.h.b16 %v3537
    %v5062 = vunpack.c.l.b16 %v3538
    %v5063 = vunpack.c.h.b16 %v3538
    %v5064 = vunpack.c.l.b16 %v3539
    %v5065 = vunpack.c.h.b16 %v3539
    %v5066 = vunpack.c.l.b16 %v3540
    %v5067 = vunpack.c.h.b16 %v3540
    %v5068 = vunpack.c.l.b16 %v3541
    %v5069 = vunpack.c.h.b16 %v3541
    %v5070 = vunpack.c.l.b16 %v3542
    %v5071 = vunpack.c.h.b16 %v3542
    %v5072 = vunpack.c.l.b16 %v3543
    %v5073 = vunpack.c.h.b16 %v3543
    %v5074 = vunpack.c.l.b16 %v3544
    %v5075 = vunpack.c.h.b16 %v3544
    %v5076 = vunpack.c.l.b16 %v3545
    %v5077 = vunpack.c.h.b16 %v3545
    %v5078 = vunpack.c.l.b16 %v3546
    %v5079 = vunpack.c.h.b16 %v3546
    %v5080 = vunpack.c.l.b16 %v3547
    %v5081 = vunpack.c.h.b16 %v3547
    %v5082 = vunpack.c.l.b16 %v3548
    %v5083 = vunpack.c.h.b16 %v3548
    %v5084 = vunpack.c.l.b16 %v3549
    %v5085 = vunpack.c.h.b16 %v3549
    %v5086 = vunpack.c.l.b16 %v3550
    %v5087 = vunpack.c.h.b16 %v3550
    %v5088 = vunpack.c.l.b16 %v3551
    %v5089 = vunpack.c.h.b16 %v3551
    %v5090 = vunpack.c.l.b16 %v3552
    %v5091 = vunpack.c.h.b16 %v3552
    %v5092 = vunpack.c.l.b16 %v3553
    %v5093 = vunpack.c.h.b16 %v3553
    %v5094 = vunpack.c.l.b16 %v3554
    %v5095 = vunpack.c.h.b16 %v3554
    %v5096 = vunpack.c.l.b16 %v3555
    %v5097 = vunpack.c.h.b16 %v3555
    %v5098 = vunpack.c.l.b16 %v3556
    %v5099 = vunpack.c.h.b16 %v3556
    %v5100 = vunpack.c.l.b16 %v3557
    %v5101 = vunpack.c.h.b16 %v3557
    %v5102 = vunpack.c.l.b16 %v3558
    %v5103 = vunpack.c.h.b16 %v3558
    %v5104 = vunpack.c.l.b16 %v3559
    %v5105 = vunpack.c.h.b16 %v3559
    %v5106 = vunpack.c.l.b16 %v3560
    %v5107 = vunpack.c.h.b16 %v3560
    %v5108 = vunpack.c.l.b16 %v3561
    %v5109 = vunpack.c.h.b16 %v3561
    %v5110 = vunpack.c.l.b16 %v3562
    %v5111 = vunpack.c.h.b16 %v3562
    %v5112 = vunpack.c.l.b16 %v3563
    %v5113 = vunpack.c.h.b16 %v3563
    %v5114 = vunpack.c.l.b16 %v3564
    %v5115 = vunpack.c.h.b16 %v3564
    %v5116 = vunpack.c.l.b16 %v3565
    %v5117 = vunpack.c.h.b16 %v3565
    %v5118 = vunpack.c.l.b16 %v3566
    %v5119 = vunpack.c.h.b16 %v3566
    %v5120 = vunpack.c.l.b16 %v3567
    %v5121 = vunpack.c.h.b16 %v3567
    %v5122 = vunpack.c.l.b16 %v3568
    %v5123 = vunpack.c.h.b16 %v3568
    %v5124 = vunpack.c.l.b16 %v3569
    %v5125 = vunpack.c.h.b16 %v3569
    %v5126 = vunpack.c.l.b16 %v3570
    %v5127 = vunpack.c.h.b16 %v3570
    %v5128 = vunpack.c.l.b16 %v3571
    %v5129 = vunpack.c.h.b16 %v3571
    %v5130 = vunpack.c.l.b16 %v3572
    %v5131 = vunpack.c.h.b16 %v3572
    %v5132 = vunpack.c.l.b16 %v3573
    %v5133 = vunpack.c.h.b16 %v3573
    %v5134 = vunpack.c.l.b16 %v3574
    %v5135 = vunpack.c.h.b16 %v3574
    %v5136 = vunpack.c.l.b16 %v3575
    %v5137 = vunpack.c.h.b16 %v3575
    %v5138 = vpack.c.b16 %v4122, %v4114
    %v5139 = vpack.c.b16 %v4123, %v4115
    %v5140 = vpack.c.b16 %v4124, %v4116
    %v5141 = vpack.c.b16 %v4125, %v4117
    %v5142 = vpack.c.b16 %v4126, %v4118
    %v5143 = vpack.c.b16 %v4127, %v4119
    %v5144 = vpack.c.b16 %v4128, %v4120
    %v5145 = vpack.c.b16 %v4129, %v4121
    %v5146 = vpack.c.b16 %v4138, %v4130
    %v5147 = vpack.c.b16 %v4139, %v4131
    %v5148 = vpack.c.b16 %v4140, %v4132
    %v5149 = vpack.c.b16 %v4141, %v4133
    %v5150 = vpack.c.b16 %v4142, %v4134
    %v5151 = vpack.c.b16 %v4143, %v4135
    %v5152 = vpack.c.b16 %v4144, %v4136
    %v5153 = vpack.c.b16 %v4145, %v4137
    %v5154 = vpack.c.b16 %v4154, %v4146
    %v5155 = vpack.c.b16 %v4155, %v4147
    %v5156 = vpack.c.b16 %v4156, %v4148
    %v5157 = vpack.c.b16 %v4157, %v4149
    %v5158 = vpack.c.b16 %v4158, %v4150
    %v5159 = vpack.c.b16 %v4159, %v4151
    %v5160 = vpack.c.b16 %v4160, %v4152
    %v5161 = vpack.c.b16 %v4161, %v4153
    %v5162 = vpack.c.b16 %v4170, %v4162
    %v5163 = vpack.c.b16 %v4171, %v4163
    %v5164 = vpack.c.b16 %v4172, %v4164
    %v5165 = vpack.c.b16 %v4173, %v4165
    %v5166 = vpack.c.b16 %v4174, %v4166
    %v5167 = vpack.c.b16 %v4175, %v4167
    %v5168 = vpack.c.b16 %v4176, %v4168
    %v5169 = vpack.c.b16 %v4177, %v4169
    %v5170 = vpack.c.b16 %v4186, %v4178
    %v5171 = vpack.c.b16 %v4187, %v4179
    %v5172 = vpack.c.b16 %v4188, %v4180
    %v5173 = vpack.c.b16 %v4189, %v4181
    %v5174 = vpack.c.b16 %v4190, %v4182
    %v5175 = vpack.c.b16 %v4191, %v4183
    %v5176 = vpack.c.b16 %v4192, %v4184
    %v5177 = vpack.c.b16 %v4193, %v4185
    %v5178 = vpack.c.b16 %v4202, %v4194
    %v5179 = vpack.c.b16 %v4203, %v4195
    %v5180 = vpack.c.b16 %v4204, %v4196
    %v5181 = vpack.c.b16 %v4205, %v4197
    %v5182 = vpack.c.b16 %v4206, %v4198
    %v5183 = vpack.c.b16 %v4207, %v4199
    %v5184 = vpack.c.b16 %v4208, %v4200
    %v5185 = vpack.c.b16 %v4209, %v4201
    %v5186 = vpack.c.b16 %v4218, %v4210
    %v5187 = vpack.c.b16 %v4219, %v4211
    %v5188 = vpack.c.b16 %v4220, %v4212
    %v5189 = vpack.c.b16 %v4221, %v4213
    %v5190 = vpack.c.b16 %v4222, %v4214
    %v5191 = vpack.c.b16 %v4223, %v4215
    %v5192 = vpack.c.b16 %v4224, %v4216
    %v5193 = vpack.c.b16 %v4225, %v4217
    %v5194 = vpack.c.b16 %v4234, %v4226
    %v5195 = vpack.c.b16 %v4235, %v4227
    %v5196 = vpack.c.b16 %v4236, %v4228
    %v5197 = vpack.c.b16 %v4237, %v4229
    %v5198 = vpack.c.b16 %v4238, %v4230
    %v5199 = vpack.c.b16 %v4239, %v4231
    %v5200 = vpack.c.b16 %v4240, %v4232
    %v5201 = vpack.c.b16 %v4241, %v4233
    %v5202 = vpack.c.b16 %v4250, %v4242
    %v5203 = vpack.c.b16 %v4251, %v4243
    %v5204 = vpack.c.b16 %v4252, %v4244
    %v5205 = vpack.c.b16 %v4253, %v4245
    %v5206 = vpack.c.b16 %v4254, %v4246
    %v5207 = vpack.c.b16 %v4255, %v4247
    %v5208 = vpack.c.b16 %v4256, %v4248
    %v5209 = vpack.c.b16 %v4257, %v4249
    %v5210 = vpack.c.b16 %v4266, %v4258
    %v5211 = vpack.c.b16 %v4267, %v4259
    %v5212 = vpack.c.b16 %v4268, %v4260
    %v5213 = vpack.c.b16 %v4269, %v4261
    %v5214 = vpack.c.b16 %v4270, %v4262
    %v5215 = vpack.c.b16 %v4271, %v4263
    %v5216 = vpack.c.b16 %v4272, %v4264
    %v5217 = vpack.c.b16 %v4273, %v4265
    %v5218 = vpack.c.b16 %v4282, %v4274
    %v5219 = vpack.c.b16 %v4283, %v4275
    %v5220 = vpack.c.b16 %v4284, %v4276
    %v5221 = vpack.c.b16 %v4285, %v4277
    %v5222 = vpack.c.b16 %v4286, %v4278
    %v5223 = vpack.c.b16 %v4287, %v4279
    %v5224 = vpack.c.b16 %v4288, %v4280
    %v5225 = vpack.c.b16 %v4289, %v4281
    %v5226 = vpack.c.b16 %v4298, %v4290
    %v5227 = vpack.c.b16 %v4299, %v4291
    %v5228 = vpack.c.b16 %v4300, %v4292
    %v5229 = vpack.c.b16 %v4301, %v4293
    %v5230 = vpack.c.b16 %v4302, %v4294
    %v5231 = vpack.c.b16 %v4303, %v4295
    %v5232 = vpack.c.b16 %v4304, %v4296
    %v5233 = vpack.c.b16 %v4305, %v4297
    %v5234 = vpack.c.b16 %v4314, %v4306
    %v5235 = vpack.c.b16 %v4315, %v4307
    %v5236 = vpack.c.b16 %v4316, %v4308
    %v5237 = vpack.c.b16 %v4317, %v4309
    %v5238 = vpack.c.b16 %v4318, %v4310
    %v5239 = vpack.c.b16 %v4319, %v4311
    %v5240 = vpack.c.b16 %v4320, %v4312
    %v5241 = vpack.c.b16 %v4321, %v4313
    %v5242 = vpack.c.b16 %v4330, %v4322
    %v5243 = vpack.c.b16 %v4331, %v4323
    %v5244 = vpack.c.b16 %v4332, %v4324
    %v5245 = vpack.c.b16 %v4333, %v4325
    %v5246 = vpack.c.b16 %v4334, %v4326
    %v5247 = vpack.c.b16 %v4335, %v4327
    %v5248 = vpack.c.b16 %v4336, %v4328
    %v5249 = vpack.c.b16 %v4337, %v4329
    %v5250 = vpack.c.b16 %v4346, %v4338
    %v5251 = vpack.c.b16 %v4347, %v4339
    %v5252 = vpack.c.b16 %v4348, %v4340
    %v5253 = vpack.c.b16 %v4349, %v4341
    %v5254 = vpack.c.b16 %v4350, %v4342
    %v5255 = vpack.c.b16 %v4351, %v4343
    %v5256 = vpack.c.b16 %v4352, %v4344
    %v5257 = vpack.c.b16 %v4353, %v4345
    %v5258 = vpack.c.b16 %v4362, %v4354
    %v5259 = vpack.c.b16 %v4363, %v4355
    %v5260 = vpack.c.b16 %v4364, %v4356
    %v5261 = vpack.c.b16 %v4365, %v4357
    %v5262 = vpack.c.b16 %v4366, %v4358
    %v5263 = vpack.c.b16 %v4367, %v4359
    %v5264 = vpack.c.b16 %v4368, %v4360
    %v5265 = vpack.c.b16 %v4369, %v4361
    %v5266 = vpack.c.b16 %v4378, %v4370
    %v5267 = vpack.c.b16 %v4379, %v4371
    %v5268 = vpack.c.b16 %v4380, %v4372
    %v5269 = vpack.c.b16 %v4381, %v4373
    %v5270 = vpack.c.b16 %v4382, %v4374
    %v5271 = vpack.c.b16 %v4383, %v4375
    %v5272 = vpack.c.b16 %v4384, %v4376
    %v5273 = vpack.c.b16 %v4385, %v4377
    %v5274 = vpack.c.b16 %v4394, %v4386
    %v5275 = vpack.c.b16 %v4395, %v4387
    %v5276 = vpack.c.b16 %v4396, %v4388
    %v5277 = vpack.c.b16 %v4397, %v4389
    %v5278 = vpack.c.b16 %v4398, %v4390
    %v5279 = vpack.c.b16 %v4399, %v4391
    %v5280 = vpack.c.b16 %v4400, %v4392
    %v5281 = vpack.c.b16 %v4401, %v4393
    %v5282 = vpack.c.b16 %v4410, %v4402
    %v5283 = vpack.c.b16 %v4411, %v4403
    %v5284 = vpack.c.b16 %v4412, %v4404
    %v5285 = vpack.c.b16 %v4413, %v4405
    %v5286 = vpack.c.b16 %v4414, %v4406
    %v5287 = vpack.c.b16 %v4415, %v4407
    %v5288 = vpack.c.b16 %v4416, %v4408
    %v5289 = vpack.c.b16 %v4417, %v4409
    %v5290 = vpack.c.b16 %v4426, %v4418
    %v5291 = vpack.c.b16 %v4427, %v4419
    %v5292 = vpack.c.b16 %v4428, %v4420
    %v5293 = vpack.c.b16 %v4429, %v4421
    %v5294 = vpack.c.b16 %v4430, %v4422
    %v5295 = vpack.c.b16 %v4431, %v4423
    %v5296 = vpack.c.b16 %v4432, %v4424
    %v5297 = vpack.c.b16 %v4433, %v4425
    %v5298 = vpack.c.b16 %v4442, %v4434
    %v5299 = vpack.c.b16 %v4443, %v4435
    %v5300 = vpack.c.b16 %v4444, %v4436
    %v5301 = vpack.c.b16 %v4445, %v4437
    %v5302 = vpack.c.b16 %v4446, %v4438
    %v5303 = vpack.c.b16 %v4447, %v4439
    %v5304 = vpack.c.b16 %v4448, %v4440
    %v5305 = vpack.c.b16 %v4449, %v4441
    %v5306 = vpack.c.b16 %v4458, %v4450
    %v5307 = vpack.c.b16 %v4459, %v4451
    %v5308 = vpack.c.b16 %v4460, %v4452
    %v5309 = vpack.c.b16 %v4461, %v4453
    %v5310 = vpack.c.b16 %v4462, %v4454
    %v5311 = vpack.c.b16 %v4463, %v4455
    %v5312 = vpack.c.b16 %v4464, %v4456
    %v5313 = vpack.c.b16 %v4465, %v4457
    %v5314 = vpack.c.b16 %v4474, %v4466
    %v5315 = vpack.c.b16 %v4475, %v4467
    %v5316 = vpack.c.b16 %v4476, %v4468
    %v5317 = vpack.c.b16 %v4477, %v4469
    %v5318 = vpack.c.b16 %v4478, %v4470
    %v5319 = vpack.c.b16 %v4479, %v4471
    %v5320 = vpack.c.b16 %v4480, %v4472
    %v5321 = vpack.c.b16 %v4481, %v4473
    %v5322 = vpack.c.b16 %v4490, %v4482
    %v5323 = vpack.c.b16 %v4491, %v4483
    %v5324 = vpack.c.b16 %v4492, %v4484
    %v5325 = vpack.c.b16 %v4493, %v4485
    %v5326 = vpack.c.b16 %v4494, %v4486
    %v5327 = vpack.c.b16 %v4495, %v4487
    %v5328 = vpack.c.b16 %v4496, %v4488
    %v5329 = vpack.c.b16 %v4497, %v4489
    %v5330 = vpack.c.b16 %v4506, %v4498
    %v5331 = vpack.c.b16 %v4507, %v4499
    %v5332 = vpack.c.b16 %v4508, %v4500
    %v5333 = vpack.c.b16 %v4509, %v4501
    %v5334 = vpack.c.b16 %v4510, %v4502
    %v5335 = vpack.c.b16 %v4511, %v4503
    %v5336 = vpack.c.b16 %v4512, %v4504
    %v5337 = vpack.c.b16 %v4513, %v4505
    %v5338 = vpack.c.b16 %v4522, %v4514
    %v5339 = vpack.c.b16 %v4523, %v4515
    %v5340 = vpack.c.b16 %v4524, %v4516
    %v5341 = vpack.c.b16 %v4525, %v4517
    %v5342 = vpack.c.b16 %v4526, %v4518
    %v5343 = vpack.c.b16 %v4527, %v4519
    %v5344 = vpack.c.b16 %v4528, %v4520
    %v5345 = vpack.c.b16 %v4529, %v4521
    %v5346 = vpack.c.b16 %v4538, %v4530
    %v5347 = vpack.c.b16 %v4539, %v4531
    %v5348 = vpack.c.b16 %v4540, %v4532
    %v5349 = vpack.c.b16 %v4541, %v4533
    %v5350 = vpack.c.b16 %v4542, %v4534
    %v5351 = vpack.c.b16 %v4543, %v4535
    %v5352 = vpack.c.b16 %v4544, %v4536
    %v5353 = vpack.c.b16 %v4545, %v4537
    %v5354 = vpack.c.b16 %v4554, %v4546
    %v5355 = vpack.c.b16 %v4555, %v4547
    %v5356 = vpack.c.b16 %v4556, %v4548
    %v5357 = vpack.c.b16 %v4557, %v4549
    %v5358 = vpack.c.b16 %v4558, %v4550
    %v5359 = vpack.c.b16 %v4559, %v4551
    %v5360 = vpack.c.b16 %v4560, %v4552
    %v5361 = vpack.c.b16 %v4561, %v4553
    %v5362 = vpack.c.b16 %v4570, %v4562
    %v5363 = vpack.c.b16 %v4571, %v4563
    %v5364 = vpack.c.b16 %v4572, %v4564
    %v5365 = vpack.c.b16 %v4573, %v4565
    %v5366 = vpack.c.b16 %v4574, %v4566
    %v5367 = vpack.c.b16 %v4575, %v4567
    %v5368 = vpack.c.b16 %v4576, %v4568
    %v5369 = vpack.c.b16 %v4577, %v4569
    %v5370 = vpack.c.b16 %v4586, %v4578
    %v5371 = vpack.c.b16 %v4587, %v4579
    %v5372 = vpack.c.b16 %v4588, %v4580
    %v5373 = vpack.c.b16 %v4589, %v4581
    %v5374 = vpack.c.b16 %v4590, %v4582
    %v5375 = vpack.c.b16 %v4591, %v4583
    %v5376 = vpack.c.b16 %v4592, %v4584
    %v5377 = vpack.c.b16 %v4593, %v4585
    %v5378 = vpack.c.b16 %v4602, %v4594
    %v5379 = vpack.c.b16 %v4603, %v4595
    %v5380 = vpack.c.b16 %v4604, %v4596
    %v5381 = vpack.c.b16 %v4605, %v4597
    %v5382 = vpack.c.b16 %v4606, %v4598
    %v5383 = vpack.c.b16 %v4607, %v4599
    %v5384 = vpack.c.b16 %v4608, %v4600
    %v5385 = vpack.c.b16 %v4609, %v4601
    %v5386 = vpack.c.b16 %v4618, %v4610
    %v5387 = vpack.c.b16 %v4619, %v4611
    %v5388 = vpack.c.b16 %v4620, %v4612
    %v5389 = vpack.c.b16 %v4621, %v4613
    %v5390 = vpack.c.b16 %v4622, %v4614
    %v5391 = vpack.c.b16 %v4623, %v4615
    %v5392 = vpack.c.b16 %v4624, %v4616
    %v5393 = vpack.c.b16 %v4625, %v4617
    %v5394 = vpack.c.b16 %v4634, %v4626
    %v5395 = vpack.c.b16 %v4635, %v4627
    %v5396 = vpack.c.b16 %v4636, %v4628
    %v5397 = vpack.c.b16 %v4637, %v4629
    %v5398 = vpack.c.b16 %v4638, %v4630
    %v5399 = vpack.c.b16 %v4639, %v4631
    %v5400 = vpack.c.b16 %v4640, %v4632
    %v5401 = vpack.c.b16 %v4641, %v4633
    %v5402 = vpack.c.b16 %v4650, %v4642
    %v5403 = vpack.c.b16 %v4651, %v4643
    %v5404 = vpack.c.b16 %v4652, %v4644
    %v5405 = vpack.c.b16 %v4653, %v4645
    %v5406 = vpack.c.b16 %v4654, %v4646
    %v5407 = vpack.c.b16 %v4655, %v4647
    %v5408 = vpack.c.b16 %v4656, %v4648
    %v5409 = vpack.c.b16 %v4657, %v4649
    %v5410 = vpack.c.b16 %v4666, %v4658
    %v5411 = vpack.c.b16 %v4667, %v4659
    %v5412 = vpack.c.b16 %v4668, %v4660
    %v5413 = vpack.c.b16 %v4669, %v4661
    %v5414 = vpack.c.b16 %v4670, %v4662
    %v5415 = vpack.c.b16 %v4671, %v4663
    %v5416 = vpack.c.b16 %v4672, %v4664
    %v5417 = vpack.c.b16 %v4673, %v4665
    %v5418 = vpack.c.b16 %v4682, %v4674
    %v5419 = vpack.c.b16 %v4683, %v4675
    %v5420 = vpack.c.b16 %v4684, %v4676
    %v5421 = vpack.c.b16 %v4685, %v4677
    %v5422 = vpack.c.b16 %v4686, %v4678
    %v5423 = vpack.c.b16 %v4687, %v4679
    %v5424 = vpack.c.b16 %v4688, %v4680
    %v5425 = vpack.c.b16 %v4689, %v4681
    %v5426 = vpack.c.b16 %v4698, %v4690
    %v5427 = vpack.c.b16 %v4699, %v4691
    %v5428 = vpack.c.b16 %v4700, %v4692
    %v5429 = vpack.c.b16 %v4701, %v4693
    %v5430 = vpack.c.b16 %v4702, %v4694
    %v5431 = vpack.c.b16 %v4703, %v4695
    %v5432 = vpack.c.b16 %v4704, %v4696
    %v5433 = vpack.c.b16 %v4705, %v4697
    %v5434 = vpack.c.b16 %v4714, %v4706
    %v5435 = vpack.c.b16 %v4715, %v4707
    %v5436 = vpack.c.b16 %v4716, %v4708
    %v5437 = vpack.c.b16 %v4717, %v4709
    %v5438 = vpack.c.b16 %v4718, %v4710
    %v5439 = vpack.c.b16 %v4719, %v4711
    %v5440 = vpack.c.b16 %v4720, %v4712
    %v5441 = vpack.c.b16 %v4721, %v4713
    %v5442 = vpack.c.b16 %v4730, %v4722
    %v5443 = vpack.c.b16 %v4731, %v4723
    %v5444 = vpack.c.b16 %v4732, %v4724
    %v5445 = vpack.c.b16 %v4733, %v4725
    %v5446 = vpack.c.b16 %v4734, %v4726
    %v5447 = vpack.c.b16 %v4735, %v4727
    %v5448 = vpack.c.b16 %v4736, %v4728
    %v5449 = vpack.c.b16 %v4737, %v4729
    %v5450 = vpack.c.b16 %v4746, %v4738
    %v5451 = vpack.c.b16 %v4747, %v4739
    %v5452 = vpack.c.b16 %v4748, %v4740
    %v5453 = vpack.c.b16 %v4749, %v4741
    %v5454 = vpack.c.b16 %v4750, %v4742
    %v5455 = vpack.c.b16 %v4751, %v4743
    %v5456 = vpack.c.b16 %v4752, %v4744
    %v5457 = vpack.c.b16 %v4753, %v4745
    %v5458 = vpack.c.b16 %v4762, %v4754
    %v5459 = vpack.c.b16 %v4763, %v4755
    %v5460 = vpack.c.b16 %v4764, %v4756
    %v5461 = vpack.c.b16 %v4765, %v4757
    %v5462 = vpack.c.b16 %v4766, %v4758
    %v5463 = vpack.c.b16 %v4767, %v4759
    %v5464 = vpack.c.b16 %v4768, %v4760
    %v5465 = vpack.c.b16 %v4769, %v4761
    %v5466 = vpack.c.b16 %v4778, %v4770
    %v5467 = vpack.c.b16 %v4779, %v4771
    %v5468 = vpack.c.b16 %v4780, %v4772
    %v5469 = vpack.c.b16 %v4781, %v4773
    %v5470 = vpack.c.b16 %v4782, %v4774
    %v5471 = vpack.c.b16 %v4783, %v4775
    %v5472 = vpack.c.b16 %v4784, %v4776
    %v5473 = vpack.c.b16 %v4785, %v4777
    %v5474 = vpack.c.b16 %v4794, %v4786
    %v5475 = vpack.c.b16 %v4795, %v4787
    %v5476 = vpack.c.b16 %v4796, %v4788
    %v5477 = vpack.c.b16 %v4797, %v4789
    %v5478 = vpack.c.b16 %v4798, %v4790
    %v5479 = vpack.c.b16 %v4799, %v4791
    %v5480 = vpack.c.b16 %v4800, %v4792
    %v5481 = vpack.c.b16 %v4801, %v4793
    %v5482 = vpack.c.b16 %v4810, %v4802
    %v5483 = vpack.c.b16 %v4811, %v4803
    %v5484 = vpack.c.b16 %v4812, %v4804
    %v5485 = vpack.c.b16 %v4813, %v4805
    %v5486 = vpack.c.b16 %v4814, %v4806
    %v5487 = vpack.c.b16 %v4815, %v4807
    %v5488 = vpack.c.b16 %v4816, %v4808
    %v5489 = vpack.c.b16 %v4817, %v4809
    %v5490 = vpack.c.b16 %v4826, %v4818
    %v5491 = vpack.c.b16 %v4827, %v4819
    %v5492 = vpack.c.b16 %v4828, %v4820
    %v5493 = vpack.c.b16 %v4829, %v4821
    %v5494 = vpack.c.b16 %v4830, %v4822
    %v5495 = vpack.c.b16 %v4831, %v4823
    %v5496 = vpack.c.b16 %v4832, %v4824
    %v5497 = vpack.c.b16 %v4833, %v4825
    %v5498 = vpack.c.b16 %v4842, %v4834
    %v5499 = vpack.c.b16 %v4843, %v4835
    %v5500 = vpack.c.b16 %v4844, %v4836
    %v5501 = vpack.c.b16 %v4845, %v4837
    %v5502 = vpack.c.b16 %v4846, %v4838
    %v5503 = vpack.c.b16 %v4847, %v4839
    %v5504 = vpack.c.b16 %v4848, %v4840
    %v5505 = vpack.c.b16 %v4849, %v4841
    %v5506 = vpack.c.b16 %v4858, %v4850
    %v5507 = vpack.c.b16 %v4859, %v4851
    %v5508 = vpack.c.b16 %v4860, %v4852
    %v5509 = vpack.c.b16 %v4861, %v4853
    %v5510 = vpack.c.b16 %v4862, %v4854
    %v5511 = vpack.c.b16 %v4863, %v4855
    %v5512 = vpack.c.b16 %v4864, %v4856
    %v5513 = vpack.c.b16 %v4865, %v4857
    %v5514 = vpack.c.b16 %v4874, %v4866
    %v5515 = vpack.c.b16 %v4875, %v4867
    %v5516 = vpack.c.b16 %v4876, %v4868
    %v5517 = vpack.c.b16 %v4877, %v4869
    %v5518 = vpack.c.b16 %v4878, %v4870
    %v5519 = vpack.c.b16 %v4879, %v4871
    %v5520 = vpack.c.b16 %v4880, %v4872
    %v5521 = vpack.c.b16 %v4881, %v4873
    %v5522 = vpack.c.b16 %v4890, %v4882
    %v5523 = vpack.c.b16 %v4891, %v4883
    %v5524 = vpack.c.b16 %v4892, %v4884
    %v5525 = vpack.c.b16 %v4893, %v4885
    %v5526 = vpack.c.b16 %v4894, %v4886
    %v5527 = vpack.c.b16 %v4895, %v4887
    %v5528 = vpack.c.b16 %v4896, %v4888
    %v5529 = vpack.c.b16 %v4897, %v4889
    %v5530 = vpack.c.b16 %v4906, %v4898
    %v5531 = vpack.c.b16 %v4907, %v4899
    %v5532 = vpack.c.b16 %v4908, %v4900
    %v5533 = vpack.c.b16 %v4909, %v4901
    %v5534 = vpack.c.b16 %v4910, %v4902
    %v5535 = vpack.c.b16 %v4911, %v4903
    %v5536 = vpack.c.b16 %v4912, %v4904
    %v5537 = vpack.c.b16 %v4913, %v4905
    %v5538 = vpack.c.b16 %v4922, %v4914
    %v5539 = vpack.c.b16 %v4923, %v4915
    %v5540 = vpack.c.b16 %v4924, %v4916
    %v5541 = vpack.c.b16 %v4925, %v4917
    %v5542 = vpack.c.b16 %v4926, %v4918
    %v5543 = vpack.c.b16 %v4927, %v4919
    %v5544 = vpack.c.b16 %v4928, %v4920
    %v5545 = vpack.c.b16 %v4929, %v4921
    %v5546 = vpack.c.b16 %v4938, %v4930
    %v5547 = vpack.c.b16 %v4939, %v4931
    %v5548 = vpack.c.b16 %v4940, %v4932
    %v5549 = vpack.c.b16 %v4941, %v4933
    %v5550 = vpack.c.b16 %v4942, %v4934
    %v5551 = vpack.c.b16 %v4943, %v4935
    %v5552 = vpack.c.b16 %v4944, %v4936
    %v5553 = vpack.c.b16 %v4945, %v4937
    %v5554 = vpack.c.b16 %v4954, %v4946
    %v5555 = vpack.c.b16 %v4955, %v4947
    %v5556 = vpack.c.b16 %v4956, %v4948
    %v5557 = vpack.c.b16 %v4957, %v4949
    %v5558 = vpack.c.b16 %v4958, %v4950
    %v5559 = vpack.c.b16 %v4959, %v4951
    %v5560 = vpack.c.b16 %v4960, %v4952
    %v5561 = vpack.c.b16 %v4961, %v4953
    %v5562 = vpack.c.b16 %v4970, %v4962
    %v5563 = vpack.c.b16 %v4971, %v4963
    %v5564 = vpack.c.b16 %v4972, %v4964
    %v5565 = vpack.c.b16 %v4973, %v4965
    %v5566 = vpack.c.b16 %v4974, %v4966
    %v5567 = vpack.c.b16 %v4975, %v4967
    %v5568 = vpack.c.b16 %v4976, %v4968
    %v5569 = vpack.c.b16 %v4977, %v4969
    %v5570 = vpack.c.b16 %v4986, %v4978
    %v5571 = vpack.c.b16 %v4987, %v4979
    %v5572 = vpack.c.b16 %v4988, %v4980
    %v5573 = vpack.c.b16 %v4989, %v4981
    %v5574 = vpack.c.b16 %v4990, %v4982
    %v5575 = vpack.c.b16 %v4991, %v4983
    %v5576 = vpack.c.b16 %v4992, %v4984
    %v5577 = vpack.c.b16 %v4993, %v4985
    %v5578 = vpack.c.b16 %v5002, %v4994
    %v5579 = vpack.c.b16 %v5003, %v4995
    %v5580 = vpack.c.b16 %v5004, %v4996
    %v5581 = vpack.c.b16 %v5005, %v4997
    %v5582 = vpack.c.b16 %v5006, %v4998
    %v5583 = vpack.c.b16 %v5007, %v4999
    %v5584 = vpack.c.b16 %v5008, %v5000
    %v5585 = vpack.c.b16 %v5009, %v5001
    %v5586 = vpack.c.b16 %v5018, %v5010
    %v5587 = vpack.c.b16 %v5019, %v5011
    %v5588 = vpack.c.b16 %v5020, %v5012
    %v5589 = vpack.c.b16 %v5021, %v5013
    %v5590 = vpack.c.b16 %v5022, %v5014
    %v5591 = vpack.c.b16 %v5023, %v5015
    %v5592 = vpack.c.b16 %v5024, %v5016
    %v5593 = vpack.c.b16 %v5025, %v5017
    %v5594 = vpack.c.b16 %v5034, %v5026
    %v5595 = vpack.c.b16 %v5035, %v5027
    %v5596 = vpack.c.b16 %v5036, %v5028
    %v5597 = vpack.c.b16 %v5037, %v5029
    %v5598 = vpack.c.b16 %v5038, %v5030
    %v5599 = vpack.c.b16 %v5039, %v5031
    %v5600 = vpack.c.b16 %v5040, %v5032
    %v5601 = vpack.c.b16 %v5041, %v5033
    %v5602 = vpack.c.b16 %v5050, %v5042
    %v5603 = vpack.c.b16 %v5051, %v5043
    %v5604 = vpack.c.b16 %v5052, %v5044
    %v5605 = vpack.c.b16 %v5053, %v5045
    %v5606 = vpack.c.b16 %v5054, %v5046
    %v5607 = vpack.c.b16 %v5055, %v5047
    %v5608 = vpack.c.b16 %v5056, %v5048
    %v5609 = vpack.c.b16 %v5057, %v5049
    %v5610 = vpack.c.b16 %v5066, %v5058
    %v5611 = vpack.c.b16 %v5067, %v5059
    %v5612 = vpack.c.b16 %v5068, %v5060
    %v5613 = vpack.c.b16 %v5069, %v5061
    %v5614 = vpack.c.b16 %v5070, %v5062
    %v5615 = vpack.c.b16 %v5071, %v5063
    %v5616 = vpack.c.b16 %v5072, %v5064
    %v5617 = vpack.c.b16 %v5073, %v5065
    %v5618 = vpack.c.b16 %v5082, %v5074
    %v5619 = vpack.c.b16 %v5083, %v5075
    %v5620 = vpack.c.b16 %v5084, %v5076
    %v5621 = vpack.c.b16 %v5085, %v5077
    %v5622 = vpack.c.b16 %v5086, %v5078
    %v5623 = vpack.c.b16 %v5087, %v5079
    %v5624 = vpack.c.b16 %v5088, %v5080
    %v5625 = vpack.c.b16 %v5089, %v5081
    %v5626 = vpack.c.b16 %v5098, %v5090
    %v5627 = vpack.c.b16 %v5099, %v5091
    %v5628 = vpack.c.b16 %v5100, %v5092
    %v5629 = vpack.c.b16 %v5101, %v5093
    %v5630 = vpack.c.b16 %v5102, %v5094
    %v5631 = vpack.c.b16 %v5103, %v5095
    %v5632 = vpack.c.b16 %v5104, %v5096
    %v5633 = vpack.c.b16 %v5105, %v5097
    %v5634 = vpack.c.b16 %v5114, %v5106
    %v5635 = vpack.c.b16 %v5115, %v5107
    %v5636 = vpack.c.b16 %v5116, %v5108
    %v5637 = vpack.c.b16 %v5117, %v5109
    %v5638 = vpack.c.b16 %v5118, %v5110
    %v5639 = vpack.c.b16 %v5119, %v5111
    %v5640 = vpack.c.b16 %v5120, %v5112
    %v5641 = vpack.c.b16 %v5121, %v5113
    %v5642 = vpack.c.b16 %v5130, %v5122
    %v5643 = vpack.c.b16 %v5131, %v5123
    %v5644 = vpack.c.b16 %v5132, %v5124
    %v5645 = vpack.c.b16 %v5133, %v5125
    %v5646 = vpack.c.b16 %v5134, %v5126
    %v5647 = vpack.c.b16 %v5135, %v5127
    %v5648 = vpack.c.b16 %v5136, %v5128
    %v5649 = vpack.c.b16 %v5137, %v5129
    %6162 = vmatpush.bf16.msra.mxu0 %v5194
    %6163 = vmatpush.bf16.msra.mxu0 %v5186
    %6164 = vmatpush.bf16.msra.mxu0 %v5178
    %6165 = vmatpush.bf16.msra.mxu0 %v5170
    %6166 = vmatpush.bf16.msra.mxu0 %v5162
    %6167 = vmatpush.bf16.msra.mxu0 %v5154
    %6168 = vmatpush.bf16.msra.mxu0 %v5146
    %6169 = vmatpush.bf16.msra.mxu0 %v5138
    %6170 = vmatmul.bf16.gmra.mxu0 %v3577
    %v6171 = vpop.f32.mrf.mxu0
    %v6172 = vadd.f32 %v3586, %v6171
    %v6173 = vpop.f32.mrf.mxu0
    %6174 = vdwg.mxu0
    %6175 = vmatpush.bf16.msra.mxu0 %v5258
    %6176 = vmatpush.bf16.msra.mxu0 %v5250
    %6177 = vmatpush.bf16.msra.mxu0 %v5242
    %6178 = vmatpush.bf16.msra.mxu0 %v5234
    %6179 = vmatpush.bf16.msra.mxu0 %v5226
    %6180 = vmatpush.bf16.msra.mxu0 %v5218
    %6181 = vmatpush.bf16.msra.mxu0 %v5210
    %6182 = vmatpush.bf16.msra.mxu0 %v5202
    %6183 = vmatmul.bf16.gmra.mxu0 %v3578
    %v6184 = vpop.f32.mrf.mxu0
    %v6185 = vadd.f32 %v6172, %v6184
    %v6186 = vpop.f32.mrf.mxu0
    %6187 = vdwg.mxu0
    %6188 = vmatpush.bf16.msra.mxu0 %v5322
    %6189 = vmatpush.bf16.msra.mxu0 %v5314
    %6190 = vmatpush.bf16.msra.mxu0 %v5306
    %6191 = vmatpush.bf16.msra.mxu0 %v5298
    %6192 = vmatpush.bf16.msra.mxu0 %v5290
    %6193 = vmatpush.bf16.msra.mxu0 %v5282
    %6194 = vmatpush.bf16.msra.mxu0 %v5274
    %6195 = vmatpush.bf16.msra.mxu0 %v5266
    %6196 = vmatmul.bf16.gmra.mxu0 %v3579
    %v6197 = vpop.f32.mrf.mxu0
    %v6198 = vadd.f32 %v6185, %v6197
    %v6199 = vpop.f32.mrf.mxu0
    %6200 = vdwg.mxu0
    %6201 = vmatpush.bf16.msra.mxu0 %v5386
    %6202 = vmatpush.bf16.msra.mxu0 %v5378
    %6203 = vmatpush.bf16.msra.mxu0 %v5370
    %6204 = vmatpush.bf16.msra.mxu0 %v5362
    %6205 = vmatpush.bf16.msra.mxu0 %v5354
    %6206 = vmatpush.bf16.msra.mxu0 %v5346
    %6207 = vmatpush.bf16.msra.mxu0 %v5338
    %6208 = vmatpush.bf16.msra.mxu0 %v5330
    %6209 = vmatmul.bf16.gmra.mxu0 %v3580
    %v6210 = vpop.f32.mrf.mxu0
    %v6211 = vadd.f32 %v6198, %v6210
    %v6212 = vpop.f32.mrf.mxu0
    %6213 = vdwg.mxu0
    %6214 = vmatpush.bf16.msra.mxu0 %v5450
    %6215 = vmatpush.bf16.msra.mxu0 %v5442
    %6216 = vmatpush.bf16.msra.mxu0 %v5434
    %6217 = vmatpush.bf16.msra.mxu0 %v5426
    %6218 = vmatpush.bf16.msra.mxu0 %v5418
    %6219 = vmatpush.bf16.msra.mxu0 %v5410
    %6220 = vmatpush.bf16.msra.mxu0 %v5402
    %6221 = vmatpush.bf16.msra.mxu0 %v5394
    %6222 = vmatmul.bf16.gmra.mxu0 %v3581
    %v6223 = vpop.f32.mrf.mxu0
    %v6224 = vadd.f32 %v6211, %v6223
    %v6225 = vpop.f32.mrf.mxu0
    %6226 = vdwg.mxu0
    %6227 = vmatpush.bf16.msra.mxu0 %v5514
    %6228 = vmatpush.bf16.msra.mxu0 %v5506
    %6229 = vmatpush.bf16.msra.mxu0 %v5498
    %6230 = vmatpush.bf16.msra.mxu0 %v5490
    %6231 = vmatpush.bf16.msra.mxu0 %v5482
    %6232 = vmatpush.bf16.msra.mxu0 %v5474
    %6233 = vmatpush.bf16.msra.mxu0 %v5466
    %6234 = vmatpush.bf16.msra.mxu0 %v5458
    %6235 = vmatmul.bf16.gmra.mxu0 %v3582
    %v6236 = vpop.f32.mrf.mxu0
    %v6237 = vadd.f32 %v6224, %v6236
    %v6238 = vpop.f32.mrf.mxu0
    %6239 = vdwg.mxu0
    %6240 = vmatpush.bf16.msra.mxu0 %v5578
    %6241 = vmatpush.bf16.msra.mxu0 %v5570
    %6242 = vmatpush.bf16.msra.mxu0 %v5562
    %6243 = vmatpush.bf16.msra.mxu0 %v5554
    %6244 = vmatpush.bf16.msra.mxu0 %v5546
    %6245 = vmatpush.bf16.msra.mxu0 %v5538
    %6246 = vmatpush.bf16.msra.mxu0 %v5530
    %6247 = vmatpush.bf16.msra.mxu0 %v5522
    %6248 = vmatmul.bf16.gmra.mxu0 %v3583
    %v6249 = vpop.f32.mrf.mxu0
    %v6250 = vadd.f32 %v6237, %v6249
    %v6251 = vpop.f32.mrf.mxu0
    %6252 = vdwg.mxu0
    %6253 = vmatpush.bf16.msra.mxu0 %v5642
    %6254 = vmatpush.bf16.msra.mxu0 %v5634
    %6255 = vmatpush.bf16.msra.mxu0 %v5626
    %6256 = vmatpush.bf16.msra.mxu0 %v5618
    %6257 = vmatpush.bf16.msra.mxu0 %v5610
    %6258 = vmatpush.bf16.msra.mxu0 %v5602
    %6259 = vmatpush.bf16.msra.mxu0 %v5594
    %6260 = vmatpush.bf16.msra.mxu0 %v5586
    %6261 = vmatmul.bf16.gmra.mxu0 %v3584
    %v6262 = vpop.f32.mrf.mxu0
    %v6263 = vadd.f32 %v6250, %v6262
    %v6264 = vpop.f32.mrf.mxu0
    %6265 = vdwg.mxu0
    %6266 = vmatpush.bf16.msra.mxu0 %v5195
    %6267 = vmatpush.bf16.msra.mxu0 %v5187
    %6268 = vmatpush.bf16.msra.mxu0 %v5179
    %6269 = vmatpush.bf16.msra.mxu0 %v5171
    %6270 = vmatpush.bf16.msra.mxu0 %v5163
    %6271 = vmatpush.bf16.msra.mxu0 %v5155
    %6272 = vmatpush.bf16.msra.mxu0 %v5147
    %6273 = vmatpush.bf16.msra.mxu0 %v5139
    %6274 = vmatmul.bf16.gmra.mxu0 %v3577
    %v6275 = vpop.f32.mrf.mxu0
    %v6276 = vadd.f32 %v3587, %v6275
    %v6277 = vpop.f32.mrf.mxu0
    %6278 = vdwg.mxu0
    %6279 = vmatpush.bf16.msra.mxu0 %v5259
    %6280 = vmatpush.bf16.msra.mxu0 %v5251
    %6281 = vmatpush.bf16.msra.mxu0 %v5243
    %6282 = vmatpush.bf16.msra.mxu0 %v5235
    %6283 = vmatpush.bf16.msra.mxu0 %v5227
    %6284 = vmatpush.bf16.msra.mxu0 %v5219
    %6285 = vmatpush.bf16.msra.mxu0 %v5211
    %6286 = vmatpush.bf16.msra.mxu0 %v5203
    %6287 = vmatmul.bf16.gmra.mxu0 %v3578
    %v6288 = vpop.f32.mrf.mxu0
    %v6289 = vadd.f32 %v6276, %v6288
    %v6290 = vpop.f32.mrf.mxu0
    %6291 = vdwg.mxu0
    %6292 = vmatpush.bf16.msra.mxu0 %v5323
    %6293 = vmatpush.bf16.msra.mxu0 %v5315
    %6294 = vmatpush.bf16.msra.mxu0 %v5307
    %6295 = vmatpush.bf16.msra.mxu0 %v5299
    %6296 = vmatpush.bf16.msra.mxu0 %v5291
    %6297 = vmatpush.bf16.msra.mxu0 %v5283
    %6298 = vmatpush.bf16.msra.mxu0 %v5275
    %6299 = vmatpush.bf16.msra.mxu0 %v5267
    %6300 = vmatmul.bf16.gmra.mxu0 %v3579
    %v6301 = vpop.f32.mrf.mxu0
    %v6302 = vadd.f32 %v6289, %v6301
    %v6303 = vpop.f32.mrf.mxu0
    %6304 = vdwg.mxu0
    %6305 = vmatpush.bf16.msra.mxu0 %v5387
    %6306 = vmatpush.bf16.msra.mxu0 %v5379
    %6307 = vmatpush.bf16.msra.mxu0 %v5371
    %6308 = vmatpush.bf16.msra.mxu0 %v5363
    %6309 = vmatpush.bf16.msra.mxu0 %v5355
    %6310 = vmatpush.bf16.msra.mxu0 %v5347
    %6311 = vmatpush.bf16.msra.mxu0 %v5339
    %6312 = vmatpush.bf16.msra.mxu0 %v5331
    %6313 = vmatmul.bf16.gmra.mxu0 %v3580
    %v6314 = vpop.f32.mrf.mxu0
    %v6315 = vadd.f32 %v6302, %v6314
    %v6316 = vpop.f32.mrf.mxu0
    %6317 = vdwg.mxu0
    %6318 = vmatpush.bf16.msra.mxu0 %v5451
    %6319 = vmatpush.bf16.msra.mxu0 %v5443
    %6320 = vmatpush.bf16.msra.mxu0 %v5435
    %6321 = vmatpush.bf16.msra.mxu0 %v5427
    %6322 = vmatpush.bf16.msra.mxu0 %v5419
    %6323 = vmatpush.bf16.msra.mxu0 %v5411
    %6324 = vmatpush.bf16.msra.mxu0 %v5403
    %6325 = vmatpush.bf16.msra.mxu0 %v5395
    %6326 = vmatmul.bf16.gmra.mxu0 %v3581
    %v6327 = vpop.f32.mrf.mxu0
    %v6328 = vadd.f32 %v6315, %v6327
    %v6329 = vpop.f32.mrf.mxu0
    %6330 = vdwg.mxu0
    %6331 = vmatpush.bf16.msra.mxu0 %v5515
    %6332 = vmatpush.bf16.msra.mxu0 %v5507
    %6333 = vmatpush.bf16.msra.mxu0 %v5499
    %6334 = vmatpush.bf16.msra.mxu0 %v5491
    %6335 = vmatpush.bf16.msra.mxu0 %v5483
    %6336 = vmatpush.bf16.msra.mxu0 %v5475
    %6337 = vmatpush.bf16.msra.mxu0 %v5467
    %6338 = vmatpush.bf16.msra.mxu0 %v5459
    %6339 = vmatmul.bf16.gmra.mxu0 %v3582
    %v6340 = vpop.f32.mrf.mxu0
    %v6341 = vadd.f32 %v6328, %v6340
    %v6342 = vpop.f32.mrf.mxu0
    %6343 = vdwg.mxu0
    %6344 = vmatpush.bf16.msra.mxu0 %v5579
    %6345 = vmatpush.bf16.msra.mxu0 %v5571
    %6346 = vmatpush.bf16.msra.mxu0 %v5563
    %6347 = vmatpush.bf16.msra.mxu0 %v5555
    %6348 = vmatpush.bf16.msra.mxu0 %v5547
    %6349 = vmatpush.bf16.msra.mxu0 %v5539
    %6350 = vmatpush.bf16.msra.mxu0 %v5531
    %6351 = vmatpush.bf16.msra.mxu0 %v5523
    %6352 = vmatmul.bf16.gmra.mxu0 %v3583
    %v6353 = vpop.f32.mrf.mxu0
    %v6354 = vadd.f32 %v6341, %v6353
    %v6355 = vpop.f32.mrf.mxu0
    %6356 = vdwg.mxu0
    %6357 = vmatpush.bf16.msra.mxu0 %v5643
    %6358 = vmatpush.bf16.msra.mxu0 %v5635
    %6359 = vmatpush.bf16.msra.mxu0 %v5627
    %6360 = vmatpush.bf16.msra.mxu0 %v5619
    %6361 = vmatpush.bf16.msra.mxu0 %v5611
    %6362 = vmatpush.bf16.msra.mxu0 %v5603
    %6363 = vmatpush.bf16.msra.mxu0 %v5595
    %6364 = vmatpush.bf16.msra.mxu0 %v5587
    %6365 = vmatmul.bf16.gmra.mxu0 %v3584
    %v6366 = vpop.f32.mrf.mxu0
    %v6367 = vadd.f32 %v6354, %v6366
    %v6368 = vpop.f32.mrf.mxu0
    %6369 = vdwg.mxu0
    %6370 = vmatpush.bf16.msra.mxu0 %v5196
    %6371 = vmatpush.bf16.msra.mxu0 %v5188
    %6372 = vmatpush.bf16.msra.mxu0 %v5180
    %6373 = vmatpush.bf16.msra.mxu0 %v5172
    %6374 = vmatpush.bf16.msra.mxu0 %v5164
    %6375 = vmatpush.bf16.msra.mxu0 %v5156
    %6376 = vmatpush.bf16.msra.mxu0 %v5148
    %6377 = vmatpush.bf16.msra.mxu0 %v5140
    %6378 = vmatmul.bf16.gmra.mxu0 %v3577
    %v6379 = vpop.f32.mrf.mxu0
    %v6380 = vadd.f32 %v3588, %v6379
    %v6381 = vpop.f32.mrf.mxu0
    %6382 = vdwg.mxu0
    %6383 = vmatpush.bf16.msra.mxu0 %v5260
    %6384 = vmatpush.bf16.msra.mxu0 %v5252
    %6385 = vmatpush.bf16.msra.mxu0 %v5244
    %6386 = vmatpush.bf16.msra.mxu0 %v5236
    %6387 = vmatpush.bf16.msra.mxu0 %v5228
    %6388 = vmatpush.bf16.msra.mxu0 %v5220
    %6389 = vmatpush.bf16.msra.mxu0 %v5212
    %6390 = vmatpush.bf16.msra.mxu0 %v5204
    %6391 = vmatmul.bf16.gmra.mxu0 %v3578
    %v6392 = vpop.f32.mrf.mxu0
    %v6393 = vadd.f32 %v6380, %v6392
    %v6394 = vpop.f32.mrf.mxu0
    %6395 = vdwg.mxu0
    %6396 = vmatpush.bf16.msra.mxu0 %v5324
    %6397 = vmatpush.bf16.msra.mxu0 %v5316
    %6398 = vmatpush.bf16.msra.mxu0 %v5308
    %6399 = vmatpush.bf16.msra.mxu0 %v5300
    %6400 = vmatpush.bf16.msra.mxu0 %v5292
    %6401 = vmatpush.bf16.msra.mxu0 %v5284
    %6402 = vmatpush.bf16.msra.mxu0 %v5276
    %6403 = vmatpush.bf16.msra.mxu0 %v5268
    %6404 = vmatmul.bf16.gmra.mxu0 %v3579
    %v6405 = vpop.f32.mrf.mxu0
    %v6406 = vadd.f32 %v6393, %v6405
    %v6407 = vpop.f32.mrf.mxu0
    %6408 = vdwg.mxu0
    %6409 = vmatpush.bf16.msra.mxu0 %v5388
    %6410 = vmatpush.bf16.msra.mxu0 %v5380
    %6411 = vmatpush.bf16.msra.mxu0 %v5372
    %6412 = vmatpush.bf16.msra.mxu0 %v5364
    %6413 = vmatpush.bf16.msra.mxu0 %v5356
    %6414 = vmatpush.bf16.msra.mxu0 %v5348
    %6415 = vmatpush.bf16.msra.mxu0 %v5340
    %6416 = vmatpush.bf16.msra.mxu0 %v5332
    %6417 = vmatmul.bf16.gmra.mxu0 %v3580
    %v6418 = vpop.f32.mrf.mxu0
    %v6419 = vadd.f32 %v6406, %v6418
    %v6420 = vpop.f32.mrf.mxu0
    %6421 = vdwg.mxu0
    %6422 = vmatpush.bf16.msra.mxu0 %v5452
    %6423 = vmatpush.bf16.msra.mxu0 %v5444
    %6424 = vmatpush.bf16.msra.mxu0 %v5436
    %6425 = vmatpush.bf16.msra.mxu0 %v5428
    %6426 = vmatpush.bf16.msra.mxu0 %v5420
    %6427 = vmatpush.bf16.msra.mxu0 %v5412
    %6428 = vmatpush.bf16.msra.mxu0 %v5404
    %6429 = vmatpush.bf16.msra.mxu0 %v5396
    %6430 = vmatmul.bf16.gmra.mxu0 %v3581
    %v6431 = vpop.f32.mrf.mxu0
    %v6432 = vadd.f32 %v6419, %v6431
    %v6433 = vpop.f32.mrf.mxu0
    %6434 = vdwg.mxu0
    %6435 = vmatpush.bf16.msra.mxu0 %v5516
    %6436 = vmatpush.bf16.msra.mxu0 %v5508
    %6437 = vmatpush.bf16.msra.mxu0 %v5500
    %6438 = vmatpush.bf16.msra.mxu0 %v5492
    %6439 = vmatpush.bf16.msra.mxu0 %v5484
    %6440 = vmatpush.bf16.msra.mxu0 %v5476
    %6441 = vmatpush.bf16.msra.mxu0 %v5468
    %6442 = vmatpush.bf16.msra.mxu0 %v5460
    %6443 = vmatmul.bf16.gmra.mxu0 %v3582
    %v6444 = vpop.f32.mrf.mxu0
    %v6445 = vadd.f32 %v6432, %v6444
    %v6446 = vpop.f32.mrf.mxu0
    %6447 = vdwg.mxu0
    %6448 = vmatpush.bf16.msra.mxu0 %v5580
    %6449 = vmatpush.bf16.msra.mxu0 %v5572
    %6450 = vmatpush.bf16.msra.mxu0 %v5564
    %6451 = vmatpush.bf16.msra.mxu0 %v5556
    %6452 = vmatpush.bf16.msra.mxu0 %v5548
    %6453 = vmatpush.bf16.msra.mxu0 %v5540
    %6454 = vmatpush.bf16.msra.mxu0 %v5532
    %6455 = vmatpush.bf16.msra.mxu0 %v5524
    %6456 = vmatmul.bf16.gmra.mxu0 %v3583
    %v6457 = vpop.f32.mrf.mxu0
    %v6458 = vadd.f32 %v6445, %v6457
    %v6459 = vpop.f32.mrf.mxu0
    %6460 = vdwg.mxu0
    %6461 = vmatpush.bf16.msra.mxu0 %v5644
    %6462 = vmatpush.bf16.msra.mxu0 %v5636
    %6463 = vmatpush.bf16.msra.mxu0 %v5628
    %6464 = vmatpush.bf16.msra.mxu0 %v5620
    %6465 = vmatpush.bf16.msra.mxu0 %v5612
    %6466 = vmatpush.bf16.msra.mxu0 %v5604
    %6467 = vmatpush.bf16.msra.mxu0 %v5596
    %6468 = vmatpush.bf16.msra.mxu0 %v5588
    %6469 = vmatmul.bf16.gmra.mxu0 %v3584
    %v6470 = vpop.f32.mrf.mxu0
    %v6471 = vadd.f32 %v6458, %v6470
    %v6472 = vpop.f32.mrf.mxu0
    %6473 = vdwg.mxu0
    %6474 = vmatpush.bf16.msra.mxu0 %v5197
    %6475 = vmatpush.bf16.msra.mxu0 %v5189
    %6476 = vmatpush.bf16.msra.mxu0 %v5181
    %6477 = vmatpush.bf16.msra.mxu0 %v5173
    %6478 = vmatpush.bf16.msra.mxu0 %v5165
    %6479 = vmatpush.bf16.msra.mxu0 %v5157
    %6480 = vmatpush.bf16.msra.mxu0 %v5149
    %6481 = vmatpush.bf16.msra.mxu0 %v5141
    %6482 = vmatmul.bf16.gmra.mxu0 %v3577
    %v6483 = vpop.f32.mrf.mxu0
    %v6484 = vadd.f32 %v3589, %v6483
    %v6485 = vpop.f32.mrf.mxu0
    %6486 = vdwg.mxu0
    %6487 = vmatpush.bf16.msra.mxu0 %v5261
    %6488 = vmatpush.bf16.msra.mxu0 %v5253
    %6489 = vmatpush.bf16.msra.mxu0 %v5245
    %6490 = vmatpush.bf16.msra.mxu0 %v5237
    %6491 = vmatpush.bf16.msra.mxu0 %v5229
    %6492 = vmatpush.bf16.msra.mxu0 %v5221
    %6493 = vmatpush.bf16.msra.mxu0 %v5213
    %6494 = vmatpush.bf16.msra.mxu0 %v5205
    %6495 = vmatmul.bf16.gmra.mxu0 %v3578
    %v6496 = vpop.f32.mrf.mxu0
    %v6497 = vadd.f32 %v6484, %v6496
    %v6498 = vpop.f32.mrf.mxu0
    %6499 = vdwg.mxu0
    %6500 = vmatpush.bf16.msra.mxu0 %v5325
    %6501 = vmatpush.bf16.msra.mxu0 %v5317
    %6502 = vmatpush.bf16.msra.mxu0 %v5309
    %6503 = vmatpush.bf16.msra.mxu0 %v5301
    %6504 = vmatpush.bf16.msra.mxu0 %v5293
    %6505 = vmatpush.bf16.msra.mxu0 %v5285
    %6506 = vmatpush.bf16.msra.mxu0 %v5277
    %6507 = vmatpush.bf16.msra.mxu0 %v5269
    %6508 = vmatmul.bf16.gmra.mxu0 %v3579
    %v6509 = vpop.f32.mrf.mxu0
    %v6510 = vadd.f32 %v6497, %v6509
    %v6511 = vpop.f32.mrf.mxu0
    %6512 = vdwg.mxu0
    %6513 = vmatpush.bf16.msra.mxu0 %v5389
    %6514 = vmatpush.bf16.msra.mxu0 %v5381
    %6515 = vmatpush.bf16.msra.mxu0 %v5373
    %6516 = vmatpush.bf16.msra.mxu0 %v5365
    %6517 = vmatpush.bf16.msra.mxu0 %v5357
    %6518 = vmatpush.bf16.msra.mxu0 %v5349
    %6519 = vmatpush.bf16.msra.mxu0 %v5341
    %6520 = vmatpush.bf16.msra.mxu0 %v5333
    %6521 = vmatmul.bf16.gmra.mxu0 %v3580
    %v6522 = vpop.f32.mrf.mxu0
    %v6523 = vadd.f32 %v6510, %v6522
    %v6524 = vpop.f32.mrf.mxu0
    %6525 = vdwg.mxu0
    %6526 = vmatpush.bf16.msra.mxu0 %v5453
    %6527 = vmatpush.bf16.msra.mxu0 %v5445
    %6528 = vmatpush.bf16.msra.mxu0 %v5437
    %6529 = vmatpush.bf16.msra.mxu0 %v5429
    %6530 = vmatpush.bf16.msra.mxu0 %v5421
    %6531 = vmatpush.bf16.msra.mxu0 %v5413
    %6532 = vmatpush.bf16.msra.mxu0 %v5405
    %6533 = vmatpush.bf16.msra.mxu0 %v5397
    %6534 = vmatmul.bf16.gmra.mxu0 %v3581
    %v6535 = vpop.f32.mrf.mxu0
    %v6536 = vadd.f32 %v6523, %v6535
    %v6537 = vpop.f32.mrf.mxu0
    %6538 = vdwg.mxu0
    %6539 = vmatpush.bf16.msra.mxu0 %v5517
    %6540 = vmatpush.bf16.msra.mxu0 %v5509
    %6541 = vmatpush.bf16.msra.mxu0 %v5501
    %6542 = vmatpush.bf16.msra.mxu0 %v5493
    %6543 = vmatpush.bf16.msra.mxu0 %v5485
    %6544 = vmatpush.bf16.msra.mxu0 %v5477
    %6545 = vmatpush.bf16.msra.mxu0 %v5469
    %6546 = vmatpush.bf16.msra.mxu0 %v5461
    %6547 = vmatmul.bf16.gmra.mxu0 %v3582
    %v6548 = vpop.f32.mrf.mxu0
    %v6549 = vadd.f32 %v6536, %v6548
    %v6550 = vpop.f32.mrf.mxu0
    %6551 = vdwg.mxu0
    %6552 = vmatpush.bf16.msra.mxu0 %v5581
    %6553 = vmatpush.bf16.msra.mxu0 %v5573
    %6554 = vmatpush.bf16.msra.mxu0 %v5565
    %6555 = vmatpush.bf16.msra.mxu0 %v5557
    %6556 = vmatpush.bf16.msra.mxu0 %v5549
    %6557 = vmatpush.bf16.msra.mxu0 %v5541
    %6558 = vmatpush.bf16.msra.mxu0 %v5533
    %6559 = vmatpush.bf16.msra.mxu0 %v5525
    %6560 = vmatmul.bf16.gmra.mxu0 %v3583
    %v6561 = vpop.f32.mrf.mxu0
    %v6562 = vadd.f32 %v6549, %v6561
    %v6563 = vpop.f32.mrf.mxu0
    %6564 = vdwg.mxu0
    %6565 = vmatpush.bf16.msra.mxu0 %v5645
    %6566 = vmatpush.bf16.msra.mxu0 %v5637
    %6567 = vmatpush.bf16.msra.mxu0 %v5629
    %6568 = vmatpush.bf16.msra.mxu0 %v5621
    %6569 = vmatpush.bf16.msra.mxu0 %v5613
    %6570 = vmatpush.bf16.msra.mxu0 %v5605
    %6571 = vmatpush.bf16.msra.mxu0 %v5597
    %6572 = vmatpush.bf16.msra.mxu0 %v5589
    %6573 = vmatmul.bf16.gmra.mxu0 %v3584
    %v6574 = vpop.f32.mrf.mxu0
    %v6575 = vadd.f32 %v6562, %v6574
    %v6576 = vpop.f32.mrf.mxu0
    %6577 = vdwg.mxu0
    %6578 = vmatpush.bf16.msra.mxu0 %v5198
    %6579 = vmatpush.bf16.msra.mxu0 %v5190
    %6580 = vmatpush.bf16.msra.mxu0 %v5182
    %6581 = vmatpush.bf16.msra.mxu0 %v5174
    %6582 = vmatpush.bf16.msra.mxu0 %v5166
    %6583 = vmatpush.bf16.msra.mxu0 %v5158
    %6584 = vmatpush.bf16.msra.mxu0 %v5150
    %6585 = vmatpush.bf16.msra.mxu0 %v5142
    %6586 = vmatmul.bf16.gmra.mxu0 %v3577
    %v6587 = vpop.f32.mrf.mxu0
    %v6588 = vadd.f32 %v3590, %v6587
    %v6589 = vpop.f32.mrf.mxu0
    %6590 = vdwg.mxu0
    %6591 = vmatpush.bf16.msra.mxu0 %v5262
    %6592 = vmatpush.bf16.msra.mxu0 %v5254
    %6593 = vmatpush.bf16.msra.mxu0 %v5246
    %6594 = vmatpush.bf16.msra.mxu0 %v5238
    %6595 = vmatpush.bf16.msra.mxu0 %v5230
    %6596 = vmatpush.bf16.msra.mxu0 %v5222
    %6597 = vmatpush.bf16.msra.mxu0 %v5214
    %6598 = vmatpush.bf16.msra.mxu0 %v5206
    %6599 = vmatmul.bf16.gmra.mxu0 %v3578
    %v6600 = vpop.f32.mrf.mxu0
    %v6601 = vadd.f32 %v6588, %v6600
    %v6602 = vpop.f32.mrf.mxu0
    %6603 = vdwg.mxu0
    %6604 = vmatpush.bf16.msra.mxu0 %v5326
    %6605 = vmatpush.bf16.msra.mxu0 %v5318
    %6606 = vmatpush.bf16.msra.mxu0 %v5310
    %6607 = vmatpush.bf16.msra.mxu0 %v5302
    %6608 = vmatpush.bf16.msra.mxu0 %v5294
    %6609 = vmatpush.bf16.msra.mxu0 %v5286
    %6610 = vmatpush.bf16.msra.mxu0 %v5278
    %6611 = vmatpush.bf16.msra.mxu0 %v5270
    %6612 = vmatmul.bf16.gmra.mxu0 %v3579
    %v6613 = vpop.f32.mrf.mxu0
    %v6614 = vadd.f32 %v6601, %v6613
    %v6615 = vpop.f32.mrf.mxu0
    %6616 = vdwg.mxu0
    %6617 = vmatpush.bf16.msra.mxu0 %v5390
    %6618 = vmatpush.bf16.msra.mxu0 %v5382
    %6619 = vmatpush.bf16.msra.mxu0 %v5374
    %6620 = vmatpush.bf16.msra.mxu0 %v5366
    %6621 = vmatpush.bf16.msra.mxu0 %v5358
    %6622 = vmatpush.bf16.msra.mxu0 %v5350
    %6623 = vmatpush.bf16.msra.mxu0 %v5342
    %6624 = vmatpush.bf16.msra.mxu0 %v5334
    %6625 = vmatmul.bf16.gmra.mxu0 %v3580
    %v6626 = vpop.f32.mrf.mxu0
    %v6627 = vadd.f32 %v6614, %v6626
    %v6628 = vpop.f32.mrf.mxu0
    %6629 = vdwg.mxu0
    %6630 = vmatpush.bf16.msra.mxu0 %v5454
    %6631 = vmatpush.bf16.msra.mxu0 %v5446
    %6632 = vmatpush.bf16.msra.mxu0 %v5438
    %6633 = vmatpush.bf16.msra.mxu0 %v5430
    %6634 = vmatpush.bf16.msra.mxu0 %v5422
    %6635 = vmatpush.bf16.msra.mxu0 %v5414
    %6636 = vmatpush.bf16.msra.mxu0 %v5406
    %6637 = vmatpush.bf16.msra.mxu0 %v5398
    %6638 = vmatmul.bf16.gmra.mxu0 %v3581
    %v6639 = vpop.f32.mrf.mxu0
    %v6640 = vadd.f32 %v6627, %v6639
    %v6641 = vpop.f32.mrf.mxu0
    %6642 = vdwg.mxu0
    %6643 = vmatpush.bf16.msra.mxu0 %v5518
    %6644 = vmatpush.bf16.msra.mxu0 %v5510
    %6645 = vmatpush.bf16.msra.mxu0 %v5502
    %6646 = vmatpush.bf16.msra.mxu0 %v5494
    %6647 = vmatpush.bf16.msra.mxu0 %v5486
    %6648 = vmatpush.bf16.msra.mxu0 %v5478
    %6649 = vmatpush.bf16.msra.mxu0 %v5470
    %6650 = vmatpush.bf16.msra.mxu0 %v5462
    %6651 = vmatmul.bf16.gmra.mxu0 %v3582
    %v6652 = vpop.f32.mrf.mxu0
    %v6653 = vadd.f32 %v6640, %v6652
    %v6654 = vpop.f32.mrf.mxu0
    %6655 = vdwg.mxu0
    %6656 = vmatpush.bf16.msra.mxu0 %v5582
    %6657 = vmatpush.bf16.msra.mxu0 %v5574
    %6658 = vmatpush.bf16.msra.mxu0 %v5566
    %6659 = vmatpush.bf16.msra.mxu0 %v5558
    %6660 = vmatpush.bf16.msra.mxu0 %v5550
    %6661 = vmatpush.bf16.msra.mxu0 %v5542
    %6662 = vmatpush.bf16.msra.mxu0 %v5534
    %6663 = vmatpush.bf16.msra.mxu0 %v5526
    %6664 = vmatmul.bf16.gmra.mxu0 %v3583
    %v6665 = vpop.f32.mrf.mxu0
    %v6666 = vadd.f32 %v6653, %v6665
    %v6667 = vpop.f32.mrf.mxu0
    %6668 = vdwg.mxu0
    %6669 = vmatpush.bf16.msra.mxu0 %v5646
    %6670 = vmatpush.bf16.msra.mxu0 %v5638
    %6671 = vmatpush.bf16.msra.mxu0 %v5630
    %6672 = vmatpush.bf16.msra.mxu0 %v5622
    %6673 = vmatpush.bf16.msra.mxu0 %v5614
    %6674 = vmatpush.bf16.msra.mxu0 %v5606
    %6675 = vmatpush.bf16.msra.mxu0 %v5598
    %6676 = vmatpush.bf16.msra.mxu0 %v5590
    %6677 = vmatmul.bf16.gmra.mxu0 %v3584
    %v6678 = vpop.f32.mrf.mxu0
    %v6679 = vadd.f32 %v6666, %v6678
    %v6680 = vpop.f32.mrf.mxu0
    %6681 = vdwg.mxu0
    %6682 = vmatpush.bf16.msra.mxu0 %v5199
    %6683 = vmatpush.bf16.msra.mxu0 %v5191
    %6684 = vmatpush.bf16.msra.mxu0 %v5183
    %6685 = vmatpush.bf16.msra.mxu0 %v5175
    %6686 = vmatpush.bf16.msra.mxu0 %v5167
    %6687 = vmatpush.bf16.msra.mxu0 %v5159
    %6688 = vmatpush.bf16.msra.mxu0 %v5151
    %6689 = vmatpush.bf16.msra.mxu0 %v5143
    %6690 = vmatmul.bf16.gmra.mxu0 %v3577
    %v6691 = vpop.f32.mrf.mxu0
    %v6692 = vadd.f32 %v3591, %v6691
    %v6693 = vpop.f32.mrf.mxu0
    %6694 = vdwg.mxu0
    %6695 = vmatpush.bf16.msra.mxu0 %v5263
    %6696 = vmatpush.bf16.msra.mxu0 %v5255
    %6697 = vmatpush.bf16.msra.mxu0 %v5247
    %6698 = vmatpush.bf16.msra.mxu0 %v5239
    %6699 = vmatpush.bf16.msra.mxu0 %v5231
    %6700 = vmatpush.bf16.msra.mxu0 %v5223
    %6701 = vmatpush.bf16.msra.mxu0 %v5215
    %6702 = vmatpush.bf16.msra.mxu0 %v5207
    %6703 = vmatmul.bf16.gmra.mxu0 %v3578
    %v6704 = vpop.f32.mrf.mxu0
    %v6705 = vadd.f32 %v6692, %v6704
    %v6706 = vpop.f32.mrf.mxu0
    %6707 = vdwg.mxu0
    %6708 = vmatpush.bf16.msra.mxu0 %v5327
    %6709 = vmatpush.bf16.msra.mxu0 %v5319
    %6710 = vmatpush.bf16.msra.mxu0 %v5311
    %6711 = vmatpush.bf16.msra.mxu0 %v5303
    %6712 = vmatpush.bf16.msra.mxu0 %v5295
    %6713 = vmatpush.bf16.msra.mxu0 %v5287
    %6714 = vmatpush.bf16.msra.mxu0 %v5279
    %6715 = vmatpush.bf16.msra.mxu0 %v5271
    %6716 = vmatmul.bf16.gmra.mxu0 %v3579
    %v6717 = vpop.f32.mrf.mxu0
    %v6718 = vadd.f32 %v6705, %v6717
    %v6719 = vpop.f32.mrf.mxu0
    %6720 = vdwg.mxu0
    %6721 = vmatpush.bf16.msra.mxu0 %v5391
    %6722 = vmatpush.bf16.msra.mxu0 %v5383
    %6723 = vmatpush.bf16.msra.mxu0 %v5375
    %6724 = vmatpush.bf16.msra.mxu0 %v5367
    %6725 = vmatpush.bf16.msra.mxu0 %v5359
    %6726 = vmatpush.bf16.msra.mxu0 %v5351
    %6727 = vmatpush.bf16.msra.mxu0 %v5343
    %6728 = vmatpush.bf16.msra.mxu0 %v5335
    %6729 = vmatmul.bf16.gmra.mxu0 %v3580
    %v6730 = vpop.f32.mrf.mxu0
    %v6731 = vadd.f32 %v6718, %v6730
    %v6732 = vpop.f32.mrf.mxu0
    %6733 = vdwg.mxu0
    %6734 = vmatpush.bf16.msra.mxu0 %v5455
    %6735 = vmatpush.bf16.msra.mxu0 %v5447
    %6736 = vmatpush.bf16.msra.mxu0 %v5439
    %6737 = vmatpush.bf16.msra.mxu0 %v5431
    %6738 = vmatpush.bf16.msra.mxu0 %v5423
    %6739 = vmatpush.bf16.msra.mxu0 %v5415
    %6740 = vmatpush.bf16.msra.mxu0 %v5407
    %6741 = vmatpush.bf16.msra.mxu0 %v5399
    %6742 = vmatmul.bf16.gmra.mxu0 %v3581
    %v6743 = vpop.f32.mrf.mxu0
    %v6744 = vadd.f32 %v6731, %v6743
    %v6745 = vpop.f32.mrf.mxu0
    %6746 = vdwg.mxu0
    %6747 = vmatpush.bf16.msra.mxu0 %v5519
    %6748 = vmatpush.bf16.msra.mxu0 %v5511
    %6749 = vmatpush.bf16.msra.mxu0 %v5503
    %6750 = vmatpush.bf16.msra.mxu0 %v5495
    %6751 = vmatpush.bf16.msra.mxu0 %v5487
    %6752 = vmatpush.bf16.msra.mxu0 %v5479
    %6753 = vmatpush.bf16.msra.mxu0 %v5471
    %6754 = vmatpush.bf16.msra.mxu0 %v5463
    %6755 = vmatmul.bf16.gmra.mxu0 %v3582
    %v6756 = vpop.f32.mrf.mxu0
    %v6757 = vadd.f32 %v6744, %v6756
    %v6758 = vpop.f32.mrf.mxu0
    %6759 = vdwg.mxu0
    %6760 = vmatpush.bf16.msra.mxu0 %v5583
    %6761 = vmatpush.bf16.msra.mxu0 %v5575
    %6762 = vmatpush.bf16.msra.mxu0 %v5567
    %6763 = vmatpush.bf16.msra.mxu0 %v5559
    %6764 = vmatpush.bf16.msra.mxu0 %v5551
    %6765 = vmatpush.bf16.msra.mxu0 %v5543
    %6766 = vmatpush.bf16.msra.mxu0 %v5535
    %6767 = vmatpush.bf16.msra.mxu0 %v5527
    %6768 = vmatmul.bf16.gmra.mxu0 %v3583
    %v6769 = vpop.f32.mrf.mxu0
    %v6770 = vadd.f32 %v6757, %v6769
    %v6771 = vpop.f32.mrf.mxu0
    %6772 = vdwg.mxu0
    %6773 = vmatpush.bf16.msra.mxu0 %v5647
    %6774 = vmatpush.bf16.msra.mxu0 %v5639
    %6775 = vmatpush.bf16.msra.mxu0 %v5631
    %6776 = vmatpush.bf16.msra.mxu0 %v5623
    %6777 = vmatpush.bf16.msra.mxu0 %v5615
    %6778 = vmatpush.bf16.msra.mxu0 %v5607
    %6779 = vmatpush.bf16.msra.mxu0 %v5599
    %6780 = vmatpush.bf16.msra.mxu0 %v5591
    %6781 = vmatmul.bf16.gmra.mxu0 %v3584
    %v6782 = vpop.f32.mrf.mxu0
    %v6783 = vadd.f32 %v6770, %v6782
    %v6784 = vpop.f32.mrf.mxu0
    %6785 = vdwg.mxu0
    %6786 = vmatpush.bf16.msra.mxu0 %v5200
    %6787 = vmatpush.bf16.msra.mxu0 %v5192
    %6788 = vmatpush.bf16.msra.mxu0 %v5184
    %6789 = vmatpush.bf16.msra.mxu0 %v5176
    %6790 = vmatpush.bf16.msra.mxu0 %v5168
    %6791 = vmatpush.bf16.msra.mxu0 %v5160
    %6792 = vmatpush.bf16.msra.mxu0 %v5152
    %6793 = vmatpush.bf16.msra.mxu0 %v5144
    %6794 = vmatmul.bf16.gmra.mxu0 %v3577
    %v6795 = vpop.f32.mrf.mxu0
    %v6796 = vadd.f32 %v3592, %v6795
    %v6797 = vpop.f32.mrf.mxu0
    %6798 = vdwg.mxu0
    %6799 = vmatpush.bf16.msra.mxu0 %v5264
    %6800 = vmatpush.bf16.msra.mxu0 %v5256
    %6801 = vmatpush.bf16.msra.mxu0 %v5248
    %6802 = vmatpush.bf16.msra.mxu0 %v5240
    %6803 = vmatpush.bf16.msra.mxu0 %v5232
    %6804 = vmatpush.bf16.msra.mxu0 %v5224
    %6805 = vmatpush.bf16.msra.mxu0 %v5216
    %6806 = vmatpush.bf16.msra.mxu0 %v5208
    %6807 = vmatmul.bf16.gmra.mxu0 %v3578
    %v6808 = vpop.f32.mrf.mxu0
    %v6809 = vadd.f32 %v6796, %v6808
    %v6810 = vpop.f32.mrf.mxu0
    %6811 = vdwg.mxu0
    %6812 = vmatpush.bf16.msra.mxu0 %v5328
    %6813 = vmatpush.bf16.msra.mxu0 %v5320
    %6814 = vmatpush.bf16.msra.mxu0 %v5312
    %6815 = vmatpush.bf16.msra.mxu0 %v5304
    %6816 = vmatpush.bf16.msra.mxu0 %v5296
    %6817 = vmatpush.bf16.msra.mxu0 %v5288
    %6818 = vmatpush.bf16.msra.mxu0 %v5280
    %6819 = vmatpush.bf16.msra.mxu0 %v5272
    %6820 = vmatmul.bf16.gmra.mxu0 %v3579
    %v6821 = vpop.f32.mrf.mxu0
    %v6822 = vadd.f32 %v6809, %v6821
    %v6823 = vpop.f32.mrf.mxu0
    %6824 = vdwg.mxu0
    %6825 = vmatpush.bf16.msra.mxu0 %v5392
    %6826 = vmatpush.bf16.msra.mxu0 %v5384
    %6827 = vmatpush.bf16.msra.mxu0 %v5376
    %6828 = vmatpush.bf16.msra.mxu0 %v5368
    %6829 = vmatpush.bf16.msra.mxu0 %v5360
    %6830 = vmatpush.bf16.msra.mxu0 %v5352
    %6831 = vmatpush.bf16.msra.mxu0 %v5344
    %6832 = vmatpush.bf16.msra.mxu0 %v5336
    %6833 = vmatmul.bf16.gmra.mxu0 %v3580
    %v6834 = vpop.f32.mrf.mxu0
    %v6835 = vadd.f32 %v6822, %v6834
    %v6836 = vpop.f32.mrf.mxu0
    %6837 = vdwg.mxu0
    %6838 = vmatpush.bf16.msra.mxu0 %v5456
    %6839 = vmatpush.bf16.msra.mxu0 %v5448
    %6840 = vmatpush.bf16.msra.mxu0 %v5440
    %6841 = vmatpush.bf16.msra.mxu0 %v5432
    %6842 = vmatpush.bf16.msra.mxu0 %v5424
    %6843 = vmatpush.bf16.msra.mxu0 %v5416
    %6844 = vmatpush.bf16.msra.mxu0 %v5408
    %6845 = vmatpush.bf16.msra.mxu0 %v5400
    %6846 = vmatmul.bf16.gmra.mxu0 %v3581
    %v6847 = vpop.f32.mrf.mxu0
    %v6848 = vadd.f32 %v6835, %v6847
    %v6849 = vpop.f32.mrf.mxu0
    %6850 = vdwg.mxu0
    %6851 = vmatpush.bf16.msra.mxu0 %v5520
    %6852 = vmatpush.bf16.msra.mxu0 %v5512
    %6853 = vmatpush.bf16.msra.mxu0 %v5504
    %6854 = vmatpush.bf16.msra.mxu0 %v5496
    %6855 = vmatpush.bf16.msra.mxu0 %v5488
    %6856 = vmatpush.bf16.msra.mxu0 %v5480
    %6857 = vmatpush.bf16.msra.mxu0 %v5472
    %6858 = vmatpush.bf16.msra.mxu0 %v5464
    %6859 = vmatmul.bf16.gmra.mxu0 %v3582
    %v6860 = vpop.f32.mrf.mxu0
    %v6861 = vadd.f32 %v6848, %v6860
    %v6862 = vpop.f32.mrf.mxu0
    %6863 = vdwg.mxu0
    %6864 = vmatpush.bf16.msra.mxu0 %v5584
    %6865 = vmatpush.bf16.msra.mxu0 %v5576
    %6866 = vmatpush.bf16.msra.mxu0 %v5568
    %6867 = vmatpush.bf16.msra.mxu0 %v5560
    %6868 = vmatpush.bf16.msra.mxu0 %v5552
    %6869 = vmatpush.bf16.msra.mxu0 %v5544
    %6870 = vmatpush.bf16.msra.mxu0 %v5536
    %6871 = vmatpush.bf16.msra.mxu0 %v5528
    %6872 = vmatmul.bf16.gmra.mxu0 %v3583
    %v6873 = vpop.f32.mrf.mxu0
    %v6874 = vadd.f32 %v6861, %v6873
    %v6875 = vpop.f32.mrf.mxu0
    %6876 = vdwg.mxu0
    %6877 = vmatpush.bf16.msra.mxu0 %v5648
    %6878 = vmatpush.bf16.msra.mxu0 %v5640
    %6879 = vmatpush.bf16.msra.mxu0 %v5632
    %6880 = vmatpush.bf16.msra.mxu0 %v5624
    %6881 = vmatpush.bf16.msra.mxu0 %v5616
    %6882 = vmatpush.bf16.msra.mxu0 %v5608
    %6883 = vmatpush.bf16.msra.mxu0 %v5600
    %6884 = vmatpush.bf16.msra.mxu0 %v5592
    %6885 = vmatmul.bf16.gmra.mxu0 %v3584
    %v6886 = vpop.f32.mrf.mxu0
    %v6887 = vadd.f32 %v6874, %v6886
    %v6888 = vpop.f32.mrf.mxu0
    %6889 = vdwg.mxu0
    %6890 = vmatpush.bf16.msra.mxu0 %v5201
    %6891 = vmatpush.bf16.msra.mxu0 %v5193
    %6892 = vmatpush.bf16.msra.mxu0 %v5185
    %6893 = vmatpush.bf16.msra.mxu0 %v5177
    %6894 = vmatpush.bf16.msra.mxu0 %v5169
    %6895 = vmatpush.bf16.msra.mxu0 %v5161
    %6896 = vmatpush.bf16.msra.mxu0 %v5153
    %6897 = vmatpush.bf16.msra.mxu0 %v5145
    %6898 = vmatmul.bf16.gmra.mxu0 %v3577
    %v6899 = vpop.f32.mrf.mxu0
    %v6900 = vadd.f32 %v3593, %v6899
    %v6901 = vpop.f32.mrf.mxu0
    %6902 = vdwg.mxu0
    %6903 = vmatpush.bf16.msra.mxu0 %v5265
    %6904 = vmatpush.bf16.msra.mxu0 %v5257
    %6905 = vmatpush.bf16.msra.mxu0 %v5249
    %6906 = vmatpush.bf16.msra.mxu0 %v5241
    %6907 = vmatpush.bf16.msra.mxu0 %v5233
    %6908 = vmatpush.bf16.msra.mxu0 %v5225
    %6909 = vmatpush.bf16.msra.mxu0 %v5217
    %6910 = vmatpush.bf16.msra.mxu0 %v5209
    %6911 = vmatmul.bf16.gmra.mxu0 %v3578
    %v6912 = vpop.f32.mrf.mxu0
    %v6913 = vadd.f32 %v6900, %v6912
    %v6914 = vpop.f32.mrf.mxu0
    %6915 = vdwg.mxu0
    %6916 = vmatpush.bf16.msra.mxu0 %v5329
    %6917 = vmatpush.bf16.msra.mxu0 %v5321
    %6918 = vmatpush.bf16.msra.mxu0 %v5313
    %6919 = vmatpush.bf16.msra.mxu0 %v5305
    %6920 = vmatpush.bf16.msra.mxu0 %v5297
    %6921 = vmatpush.bf16.msra.mxu0 %v5289
    %6922 = vmatpush.bf16.msra.mxu0 %v5281
    %6923 = vmatpush.bf16.msra.mxu0 %v5273
    %6924 = vmatmul.bf16.gmra.mxu0 %v3579
    %v6925 = vpop.f32.mrf.mxu0
    %v6926 = vadd.f32 %v6913, %v6925
    %v6927 = vpop.f32.mrf.mxu0
    %6928 = vdwg.mxu0
    %6929 = vmatpush.bf16.msra.mxu0 %v5393
    %6930 = vmatpush.bf16.msra.mxu0 %v5385
    %6931 = vmatpush.bf16.msra.mxu0 %v5377
    %6932 = vmatpush.bf16.msra.mxu0 %v5369
    %6933 = vmatpush.bf16.msra.mxu0 %v5361
    %6934 = vmatpush.bf16.msra.mxu0 %v5353
    %6935 = vmatpush.bf16.msra.mxu0 %v5345
    %6936 = vmatpush.bf16.msra.mxu0 %v5337
    %6937 = vmatmul.bf16.gmra.mxu0 %v3580
    %v6938 = vpop.f32.mrf.mxu0
    %v6939 = vadd.f32 %v6926, %v6938
    %v6940 = vpop.f32.mrf.mxu0
    %6941 = vdwg.mxu0
    %6942 = vmatpush.bf16.msra.mxu0 %v5457
    %6943 = vmatpush.bf16.msra.mxu0 %v5449
    %6944 = vmatpush.bf16.msra.mxu0 %v5441
    %6945 = vmatpush.bf16.msra.mxu0 %v5433
    %6946 = vmatpush.bf16.msra.mxu0 %v5425
    %6947 = vmatpush.bf16.msra.mxu0 %v5417
    %6948 = vmatpush.bf16.msra.mxu0 %v5409
    %6949 = vmatpush.bf16.msra.mxu0 %v5401
    %6950 = vmatmul.bf16.gmra.mxu0 %v3581
    %v6951 = vpop.f32.mrf.mxu0
    %v6952 = vadd.f32 %v6939, %v6951
    %v6953 = vpop.f32.mrf.mxu0
    %6954 = vdwg.mxu0
    %6955 = vmatpush.bf16.msra.mxu0 %v5521
    %6956 = vmatpush.bf16.msra.mxu0 %v5513
    %6957 = vmatpush.bf16.msra.mxu0 %v5505
    %6958 = vmatpush.bf16.msra.mxu0 %v5497
    %6959 = vmatpush.bf16.msra.mxu0 %v5489
    %6960 = vmatpush.bf16.msra.mxu0 %v5481
    %6961 = vmatpush.bf16.msra.mxu0 %v5473
    %6962 = vmatpush.bf16.msra.mxu0 %v5465
    %6963 = vmatmul.bf16.gmra.mxu0 %v3582
    %v6964 = vpop.f32.mrf.mxu0
    %v6965 = vadd.f32 %v6952, %v6964
    %v6966 = vpop.f32.mrf.mxu0
    %6967 = vdwg.mxu0
    %6968 = vmatpush.bf16.msra.mxu0 %v5585
    %6969 = vmatpush.bf16.msra.mxu0 %v5577
    %6970 = vmatpush.bf16.msra.mxu0 %v5569
    %6971 = vmatpush.bf16.msra.mxu0 %v5561
    %6972 = vmatpush.bf16.msra.mxu0 %v5553
    %6973 = vmatpush.bf16.msra.mxu0 %v5545
    %6974 = vmatpush.bf16.msra.mxu0 %v5537
    %6975 = vmatpush.bf16.msra.mxu0 %v5529
    %6976 = vmatmul.bf16.gmra.mxu0 %v3583
    %v6977 = vpop.f32.mrf.mxu0
    %v6978 = vadd.f32 %v6965, %v6977
    %v6979 = vpop.f32.mrf.mxu0
    %6980 = vdwg.mxu0
    %6981 = vmatpush.bf16.msra.mxu0 %v5649
    %6982 = vmatpush.bf16.msra.mxu0 %v5641
    %6983 = vmatpush.bf16.msra.mxu0 %v5633
    %6984 = vmatpush.bf16.msra.mxu0 %v5625
    %6985 = vmatpush.bf16.msra.mxu0 %v5617
    %6986 = vmatpush.bf16.msra.mxu0 %v5609
    %6987 = vmatpush.bf16.msra.mxu0 %v5601
    %6988 = vmatpush.bf16.msra.mxu0 %v5593
    %6989 = vmatmul.bf16.gmra.mxu0 %v3584
    %v6990 = vpop.f32.mrf.mxu0
    %v6991 = vadd.f32 %v6978, %v6990
    %v6992 = vpop.f32.mrf.mxu0
    %6993 = vdwg.mxu0
    %v6994 = vmax.f32 %v6263, 0.0
    %v6995 = vmax.f32 %v6367, 0.0
    %v6996 = vmax.f32 %v6471, 0.0
    %v6997 = vmax.f32 %v6575, 0.0
    %v6998 = vmax.f32 %v6679, 0.0
    %v6999 = vmax.f32 %v6783, 0.0
    %v7000 = vmax.f32 %v6887, 0.0
    %v7001 = vmax.f32 %v6991, 0.0
    %s7002 = smul.u32 %s3060, 4
    %s7003 = sshll.u32 %s7002, 4
    %7004 = dma.done %s224, %s7003
    %v7005 = vld [vmem:[#allocation3] sm:$0xff]
    %v7006 = vld [vmem:[#allocation3 + $0x8] sm:$0xff]
    %v7007 = vld [vmem:[#allocation3 + $0x10] sm:$0xff]
    %v7008 = vld [vmem:[#allocation3 + $0x18] sm:$0xff]
    %v7009 = vld [vmem:[#allocation3 + $0x20] sm:$0xff]
    %v7010 = vld [vmem:[#allocation3 + $0x28] sm:$0xff]
    %v7011 = vld [vmem:[#allocation3 + $0x30] sm:$0xff]
    %v7012 = vld [vmem:[#allocation3 + $0x38] sm:$0xff]
    %v7013 = vld [vmem:[#allocation3 + $0x40] sm:$0xff]
    %v7014 = vld [vmem:[#allocation3 + $0x48] sm:$0xff]
    %v7015 = vld [vmem:[#allocation3 + $0x50] sm:$0xff]
    %v7016 = vld [vmem:[#allocation3 + $0x58] sm:$0xff]
    %v7017 = vld [vmem:[#allocation3 + $0x60] sm:$0xff]
    %v7018 = vld [vmem:[#allocation3 + $0x68] sm:$0xff]
    %v7019 = vld [vmem:[#allocation3 + $0x70] sm:$0xff]
    %v7020 = vld [vmem:[#allocation3 + $0x78] sm:$0xff]
    %v7021 = vld [vmem:[#allocation3 + $0x80] sm:$0xff]
    %v7022 = vld [vmem:[#allocation3 + $0x88] sm:$0xff]
    %v7023 = vld [vmem:[#allocation3 + $0x90] sm:$0xff]
    %v7024 = vld [vmem:[#allocation3 + $0x98] sm:$0xff]
    %v7025 = vld [vmem:[#allocation3 + $0xa0] sm:$0xff]
    %v7026 = vld [vmem:[#allocation3 + $0xa8] sm:$0xff]
    %v7027 = vld [vmem:[#allocation3 + $0xb0] sm:$0xff]
    %v7028 = vld [vmem:[#allocation3 + $0xb8] sm:$0xff]
    %v7029 = vld [vmem:[#allocation3 + $0xc0] sm:$0xff]
    %v7030 = vld [vmem:[#allocation3 + $0xc8] sm:$0xff]
    %v7031 = vld [vmem:[#allocation3 + $0xd0] sm:$0xff]
    %v7032 = vld [vmem:[#allocation3 + $0xd8] sm:$0xff]
    %v7033 = vld [vmem:[#allocation3 + $0xe0] sm:$0xff]
    %v7034 = vld [vmem:[#allocation3 + $0xe8] sm:$0xff]
    %v7035 = vld [vmem:[#allocation3 + $0xf0] sm:$0xff]
    %v7036 = vld [vmem:[#allocation3 + $0xf8] sm:$0xff]
    %v7037 = vld [vmem:[#allocation3 + $0x100] sm:$0xff]
    %v7038 = vld [vmem:[#allocation3 + $0x108] sm:$0xff]
    %v7039 = vld [vmem:[#allocation3 + $0x110] sm:$0xff]
    %v7040 = vld [vmem:[#allocation3 + $0x118] sm:$0xff]
    %v7041 = vld [vmem:[#allocation3 + $0x120] sm:$0xff]
    %v7042 = vld [vmem:[#allocation3 + $0x128] sm:$0xff]
    %v7043 = vld [vmem:[#allocation3 + $0x130] sm:$0xff]
    %v7044 = vld [vmem:[#allocation3 + $0x138] sm:$0xff]
    %v7045 = vld [vmem:[#allocation3 + $0x140] sm:$0xff]
    %v7046 = vld [vmem:[#allocation3 + $0x148] sm:$0xff]
    %v7047 = vld [vmem:[#allocation3 + $0x150] sm:$0xff]
    %v7048 = vld [vmem:[#allocation3 + $0x158] sm:$0xff]
    %v7049 = vld [vmem:[#allocation3 + $0x160] sm:$0xff]
    %v7050 = vld [vmem:[#allocation3 + $0x168] sm:$0xff]
    %v7051 = vld [vmem:[#allocation3 + $0x170] sm:$0xff]
    %v7052 = vld [vmem:[#allocation3 + $0x178] sm:$0xff]
    %v7053 = vld [vmem:[#allocation3 + $0x180] sm:$0xff]
    %v7054 = vld [vmem:[#allocation3 + $0x188] sm:$0xff]
    %v7055 = vld [vmem:[#allocation3 + $0x190] sm:$0xff]
    %v7056 = vld [vmem:[#allocation3 + $0x198] sm:$0xff]
    %v7057 = vld [vmem:[#allocation3 + $0x1a0] sm:$0xff]
    %v7058 = vld [vmem:[#allocation3 + $0x1a8] sm:$0xff]
    %v7059 = vld [vmem:[#allocation3 + $0x1b0] sm:$0xff]
    %v7060 = vld [vmem:[#allocation3 + $0x1b8] sm:$0xff]
    %v7061 = vld [vmem:[#allocation3 + $0x1c0] sm:$0xff]
    %v7062 = vld [vmem:[#allocation3 + $0x1c8] sm:$0xff]
    %v7063 = vld [vmem:[#allocation3 + $0x1d0] sm:$0xff]
    %v7064 = vld [vmem:[#allocation3 + $0x1d8] sm:$0xff]
    %v7065 = vld [vmem:[#allocation3 + $0x1e0] sm:$0xff]
    %v7066 = vld [vmem:[#allocation3 + $0x1e8] sm:$0xff]
    %v7067 = vld [vmem:[#allocation3 + $0x1f0] sm:$0xff]
    %v7068 = vld [vmem:[#allocation3 + $0x1f8] sm:$0xff]
    %v7069 = vld [vmem:[#allocation3 + $0x200] sm:$0xff]
    %v7070 = vld [vmem:[#allocation3 + $0x208] sm:$0xff]
    %v7071 = vld [vmem:[#allocation3 + $0x210] sm:$0xff]
    %v7072 = vld [vmem:[#allocation3 + $0x218] sm:$0xff]
    %v7073 = vld [vmem:[#allocation3 + $0x220] sm:$0xff]
    %v7074 = vld [vmem:[#allocation3 + $0x228] sm:$0xff]
    %v7075 = vld [vmem:[#allocation3 + $0x230] sm:$0xff]
    %v7076 = vld [vmem:[#allocation3 + $0x238] sm:$0xff]
    %v7077 = vld [vmem:[#allocation3 + $0x240] sm:$0xff]
    %v7078 = vld [vmem:[#allocation3 + $0x248] sm:$0xff]
    %v7079 = vld [vmem:[#allocation3 + $0x250] sm:$0xff]
    %v7080 = vld [vmem:[#allocation3 + $0x258] sm:$0xff]
    %v7081 = vld [vmem:[#allocation3 + $0x260] sm:$0xff]
    %v7082 = vld [vmem:[#allocation3 + $0x268] sm:$0xff]
    %v7083 = vld [vmem:[#allocation3 + $0x270] sm:$0xff]
    %v7084 = vld [vmem:[#allocation3 + $0x278] sm:$0xff]
    %v7085 = vld [vmem:[#allocation3 + $0x280] sm:$0xff]
    %v7086 = vld [vmem:[#allocation3 + $0x288] sm:$0xff]
    %v7087 = vld [vmem:[#allocation3 + $0x290] sm:$0xff]
    %v7088 = vld [vmem:[#allocation3 + $0x298] sm:$0xff]
    %v7089 = vld [vmem:[#allocation3 + $0x2a0] sm:$0xff]
    %v7090 = vld [vmem:[#allocation3 + $0x2a8] sm:$0xff]
    %v7091 = vld [vmem:[#allocation3 + $0x2b0] sm:$0xff]
    %v7092 = vld [vmem:[#allocation3 + $0x2b8] sm:$0xff]
    %v7093 = vld [vmem:[#allocation3 + $0x2c0] sm:$0xff]
    %v7094 = vld [vmem:[#allocation3 + $0x2c8] sm:$0xff]
    %v7095 = vld [vmem:[#allocation3 + $0x2d0] sm:$0xff]
    %v7096 = vld [vmem:[#allocation3 + $0x2d8] sm:$0xff]
    %v7097 = vld [vmem:[#allocation3 + $0x2e0] sm:$0xff]
    %v7098 = vld [vmem:[#allocation3 + $0x2e8] sm:$0xff]
    %v7099 = vld [vmem:[#allocation3 + $0x2f0] sm:$0xff]
    %v7100 = vld [vmem:[#allocation3 + $0x2f8] sm:$0xff]
    %v7101 = vld [vmem:[#allocation3 + $0x300] sm:$0xff]
    %v7102 = vld [vmem:[#allocation3 + $0x308] sm:$0xff]
    %v7103 = vld [vmem:[#allocation3 + $0x310] sm:$0xff]
    %v7104 = vld [vmem:[#allocation3 + $0x318] sm:$0xff]
    %v7105 = vld [vmem:[#allocation3 + $0x320] sm:$0xff]
    %v7106 = vld [vmem:[#allocation3 + $0x328] sm:$0xff]
    %v7107 = vld [vmem:[#allocation3 + $0x330] sm:$0xff]
    %v7108 = vld [vmem:[#allocation3 + $0x338] sm:$0xff]
    %v7109 = vld [vmem:[#allocation3 + $0x340] sm:$0xff]
    %v7110 = vld [vmem:[#allocation3 + $0x348] sm:$0xff]
    %v7111 = vld [vmem:[#allocation3 + $0x350] sm:$0xff]
    %v7112 = vld [vmem:[#allocation3 + $0x358] sm:$0xff]
    %v7113 = vld [vmem:[#allocation3 + $0x360] sm:$0xff]
    %v7114 = vld [vmem:[#allocation3 + $0x368] sm:$0xff]
    %v7115 = vld [vmem:[#allocation3 + $0x370] sm:$0xff]
    %v7116 = vld [vmem:[#allocation3 + $0x378] sm:$0xff]
    %v7117 = vld [vmem:[#allocation3 + $0x380] sm:$0xff]
    %v7118 = vld [vmem:[#allocation3 + $0x388] sm:$0xff]
    %v7119 = vld [vmem:[#allocation3 + $0x390] sm:$0xff]
    %v7120 = vld [vmem:[#allocation3 + $0x398] sm:$0xff]
    %v7121 = vld [vmem:[#allocation3 + $0x3a0] sm:$0xff]
    %v7122 = vld [vmem:[#allocation3 + $0x3a8] sm:$0xff]
    %v7123 = vld [vmem:[#allocation3 + $0x3b0] sm:$0xff]
    %v7124 = vld [vmem:[#allocation3 + $0x3b8] sm:$0xff]
    %v7125 = vld [vmem:[#allocation3 + $0x3c0] sm:$0xff]
    %v7126 = vld [vmem:[#allocation3 + $0x3c8] sm:$0xff]
    %v7127 = vld [vmem:[#allocation3 + $0x3d0] sm:$0xff]
    %v7128 = vld [vmem:[#allocation3 + $0x3d8] sm:$0xff]
    %v7129 = vld [vmem:[#allocation3 + $0x3e0] sm:$0xff]
    %v7130 = vld [vmem:[#allocation3 + $0x3e8] sm:$0xff]
    %v7131 = vld [vmem:[#allocation3 + $0x3f0] sm:$0xff]
    %v7132 = vld [vmem:[#allocation3 + $0x3f8] sm:$0xff]
    %v7133 = vld [vmem:[#allocation3 + $0x400] sm:$0xff]
    %v7134 = vld [vmem:[#allocation3 + $0x408] sm:$0xff]
    %v7135 = vld [vmem:[#allocation3 + $0x410] sm:$0xff]
    %v7136 = vld [vmem:[#allocation3 + $0x418] sm:$0xff]
    %v7137 = vld [vmem:[#allocation3 + $0x420] sm:$0xff]
    %v7138 = vld [vmem:[#allocation3 + $0x428] sm:$0xff]
    %v7139 = vld [vmem:[#allocation3 + $0x430] sm:$0xff]
    %v7140 = vld [vmem:[#allocation3 + $0x438] sm:$0xff]
    %v7141 = vld [vmem:[#allocation3 + $0x440] sm:$0xff]
    %v7142 = vld [vmem:[#allocation3 + $0x448] sm:$0xff]
    %v7143 = vld [vmem:[#allocation3 + $0x450] sm:$0xff]
    %v7144 = vld [vmem:[#allocation3 + $0x458] sm:$0xff]
    %v7145 = vld [vmem:[#allocation3 + $0x460] sm:$0xff]
    %v7146 = vld [vmem:[#allocation3 + $0x468] sm:$0xff]
    %v7147 = vld [vmem:[#allocation3 + $0x470] sm:$0xff]
    %v7148 = vld [vmem:[#allocation3 + $0x478] sm:$0xff]
    %v7149 = vld [vmem:[#allocation3 + $0x480] sm:$0xff]
    %v7150 = vld [vmem:[#allocation3 + $0x488] sm:$0xff]
    %v7151 = vld [vmem:[#allocation3 + $0x490] sm:$0xff]
    %v7152 = vld [vmem:[#allocation3 + $0x498] sm:$0xff]
    %v7153 = vld [vmem:[#allocation3 + $0x4a0] sm:$0xff]
    %v7154 = vld [vmem:[#allocation3 + $0x4a8] sm:$0xff]
    %v7155 = vld [vmem:[#allocation3 + $0x4b0] sm:$0xff]
    %v7156 = vld [vmem:[#allocation3 + $0x4b8] sm:$0xff]
    %v7157 = vld [vmem:[#allocation3 + $0x4c0] sm:$0xff]
    %v7158 = vld [vmem:[#allocation3 + $0x4c8] sm:$0xff]
    %v7159 = vld [vmem:[#allocation3 + $0x4d0] sm:$0xff]
    %v7160 = vld [vmem:[#allocation3 + $0x4d8] sm:$0xff]
    %v7161 = vld [vmem:[#allocation3 + $0x4e0] sm:$0xff]
    %v7162 = vld [vmem:[#allocation3 + $0x4e8] sm:$0xff]
    %v7163 = vld [vmem:[#allocation3 + $0x4f0] sm:$0xff]
    %v7164 = vld [vmem:[#allocation3 + $0x4f8] sm:$0xff]
    %v7165 = vld [vmem:[#allocation3 + $0x500] sm:$0xff]
    %v7166 = vld [vmem:[#allocation3 + $0x508] sm:$0xff]
    %v7167 = vld [vmem:[#allocation3 + $0x510] sm:$0xff]
    %v7168 = vld [vmem:[#allocation3 + $0x518] sm:$0xff]
    %v7169 = vld [vmem:[#allocation3 + $0x520] sm:$0xff]
    %v7170 = vld [vmem:[#allocation3 + $0x528] sm:$0xff]
    %v7171 = vld [vmem:[#allocation3 + $0x530] sm:$0xff]
    %v7172 = vld [vmem:[#allocation3 + $0x538] sm:$0xff]
    %v7173 = vld [vmem:[#allocation3 + $0x540] sm:$0xff]
    %v7174 = vld [vmem:[#allocation3 + $0x548] sm:$0xff]
    %v7175 = vld [vmem:[#allocation3 + $0x550] sm:$0xff]
    %v7176 = vld [vmem:[#allocation3 + $0x558] sm:$0xff]
    %v7177 = vld [vmem:[#allocation3 + $0x560] sm:$0xff]
    %v7178 = vld [vmem:[#allocation3 + $0x568] sm:$0xff]
    %v7179 = vld [vmem:[#allocation3 + $0x570] sm:$0xff]
    %v7180 = vld [vmem:[#allocation3 + $0x578] sm:$0xff]
    %v7181 = vld [vmem:[#allocation3 + $0x580] sm:$0xff]
    %v7182 = vld [vmem:[#allocation3 + $0x588] sm:$0xff]
    %v7183 = vld [vmem:[#allocation3 + $0x590] sm:$0xff]
    %v7184 = vld [vmem:[#allocation3 + $0x598] sm:$0xff]
    %v7185 = vld [vmem:[#allocation3 + $0x5a0] sm:$0xff]
    %v7186 = vld [vmem:[#allocation3 + $0x5a8] sm:$0xff]
    %v7187 = vld [vmem:[#allocation3 + $0x5b0] sm:$0xff]
    %v7188 = vld [vmem:[#allocation3 + $0x5b8] sm:$0xff]
    %v7189 = vld [vmem:[#allocation3 + $0x5c0] sm:$0xff]
    %v7190 = vld [vmem:[#allocation3 + $0x5c8] sm:$0xff]
    %v7191 = vld [vmem:[#allocation3 + $0x5d0] sm:$0xff]
    %v7192 = vld [vmem:[#allocation3 + $0x5d8] sm:$0xff]
    %v7193 = vld [vmem:[#allocation3 + $0x5e0] sm:$0xff]
    %v7194 = vld [vmem:[#allocation3 + $0x5e8] sm:$0xff]
    %v7195 = vld [vmem:[#allocation3 + $0x5f0] sm:$0xff]
    %v7196 = vld [vmem:[#allocation3 + $0x5f8] sm:$0xff]
    %v7197 = vld [vmem:[#allocation3 + $0x600] sm:$0xff]
    %v7198 = vld [vmem:[#allocation3 + $0x608] sm:$0xff]
    %v7199 = vld [vmem:[#allocation3 + $0x610] sm:$0xff]
    %v7200 = vld [vmem:[#allocation3 + $0x618] sm:$0xff]
    %v7201 = vld [vmem:[#allocation3 + $0x620] sm:$0xff]
    %v7202 = vld [vmem:[#allocation3 + $0x628] sm:$0xff]
    %v7203 = vld [vmem:[#allocation3 + $0x630] sm:$0xff]
    %v7204 = vld [vmem:[#allocation3 + $0x638] sm:$0xff]
    %v7205 = vld [vmem:[#allocation3 + $0x640] sm:$0xff]
    %v7206 = vld [vmem:[#allocation3 + $0x648] sm:$0xff]
    %v7207 = vld [vmem:[#allocation3 + $0x650] sm:$0xff]
    %v7208 = vld [vmem:[#allocation3 + $0x658] sm:$0xff]
    %v7209 = vld [vmem:[#allocation3 + $0x660] sm:$0xff]
    %v7210 = vld [vmem:[#allocation3 + $0x668] sm:$0xff]
    %v7211 = vld [vmem:[#allocation3 + $0x670] sm:$0xff]
    %v7212 = vld [vmem:[#allocation3 + $0x678] sm:$0xff]
    %v7213 = vld [vmem:[#allocation3 + $0x680] sm:$0xff]
    %v7214 = vld [vmem:[#allocation3 + $0x688] sm:$0xff]
    %v7215 = vld [vmem:[#allocation3 + $0x690] sm:$0xff]
    %v7216 = vld [vmem:[#allocation3 + $0x698] sm:$0xff]
    %v7217 = vld [vmem:[#allocation3 + $0x6a0] sm:$0xff]
    %v7218 = vld [vmem:[#allocation3 + $0x6a8] sm:$0xff]
    %v7219 = vld [vmem:[#allocation3 + $0x6b0] sm:$0xff]
    %v7220 = vld [vmem:[#allocation3 + $0x6b8] sm:$0xff]
    %v7221 = vld [vmem:[#allocation3 + $0x6c0] sm:$0xff]
    %v7222 = vld [vmem:[#allocation3 + $0x6c8] sm:$0xff]
    %v7223 = vld [vmem:[#allocation3 + $0x6d0] sm:$0xff]
    %v7224 = vld [vmem:[#allocation3 + $0x6d8] sm:$0xff]
    %v7225 = vld [vmem:[#allocation3 + $0x6e0] sm:$0xff]
    %v7226 = vld [vmem:[#allocation3 + $0x6e8] sm:$0xff]
    %v7227 = vld [vmem:[#allocation3 + $0x6f0] sm:$0xff]
    %v7228 = vld [vmem:[#allocation3 + $0x6f8] sm:$0xff]
    %v7229 = vld [vmem:[#allocation3 + $0x700] sm:$0xff]
    %v7230 = vld [vmem:[#allocation3 + $0x708] sm:$0xff]
    %v7231 = vld [vmem:[#allocation3 + $0x710] sm:$0xff]
    %v7232 = vld [vmem:[#allocation3 + $0x718] sm:$0xff]
    %v7233 = vld [vmem:[#allocation3 + $0x720] sm:$0xff]
    %v7234 = vld [vmem:[#allocation3 + $0x728] sm:$0xff]
    %v7235 = vld [vmem:[#allocation3 + $0x730] sm:$0xff]
    %v7236 = vld [vmem:[#allocation3 + $0x738] sm:$0xff]
    %v7237 = vld [vmem:[#allocation3 + $0x740] sm:$0xff]
    %v7238 = vld [vmem:[#allocation3 + $0x748] sm:$0xff]
    %v7239 = vld [vmem:[#allocation3 + $0x750] sm:$0xff]
    %v7240 = vld [vmem:[#allocation3 + $0x758] sm:$0xff]
    %v7241 = vld [vmem:[#allocation3 + $0x760] sm:$0xff]
    %v7242 = vld [vmem:[#allocation3 + $0x768] sm:$0xff]
    %v7243 = vld [vmem:[#allocation3 + $0x770] sm:$0xff]
    %v7244 = vld [vmem:[#allocation3 + $0x778] sm:$0xff]
    %v7245 = vld [vmem:[#allocation3 + $0x780] sm:$0xff]
    %v7246 = vld [vmem:[#allocation3 + $0x788] sm:$0xff]
    %v7247 = vld [vmem:[#allocation3 + $0x790] sm:$0xff]
    %v7248 = vld [vmem:[#allocation3 + $0x798] sm:$0xff]
    %v7249 = vld [vmem:[#allocation3 + $0x7a0] sm:$0xff]
    %v7250 = vld [vmem:[#allocation3 + $0x7a8] sm:$0xff]
    %v7251 = vld [vmem:[#allocation3 + $0x7b0] sm:$0xff]
    %v7252 = vld [vmem:[#allocation3 + $0x7b8] sm:$0xff]
    %v7253 = vld [vmem:[#allocation3 + $0x7c0] sm:$0xff]
    %v7254 = vld [vmem:[#allocation3 + $0x7c8] sm:$0xff]
    %v7255 = vld [vmem:[#allocation3 + $0x7d0] sm:$0xff]
    %v7256 = vld [vmem:[#allocation3 + $0x7d8] sm:$0xff]
    %v7257 = vld [vmem:[#allocation3 + $0x7e0] sm:$0xff]
    %v7258 = vld [vmem:[#allocation3 + $0x7e8] sm:$0xff]
    %v7259 = vld [vmem:[#allocation3 + $0x7f0] sm:$0xff]
    %v7260 = vld [vmem:[#allocation3 + $0x7f8] sm:$0xff]
    %v7261 = vld [vmem:[#allocation22] sm:$0xf]
    %v7262 = vpack.c.bf16 %v6994, %v6994
    %v7263 = vpack.c.bf16 %v6995, %v6995
    %v7264 = vpack.c.bf16 %v6996, %v6996
    %v7265 = vpack.c.bf16 %v6997, %v6997
    %v7266 = vpack.c.bf16 %v6998, %v6998
    %v7267 = vpack.c.bf16 %v6999, %v6999
    %v7268 = vpack.c.bf16 %v7000, %v7000
    %v7269 = vpack.c.bf16 %v7001, %v7001
    %v7271 = vperm.slane %v7261, 0
    %v7272 = vperm.slane %v7261, 1
    %v7273 = vperm.slane %v7261, 2
    %v7274 = vperm.slane %v7261, 3
    %v7535 = vunpack.c.l.b16 %v7005
    %v7536 = vunpack.c.h.b16 %v7005
    %v7537 = vunpack.c.l.b16 %v7006
    %v7538 = vunpack.c.h.b16 %v7006
    %v7539 = vunpack.c.l.b16 %v7007
    %v7540 = vunpack.c.h.b16 %v7007
    %v7541 = vunpack.c.l.b16 %v7008
    %v7542 = vunpack.c.h.b16 %v7008
    %v7543 = vunpack.c.l.b16 %v7009
    %v7544 = vunpack.c.h.b16 %v7009
    %v7545 = vunpack.c.l.b16 %v7010
    %v7546 = vunpack.c.h.b16 %v7010
    %v7547 = vunpack.c.l.b16 %v7011
    %v7548 = vunpack.c.h.b16 %v7011
    %v7549 = vunpack.c.l.b16 %v7012
    %v7550 = vunpack.c.h.b16 %v7012
    %v7551 = vunpack.c.l.b16 %v7013
    %v7552 = vunpack.c.h.b16 %v7013
    %v7553 = vunpack.c.l.b16 %v7014
    %v7554 = vunpack.c.h.b16 %v7014
    %v7555 = vunpack.c.l.b16 %v7015
    %v7556 = vunpack.c.h.b16 %v7015
    %v7557 = vunpack.c.l.b16 %v7016
    %v7558 = vunpack.c.h.b16 %v7016
    %v7559 = vunpack.c.l.b16 %v7017
    %v7560 = vunpack.c.h.b16 %v7017
    %v7561 = vunpack.c.l.b16 %v7018
    %v7562 = vunpack.c.h.b16 %v7018
    %v7563 = vunpack.c.l.b16 %v7019
    %v7564 = vunpack.c.h.b16 %v7019
    %v7565 = vunpack.c.l.b16 %v7020
    %v7566 = vunpack.c.h.b16 %v7020
    %v7567 = vunpack.c.l.b16 %v7021
    %v7568 = vunpack.c.h.b16 %v7021
    %v7569 = vunpack.c.l.b16 %v7022
    %v7570 = vunpack.c.h.b16 %v7022
    %v7571 = vunpack.c.l.b16 %v7023
    %v7572 = vunpack.c.h.b16 %v7023
    %v7573 = vunpack.c.l.b16 %v7024
    %v7574 = vunpack.c.h.b16 %v7024
    %v7575 = vunpack.c.l.b16 %v7025
    %v7576 = vunpack.c.h.b16 %v7025
    %v7577 = vunpack.c.l.b16 %v7026
    %v7578 = vunpack.c.h.b16 %v7026
    %v7579 = vunpack.c.l.b16 %v7027
    %v7580 = vunpack.c.h.b16 %v7027
    %v7581 = vunpack.c.l.b16 %v7028
    %v7582 = vunpack.c.h.b16 %v7028
    %v7583 = vunpack.c.l.b16 %v7029
    %v7584 = vunpack.c.h.b16 %v7029
    %v7585 = vunpack.c.l.b16 %v7030
    %v7586 = vunpack.c.h.b16 %v7030
    %v7587 = vunpack.c.l.b16 %v7031
    %v7588 = vunpack.c.h.b16 %v7031
    %v7589 = vunpack.c.l.b16 %v7032
    %v7590 = vunpack.c.h.b16 %v7032
    %v7591 = vunpack.c.l.b16 %v7033
    %v7592 = vunpack.c.h.b16 %v7033
    %v7593 = vunpack.c.l.b16 %v7034
    %v7594 = vunpack.c.h.b16 %v7034
    %v7595 = vunpack.c.l.b16 %v7035
    %v7596 = vunpack.c.h.b16 %v7035
    %v7597 = vunpack.c.l.b16 %v7036
    %v7598 = vunpack.c.h.b16 %v7036
    %v7599 = vunpack.c.l.b16 %v7037
    %v7600 = vunpack.c.h.b16 %v7037
    %v7601 = vunpack.c.l.b16 %v7038
    %v7602 = vunpack.c.h.b16 %v7038
    %v7603 = vunpack.c.l.b16 %v7039
    %v7604 = vunpack.c.h.b16 %v7039
    %v7605 = vunpack.c.l.b16 %v7040
    %v7606 = vunpack.c.h.b16 %v7040
    %v7607 = vunpack.c.l.b16 %v7041
    %v7608 = vunpack.c.h.b16 %v7041
    %v7609 = vunpack.c.l.b16 %v7042
    %v7610 = vunpack.c.h.b16 %v7042
    %v7611 = vunpack.c.l.b16 %v7043
    %v7612 = vunpack.c.h.b16 %v7043
    %v7613 = vunpack.c.l.b16 %v7044
    %v7614 = vunpack.c.h.b16 %v7044
    %v7615 = vunpack.c.l.b16 %v7045
    %v7616 = vunpack.c.h.b16 %v7045
    %v7617 = vunpack.c.l.b16 %v7046
    %v7618 = vunpack.c.h.b16 %v7046
    %v7619 = vunpack.c.l.b16 %v7047
    %v7620 = vunpack.c.h.b16 %v7047
    %v7621 = vunpack.c.l.b16 %v7048
    %v7622 = vunpack.c.h.b16 %v7048
    %v7623 = vunpack.c.l.b16 %v7049
    %v7624 = vunpack.c.h.b16 %v7049
    %v7625 = vunpack.c.l.b16 %v7050
    %v7626 = vunpack.c.h.b16 %v7050
    %v7627 = vunpack.c.l.b16 %v7051
    %v7628 = vunpack.c.h.b16 %v7051
    %v7629 = vunpack.c.l.b16 %v7052
    %v7630 = vunpack.c.h.b16 %v7052
    %v7631 = vunpack.c.l.b16 %v7053
    %v7632 = vunpack.c.h.b16 %v7053
    %v7633 = vunpack.c.l.b16 %v7054
    %v7634 = vunpack.c.h.b16 %v7054
    %v7635 = vunpack.c.l.b16 %v7055
    %v7636 = vunpack.c.h.b16 %v7055
    %v7637 = vunpack.c.l.b16 %v7056
    %v7638 = vunpack.c.h.b16 %v7056
    %v7639 = vunpack.c.l.b16 %v7057
    %v7640 = vunpack.c.h.b16 %v7057
    %v7641 = vunpack.c.l.b16 %v7058
    %v7642 = vunpack.c.h.b16 %v7058
    %v7643 = vunpack.c.l.b16 %v7059
    %v7644 = vunpack.c.h.b16 %v7059
    %v7645 = vunpack.c.l.b16 %v7060
    %v7646 = vunpack.c.h.b16 %v7060
    %v7647 = vunpack.c.l.b16 %v7061
    %v7648 = vunpack.c.h.b16 %v7061
    %v7649 = vunpack.c.l.b16 %v7062
    %v7650 = vunpack.c.h.b16 %v7062
    %v7651 = vunpack.c.l.b16 %v7063
    %v7652 = vunpack.c.h.b16 %v7063
    %v7653 = vunpack.c.l.b16 %v7064
    %v7654 = vunpack.c.h.b16 %v7064
    %v7655 = vunpack.c.l.b16 %v7065
    %v7656 = vunpack.c.h.b16 %v7065
    %v7657 = vunpack.c.l.b16 %v7066
    %v7658 = vunpack.c.h.b16 %v7066
    %v7659 = vunpack.c.l.b16 %v7067
    %v7660 = vunpack.c.h.b16 %v7067
    %v7661 = vunpack.c.l.b16 %v7068
    %v7662 = vunpack.c.h.b16 %v7068
    %v7663 = vunpack.c.l.b16 %v7069
    %v7664 = vunpack.c.h.b16 %v7069
    %v7665 = vunpack.c.l.b16 %v7070
    %v7666 = vunpack.c.h.b16 %v7070
    %v7667 = vunpack.c.l.b16 %v7071
    %v7668 = vunpack.c.h.b16 %v7071
    %v7669 = vunpack.c.l.b16 %v7072
    %v7670 = vunpack.c.h.b16 %v7072
    %v7671 = vunpack.c.l.b16 %v7073
    %v7672 = vunpack.c.h.b16 %v7073
    %v7673 = vunpack.c.l.b16 %v7074
    %v7674 = vunpack.c.h.b16 %v7074
    %v7675 = vunpack.c.l.b16 %v7075
    %v7676 = vunpack.c.h.b16 %v7075
    %v7677 = vunpack.c.l.b16 %v7076
    %v7678 = vunpack.c.h.b16 %v7076
    %v7679 = vunpack.c.l.b16 %v7077
    %v7680 = vunpack.c.h.b16 %v7077
    %v7681 = vunpack.c.l.b16 %v7078
    %v7682 = vunpack.c.h.b16 %v7078
    %v7683 = vunpack.c.l.b16 %v7079
    %v7684 = vunpack.c.h.b16 %v7079
    %v7685 = vunpack.c.l.b16 %v7080
    %v7686 = vunpack.c.h.b16 %v7080
    %v7687 = vunpack.c.l.b16 %v7081
    %v7688 = vunpack.c.h.b16 %v7081
    %v7689 = vunpack.c.l.b16 %v7082
    %v7690 = vunpack.c.h.b16 %v7082
    %v7691 = vunpack.c.l.b16 %v7083
    %v7692 = vunpack.c.h.b16 %v7083
    %v7693 = vunpack.c.l.b16 %v7084
    %v7694 = vunpack.c.h.b16 %v7084
    %v7695 = vunpack.c.l.b16 %v7085
    %v7696 = vunpack.c.h.b16 %v7085
    %v7697 = vunpack.c.l.b16 %v7086
    %v7698 = vunpack.c.h.b16 %v7086
    %v7699 = vunpack.c.l.b16 %v7087
    %v7700 = vunpack.c.h.b16 %v7087
    %v7701 = vunpack.c.l.b16 %v7088
    %v7702 = vunpack.c.h.b16 %v7088
    %v7703 = vunpack.c.l.b16 %v7089
    %v7704 = vunpack.c.h.b16 %v7089
    %v7705 = vunpack.c.l.b16 %v7090
    %v7706 = vunpack.c.h.b16 %v7090
    %v7707 = vunpack.c.l.b16 %v7091
    %v7708 = vunpack.c.h.b16 %v7091
    %v7709 = vunpack.c.l.b16 %v7092
    %v7710 = vunpack.c.h.b16 %v7092
    %v7711 = vunpack.c.l.b16 %v7093
    %v7712 = vunpack.c.h.b16 %v7093
    %v7713 = vunpack.c.l.b16 %v7094
    %v7714 = vunpack.c.h.b16 %v7094
    %v7715 = vunpack.c.l.b16 %v7095
    %v7716 = vunpack.c.h.b16 %v7095
    %v7717 = vunpack.c.l.b16 %v7096
    %v7718 = vunpack.c.h.b16 %v7096
    %v7719 = vunpack.c.l.b16 %v7097
    %v7720 = vunpack.c.h.b16 %v7097
    %v7721 = vunpack.c.l.b16 %v7098
    %v7722 = vunpack.c.h.b16 %v7098
    %v7723 = vunpack.c.l.b16 %v7099
    %v7724 = vunpack.c.h.b16 %v7099
    %v7725 = vunpack.c.l.b16 %v7100
    %v7726 = vunpack.c.h.b16 %v7100
    %v7727 = vunpack.c.l.b16 %v7101
    %v7728 = vunpack.c.h.b16 %v7101
    %v7729 = vunpack.c.l.b16 %v7102
    %v7730 = vunpack.c.h.b16 %v7102
    %v7731 = vunpack.c.l.b16 %v7103
    %v7732 = vunpack.c.h.b16 %v7103
    %v7733 = vunpack.c.l.b16 %v7104
    %v7734 = vunpack.c.h.b16 %v7104
    %v7735 = vunpack.c.l.b16 %v7105
    %v7736 = vunpack.c.h.b16 %v7105
    %v7737 = vunpack.c.l.b16 %v7106
    %v7738 = vunpack.c.h.b16 %v7106
    %v7739 = vunpack.c.l.b16 %v7107
    %v7740 = vunpack.c.h.b16 %v7107
    %v7741 = vunpack.c.l.b16 %v7108
    %v7742 = vunpack.c.h.b16 %v7108
    %v7743 = vunpack.c.l.b16 %v7109
    %v7744 = vunpack.c.h.b16 %v7109
    %v7745 = vunpack.c.l.b16 %v7110
    %v7746 = vunpack.c.h.b16 %v7110
    %v7747 = vunpack.c.l.b16 %v7111
    %v7748 = vunpack.c.h.b16 %v7111
    %v7749 = vunpack.c.l.b16 %v7112
    %v7750 = vunpack.c.h.b16 %v7112
    %v7751 = vunpack.c.l.b16 %v7113
    %v7752 = vunpack.c.h.b16 %v7113
    %v7753 = vunpack.c.l.b16 %v7114
    %v7754 = vunpack.c.h.b16 %v7114
    %v7755 = vunpack.c.l.b16 %v7115
    %v7756 = vunpack.c.h.b16 %v7115
    %v7757 = vunpack.c.l.b16 %v7116
    %v7758 = vunpack.c.h.b16 %v7116
    %v7759 = vunpack.c.l.b16 %v7117
    %v7760 = vunpack.c.h.b16 %v7117
    %v7761 = vunpack.c.l.b16 %v7118
    %v7762 = vunpack.c.h.b16 %v7118
    %v7763 = vunpack.c.l.b16 %v7119
    %v7764 = vunpack.c.h.b16 %v7119
    %v7765 = vunpack.c.l.b16 %v7120
    %v7766 = vunpack.c.h.b16 %v7120
    %v7767 = vunpack.c.l.b16 %v7121
    %v7768 = vunpack.c.h.b16 %v7121
    %v7769 = vunpack.c.l.b16 %v7122
    %v7770 = vunpack.c.h.b16 %v7122
    %v7771 = vunpack.c.l.b16 %v7123
    %v7772 = vunpack.c.h.b16 %v7123
    %v7773 = vunpack.c.l.b16 %v7124
    %v7774 = vunpack.c.h.b16 %v7124
    %v7775 = vunpack.c.l.b16 %v7125
    %v7776 = vunpack.c.h.b16 %v7125
    %v7777 = vunpack.c.l.b16 %v7126
    %v7778 = vunpack.c.h.b16 %v7126
    %v7779 = vunpack.c.l.b16 %v7127
    %v7780 = vunpack.c.h.b16 %v7127
    %v7781 = vunpack.c.l.b16 %v7128
    %v7782 = vunpack.c.h.b16 %v7128
    %v7783 = vunpack.c.l.b16 %v7129
    %v7784 = vunpack.c.h.b16 %v7129
    %v7785 = vunpack.c.l.b16 %v7130
    %v7786 = vunpack.c.h.b16 %v7130
    %v7787 = vunpack.c.l.b16 %v7131
    %v7788 = vunpack.c.h.b16 %v7131
    %v7789 = vunpack.c.l.b16 %v7132
    %v7790 = vunpack.c.h.b16 %v7132
    %v7791 = vunpack.c.l.b16 %v7133
    %v7792 = vunpack.c.h.b16 %v7133
    %v7793 = vunpack.c.l.b16 %v7134
    %v7794 = vunpack.c.h.b16 %v7134
    %v7795 = vunpack.c.l.b16 %v7135
    %v7796 = vunpack.c.h.b16 %v7135
    %v7797 = vunpack.c.l.b16 %v7136
    %v7798 = vunpack.c.h.b16 %v7136
    %v7799 = vunpack.c.l.b16 %v7137
    %v7800 = vunpack.c.h.b16 %v7137
    %v7801 = vunpack.c.l.b16 %v7138
    %v7802 = vunpack.c.h.b16 %v7138
    %v7803 = vunpack.c.l.b16 %v7139
    %v7804 = vunpack.c.h.b16 %v7139
    %v7805 = vunpack.c.l.b16 %v7140
    %v7806 = vunpack.c.h.b16 %v7140
    %v7807 = vunpack.c.l.b16 %v7141
    %v7808 = vunpack.c.h.b16 %v7141
    %v7809 = vunpack.c.l.b16 %v7142
    %v7810 = vunpack.c.h.b16 %v7142
    %v7811 = vunpack.c.l.b16 %v7143
    %v7812 = vunpack.c.h.b16 %v7143
    %v7813 = vunpack.c.l.b16 %v7144
    %v7814 = vunpack.c.h.b16 %v7144
    %v7815 = vunpack.c.l.b16 %v7145
    %v7816 = vunpack.c.h.b16 %v7145
    %v7817 = vunpack.c.l.b16 %v7146
    %v7818 = vunpack.c.h.b16 %v7146
    %v7819 = vunpack.c.l.b16 %v7147
    %v7820 = vunpack.c.h.b16 %v7147
    %v7821 = vunpack.c.l.b16 %v7148
    %v7822 = vunpack.c.h.b16 %v7148
    %v7823 = vunpack.c.l.b16 %v7149
    %v7824 = vunpack.c.h.b16 %v7149
    %v7825 = vunpack.c.l.b16 %v7150
    %v7826 = vunpack.c.h.b16 %v7150
    %v7827 = vunpack.c.l.b16 %v7151
    %v7828 = vunpack.c.h.b16 %v7151
    %v7829 = vunpack.c.l.b16 %v7152
    %v7830 = vunpack.c.h.b16 %v7152
    %v7831 = vunpack.c.l.b16 %v7153
    %v7832 = vunpack.c.h.b16 %v7153
    %v7833 = vunpack.c.l.b16 %v7154
    %v7834 = vunpack.c.h.b16 %v7154
    %v7835 = vunpack.c.l.b16 %v7155
    %v7836 = vunpack.c.h.b16 %v7155
    %v7837 = vunpack.c.l.b16 %v7156
    %v7838 = vunpack.c.h.b16 %v7156
    %v7839 = vunpack.c.l.b16 %v7157
    %v7840 = vunpack.c.h.b16 %v7157
    %v7841 = vunpack.c.l.b16 %v7158
    %v7842 = vunpack.c.h.b16 %v7158
    %v7843 = vunpack.c.l.b16 %v7159
    %v7844 = vunpack.c.h.b16 %v7159
    %v7845 = vunpack.c.l.b16 %v7160
    %v7846 = vunpack.c.h.b16 %v7160
    %v7847 = vunpack.c.l.b16 %v7161
    %v7848 = vunpack.c.h.b16 %v7161
    %v7849 = vunpack.c.l.b16 %v7162
    %v7850 = vunpack.c.h.b16 %v7162
    %v7851 = vunpack.c.l.b16 %v7163
    %v7852 = vunpack.c.h.b16 %v7163
    %v7853 = vunpack.c.l.b16 %v7164
    %v7854 = vunpack.c.h.b16 %v7164
    %v7855 = vunpack.c.l.b16 %v7165
    %v7856 = vunpack.c.h.b16 %v7165
    %v7857 = vunpack.c.l.b16 %v7166
    %v7858 = vunpack.c.h.b16 %v7166
    %v7859 = vunpack.c.l.b16 %v7167
    %v7860 = vunpack.c.h.b16 %v7167
    %v7861 = vunpack.c.l.b16 %v7168
    %v7862 = vunpack.c.h.b16 %v7168
    %v7863 = vunpack.c.l.b16 %v7169
    %v7864 = vunpack.c.h.b16 %v7169
    %v7865 = vunpack.c.l.b16 %v7170
    %v7866 = vunpack.c.h.b16 %v7170
    %v7867 = vunpack.c.l.b16 %v7171
    %v7868 = vunpack.c.h.b16 %v7171
    %v7869 = vunpack.c.l.b16 %v7172
    %v7870 = vunpack.c.h.b16 %v7172
    %v7871 = vunpack.c.l.b16 %v7173
    %v7872 = vunpack.c.h.b16 %v7173
    %v7873 = vunpack.c.l.b16 %v7174
    %v7874 = vunpack.c.h.b16 %v7174
    %v7875 = vunpack.c.l.b16 %v7175
    %v7876 = vunpack.c.h.b16 %v7175
    %v7877 = vunpack.c.l.b16 %v7176
    %v7878 = vunpack.c.h.b16 %v7176
    %v7879 = vunpack.c.l.b16 %v7177
    %v7880 = vunpack.c.h.b16 %v7177
    %v7881 = vunpack.c.l.b16 %v7178
    %v7882 = vunpack.c.h.b16 %v7178
    %v7883 = vunpack.c.l.b16 %v7179
    %v7884 = vunpack.c.h.b16 %v7179
    %v7885 = vunpack.c.l.b16 %v7180
    %v7886 = vunpack.c.h.b16 %v7180
    %v7887 = vunpack.c.l.b16 %v7181
    %v7888 = vunpack.c.h.b16 %v7181
    %v7889 = vunpack.c.l.b16 %v7182
    %v7890 = vunpack.c.h.b16 %v7182
    %v7891 = vunpack.c.l.b16 %v7183
    %v7892 = vunpack.c.h.b16 %v7183
    %v7893 = vunpack.c.l.b16 %v7184
    %v7894 = vunpack.c.h.b16 %v7184
    %v7895 = vunpack.c.l.b16 %v7185
    %v7896 = vunpack.c.h.b16 %v7185
    %v7897 = vunpack.c.l.b16 %v7186
    %v7898 = vunpack.c.h.b16 %v7186
    %v7899 = vunpack.c.l.b16 %v7187
    %v7900 = vunpack.c.h.b16 %v7187
    %v7901 = vunpack.c.l.b16 %v7188
    %v7902 = vunpack.c.h.b16 %v7188
    %v7903 = vunpack.c.l.b16 %v7189
    %v7904 = vunpack.c.h.b16 %v7189
    %v7905 = vunpack.c.l.b16 %v7190
    %v7906 = vunpack.c.h.b16 %v7190
    %v7907 = vunpack.c.l.b16 %v7191
    %v7908 = vunpack.c.h.b16 %v7191
    %v7909 = vunpack.c.l.b16 %v7192
    %v7910 = vunpack.c.h.b16 %v7192
    %v7911 = vunpack.c.l.b16 %v7193
    %v7912 = vunpack.c.h.b16 %v7193
    %v7913 = vunpack.c.l.b16 %v7194
    %v7914 = vunpack.c.h.b16 %v7194
    %v7915 = vunpack.c.l.b16 %v7195
    %v7916 = vunpack.c.h.b16 %v7195
    %v7917 = vunpack.c.l.b16 %v7196
    %v7918 = vunpack.c.h.b16 %v7196
    %v7919 = vunpack.c.l.b16 %v7197
    %v7920 = vunpack.c.h.b16 %v7197
    %v7921 = vunpack.c.l.b16 %v7198
    %v7922 = vunpack.c.h.b16 %v7198
    %v7923 = vunpack.c.l.b16 %v7199
    %v7924 = vunpack.c.h.b16 %v7199
    %v7925 = vunpack.c.l.b16 %v7200
    %v7926 = vunpack.c.h.b16 %v7200
    %v7927 = vunpack.c.l.b16 %v7201
    %v7928 = vunpack.c.h.b16 %v7201
    %v7929 = vunpack.c.l.b16 %v7202
    %v7930 = vunpack.c.h.b16 %v7202
    %v7931 = vunpack.c.l.b16 %v7203
    %v7932 = vunpack.c.h.b16 %v7203
    %v7933 = vunpack.c.l.b16 %v7204
    %v7934 = vunpack.c.h.b16 %v7204
    %v7935 = vunpack.c.l.b16 %v7205
    %v7936 = vunpack.c.h.b16 %v7205
    %v7937 = vunpack.c.l.b16 %v7206
    %v7938 = vunpack.c.h.b16 %v7206
    %v7939 = vunpack.c.l.b16 %v7207
    %v7940 = vunpack.c.h.b16 %v7207
    %v7941 = vunpack.c.l.b16 %v7208
    %v7942 = vunpack.c.h.b16 %v7208
    %v7943 = vunpack.c.l.b16 %v7209
    %v7944 = vunpack.c.h.b16 %v7209
    %v7945 = vunpack.c.l.b16 %v7210
    %v7946 = vunpack.c.h.b16 %v7210
    %v7947 = vunpack.c.l.b16 %v7211
    %v7948 = vunpack.c.h.b16 %v7211
    %v7949 = vunpack.c.l.b16 %v7212
    %v7950 = vunpack.c.h.b16 %v7212
    %v7951 = vunpack.c.l.b16 %v7213
    %v7952 = vunpack.c.h.b16 %v7213
    %v7953 = vunpack.c.l.b16 %v7214
    %v7954 = vunpack.c.h.b16 %v7214
    %v7955 = vunpack.c.l.b16 %v7215
    %v7956 = vunpack.c.h.b16 %v7215
    %v7957 = vunpack.c.l.b16 %v7216
    %v7958 = vunpack.c.h.b16 %v7216
    %v7959 = vunpack.c.l.b16 %v7217
    %v7960 = vunpack.c.h.b16 %v7217
    %v7961 = vunpack.c.l.b16 %v7218
    %v7962 = vunpack.c.h.b16 %v7218
    %v7963 = vunpack.c.l.b16 %v7219
    %v7964 = vunpack.c.h.b16 %v7219
    %v7965 = vunpack.c.l.b16 %v7220
    %v7966 = vunpack.c.h.b16 %v7220
    %v7967 = vunpack.c.l.b16 %v7221
    %v7968 = vunpack.c.h.b16 %v7221
    %v7969 = vunpack.c.l.b16 %v7222
    %v7970 = vunpack.c.h.b16 %v7222
    %v7971 = vunpack.c.l.b16 %v7223
    %v7972 = vunpack.c.h.b16 %v7223
    %v7973 = vunpack.c.l.b16 %v7224
    %v7974 = vunpack.c.h.b16 %v7224
    %v7975 = vunpack.c.l.b16 %v7225
    %v7976 = vunpack.c.h.b16 %v7225
    %v7977 = vunpack.c.l.b16 %v7226
    %v7978 = vunpack.c.h.b16 %v7226
    %v7979 = vunpack.c.l.b16 %v7227
    %v7980 = vunpack.c.h.b16 %v7227
    %v7981 = vunpack.c.l.b16 %v7228
    %v7982 = vunpack.c.h.b16 %v7228
    %v7983 = vunpack.c.l.b16 %v7229
    %v7984 = vunpack.c.h.b16 %v7229
    %v7985 = vunpack.c.l.b16 %v7230
    %v7986 = vunpack.c.h.b16 %v7230
    %v7987 = vunpack.c.l.b16 %v7231
    %v7988 = vunpack.c.h.b16 %v7231
    %v7989 = vunpack.c.l.b16 %v7232
    %v7990 = vunpack.c.h.b16 %v7232
    %v7991 = vunpack.c.l.b16 %v7233
    %v7992 = vunpack.c.h.b16 %v7233
    %v7993 = vunpack.c.l.b16 %v7234
    %v7994 = vunpack.c.h.b16 %v7234
    %v7995 = vunpack.c.l.b16 %v7235
    %v7996 = vunpack.c.h.b16 %v7235
    %v7997 = vunpack.c.l.b16 %v7236
    %v7998 = vunpack.c.h.b16 %v7236
    %v7999 = vunpack.c.l.b16 %v7237
    %v8000 = vunpack.c.h.b16 %v7237
    %v8001 = vunpack.c.l.b16 %v7238
    %v8002 = vunpack.c.h.b16 %v7238
    %v8003 = vunpack.c.l.b16 %v7239
    %v8004 = vunpack.c.h.b16 %v7239
    %v8005 = vunpack.c.l.b16 %v7240
    %v8006 = vunpack.c.h.b16 %v7240
    %v8007 = vunpack.c.l.b16 %v7241
    %v8008 = vunpack.c.h.b16 %v7241
    %v8009 = vunpack.c.l.b16 %v7242
    %v8010 = vunpack.c.h.b16 %v7242
    %v8011 = vunpack.c.l.b16 %v7243
    %v8012 = vunpack.c.h.b16 %v7243
    %v8013 = vunpack.c.l.b16 %v7244
    %v8014 = vunpack.c.h.b16 %v7244
    %v8015 = vunpack.c.l.b16 %v7245
    %v8016 = vunpack.c.h.b16 %v7245
    %v8017 = vunpack.c.l.b16 %v7246
    %v8018 = vunpack.c.h.b16 %v7246
    %v8019 = vunpack.c.l.b16 %v7247
    %v8020 = vunpack.c.h.b16 %v7247
    %v8021 = vunpack.c.l.b16 %v7248
    %v8022 = vunpack.c.h.b16 %v7248
    %v8023 = vunpack.c.l.b16 %v7249
    %v8024 = vunpack.c.h.b16 %v7249
    %v8025 = vunpack.c.l.b16 %v7250
    %v8026 = vunpack.c.h.b16 %v7250
    %v8027 = vunpack.c.l.b16 %v7251
    %v8028 = vunpack.c.h.b16 %v7251
    %v8029 = vunpack.c.l.b16 %v7252
    %v8030 = vunpack.c.h.b16 %v7252
    %v8031 = vunpack.c.l.b16 %v7253
    %v8032 = vunpack.c.h.b16 %v7253
    %v8033 = vunpack.c.l.b16 %v7254
    %v8034 = vunpack.c.h.b16 %v7254
    %v8035 = vunpack.c.l.b16 %v7255
    %v8036 = vunpack.c.h.b16 %v7255
    %v8037 = vunpack.c.l.b16 %v7256
    %v8038 = vunpack.c.h.b16 %v7256
    %v8039 = vunpack.c.l.b16 %v7257
    %v8040 = vunpack.c.h.b16 %v7257
    %v8041 = vunpack.c.l.b16 %v7258
    %v8042 = vunpack.c.h.b16 %v7258
    %v8043 = vunpack.c.l.b16 %v7259
    %v8044 = vunpack.c.h.b16 %v7259
    %v8045 = vunpack.c.l.b16 %v7260
    %v8046 = vunpack.c.h.b16 %v7260
    %v8047 = vpack.c.b16 %v7539, %v7535
    %v8048 = vpack.c.b16 %v7540, %v7536
    %v8049 = vpack.c.b16 %v7541, %v7537
    %v8050 = vpack.c.b16 %v7542, %v7538
    %v8051 = vpack.c.b16 %v7547, %v7543
    %v8052 = vpack.c.b16 %v7548, %v7544
    %v8053 = vpack.c.b16 %v7549, %v7545
    %v8054 = vpack.c.b16 %v7550, %v7546
    %v8055 = vpack.c.b16 %v7555, %v7551
    %v8056 = vpack.c.b16 %v7556, %v7552
    %v8057 = vpack.c.b16 %v7557, %v7553
    %v8058 = vpack.c.b16 %v7558, %v7554
    %v8059 = vpack.c.b16 %v7563, %v7559
    %v8060 = vpack.c.b16 %v7564, %v7560
    %v8061 = vpack.c.b16 %v7565, %v7561
    %v8062 = vpack.c.b16 %v7566, %v7562
    %v8063 = vpack.c.b16 %v7571, %v7567
    %v8064 = vpack.c.b16 %v7572, %v7568
    %v8065 = vpack.c.b16 %v7573, %v7569
    %v8066 = vpack.c.b16 %v7574, %v7570
    %v8067 = vpack.c.b16 %v7579, %v7575
    %v8068 = vpack.c.b16 %v7580, %v7576
    %v8069 = vpack.c.b16 %v7581, %v7577
    %v8070 = vpack.c.b16 %v7582, %v7578
    %v8071 = vpack.c.b16 %v7587, %v7583
    %v8072 = vpack.c.b16 %v7588, %v7584
    %v8073 = vpack.c.b16 %v7589, %v7585
    %v8074 = vpack.c.b16 %v7590, %v7586
    %v8075 = vpack.c.b16 %v7595, %v7591
    %v8076 = vpack.c.b16 %v7596, %v7592
    %v8077 = vpack.c.b16 %v7597, %v7593
    %v8078 = vpack.c.b16 %v7598, %v7594
    %v8079 = vpack.c.b16 %v7603, %v7599
    %v8080 = vpack.c.b16 %v7604, %v7600
    %v8081 = vpack.c.b16 %v7605, %v7601
    %v8082 = vpack.c.b16 %v7606, %v7602
    %v8083 = vpack.c.b16 %v7611, %v7607
    %v8084 = vpack.c.b16 %v7612, %v7608
    %v8085 = vpack.c.b16 %v7613, %v7609
    %v8086 = vpack.c.b16 %v7614, %v7610
    %v8087 = vpack.c.b16 %v7619, %v7615
    %v8088 = vpack.c.b16 %v7620, %v7616
    %v8089 = vpack.c.b16 %v7621, %v7617
    %v8090 = vpack.c.b16 %v7622, %v7618
    %v8091 = vpack.c.b16 %v7627, %v7623
    %v8092 = vpack.c.b16 %v7628, %v7624
    %v8093 = vpack.c.b16 %v7629, %v7625
    %v8094 = vpack.c.b16 %v7630, %v7626
    %v8095 = vpack.c.b16 %v7635, %v7631
    %v8096 = vpack.c.b16 %v7636, %v7632
    %v8097 = vpack.c.b16 %v7637, %v7633
    %v8098 = vpack.c.b16 %v7638, %v7634
    %v8099 = vpack.c.b16 %v7643, %v7639
    %v8100 = vpack.c.b16 %v7644, %v7640
    %v8101 = vpack.c.b16 %v7645, %v7641
    %v8102 = vpack.c.b16 %v7646, %v7642
    %v8103 = vpack.c.b16 %v7651, %v7647
    %v8104 = vpack.c.b16 %v7652, %v7648
    %v8105 = vpack.c.b16 %v7653, %v7649
    %v8106 = vpack.c.b16 %v7654, %v7650
    %v8107 = vpack.c.b16 %v7659, %v7655
    %v8108 = vpack.c.b16 %v7660, %v7656
    %v8109 = vpack.c.b16 %v7661, %v7657
    %v8110 = vpack.c.b16 %v7662, %v7658
    %v8111 = vpack.c.b16 %v7667, %v7663
    %v8112 = vpack.c.b16 %v7668, %v7664
    %v8113 = vpack.c.b16 %v7669, %v7665
    %v8114 = vpack.c.b16 %v7670, %v7666
    %v8115 = vpack.c.b16 %v7675, %v7671
    %v8116 = vpack.c.b16 %v7676, %v7672
    %v8117 = vpack.c.b16 %v7677, %v7673
    %v8118 = vpack.c.b16 %v7678, %v7674
    %v8119 = vpack.c.b16 %v7683, %v7679
    %v8120 = vpack.c.b16 %v7684, %v7680
    %v8121 = vpack.c.b16 %v7685, %v7681
    %v8122 = vpack.c.b16 %v7686, %v7682
    %v8123 = vpack.c.b16 %v7691, %v7687
    %v8124 = vpack.c.b16 %v7692, %v7688
    %v8125 = vpack.c.b16 %v7693, %v7689
    %v8126 = vpack.c.b16 %v7694, %v7690
    %v8127 = vpack.c.b16 %v7699, %v7695
    %v8128 = vpack.c.b16 %v7700, %v7696
    %v8129 = vpack.c.b16 %v7701, %v7697
    %v8130 = vpack.c.b16 %v7702, %v7698
    %v8131 = vpack.c.b16 %v7707, %v7703
    %v8132 = vpack.c.b16 %v7708, %v7704
    %v8133 = vpack.c.b16 %v7709, %v7705
    %v8134 = vpack.c.b16 %v7710, %v7706
    %v8135 = vpack.c.b16 %v7715, %v7711
    %v8136 = vpack.c.b16 %v7716, %v7712
    %v8137 = vpack.c.b16 %v7717, %v7713
    %v8138 = vpack.c.b16 %v7718, %v7714
    %v8139 = vpack.c.b16 %v7723, %v7719
    %v8140 = vpack.c.b16 %v7724, %v7720
    %v8141 = vpack.c.b16 %v7725, %v7721
    %v8142 = vpack.c.b16 %v7726, %v7722
    %v8143 = vpack.c.b16 %v7731, %v7727
    %v8144 = vpack.c.b16 %v7732, %v7728
    %v8145 = vpack.c.b16 %v7733, %v7729
    %v8146 = vpack.c.b16 %v7734, %v7730
    %v8147 = vpack.c.b16 %v7739, %v7735
    %v8148 = vpack.c.b16 %v7740, %v7736
    %v8149 = vpack.c.b16 %v7741, %v7737
    %v8150 = vpack.c.b16 %v7742, %v7738
    %v8151 = vpack.c.b16 %v7747, %v7743
    %v8152 = vpack.c.b16 %v7748, %v7744
    %v8153 = vpack.c.b16 %v7749, %v7745
    %v8154 = vpack.c.b16 %v7750, %v7746
    %v8155 = vpack.c.b16 %v7755, %v7751
    %v8156 = vpack.c.b16 %v7756, %v7752
    %v8157 = vpack.c.b16 %v7757, %v7753
    %v8158 = vpack.c.b16 %v7758, %v7754
    %v8159 = vpack.c.b16 %v7763, %v7759
    %v8160 = vpack.c.b16 %v7764, %v7760
    %v8161 = vpack.c.b16 %v7765, %v7761
    %v8162 = vpack.c.b16 %v7766, %v7762
    %v8163 = vpack.c.b16 %v7771, %v7767
    %v8164 = vpack.c.b16 %v7772, %v7768
    %v8165 = vpack.c.b16 %v7773, %v7769
    %v8166 = vpack.c.b16 %v7774, %v7770
    %v8167 = vpack.c.b16 %v7779, %v7775
    %v8168 = vpack.c.b16 %v7780, %v7776
    %v8169 = vpack.c.b16 %v7781, %v7777
    %v8170 = vpack.c.b16 %v7782, %v7778
    %v8171 = vpack.c.b16 %v7787, %v7783
    %v8172 = vpack.c.b16 %v7788, %v7784
    %v8173 = vpack.c.b16 %v7789, %v7785
    %v8174 = vpack.c.b16 %v7790, %v7786
    %v8175 = vpack.c.b16 %v7795, %v7791
    %v8176 = vpack.c.b16 %v7796, %v7792
    %v8177 = vpack.c.b16 %v7797, %v7793
    %v8178 = vpack.c.b16 %v7798, %v7794
    %v8179 = vpack.c.b16 %v7803, %v7799
    %v8180 = vpack.c.b16 %v7804, %v7800
    %v8181 = vpack.c.b16 %v7805, %v7801
    %v8182 = vpack.c.b16 %v7806, %v7802
    %v8183 = vpack.c.b16 %v7811, %v7807
    %v8184 = vpack.c.b16 %v7812, %v7808
    %v8185 = vpack.c.b16 %v7813, %v7809
    %v8186 = vpack.c.b16 %v7814, %v7810
    %v8187 = vpack.c.b16 %v7819, %v7815
    %v8188 = vpack.c.b16 %v7820, %v7816
    %v8189 = vpack.c.b16 %v7821, %v7817
    %v8190 = vpack.c.b16 %v7822, %v7818
    %v8191 = vpack.c.b16 %v7827, %v7823
    %v8192 = vpack.c.b16 %v7828, %v7824
    %v8193 = vpack.c.b16 %v7829, %v7825
    %v8194 = vpack.c.b16 %v7830, %v7826
    %v8195 = vpack.c.b16 %v7835, %v7831
    %v8196 = vpack.c.b16 %v7836, %v7832
    %v8197 = vpack.c.b16 %v7837, %v7833
    %v8198 = vpack.c.b16 %v7838, %v7834
    %v8199 = vpack.c.b16 %v7843, %v7839
    %v8200 = vpack.c.b16 %v7844, %v7840
    %v8201 = vpack.c.b16 %v7845, %v7841
    %v8202 = vpack.c.b16 %v7846, %v7842
    %v8203 = vpack.c.b16 %v7851, %v7847
    %v8204 = vpack.c.b16 %v7852, %v7848
    %v8205 = vpack.c.b16 %v7853, %v7849
    %v8206 = vpack.c.b16 %v7854, %v7850
    %v8207 = vpack.c.b16 %v7859, %v7855
    %v8208 = vpack.c.b16 %v7860, %v7856
    %v8209 = vpack.c.b16 %v7861, %v7857
    %v8210 = vpack.c.b16 %v7862, %v7858
    %v8211 = vpack.c.b16 %v7867, %v7863
    %v8212 = vpack.c.b16 %v7868, %v7864
    %v8213 = vpack.c.b16 %v7869, %v7865
    %v8214 = vpack.c.b16 %v7870, %v7866
    %v8215 = vpack.c.b16 %v7875, %v7871
    %v8216 = vpack.c.b16 %v7876, %v7872
    %v8217 = vpack.c.b16 %v7877, %v7873
    %v8218 = vpack.c.b16 %v7878, %v7874
    %v8219 = vpack.c.b16 %v7883, %v7879
    %v8220 = vpack.c.b16 %v7884, %v7880
    %v8221 = vpack.c.b16 %v7885, %v7881
    %v8222 = vpack.c.b16 %v7886, %v7882
    %v8223 = vpack.c.b16 %v7891, %v7887
    %v8224 = vpack.c.b16 %v7892, %v7888
    %v8225 = vpack.c.b16 %v7893, %v7889
    %v8226 = vpack.c.b16 %v7894, %v7890
    %v8227 = vpack.c.b16 %v7899, %v7895
    %v8228 = vpack.c.b16 %v7900, %v7896
    %v8229 = vpack.c.b16 %v7901, %v7897
    %v8230 = vpack.c.b16 %v7902, %v7898
    %v8231 = vpack.c.b16 %v7907, %v7903
    %v8232 = vpack.c.b16 %v7908, %v7904
    %v8233 = vpack.c.b16 %v7909, %v7905
    %v8234 = vpack.c.b16 %v7910, %v7906
    %v8235 = vpack.c.b16 %v7915, %v7911
    %v8236 = vpack.c.b16 %v7916, %v7912
    %v8237 = vpack.c.b16 %v7917, %v7913
    %v8238 = vpack.c.b16 %v7918, %v7914
    %v8239 = vpack.c.b16 %v7923, %v7919
    %v8240 = vpack.c.b16 %v7924, %v7920
    %v8241 = vpack.c.b16 %v7925, %v7921
    %v8242 = vpack.c.b16 %v7926, %v7922
    %v8243 = vpack.c.b16 %v7931, %v7927
    %v8244 = vpack.c.b16 %v7932, %v7928
    %v8245 = vpack.c.b16 %v7933, %v7929
    %v8246 = vpack.c.b16 %v7934, %v7930
    %v8247 = vpack.c.b16 %v7939, %v7935
    %v8248 = vpack.c.b16 %v7940, %v7936
    %v8249 = vpack.c.b16 %v7941, %v7937
    %v8250 = vpack.c.b16 %v7942, %v7938
    %v8251 = vpack.c.b16 %v7947, %v7943
    %v8252 = vpack.c.b16 %v7948, %v7944
    %v8253 = vpack.c.b16 %v7949, %v7945
    %v8254 = vpack.c.b16 %v7950, %v7946
    %v8255 = vpack.c.b16 %v7955, %v7951
    %v8256 = vpack.c.b16 %v7956, %v7952
    %v8257 = vpack.c.b16 %v7957, %v7953
    %v8258 = vpack.c.b16 %v7958, %v7954
    %v8259 = vpack.c.b16 %v7963, %v7959
    %v8260 = vpack.c.b16 %v7964, %v7960
    %v8261 = vpack.c.b16 %v7965, %v7961
    %v8262 = vpack.c.b16 %v7966, %v7962
    %v8263 = vpack.c.b16 %v7971, %v7967
    %v8264 = vpack.c.b16 %v7972, %v7968
    %v8265 = vpack.c.b16 %v7973, %v7969
    %v8266 = vpack.c.b16 %v7974, %v7970
    %v8267 = vpack.c.b16 %v7979, %v7975
    %v8268 = vpack.c.b16 %v7980, %v7976
    %v8269 = vpack.c.b16 %v7981, %v7977
    %v8270 = vpack.c.b16 %v7982, %v7978
    %v8271 = vpack.c.b16 %v7987, %v7983
    %v8272 = vpack.c.b16 %v7988, %v7984
    %v8273 = vpack.c.b16 %v7989, %v7985
    %v8274 = vpack.c.b16 %v7990, %v7986
    %v8275 = vpack.c.b16 %v7995, %v7991
    %v8276 = vpack.c.b16 %v7996, %v7992
    %v8277 = vpack.c.b16 %v7997, %v7993
    %v8278 = vpack.c.b16 %v7998, %v7994
    %v8279 = vpack.c.b16 %v8003, %v7999
    %v8280 = vpack.c.b16 %v8004, %v8000
    %v8281 = vpack.c.b16 %v8005, %v8001
    %v8282 = vpack.c.b16 %v8006, %v8002
    %v8283 = vpack.c.b16 %v8011, %v8007
    %v8284 = vpack.c.b16 %v8012, %v8008
    %v8285 = vpack.c.b16 %v8013, %v8009
    %v8286 = vpack.c.b16 %v8014, %v8010
    %v8287 = vpack.c.b16 %v8019, %v8015
    %v8288 = vpack.c.b16 %v8020, %v8016
    %v8289 = vpack.c.b16 %v8021, %v8017
    %v8290 = vpack.c.b16 %v8022, %v8018
    %v8291 = vpack.c.b16 %v8027, %v8023
    %v8292 = vpack.c.b16 %v8028, %v8024
    %v8293 = vpack.c.b16 %v8029, %v8025
    %v8294 = vpack.c.b16 %v8030, %v8026
    %v8295 = vpack.c.b16 %v8035, %v8031
    %v8296 = vpack.c.b16 %v8036, %v8032
    %v8297 = vpack.c.b16 %v8037, %v8033
    %v8298 = vpack.c.b16 %v8038, %v8034
    %v8299 = vpack.c.b16 %v8043, %v8039
    %v8300 = vpack.c.b16 %v8044, %v8040
    %v8301 = vpack.c.b16 %v8045, %v8041
    %v8302 = vpack.c.b16 %v8046, %v8042
    %8559 = vmatpush.bf16.msra.mxu0 %v8075
    %8560 = vmatpush.bf16.msra.mxu0 %v8071
    %8561 = vmatpush.bf16.msra.mxu0 %v8067
    %8562 = vmatpush.bf16.msra.mxu0 %v8063
    %8563 = vmatpush.bf16.msra.mxu0 %v8059
    %8564 = vmatpush.bf16.msra.mxu0 %v8055
    %8565 = vmatpush.bf16.msra.mxu0 %v8051
    %8566 = vmatpush.bf16.msra.mxu0 %v8047
    %8567 = vmatmul.bf16.gmra.mxu0 %v7262
    %v8568 = vpop.f32.mrf.mxu0
    %v8569 = vadd.f32 %v7271, %v8568
    %v8570 = vpop.f32.mrf.mxu0
    %8571 = vdwg.mxu0
    %8572 = vmatpush.bf16.msra.mxu0 %v8107
    %8573 = vmatpush.bf16.msra.mxu0 %v8103
    %8574 = vmatpush.bf16.msra.mxu0 %v8099
    %8575 = vmatpush.bf16.msra.mxu0 %v8095
    %8576 = vmatpush.bf16.msra.mxu0 %v8091
    %8577 = vmatpush.bf16.msra.mxu0 %v8087
    %8578 = vmatpush.bf16.msra.mxu0 %v8083
    %8579 = vmatpush.bf16.msra.mxu0 %v8079
    %8580 = vmatmul.bf16.gmra.mxu0 %v7263
    %v8581 = vpop.f32.mrf.mxu0
    %v8582 = vadd.f32 %v8569, %v8581
    %v8583 = vpop.f32.mrf.mxu0
    %8584 = vdwg.mxu0
    %8585 = vmatpush.bf16.msra.mxu0 %v8139
    %8586 = vmatpush.bf16.msra.mxu0 %v8135
    %8587 = vmatpush.bf16.msra.mxu0 %v8131
    %8588 = vmatpush.bf16.msra.mxu0 %v8127
    %8589 = vmatpush.bf16.msra.mxu0 %v8123
    %8590 = vmatpush.bf16.msra.mxu0 %v8119
    %8591 = vmatpush.bf16.msra.mxu0 %v8115
    %8592 = vmatpush.bf16.msra.mxu0 %v8111
    %8593 = vmatmul.bf16.gmra.mxu0 %v7264
    %v8594 = vpop.f32.mrf.mxu0
    %v8595 = vadd.f32 %v8582, %v8594
    %v8596 = vpop.f32.mrf.mxu0
    %8597 = vdwg.mxu0
    %8598 = vmatpush.bf16.msra.mxu0 %v8171
    %8599 = vmatpush.bf16.msra.mxu0 %v8167
    %8600 = vmatpush.bf16.msra.mxu0 %v8163
    %8601 = vmatpush.bf16.msra.mxu0 %v8159
    %8602 = vmatpush.bf16.msra.mxu0 %v8155
    %8603 = vmatpush.bf16.msra.mxu0 %v8151
    %8604 = vmatpush.bf16.msra.mxu0 %v8147
    %8605 = vmatpush.bf16.msra.mxu0 %v8143
    %8606 = vmatmul.bf16.gmra.mxu0 %v7265
    %v8607 = vpop.f32.mrf.mxu0
    %v8608 = vadd.f32 %v8595, %v8607
    %v8609 = vpop.f32.mrf.mxu0
    %8610 = vdwg.mxu0
    %8611 = vmatpush.bf16.msra.mxu0 %v8203
    %8612 = vmatpush.bf16.msra.mxu0 %v8199
    %8613 = vmatpush.bf16.msra.mxu0 %v8195
    %8614 = vmatpush.bf16.msra.mxu0 %v8191
    %8615 = vmatpush.bf16.msra.mxu0 %v8187
    %8616 = vmatpush.bf16.msra.mxu0 %v8183
    %8617 = vmatpush.bf16.msra.mxu0 %v8179
    %8618 = vmatpush.bf16.msra.mxu0 %v8175
    %8619 = vmatmul.bf16.gmra.mxu0 %v7266
    %v8620 = vpop.f32.mrf.mxu0
    %v8621 = vadd.f32 %v8608, %v8620
    %v8622 = vpop.f32.mrf.mxu0
    %8623 = vdwg.mxu0
    %8624 = vmatpush.bf16.msra.mxu0 %v8235
    %8625 = vmatpush.bf16.msra.mxu0 %v8231
    %8626 = vmatpush.bf16.msra.mxu0 %v8227
    %8627 = vmatpush.bf16.msra.mxu0 %v8223
    %8628 = vmatpush.bf16.msra.mxu0 %v8219
    %8629 = vmatpush.bf16.msra.mxu0 %v8215
    %8630 = vmatpush.bf16.msra.mxu0 %v8211
    %8631 = vmatpush.bf16.msra.mxu0 %v8207
    %8632 = vmatmul.bf16.gmra.mxu0 %v7267
    %v8633 = vpop.f32.mrf.mxu0
    %v8634 = vadd.f32 %v8621, %v8633
    %v8635 = vpop.f32.mrf.mxu0
    %8636 = vdwg.mxu0
    %8637 = vmatpush.bf16.msra.mxu0 %v8267
    %8638 = vmatpush.bf16.msra.mxu0 %v8263
    %8639 = vmatpush.bf16.msra.mxu0 %v8259
    %8640 = vmatpush.bf16.msra.mxu0 %v8255
    %8641 = vmatpush.bf16.msra.mxu0 %v8251
    %8642 = vmatpush.bf16.msra.mxu0 %v8247
    %8643 = vmatpush.bf16.msra.mxu0 %v8243
    %8644 = vmatpush.bf16.msra.mxu0 %v8239
    %8645 = vmatmul.bf16.gmra.mxu0 %v7268
    %v8646 = vpop.f32.mrf.mxu0
    %v8647 = vadd.f32 %v8634, %v8646
    %v8648 = vpop.f32.mrf.mxu0
    %8649 = vdwg.mxu0
    %8650 = vmatpush.bf16.msra.mxu0 %v8299
    %8651 = vmatpush.bf16.msra.mxu0 %v8295
    %8652 = vmatpush.bf16.msra.mxu0 %v8291
    %8653 = vmatpush.bf16.msra.mxu0 %v8287
    %8654 = vmatpush.bf16.msra.mxu0 %v8283
    %8655 = vmatpush.bf16.msra.mxu0 %v8279
    %8656 = vmatpush.bf16.msra.mxu0 %v8275
    %8657 = vmatpush.bf16.msra.mxu0 %v8271
    %8658 = vmatmul.bf16.gmra.mxu0 %v7269
    %v8659 = vpop.f32.mrf.mxu0
    %v8660 = vadd.f32 %v8647, %v8659
    %v8661 = vpop.f32.mrf.mxu0
    %8662 = vdwg.mxu0
    %8663 = vmatpush.bf16.msra.mxu0 %v8076
    %8664 = vmatpush.bf16.msra.mxu0 %v8072
    %8665 = vmatpush.bf16.msra.mxu0 %v8068
    %8666 = vmatpush.bf16.msra.mxu0 %v8064
    %8667 = vmatpush.bf16.msra.mxu0 %v8060
    %8668 = vmatpush.bf16.msra.mxu0 %v8056
    %8669 = vmatpush.bf16.msra.mxu0 %v8052
    %8670 = vmatpush.bf16.msra.mxu0 %v8048
    %8671 = vmatmul.bf16.gmra.mxu0 %v7262
    %v8672 = vpop.f32.mrf.mxu0
    %v8673 = vadd.f32 %v7272, %v8672
    %v8674 = vpop.f32.mrf.mxu0
    %8675 = vdwg.mxu0
    %8676 = vmatpush.bf16.msra.mxu0 %v8108
    %8677 = vmatpush.bf16.msra.mxu0 %v8104
    %8678 = vmatpush.bf16.msra.mxu0 %v8100
    %8679 = vmatpush.bf16.msra.mxu0 %v8096
    %8680 = vmatpush.bf16.msra.mxu0 %v8092
    %8681 = vmatpush.bf16.msra.mxu0 %v8088
    %8682 = vmatpush.bf16.msra.mxu0 %v8084
    %8683 = vmatpush.bf16.msra.mxu0 %v8080
    %8684 = vmatmul.bf16.gmra.mxu0 %v7263
    %v8685 = vpop.f32.mrf.mxu0
    %v8686 = vadd.f32 %v8673, %v8685
    %v8687 = vpop.f32.mrf.mxu0
    %8688 = vdwg.mxu0
    %8689 = vmatpush.bf16.msra.mxu0 %v8140
    %8690 = vmatpush.bf16.msra.mxu0 %v8136
    %8691 = vmatpush.bf16.msra.mxu0 %v8132
    %8692 = vmatpush.bf16.msra.mxu0 %v8128
    %8693 = vmatpush.bf16.msra.mxu0 %v8124
    %8694 = vmatpush.bf16.msra.mxu0 %v8120
    %8695 = vmatpush.bf16.msra.mxu0 %v8116
    %8696 = vmatpush.bf16.msra.mxu0 %v8112
    %8697 = vmatmul.bf16.gmra.mxu0 %v7264
    %v8698 = vpop.f32.mrf.mxu0
    %v8699 = vadd.f32 %v8686, %v8698
    %v8700 = vpop.f32.mrf.mxu0
    %8701 = vdwg.mxu0
    %8702 = vmatpush.bf16.msra.mxu0 %v8172
    %8703 = vmatpush.bf16.msra.mxu0 %v8168
    %8704 = vmatpush.bf16.msra.mxu0 %v8164
    %8705 = vmatpush.bf16.msra.mxu0 %v8160
    %8706 = vmatpush.bf16.msra.mxu0 %v8156
    %8707 = vmatpush.bf16.msra.mxu0 %v8152
    %8708 = vmatpush.bf16.msra.mxu0 %v8148
    %8709 = vmatpush.bf16.msra.mxu0 %v8144
    %8710 = vmatmul.bf16.gmra.mxu0 %v7265
    %v8711 = vpop.f32.mrf.mxu0
    %v8712 = vadd.f32 %v8699, %v8711
    %v8713 = vpop.f32.mrf.mxu0
    %8714 = vdwg.mxu0
    %8715 = vmatpush.bf16.msra.mxu0 %v8204
    %8716 = vmatpush.bf16.msra.mxu0 %v8200
    %8717 = vmatpush.bf16.msra.mxu0 %v8196
    %8718 = vmatpush.bf16.msra.mxu0 %v8192
    %8719 = vmatpush.bf16.msra.mxu0 %v8188
    %8720 = vmatpush.bf16.msra.mxu0 %v8184
    %8721 = vmatpush.bf16.msra.mxu0 %v8180
    %8722 = vmatpush.bf16.msra.mxu0 %v8176
    %8723 = vmatmul.bf16.gmra.mxu0 %v7266
    %v8724 = vpop.f32.mrf.mxu0
    %v8725 = vadd.f32 %v8712, %v8724
    %v8726 = vpop.f32.mrf.mxu0
    %8727 = vdwg.mxu0
    %8728 = vmatpush.bf16.msra.mxu0 %v8236
    %8729 = vmatpush.bf16.msra.mxu0 %v8232
    %8730 = vmatpush.bf16.msra.mxu0 %v8228
    %8731 = vmatpush.bf16.msra.mxu0 %v8224
    %8732 = vmatpush.bf16.msra.mxu0 %v8220
    %8733 = vmatpush.bf16.msra.mxu0 %v8216
    %8734 = vmatpush.bf16.msra.mxu0 %v8212
    %8735 = vmatpush.bf16.msra.mxu0 %v8208
    %8736 = vmatmul.bf16.gmra.mxu0 %v7267
    %v8737 = vpop.f32.mrf.mxu0
    %v8738 = vadd.f32 %v8725, %v8737
    %v8739 = vpop.f32.mrf.mxu0
    %8740 = vdwg.mxu0
    %8741 = vmatpush.bf16.msra.mxu0 %v8268
    %8742 = vmatpush.bf16.msra.mxu0 %v8264
    %8743 = vmatpush.bf16.msra.mxu0 %v8260
    %8744 = vmatpush.bf16.msra.mxu0 %v8256
    %8745 = vmatpush.bf16.msra.mxu0 %v8252
    %8746 = vmatpush.bf16.msra.mxu0 %v8248
    %8747 = vmatpush.bf16.msra.mxu0 %v8244
    %8748 = vmatpush.bf16.msra.mxu0 %v8240
    %8749 = vmatmul.bf16.gmra.mxu0 %v7268
    %v8750 = vpop.f32.mrf.mxu0
    %v8751 = vadd.f32 %v8738, %v8750
    %v8752 = vpop.f32.mrf.mxu0
    %8753 = vdwg.mxu0
    %8754 = vmatpush.bf16.msra.mxu0 %v8300
    %8755 = vmatpush.bf16.msra.mxu0 %v8296
    %8756 = vmatpush.bf16.msra.mxu0 %v8292
    %8757 = vmatpush.bf16.msra.mxu0 %v8288
    %8758 = vmatpush.bf16.msra.mxu0 %v8284
    %8759 = vmatpush.bf16.msra.mxu0 %v8280
    %8760 = vmatpush.bf16.msra.mxu0 %v8276
    %8761 = vmatpush.bf16.msra.mxu0 %v8272
    %8762 = vmatmul.bf16.gmra.mxu0 %v7269
    %v8763 = vpop.f32.mrf.mxu0
    %v8764 = vadd.f32 %v8751, %v8763
    %v8765 = vpop.f32.mrf.mxu0
    %8766 = vdwg.mxu0
    %8767 = vmatpush.bf16.msra.mxu0 %v8077
    %8768 = vmatpush.bf16.msra.mxu0 %v8073
    %8769 = vmatpush.bf16.msra.mxu0 %v8069
    %8770 = vmatpush.bf16.msra.mxu0 %v8065
    %8771 = vmatpush.bf16.msra.mxu0 %v8061
    %8772 = vmatpush.bf16.msra.mxu0 %v8057
    %8773 = vmatpush.bf16.msra.mxu0 %v8053
    %8774 = vmatpush.bf16.msra.mxu0 %v8049
    %8775 = vmatmul.bf16.gmra.mxu0 %v7262
    %v8776 = vpop.f32.mrf.mxu0
    %v8777 = vadd.f32 %v7273, %v8776
    %v8778 = vpop.f32.mrf.mxu0
    %8779 = vdwg.mxu0
    %8780 = vmatpush.bf16.msra.mxu0 %v8109
    %8781 = vmatpush.bf16.msra.mxu0 %v8105
    %8782 = vmatpush.bf16.msra.mxu0 %v8101
    %8783 = vmatpush.bf16.msra.mxu0 %v8097
    %8784 = vmatpush.bf16.msra.mxu0 %v8093
    %8785 = vmatpush.bf16.msra.mxu0 %v8089
    %8786 = vmatpush.bf16.msra.mxu0 %v8085
    %8787 = vmatpush.bf16.msra.mxu0 %v8081
    %8788 = vmatmul.bf16.gmra.mxu0 %v7263
    %v8789 = vpop.f32.mrf.mxu0
    %v8790 = vadd.f32 %v8777, %v8789
    %v8791 = vpop.f32.mrf.mxu0
    %8792 = vdwg.mxu0
    %8793 = vmatpush.bf16.msra.mxu0 %v8141
    %8794 = vmatpush.bf16.msra.mxu0 %v8137
    %8795 = vmatpush.bf16.msra.mxu0 %v8133
    %8796 = vmatpush.bf16.msra.mxu0 %v8129
    %8797 = vmatpush.bf16.msra.mxu0 %v8125
    %8798 = vmatpush.bf16.msra.mxu0 %v8121
    %8799 = vmatpush.bf16.msra.mxu0 %v8117
    %8800 = vmatpush.bf16.msra.mxu0 %v8113
    %8801 = vmatmul.bf16.gmra.mxu0 %v7264
    %v8802 = vpop.f32.mrf.mxu0
    %v8803 = vadd.f32 %v8790, %v8802
    %v8804 = vpop.f32.mrf.mxu0
    %8805 = vdwg.mxu0
    %8806 = vmatpush.bf16.msra.mxu0 %v8173
    %8807 = vmatpush.bf16.msra.mxu0 %v8169
    %8808 = vmatpush.bf16.msra.mxu0 %v8165
    %8809 = vmatpush.bf16.msra.mxu0 %v8161
    %8810 = vmatpush.bf16.msra.mxu0 %v8157
    %8811 = vmatpush.bf16.msra.mxu0 %v8153
    %8812 = vmatpush.bf16.msra.mxu0 %v8149
    %8813 = vmatpush.bf16.msra.mxu0 %v8145
    %8814 = vmatmul.bf16.gmra.mxu0 %v7265
    %v8815 = vpop.f32.mrf.mxu0
    %v8816 = vadd.f32 %v8803, %v8815
    %v8817 = vpop.f32.mrf.mxu0
    %8818 = vdwg.mxu0
    %8819 = vmatpush.bf16.msra.mxu0 %v8205
    %8820 = vmatpush.bf16.msra.mxu0 %v8201
    %8821 = vmatpush.bf16.msra.mxu0 %v8197
    %8822 = vmatpush.bf16.msra.mxu0 %v8193
    %8823 = vmatpush.bf16.msra.mxu0 %v8189
    %8824 = vmatpush.bf16.msra.mxu0 %v8185
    %8825 = vmatpush.bf16.msra.mxu0 %v8181
    %8826 = vmatpush.bf16.msra.mxu0 %v8177
    %8827 = vmatmul.bf16.gmra.mxu0 %v7266
    %v8828 = vpop.f32.mrf.mxu0
    %v8829 = vadd.f32 %v8816, %v8828
    %v8830 = vpop.f32.mrf.mxu0
    %8831 = vdwg.mxu0
    %8832 = vmatpush.bf16.msra.mxu0 %v8237
    %8833 = vmatpush.bf16.msra.mxu0 %v8233
    %8834 = vmatpush.bf16.msra.mxu0 %v8229
    %8835 = vmatpush.bf16.msra.mxu0 %v8225
    %8836 = vmatpush.bf16.msra.mxu0 %v8221
    %8837 = vmatpush.bf16.msra.mxu0 %v8217
    %8838 = vmatpush.bf16.msra.mxu0 %v8213
    %8839 = vmatpush.bf16.msra.mxu0 %v8209
    %8840 = vmatmul.bf16.gmra.mxu0 %v7267
    %v8841 = vpop.f32.mrf.mxu0
    %v8842 = vadd.f32 %v8829, %v8841
    %v8843 = vpop.f32.mrf.mxu0
    %8844 = vdwg.mxu0
    %8845 = vmatpush.bf16.msra.mxu0 %v8269
    %8846 = vmatpush.bf16.msra.mxu0 %v8265
    %8847 = vmatpush.bf16.msra.mxu0 %v8261
    %8848 = vmatpush.bf16.msra.mxu0 %v8257
    %8849 = vmatpush.bf16.msra.mxu0 %v8253
    %8850 = vmatpush.bf16.msra.mxu0 %v8249
    %8851 = vmatpush.bf16.msra.mxu0 %v8245
    %8852 = vmatpush.bf16.msra.mxu0 %v8241
    %8853 = vmatmul.bf16.gmra.mxu0 %v7268
    %v8854 = vpop.f32.mrf.mxu0
    %v8855 = vadd.f32 %v8842, %v8854
    %v8856 = vpop.f32.mrf.mxu0
    %8857 = vdwg.mxu0
    %8858 = vmatpush.bf16.msra.mxu0 %v8301
    %8859 = vmatpush.bf16.msra.mxu0 %v8297
    %8860 = vmatpush.bf16.msra.mxu0 %v8293
    %8861 = vmatpush.bf16.msra.mxu0 %v8289
    %8862 = vmatpush.bf16.msra.mxu0 %v8285
    %8863 = vmatpush.bf16.msra.mxu0 %v8281
    %8864 = vmatpush.bf16.msra.mxu0 %v8277
    %8865 = vmatpush.bf16.msra.mxu0 %v8273
    %8866 = vmatmul.bf16.gmra.mxu0 %v7269
    %v8867 = vpop.f32.mrf.mxu0
    %v8868 = vadd.f32 %v8855, %v8867
    %v8869 = vpop.f32.mrf.mxu0
    %8870 = vdwg.mxu0
    %8871 = vmatpush.bf16.msra.mxu0 %v8078
    %8872 = vmatpush.bf16.msra.mxu0 %v8074
    %8873 = vmatpush.bf16.msra.mxu0 %v8070
    %8874 = vmatpush.bf16.msra.mxu0 %v8066
    %8875 = vmatpush.bf16.msra.mxu0 %v8062
    %8876 = vmatpush.bf16.msra.mxu0 %v8058
    %8877 = vmatpush.bf16.msra.mxu0 %v8054
    %8878 = vmatpush.bf16.msra.mxu0 %v8050
    %8879 = vmatmul.bf16.gmra.mxu0 %v7262
    %v8880 = vpop.f32.mrf.mxu0
    %v8881 = vadd.f32 %v7274, %v8880
    %v8882 = vpop.f32.mrf.mxu0
    %8883 = vdwg.mxu0
    %8884 = vmatpush.bf16.msra.mxu0 %v8110
    %8885 = vmatpush.bf16.msra.mxu0 %v8106
    %8886 = vmatpush.bf16.msra.mxu0 %v8102
    %8887 = vmatpush.bf16.msra.mxu0 %v8098
    %8888 = vmatpush.bf16.msra.mxu0 %v8094
    %8889 = vmatpush.bf16.msra.mxu0 %v8090
    %8890 = vmatpush.bf16.msra.mxu0 %v8086
    %8891 = vmatpush.bf16.msra.mxu0 %v8082
    %8892 = vmatmul.bf16.gmra.mxu0 %v7263
    %v8893 = vpop.f32.mrf.mxu0
    %v8894 = vadd.f32 %v8881, %v8893
    %v8895 = vpop.f32.mrf.mxu0
    %8896 = vdwg.mxu0
    %8897 = vmatpush.bf16.msra.mxu0 %v8142
    %8898 = vmatpush.bf16.msra.mxu0 %v8138
    %8899 = vmatpush.bf16.msra.mxu0 %v8134
    %8900 = vmatpush.bf16.msra.mxu0 %v8130
    %8901 = vmatpush.bf16.msra.mxu0 %v8126
    %8902 = vmatpush.bf16.msra.mxu0 %v8122
    %8903 = vmatpush.bf16.msra.mxu0 %v8118
    %8904 = vmatpush.bf16.msra.mxu0 %v8114
    %8905 = vmatmul.bf16.gmra.mxu0 %v7264
    %v8906 = vpop.f32.mrf.mxu0
    %v8907 = vadd.f32 %v8894, %v8906
    %v8908 = vpop.f32.mrf.mxu0
    %8909 = vdwg.mxu0
    %8910 = vmatpush.bf16.msra.mxu0 %v8174
    %8911 = vmatpush.bf16.msra.mxu0 %v8170
    %8912 = vmatpush.bf16.msra.mxu0 %v8166
    %8913 = vmatpush.bf16.msra.mxu0 %v8162
    %8914 = vmatpush.bf16.msra.mxu0 %v8158
    %8915 = vmatpush.bf16.msra.mxu0 %v8154
    %8916 = vmatpush.bf16.msra.mxu0 %v8150
    %8917 = vmatpush.bf16.msra.mxu0 %v8146
    %8918 = vmatmul.bf16.gmra.mxu0 %v7265
    %v8919 = vpop.f32.mrf.mxu0
    %v8920 = vadd.f32 %v8907, %v8919
    %v8921 = vpop.f32.mrf.mxu0
    %8922 = vdwg.mxu0
    %8923 = vmatpush.bf16.msra.mxu0 %v8206
    %8924 = vmatpush.bf16.msra.mxu0 %v8202
    %8925 = vmatpush.bf16.msra.mxu0 %v8198
    %8926 = vmatpush.bf16.msra.mxu0 %v8194
    %8927 = vmatpush.bf16.msra.mxu0 %v8190
    %8928 = vmatpush.bf16.msra.mxu0 %v8186
    %8929 = vmatpush.bf16.msra.mxu0 %v8182
    %8930 = vmatpush.bf16.msra.mxu0 %v8178
    %8931 = vmatmul.bf16.gmra.mxu0 %v7266
    %v8932 = vpop.f32.mrf.mxu0
    %v8933 = vadd.f32 %v8920, %v8932
    %v8934 = vpop.f32.mrf.mxu0
    %8935 = vdwg.mxu0
    %8936 = vmatpush.bf16.msra.mxu0 %v8238
    %8937 = vmatpush.bf16.msra.mxu0 %v8234
    %8938 = vmatpush.bf16.msra.mxu0 %v8230
    %8939 = vmatpush.bf16.msra.mxu0 %v8226
    %8940 = vmatpush.bf16.msra.mxu0 %v8222
    %8941 = vmatpush.bf16.msra.mxu0 %v8218
    %8942 = vmatpush.bf16.msra.mxu0 %v8214
    %8943 = vmatpush.bf16.msra.mxu0 %v8210
    %8944 = vmatmul.bf16.gmra.mxu0 %v7267
    %v8945 = vpop.f32.mrf.mxu0
    %v8946 = vadd.f32 %v8933, %v8945
    %v8947 = vpop.f32.mrf.mxu0
    %8948 = vdwg.mxu0
    %8949 = vmatpush.bf16.msra.mxu0 %v8270
    %8950 = vmatpush.bf16.msra.mxu0 %v8266
    %8951 = vmatpush.bf16.msra.mxu0 %v8262
    %8952 = vmatpush.bf16.msra.mxu0 %v8258
    %8953 = vmatpush.bf16.msra.mxu0 %v8254
    %8954 = vmatpush.bf16.msra.mxu0 %v8250
    %8955 = vmatpush.bf16.msra.mxu0 %v8246
    %8956 = vmatpush.bf16.msra.mxu0 %v8242
    %8957 = vmatmul.bf16.gmra.mxu0 %v7268
    %v8958 = vpop.f32.mrf.mxu0
    %v8959 = vadd.f32 %v8946, %v8958
    %v8960 = vpop.f32.mrf.mxu0
    %8961 = vdwg.mxu0
    %8962 = vmatpush.bf16.msra.mxu0 %v8302
    %8963 = vmatpush.bf16.msra.mxu0 %v8298
    %8964 = vmatpush.bf16.msra.mxu0 %v8294
    %8965 = vmatpush.bf16.msra.mxu0 %v8290
    %8966 = vmatpush.bf16.msra.mxu0 %v8286
    %8967 = vmatpush.bf16.msra.mxu0 %v8282
    %8968 = vmatpush.bf16.msra.mxu0 %v8278
    %8969 = vmatpush.bf16.msra.mxu0 %v8274
    %8970 = vmatmul.bf16.gmra.mxu0 %v7269
    %v8971 = vpop.f32.mrf.mxu0
    %v8972 = vadd.f32 %v8959, %v8971
    %v8973 = vpop.f32.mrf.mxu0
    %8974 = vdwg.mxu0
    %v8975 = vmax.f32 %v8660, 0.0
    %v8976 = vmax.f32 %v8764, 0.0
    %v8977 = vmax.f32 %v8868, 0.0
    %v8978 = vmax.f32 %v8972, 0.0
    %v8979 = vld [vmem:[%s14] sm:$0xf]
    %v8980 = vld [vmem:[%s14 + $0x4] sm:$0xf]
    %v8981 = vld [vmem:[%s14 + $0x8] sm:$0xf]
    %v8982 = vld [vmem:[%s14 + $0xc] sm:$0xf]
    %v8983 = vld [vmem:[%s14 + $0x10] sm:$0xf]
    %v8984 = vld [vmem:[%s14 + $0x14] sm:$0xf]
    %v8985 = vld [vmem:[%s14 + $0x18] sm:$0xf]
    %v8986 = vld [vmem:[%s14 + $0x1c] sm:$0xf]
    %v8987 = vld [vmem:[%s14 + $0x20] sm:$0xf]
    %v8988 = vld [vmem:[%s14 + $0x24] sm:$0xf]
    %v8989 = vld [vmem:[%s14 + $0x28] sm:$0xf]
    %v8990 = vld [vmem:[%s14 + $0x2c] sm:$0xf]
    %v8991 = vld [vmem:[%s14 + $0x30] sm:$0xf]
    %v8992 = vld [vmem:[%s14 + $0x34] sm:$0xf]
    %v8993 = vld [vmem:[%s14 + $0x38] sm:$0xf]
    %v8994 = vld [vmem:[%s14 + $0x3c] sm:$0xf]
    %v8995 = vld [vmem:[%s14 + $0x40] sm:$0xf]
    %v8996 = vld [vmem:[%s14 + $0x44] sm:$0xf]
    %v8997 = vld [vmem:[%s14 + $0x48] sm:$0xf]
    %v8998 = vld [vmem:[%s14 + $0x4c] sm:$0xf]
    %v8999 = vld [vmem:[%s14 + $0x50] sm:$0xf]
    %v9000 = vld [vmem:[%s14 + $0x54] sm:$0xf]
    %v9001 = vld [vmem:[%s14 + $0x58] sm:$0xf]
    %v9002 = vld [vmem:[%s14 + $0x5c] sm:$0xf]
    %v9003 = vld [vmem:[%s14 + $0x60] sm:$0xf]
    %v9004 = vld [vmem:[%s14 + $0x64] sm:$0xf]
    %v9005 = vld [vmem:[%s14 + $0x68] sm:$0xf]
    %v9006 = vld [vmem:[%s14 + $0x6c] sm:$0xf]
    %v9007 = vld [vmem:[%s14 + $0x70] sm:$0xf]
    %v9008 = vld [vmem:[%s14 + $0x74] sm:$0xf]
    %v9009 = vld [vmem:[%s14 + $0x78] sm:$0xf]
    %v9010 = vld [vmem:[%s14 + $0x7c] sm:$0xf]
    %v9011 = vld [vmem:[%s14 + $0x80] sm:$0xf]
    %v9012 = vld [vmem:[%s14 + $0x84] sm:$0xf]
    %v9013 = vld [vmem:[%s14 + $0x88] sm:$0xf]
    %v9014 = vld [vmem:[%s14 + $0x8c] sm:$0xf]
    %v9015 = vld [vmem:[%s14 + $0x90] sm:$0xf]
    %v9016 = vld [vmem:[%s14 + $0x94] sm:$0xf]
    %v9017 = vld [vmem:[%s14 + $0x98] sm:$0xf]
    %v9018 = vld [vmem:[%s14 + $0x9c] sm:$0xf]
    %v9019 = vld [vmem:[%s14 + $0xa0] sm:$0xf]
    %v9020 = vld [vmem:[%s14 + $0xa4] sm:$0xf]
    %v9021 = vld [vmem:[%s14 + $0xa8] sm:$0xf]
    %v9022 = vld [vmem:[%s14 + $0xac] sm:$0xf]
    %v9023 = vld [vmem:[%s14 + $0xb0] sm:$0xf]
    %v9024 = vld [vmem:[%s14 + $0xb4] sm:$0xf]
    %v9025 = vld [vmem:[%s14 + $0xb8] sm:$0xf]
    %v9026 = vld [vmem:[%s14 + $0xbc] sm:$0xf]
    %v9027 = vld [vmem:[%s14 + $0xc0] sm:$0xf]
    %v9028 = vld [vmem:[%s14 + $0xc4] sm:$0xf]
    %v9029 = vld [vmem:[%s14 + $0xc8] sm:$0xf]
    %v9030 = vld [vmem:[%s14 + $0xcc] sm:$0xf]
    %v9031 = vld [vmem:[%s14 + $0xd0] sm:$0xf]
    %v9032 = vld [vmem:[%s14 + $0xd4] sm:$0xf]
    %v9033 = vld [vmem:[%s14 + $0xd8] sm:$0xf]
    %v9034 = vld [vmem:[%s14 + $0xdc] sm:$0xf]
    %v9035 = vld [vmem:[%s14 + $0xe0] sm:$0xf]
    %v9036 = vld [vmem:[%s14 + $0xe4] sm:$0xf]
    %v9037 = vld [vmem:[%s14 + $0xe8] sm:$0xf]
    %v9038 = vld [vmem:[%s14 + $0xec] sm:$0xf]
    %v9039 = vld [vmem:[%s14 + $0xf0] sm:$0xf]
    %v9040 = vld [vmem:[%s14 + $0xf4] sm:$0xf]
    %v9041 = vld [vmem:[%s14 + $0xf8] sm:$0xf]
    %v9042 = vld [vmem:[%s14 + $0xfc] sm:$0xf]
    %v9043 = vld [vmem:[#allocation5] sm:$0x1]
    %v9044 = vpack.c.bf16 %v8975, %v8975
    %v9045 = vpack.c.bf16 %v8976, %v8976
    %v9046 = vpack.c.bf16 %v8977, %v8977
    %v9047 = vpack.c.bf16 %v8978, %v8978
    %v9049 = vperm.slane %v9043, 0
    %v9115 = vunpack.c.l.b16 %v8979
    %v9116 = vunpack.c.l.b16 %v8980
    %v9117 = vunpack.c.l.b16 %v8981
    %v9118 = vunpack.c.l.b16 %v8982
    %v9119 = vunpack.c.l.b16 %v8983
    %v9120 = vunpack.c.l.b16 %v8984
    %v9121 = vunpack.c.l.b16 %v8985
    %v9122 = vunpack.c.l.b16 %v8986
    %v9123 = vunpack.c.l.b16 %v8987
    %v9124 = vunpack.c.l.b16 %v8988
    %v9125 = vunpack.c.l.b16 %v8989
    %v9126 = vunpack.c.l.b16 %v8990
    %v9127 = vunpack.c.l.b16 %v8991
    %v9128 = vunpack.c.l.b16 %v8992
    %v9129 = vunpack.c.l.b16 %v8993
    %v9130 = vunpack.c.l.b16 %v8994
    %v9131 = vunpack.c.l.b16 %v8995
    %v9132 = vunpack.c.l.b16 %v8996
    %v9133 = vunpack.c.l.b16 %v8997
    %v9134 = vunpack.c.l.b16 %v8998
    %v9135 = vunpack.c.l.b16 %v8999
    %v9136 = vunpack.c.l.b16 %v9000
    %v9137 = vunpack.c.l.b16 %v9001
    %v9138 = vunpack.c.l.b16 %v9002
    %v9139 = vunpack.c.l.b16 %v9003
    %v9140 = vunpack.c.l.b16 %v9004
    %v9141 = vunpack.c.l.b16 %v9005
    %v9142 = vunpack.c.l.b16 %v9006
    %v9143 = vunpack.c.l.b16 %v9007
    %v9144 = vunpack.c.l.b16 %v9008
    %v9145 = vunpack.c.l.b16 %v9009
    %v9146 = vunpack.c.l.b16 %v9010
    %v9147 = vunpack.c.l.b16 %v9011
    %v9148 = vunpack.c.l.b16 %v9012
    %v9149 = vunpack.c.l.b16 %v9013
    %v9150 = vunpack.c.l.b16 %v9014
    %v9151 = vunpack.c.l.b16 %v9015
    %v9152 = vunpack.c.l.b16 %v9016
    %v9153 = vunpack.c.l.b16 %v9017
    %v9154 = vunpack.c.l.b16 %v9018
    %v9155 = vunpack.c.l.b16 %v9019
    %v9156 = vunpack.c.l.b16 %v9020
    %v9157 = vunpack.c.l.b16 %v9021
    %v9158 = vunpack.c.l.b16 %v9022
    %v9159 = vunpack.c.l.b16 %v9023
    %v9160 = vunpack.c.l.b16 %v9024
    %v9161 = vunpack.c.l.b16 %v9025
    %v9162 = vunpack.c.l.b16 %v9026
    %v9163 = vunpack.c.l.b16 %v9027
    %v9164 = vunpack.c.l.b16 %v9028
    %v9165 = vunpack.c.l.b16 %v9029
    %v9166 = vunpack.c.l.b16 %v9030
    %v9167 = vunpack.c.l.b16 %v9031
    %v9168 = vunpack.c.l.b16 %v9032
    %v9169 = vunpack.c.l.b16 %v9033
    %v9170 = vunpack.c.l.b16 %v9034
    %v9171 = vunpack.c.l.b16 %v9035
    %v9172 = vunpack.c.l.b16 %v9036
    %v9173 = vunpack.c.l.b16 %v9037
    %v9174 = vunpack.c.l.b16 %v9038
    %v9175 = vunpack.c.l.b16 %v9039
    %v9176 = vunpack.c.l.b16 %v9040
    %v9177 = vunpack.c.l.b16 %v9041
    %v9178 = vunpack.c.l.b16 %v9042
    %v9179 = vpack.c.b16 %v9116, %v9115
    %v9180 = vpack.c.b16 %v9118, %v9117
    %v9181 = vpack.c.b16 %v9120, %v9119
    %v9182 = vpack.c.b16 %v9122, %v9121
    %v9183 = vpack.c.b16 %v9124, %v9123
    %v9184 = vpack.c.b16 %v9126, %v9125
    %v9185 = vpack.c.b16 %v9128, %v9127
    %v9186 = vpack.c.b16 %v9130, %v9129
    %v9187 = vpack.c.b16 %v9132, %v9131
    %v9188 = vpack.c.b16 %v9134, %v9133
    %v9189 = vpack.c.b16 %v9136, %v9135
    %v9190 = vpack.c.b16 %v9138, %v9137
    %v9191 = vpack.c.b16 %v9140, %v9139
    %v9192 = vpack.c.b16 %v9142, %v9141
    %v9193 = vpack.c.b16 %v9144, %v9143
    %v9194 = vpack.c.b16 %v9146, %v9145
    %v9195 = vpack.c.b16 %v9148, %v9147
    %v9196 = vpack.c.b16 %v9150, %v9149
    %v9197 = vpack.c.b16 %v9152, %v9151
    %v9198 = vpack.c.b16 %v9154, %v9153
    %v9199 = vpack.c.b16 %v9156, %v9155
    %v9200 = vpack.c.b16 %v9158, %v9157
    %v9201 = vpack.c.b16 %v9160, %v9159
    %v9202 = vpack.c.b16 %v9162, %v9161
    %v9203 = vpack.c.b16 %v9164, %v9163
    %v9204 = vpack.c.b16 %v9166, %v9165
    %v9205 = vpack.c.b16 %v9168, %v9167
    %v9206 = vpack.c.b16 %v9170, %v9169
    %v9207 = vpack.c.b16 %v9172, %v9171
    %v9208 = vpack.c.b16 %v9174, %v9173
    %v9209 = vpack.c.b16 %v9176, %v9175
    %v9210 = vpack.c.b16 %v9178, %v9177
    %9243 = vmatpush.bf16.msra.mxu0 %v9186
    %9244 = vmatpush.bf16.msra.mxu0 %v9185
    %9245 = vmatpush.bf16.msra.mxu0 %v9184
    %9246 = vmatpush.bf16.msra.mxu0 %v9183
    %9247 = vmatpush.bf16.msra.mxu0 %v9182
    %9248 = vmatpush.bf16.msra.mxu0 %v9181
    %9249 = vmatpush.bf16.msra.mxu0 %v9180
    %9250 = vmatpush.bf16.msra.mxu0 %v9179
    %9251 = vmatmul.bf16.gmra.mxu0 %v9044
    %v9252 = vpop.f32.mrf.mxu0
    %v9253 = vadd.f32 %v9049, %v9252
    %v9254 = vpop.f32.mrf.mxu0
    %9255 = vdwg.mxu0
    %9256 = vmatpush.bf16.msra.mxu0 %v9194
    %9257 = vmatpush.bf16.msra.mxu0 %v9193
    %9258 = vmatpush.bf16.msra.mxu0 %v9192
    %9259 = vmatpush.bf16.msra.mxu0 %v9191
    %9260 = vmatpush.bf16.msra.mxu0 %v9190
    %9261 = vmatpush.bf16.msra.mxu0 %v9189
    %9262 = vmatpush.bf16.msra.mxu0 %v9188
    %9263 = vmatpush.bf16.msra.mxu0 %v9187
    %9264 = vmatmul.bf16.gmra.mxu0 %v9045
    %v9265 = vpop.f32.mrf.mxu0
    %v9266 = vadd.f32 %v9253, %v9265
    %v9267 = vpop.f32.mrf.mxu0
    %9268 = vdwg.mxu0
    %9269 = vmatpush.bf16.msra.mxu0 %v9202
    %9270 = vmatpush.bf16.msra.mxu0 %v9201
    %9271 = vmatpush.bf16.msra.mxu0 %v9200
    %9272 = vmatpush.bf16.msra.mxu0 %v9199
    %9273 = vmatpush.bf16.msra.mxu0 %v9198
    %9274 = vmatpush.bf16.msra.mxu0 %v9197
    %9275 = vmatpush.bf16.msra.mxu0 %v9196
    %9276 = vmatpush.bf16.msra.mxu0 %v9195
    %9277 = vmatmul.bf16.gmra.mxu0 %v9046
    %v9278 = vpop.f32.mrf.mxu0
    %v9279 = vadd.f32 %v9266, %v9278
    %v9280 = vpop.f32.mrf.mxu0
    %9281 = vdwg.mxu0
    %9282 = vmatpush.bf16.msra.mxu0 %v9210
    %9283 = vmatpush.bf16.msra.mxu0 %v9209
    %9284 = vmatpush.bf16.msra.mxu0 %v9208
    %9285 = vmatpush.bf16.msra.mxu0 %v9207
    %9286 = vmatpush.bf16.msra.mxu0 %v9206
    %9287 = vmatpush.bf16.msra.mxu0 %v9205
    %9288 = vmatpush.bf16.msra.mxu0 %v9204
    %9289 = vmatpush.bf16.msra.mxu0 %v9203
    %9290 = vmatmul.bf16.gmra.mxu0 %v9047
    %v9291 = vpop.f32.mrf.mxu0
    %v9292 = vadd.f32 %v9279, %v9291
    %v9293 = vpop.f32.mrf.mxu0
    %9294 = vdwg.mxu0
    %v9295 = vmax.f32 %v9292, 0.0
    %vm9296 = vcmask 1024
    %9297 = vst.msk [vmem:[%s16] sm:$0x3] %vm9296, %v9295
    // Predicated region
    $region110: #{net_forward.1} parent=1 // pred_check
      _
    $region111: #{net_forward.1} parent=1 // pred_check_branch
      %9299 = sbr.rel (0) target = $region113
    $region112: #{net_forward.1} parent=1 // pred_region
      _
    $region113: #{net_forward.1} parent=1 // pred_fallthru
      _
    // Predicated region
    $region114: #{net_forward.1} parent=1 // pred_check
      _
    $region115: #{net_forward.1} parent=1 // pred_check_branch
      %9301 = sbr.rel (0) target = $region117
    $region116: #{net_forward.1} parent=1 // pred_region
      _
    $region117: #{net_forward.1} parent=1 // pred_fallthru
      _
    %9302 = vsyncpa [#allocation7], 1
    %9303 = vsyncpa [#allocation9], 1
    %9304 = vsyncpa [#allocation12], 1
    %9305 = vsyncpa [#allocation15], 1
    %9306 = vsyncpa [#allocation18], 1
    %9307 = vsyncpa [#allocation21], 1
  %9308 = vsyncmov [#allocation4]
  %s9309 = vpop.sfrf %9308
  %p9310 = scmp.eq.s32.totalorder %s9309, 0
  %p9311 = pneg %p9310
  %9313 = shalt.err (%p9311)
  %s9314 = scalar_lea.sflag [#allocation4], 1
  %9315 = vsyncmov %s9314
  %s9316 = vpop.sfrf %9315
  %p9317 = scmp.eq.s32.totalorder %s9316, 0
  %p9318 = pneg %p9317
  %9320 = shalt.err (%p9318)

</llo_original>
